<compile_context>
chip_gen: v7x
topology: tpu7x:2x2x1
jax: 0.10.0
libtpu: 0.0.40
codegen_flags: <defaults>
</compile_context>

<pallas_src>
import functools

import jax
import jax.numpy as jnp
from jax.experimental import pallas as pl
from jax.experimental.pallas import tpu as pltpu


# ------------------------------ helpers -------------------------------------

def _round_up(x, m):
    return ((x + m - 1) // m) * m


def _mish_f32(y):
    # mish(y) = y * tanh(softplus(y)), evaluated with one exp and one divide:
    #   e = exp(-|y|);  tanh(softplus(y)) = ((1+e)^2 - b) / ((1+e)^2 + b)
    #   with b = e^2 if y >= 0 else 1.   (numerically stable for all y)
    e = jnp.exp(-jnp.abs(y))
    a = (1.0 + e) * (1.0 + e)
    b = jnp.where(y >= 0, e * e, 1.0)
    return y * (a - b) / (a + b)


def _tile_bytes(tile_h, w, cin_p, cout_p, itemsize):
    xbuf = (tile_h + 2) * (w + 2) * cin_p * itemsize          # haloed input slab
    xc = 3 * (tile_h + 2) * w * cin_p * itemsize              # dx-concat patch
    acc = tile_h * w * cout_p * 4                             # f32 accumulator
    ybuf = tile_h * w * cout_p * itemsize                     # writeback staging
    outb = 2 * tile_h * w * cout_p * 4                        # double-buffered out
    wts = 2 * 9 * cin_p * cout_p * itemsize                   # resident weights (2 bufs)
    return xbuf + xc + acc + ybuf + outb + wts


def _pick_tile_h(h, w, cin_p, cout_p, itemsize):
    """Largest divisor of H whose per-step footprint fits a per-gen VMEM budget."""
    try:
        cap = int(pltpu.get_tpu_info().vmem_capacity_bytes)
    except Exception:
        cap = 64 * 1024 * 1024          # conservative (v7x physical VMEM)
    budget = max(min(cap // 8, 10 * 1024 * 1024), 2 * 1024 * 1024)
    for t in range(h, 0, -1):
        if h % t == 0 and _tile_bytes(t, w, cin_p, cout_p, itemsize) <= budget:
            return t
    return 1


# ----------------------------- Pallas kernels ------------------------------

def _conv_stats_kernel(x_hbm, w_ref, b_ref, scale_ref, shift_ref,
                       y_ref, stats_ref,
                       xbuf, ybuf, sem, acc_ref,
                       *, apply_act, pad_out, img_h, img_w, tile_h):
    """One spatial tile of: [optional BN-apply+Mish] -> 3x3 conv -> partial BN stats.

    x_hbm    : (N, H+2, W+2, Cin_p) spatially padded input, HBM-resident (pl.ANY)
    w_ref    : (3, 3*Cin_p, Cout_p) weights, dx folded onto the K axis
    b_ref    : (1, Cout_p)
    scale_ref/shift_ref: (1, Cin_p)  per-input-channel BN affine (apply_act only)
    y_ref    : pad_out=False -> (1, tile_h, W, Cout_p) VMEM block (pre-BN conv out)
               pad_out=True  -> (N, H+2, W+2, Cout_p) HBM ref; tile DMA'd into the
                                interior so the next conv reads it with its halo.
    stats_ref: (1, 1, 2, Cout_p)   [sum, sum of squares] of this tile
    xbuf     : VMEM (tile_h+2, W+2, Cin_p) halo slab
    ybuf     : VMEM (tile_h, W, Cout_p) writeback staging (pad_out only)
    acc_ref  : VMEM (tile_h*W, Cout_p) f32 accumulator
    """
    n = pl.program_id(0)
    h = pl.program_id(1)

    # Manual halo DMA: rows [h*tile_h, h*tile_h + tile_h + 2) of the padded input.
    row0 = pl.multiple_of(h * tile_h, tile_h)
    in_cp = pltpu.make_async_copy(x_hbm.at[n, pl.ds(row0, tile_h + 2)], xbuf,
                                  sem.at[0])
    in_cp.start()
    in_cp.wait()

    slab = xbuf[...].astype(jnp.float32)                # (tile_h+2, W+2, Cin_p)

    if apply_act:
        # Fused BN(prev layer)-apply + Mish on the haloed slab, then zero every
        # position outside the valid image (== the conv's zero padding).  This
        # also neutralizes the never-written garbage border of a pad_out input.
        y = slab * scale_ref[0] + shift_ref[0]
        act = _mish_f32(y)
        rows = jax.lax.broadcasted_iota(jnp.int32, act.shape, 0) + h * tile_h
        cols = jax.lax.broadcasted_iota(jnp.int32, act.shape, 1)
        valid = (rows >= 1) & (rows <= img_h) & (cols >= 1) & (cols <= img_w)
        slab = jnp.where(valid, act, 0.0)

    slab = slab.astype(w_ref.dtype)

    # Fold the 3 dx taps onto the contraction axis: (tile_h+2, W, 3*Cin_p).
    xc = jnp.concatenate(
        [slab[:, 0:img_w, :], slab[:, 1:img_w + 1, :], slab[:, 2:img_w + 2, :]],
        axis=-1)

    m = tile_h * img_w
    k3 = w_ref.shape[1]
    # 3 MXU matmuls with K = 3*Cin_p (dy offsets are free outer-dim slices).
    acc_ref[...] = jnp.dot(xc[0:tile_h].reshape(m, k3), w_ref[0],
                           preferred_element_type=jnp.float32)
    acc_ref[...] += jnp.dot(xc[1:tile_h + 1].reshape(m, k3), w_ref[1],
                            preferred_element_type=jnp.float32)
    acc_ref[...] += jnp.dot(xc[2:tile_h + 2].reshape(m, k3), w_ref[2],
                            preferred_element_type=jnp.float32)

    out = acc_ref[...] + b_ref[0]
    cout_p = w_ref.shape[2]

    if pad_out:
        # Write this tile into the interior of the spatially padded HBM buffer.
        ybuf[...] = out.reshape(tile_h, img_w, cout_p).astype(ybuf.dtype)
        out_cp = pltpu.make_async_copy(
            ybuf,
            y_ref.at[n, pl.ds(row0 + 1, tile_h), pl.ds(1, img_w)],
            sem.at[1])
        out_cp.start()
    else:
        y_ref[...] = out.reshape(1, tile_h, img_w, cout_p).astype(y_ref.dtype)

    # Per-tile partial BN stats (overlaps the writeback DMA when pad_out).
    s = jnp.sum(out, axis=0, keepdims=True)
    ss = jnp.sum(out * out, axis=0, keepdims=True)
    stats_ref[0, 0] = jnp.concatenate([s, ss], axis=0)

    if pad_out:
        out_cp.wait()


def _bn_mish_apply_kernel(x_ref, scale_ref, shift_ref, o_ref):
    """y = mish(x * scale + shift) on one (1, tile_h, W, C_p) tile."""
    y = x_ref[...].astype(jnp.float32) * scale_ref[0] + shift_ref[0]
    o_ref[...] = _mish_f32(y).astype(o_ref.dtype)


# ------------------------------- wrappers -----------------------------------

def _conv_bn_stats(x_padded, w_r, bias, scale_in, shift_in, *,
                   apply_act, pad_out, img_h, img_w, tile_h, out_dtype):
    n = x_padded.shape[0]
    cin_p = x_padded.shape[-1]
    cout_p = w_r.shape[-1]
    n_h = img_h // tile_h

    kern = functools.partial(_conv_stats_kernel, apply_act=apply_act,
                             pad_out=pad_out, img_h=img_h, img_w=img_w,
                             tile_h=tile_h)

    if pad_out:
        y_shape = jax.ShapeDtypeStruct((n, img_h + 2, img_w + 2, cout_p), out_dtype)
        y_spec = pl.BlockSpec(memory_space=pl.ANY)
    else:
        y_shape = jax.ShapeDtypeStruct((n, img_h, img_w, cout_p), out_dtype)
        y_spec = pl.BlockSpec((1, tile_h, img_w, cout_p), lambda i, j: (i, j, 0, 0))

    return pl.pallas_call(
        kern,
        out_shape=(
            y_shape,
            jax.ShapeDtypeStruct((n, n_h, 2, cout_p), jnp.float32),
        ),
        grid_spec=pltpu.PrefetchScalarGridSpec(
            num_scalar_prefetch=0,
            grid=(n, n_h),
            in_specs=[
                pl.BlockSpec(memory_space=pl.ANY),                  # input stays in HBM
                pl.BlockSpec((3, 3 * cin_p, cout_p), lambda i, j: (0, 0, 0)),
                pl.BlockSpec((1, cout_p), lambda i, j: (0, 0)),
                pl.BlockSpec((1, cin_p), lambda i, j: (0, 0)),
                pl.BlockSpec((1, cin_p), lambda i, j: (0, 0)),
            ],
            out_specs=[
                y_spec,
                pl.BlockSpec((1, 1, 2, cout_p), lambda i, j: (i, j, 0, 0)),
            ],
            scratch_shapes=[
                pltpu.VMEM((tile_h + 2, img_w + 2, cin_p), x_padded.dtype),
                pltpu.VMEM((tile_h, img_w, cout_p), out_dtype),
                pltpu.SemaphoreType.DMA((2,)),
                pltpu.VMEM((tile_h * img_w, cout_p), jnp.float32),
            ],
        ),
        compiler_params=pltpu.CompilerParams(
            dimension_semantics=("parallel", "parallel"),
            vmem_limit_bytes=32 * 1024 * 1024,
        ),
    )(x_padded, w_r, bias, scale_in, shift_in)


def _bn_mish_apply(x, scale, shift, *, tile_h):
    n, h, w, cp = x.shape
    n_h = h // tile_h
    return pl.pallas_call(
        _bn_mish_apply_kernel,
        out_shape=jax.ShapeDtypeStruct((n, h, w, cp), jnp.float32),
        grid_spec=pltpu.PrefetchScalarGridSpec(
            num_scalar_prefetch=0,
            grid=(n, n_h),
            in_specs=[
                pl.BlockSpec((1, tile_h, w, cp), lambda i, j: (i, j, 0, 0)),
                pl.BlockSpec((1, cp), lambda i, j: (0, 0)),
                pl.BlockSpec((1, cp), lambda i, j: (0, 0)),
            ],
            out_specs=pl.BlockSpec((1, tile_h, w, cp), lambda i, j: (i, j, 0, 0)),
        ),
        compiler_params=pltpu.CompilerParams(
            dimension_semantics=("parallel", "parallel"),
            vmem_limit_bytes=32 * 1024 * 1024,
        ),
    )(x, scale, shift)


def _bn_affine(stats, gamma_p, beta_p, count, eps=1e-5):
    """Fold batch stats + (gamma, beta) into per-channel scale/shift (train-mode BN)."""
    tot = jnp.sum(stats.astype(jnp.float32), axis=(0, 1))     # (2, C_p)
    mean = tot[0] / count
    var = jnp.maximum(tot[1] / count - mean * mean, 0.0)      # biased variance
    inv = jax.lax.rsqrt(var + eps)
    scale = gamma_p * inv
    shift = beta_p - mean * scale
    cp = gamma_p.shape[0]
    return scale.reshape(1, cp), shift.reshape(1, cp)


def _prep_conv_params(w, b, cin_p, cout_p, compute_dtype):
    """(3,3,Cin,Cout) -> (3, 3*Cin_p, Cout_p) with dx folded onto K; bias -> (1,Cout_p)."""
    _, _, cin, cout = w.shape
    w_p = jnp.pad(w, ((0, 0), (0, 0), (0, cin_p - cin), (0, cout_p - cout)))
    w_r = w_p.reshape(3, 3 * cin_p, cout_p).astype(compute_dtype)
    b_p = jnp.pad(b, (0, cout_p - cout)).reshape(1, cout_p).astype(jnp.float32)
    return w_r, b_p


@functools.partial(jax.jit, static_argnames=("tile_h", "compute_dtype"))
def double_conv(x_nchw, params, tile_h=None, compute_dtype=jnp.float32):
    """DoubleConv forward. x_nchw: (N, Cin, H, W) -> (N, Cout, H, W).

    compute_dtype=jnp.bfloat16 feeds bf16 operands to the MXU on v6e/v7x
    (BN stats, accumulation and Mish stay f32); the self-test uses f32.
    """
    n, cin, h, w = x_nchw.shape
    cmid = params["w1"].shape[-1]
    cout = params["w2"].shape[-1]

    cin_p = _round_up(cin, 128)
    cmid_p = _round_up(cmid, 128)
    cout_p = _round_up(cout, 128)

    itemsize = jnp.dtype(compute_dtype).itemsize
    if tile_h is None:
        tile_h = _pick_tile_h(h, w, max(cin_p, cmid_p), max(cmid_p, cout_p), itemsize)
    assert h % tile_h == 0, "tile_h must divide H"

    # NCHW -> NHWC (channels on the 128-lane axis).
    x = jnp.transpose(x_nchw, (0, 2, 3, 1))

    # Spatial pad == the first conv's own zero padding; channel pad -> lane-dense.
    x_p = jnp.pad(x, ((0, 0), (1, 1), (1, 1), (0, cin_p - cin))).astype(compute_dtype)

    w1_r, b1_p = _prep_conv_params(params["w1"], params["b1"], cin_p, cmid_p, compute_dtype)
    w2_r, b2_p = _prep_conv_params(params["w2"], params["b2"], cmid_p, cout_p, compute_dtype)
    g1_p = jnp.pad(params["gamma1"], (0, cmid_p - cmid))
    be1_p = jnp.pad(params["beta1"], (0, cmid_p - cmid))
    g2_p = jnp.pad(params["gamma2"], (0, cout_p - cout))
    be2_p = jnp.pad(params["beta2"], (0, cout_p - cout))

    count = n * h * w
    one_in = jnp.ones((1, cin_p), jnp.float32)
    zero_in = jnp.zeros((1, cin_p), jnp.float32)

    # call 1: conv1 + per-tile BN1 partial stats.  The output is written
    # directly into a spatially padded HBM buffer (border never written; call 2
    # masks it), eliminating a separate jnp.pad HBM round trip.
    y1_p, st1 = _conv_bn_stats(x_p, w1_r, b1_p, one_in, zero_in,
                               apply_act=False, pad_out=True,
                               img_h=h, img_w=w, tile_h=tile_h,
                               out_dtype=compute_dtype)
    scale1, shift1 = _bn_affine(st1, g1_p, be1_p, count)

    # call 2: fused BN1-apply + Mish (border-masked) + conv2 + BN2 partial stats
    y2, st2 = _conv_bn_stats(y1_p, w2_r, b2_p, scale1, shift1,
                             apply_act=True, pad_out=False,
                             img_h=h, img_w=w, tile_h=tile_h,
                             out_dtype=jnp.float32)
    scale2, shift2 = _bn_affine(st2, g2_p, be2_p, count)

    # call 3: BN2-apply + Mish
    out = _bn_mish_apply(y2, scale2, shift2, tile_h=tile_h)

    out = out[..., :cout]
    return jnp.transpose(out, (0, 3, 1, 2))  # NHWC -> NCHW


def init_params(key, in_channels, out_channels, mid_channels=None):
    if not mid_channels:
        mid_channels = out_channels
    k1, k2, k3, k4 = jax.random.split(key, 4)
    fan1 = in_channels * 9
    fan2 = mid_channels * 9
    return {
        "w1": jax.random.uniform(k1, (3, 3, in_channels, mid_channels),
                                 jnp.float32, -1.0, 1.0) / jnp.sqrt(fan1),
        "b1": jax.random.uniform(k2, (mid_channels,), jnp.float32,
                                 -1.0, 1.0) / jnp.sqrt(fan1),
        "gamma1": jnp.ones((mid_channels,), jnp.float32),
        "beta1": jnp.zeros((mid_channels,), jnp.float32),
        "w2": jax.random.uniform(k3, (3, 3, mid_channels, out_channels),
                                 jnp.float32, -1.0, 1.0) / jnp.sqrt(fan2),
        "b2": jax.random.uniform(k4, (out_channels,), jnp.float32,
                                 -1.0, 1.0) / jnp.sqrt(fan2),
        "gamma2": jnp.ones((out_channels,), jnp.float32),
        "beta2": jnp.zeros((out_channels,), jnp.float32),
    }


# --------------------------- pure-JAX reference -----------------------------

def _ref_double_conv(x_nchw, params):
    def conv(x, w, b):  # x NCHW, w HWIO
        y = jax.lax.conv_general_dilated(
            x, w, window_strides=(1, 1), padding="SAME",
            dimension_numbers=("NCHW", "HWIO", "NCHW"))
        return y + b[None, :, None, None]

    def bn_mish(x, g, bt):
        mean = jnp.mean(x, axis=(0, 2, 3), keepdims=True)
        var = jnp.mean((x - mean) ** 2, axis=(0, 2, 3), keepdims=True)
        y = (x - mean) * jax.lax.rsqrt(var + 1e-5)
        y = y * g[None, :, None, None] + bt[None, :, None, None]
        sp = jnp.maximum(y, 0.0) + jnp.log1p(jnp.exp(-jnp.abs(y)))  # softplus
        return y * jnp.tanh(sp)

    x = conv(x_nchw, params["w1"], params["b1"])
    x = bn_mish(x, params["gamma1"], params["beta1"])
    x = conv(x, params["w2"], params["b2"])
    x = bn_mish(x, params["gamma2"], params["beta2"])
    return x


if __name__ == "__main__":
    key = jax.random.PRNGKey(0)
    k_x, k_p = jax.random.split(key)

    N, Cin, H, W = 2, 4, 16, 16
    Cout = 8
    x = jax.random.normal(k_x, (N, Cin, H, W), jnp.float32)
    params = init_params(k_p, Cin, Cout)

    ref = _ref_double_conv(x, params)

    # Default (auto-sized) tile.
    out = jax.block_until_ready(double_conv(x, params))
    assert out.shape == (N, Cout, H, W)
    assert jnp.allclose(out, ref, atol=2e-4, rtol=2e-4), "mismatch vs reference"

    # Force multiple H-tiles to exercise the halo DMA, the padded-output
    # writeback DMA and the border-mask path.
    out_tiled = jax.block_until_ready(double_conv(x, params, tile_h=4))
    assert jnp.allclose(out_tiled, ref, atol=2e-4, rtol=2e-4), "tiled mismatch vs reference"

    print("KERNEL_OK")
</pallas_src>

<mosaic_0001>
module attributes {stable_mosaic.version = 11 : i64} {
  func.func @_conv_stats_kernel(%arg0: i32, %arg1: i32, %arg2: memref<2x18x18x128xf32, #tpu.memory_space<any>>, %arg3: memref<3x384x128xf32, #tpu.memory_space<vmem>>, %arg4: memref<1x128xf32, #tpu.memory_space<vmem>>, %arg5: memref<1x128xf32, #tpu.memory_space<vmem>>, %arg6: memref<1x128xf32, #tpu.memory_space<vmem>>, %arg7: memref<2x18x18x128xf32, #tpu.memory_space<any>>, %arg8: memref<1x1x2x128xf32, #tpu.memory_space<vmem>>, %arg9: memref<18x18x128xf32, #tpu.memory_space<vmem>>, %arg10: memref<16x16x128xf32, #tpu.memory_space<vmem>>, %arg11: memref<2x!tpu.dma_semaphore, #tpu.memory_space<semaphore_mem>>, %arg12: memref<256x128xf32, #tpu.memory_space<vmem>>) attributes {dimension_semantics = [#tpu.dimension_semantics<parallel>, #tpu.dimension_semantics<parallel>], iteration_bounds = array<i64: 2, 1>, scalar_prefetch = 0 : i64, scratch_operands = 4 : i64, tpu.core_type = #tpu.core_type<tc>, window_params = [{}, {pipeline_mode = #tpu.pipeline_mode<synchronous>, transform_indices = @transform_1, window_bounds = array<i64: 3, 384, 128>}, {pipeline_mode = #tpu.pipeline_mode<synchronous>, transform_indices = @transform_2, window_bounds = array<i64: 1, 128>}, {pipeline_mode = #tpu.pipeline_mode<synchronous>, transform_indices = @transform_3, window_bounds = array<i64: 1, 128>}, {pipeline_mode = #tpu.pipeline_mode<synchronous>, transform_indices = @transform_4, window_bounds = array<i64: 1, 128>}, {}, {transform_indices = @transform_6, window_bounds = array<i64: 1, 1, 2, 128>}]} {
    %c16_i32 = arith.constant 16 : i32
    %0 = arith.muli %arg1, %c16_i32 : i32
    %1 = tpu.assume_multiple %0, 16 : i32
    %c0_i32 = arith.constant 0 : i32
    %c0_i32_0 = arith.constant 0 : i32
    %c0_i32_1 = arith.constant 0 : i32
    %2 = tpu.memref_slice %arg2[%arg0, %1, %c0_i32_0, %c0_i32_1] : memref<2x18x18x128xf32, #tpu.memory_space<any>> -> memref<1x18x18x128xf32, #tpu.memory_space<any>>
    %3 = tpu.memref_squeeze %2 : memref<1x18x18x128xf32, #tpu.memory_space<any>> -> memref<18x18x128xf32, #tpu.memory_space<any>>
    %4 = tpu.memref_slice %arg11[%c0_i32] : memref<2x!tpu.dma_semaphore, #tpu.memory_space<semaphore_mem>> -> memref<1x!tpu.dma_semaphore, #tpu.memory_space<semaphore_mem>>
    %5 = tpu.memref_squeeze %4 : memref<1x!tpu.dma_semaphore, #tpu.memory_space<semaphore_mem>> -> memref<!tpu.dma_semaphore, #tpu.memory_space<semaphore_mem>>
    tpu.enqueue_dma source(%3 : memref<18x18x128xf32, #tpu.memory_space<any>>) target(%arg9 : memref<18x18x128xf32, #tpu.memory_space<vmem>>) target_semaphore(%5 : memref<!tpu.dma_semaphore, #tpu.memory_space<semaphore_mem>>)
    %c0_i32_2 = arith.constant 0 : i32
    %c0_i32_3 = arith.constant 0 : i32
    %c0_i32_4 = arith.constant 0 : i32
    %6 = tpu.memref_slice %arg2[%arg0, %1, %c0_i32_3, %c0_i32_4] : memref<2x18x18x128xf32, #tpu.memory_space<any>> -> memref<1x18x18x128xf32, #tpu.memory_space<any>>
    %7 = tpu.memref_squeeze %6 : memref<1x18x18x128xf32, #tpu.memory_space<any>> -> memref<18x18x128xf32, #tpu.memory_space<any>>
    %8 = tpu.memref_slice %arg11[%c0_i32_2] : memref<2x!tpu.dma_semaphore, #tpu.memory_space<semaphore_mem>> -> memref<1x!tpu.dma_semaphore, #tpu.memory_space<semaphore_mem>>
    %9 = tpu.memref_squeeze %8 : memref<1x!tpu.dma_semaphore, #tpu.memory_space<semaphore_mem>> -> memref<!tpu.dma_semaphore, #tpu.memory_space<semaphore_mem>>
    tpu.wait_dma2 semaphore(%9 : memref<!tpu.dma_semaphore, #tpu.memory_space<semaphore_mem>>) src(%7 : memref<18x18x128xf32, #tpu.memory_space<any>>) dst(%arg9 : memref<18x18x128xf32, #tpu.memory_space<vmem>>)
    %c0 = arith.constant 0 : index
    %c0_5 = arith.constant 0 : index
    %c0_6 = arith.constant 0 : index
    %10 = vector.load %arg9[%c0, %c0_5, %c0_6] : memref<18x18x128xf32, #tpu.memory_space<vmem>>, vector<18x18x128xf32>
    %11 = vector.extract_strided_slice %10 {offsets = [0, 0, 0], sizes = [18, 16, 128], strides = [1, 1, 1]} : vector<18x18x128xf32> to vector<18x16x128xf32>
    %12 = vector.extract_strided_slice %10 {offsets = [0, 1, 0], sizes = [18, 16, 128], strides = [1, 1, 1]} : vector<18x18x128xf32> to vector<18x16x128xf32>
    %13 = vector.extract_strided_slice %10 {offsets = [0, 2, 0], sizes = [18, 16, 128], strides = [1, 1, 1]} : vector<18x18x128xf32> to vector<18x16x128xf32>
    %14 = tpu.concatenate %11, %12, %13 in 2 : vector<18x16x128xf32>, vector<18x16x128xf32>, vector<18x16x128xf32> -> vector<18x16x384xf32>
    %15 = vector.extract_strided_slice %14 {offsets = [0, 0, 0], sizes = [16, 16, 384], strides = [1, 1, 1]} : vector<18x16x384xf32> to vector<16x16x384xf32>
    %16 = vector.shape_cast %15 : vector<16x16x384xf32> to vector<256x384xf32>
    %c0_7 = arith.constant 0 : index
    %c0_8 = arith.constant 0 : index
    %c0_9 = arith.constant 0 : index
    %17 = vector.load %arg3[%c0_7, %c0_8, %c0_9] : memref<3x384x128xf32, #tpu.memory_space<vmem>>, vector<1x384x128xf32>
    %18 = vector.shape_cast %17 : vector<1x384x128xf32> to vector<384x128xf32>
    %cst = arith.constant dense<0.000000e+00> : vector<256x128xf32>
    %19 = tpu.matmul %16, %18, %cst {dimension_numbers = #tpu.dot_dimension_numbers<[1], [0], [0], [1], [0, 0, 1, 1], [], []>} : vector<256x384xf32>, vector<384x128xf32>, vector<256x128xf32> -> vector<256x128xf32>
    %c0_10 = arith.constant 0 : index
    %c0_11 = arith.constant 0 : index
    %20 = vector.load %arg12[%c0_10, %c0_11] : memref<256x128xf32, #tpu.memory_space<vmem>>, vector<256x128xf32>
    tpu.vector_store %arg12[%c0_10, %c0_11], %19 {strides = array<i32>} : memref<256x128xf32, #tpu.memory_space<vmem>>, vector<256x128xf32>,
    %c0_12 = arith.constant 0 : index
    %c0_13 = arith.constant 0 : index
    %21 = vector.load %arg12[%c0_12, %c0_13] : memref<256x128xf32, #tpu.memory_space<vmem>>, vector<256x128xf32>
    %22 = vector.extract_strided_slice %14 {offsets = [1, 0, 0], sizes = [16, 16, 384], strides = [1, 1, 1]} : vector<18x16x384xf32> to vector<16x16x384xf32>
    %23 = vector.shape_cast %22 : vector<16x16x384xf32> to vector<256x384xf32>
    %c1 = arith.constant 1 : index
    %c0_14 = arith.constant 0 : index
    %c0_15 = arith.constant 0 : index
    %24 = vector.load %arg3[%c1, %c0_14, %c0_15] : memref<3x384x128xf32, #tpu.memory_space<vmem>>, vector<1x384x128xf32>
    %25 = vector.shape_cast %24 : vector<1x384x128xf32> to vector<384x128xf32>
    %cst_16 = arith.constant dense<0.000000e+00> : vector<256x128xf32>
    %26 = tpu.matmul %23, %25, %cst_16 {dimension_numbers = #tpu.dot_dimension_numbers<[1], [0], [0], [1], [0, 0, 1, 1], [], []>} : vector<256x384xf32>, vector<384x128xf32>, vector<256x128xf32> -> vector<256x128xf32>
    %27 = arith.addf %21, %26 : vector<256x128xf32>
    %c0_17 = arith.constant 0 : index
    %c0_18 = arith.constant 0 : index
    %28 = vector.load %arg12[%c0_17, %c0_18] : memref<256x128xf32, #tpu.memory_space<vmem>>, vector<256x128xf32>
    tpu.vector_store %arg12[%c0_17, %c0_18], %27 {strides = array<i32>} : memref<256x128xf32, #tpu.memory_space<vmem>>, vector<256x128xf32>,
    %c0_19 = arith.constant 0 : index
    %c0_20 = arith.constant 0 : index
    %29 = vector.load %arg12[%c0_19, %c0_20] : memref<256x128xf32, #tpu.memory_space<vmem>>, vector<256x128xf32>
    %30 = vector.extract_strided_slice %14 {offsets = [2, 0, 0], sizes = [16, 16, 384], strides = [1, 1, 1]} : vector<18x16x384xf32> to vector<16x16x384xf32>
    %31 = vector.shape_cast %30 : vector<16x16x384xf32> to vector<256x384xf32>
    %c2 = arith.constant 2 : index
    %c0_21 = arith.constant 0 : index
    %c0_22 = arith.constant 0 : index
    %32 = vector.load %arg3[%c2, %c0_21, %c0_22] : memref<3x384x128xf32, #tpu.memory_space<vmem>>, vector<1x384x128xf32>
    %33 = vector.shape_cast %32 : vector<1x384x128xf32> to vector<384x128xf32>
    %cst_23 = arith.constant dense<0.000000e+00> : vector<256x128xf32>
    %34 = tpu.matmul %31, %33, %cst_23 {dimension_numbers = #tpu.dot_dimension_numbers<[1], [0], [0], [1], [0, 0, 1, 1], [], []>} : vector<256x384xf32>, vector<384x128xf32>, vector<256x128xf32> -> vector<256x128xf32>
    %35 = arith.addf %29, %34 : vector<256x128xf32>
    %c0_24 = arith.constant 0 : index
    %c0_25 = arith.constant 0 : index
    %36 = vector.load %arg12[%c0_24, %c0_25] : memref<256x128xf32, #tpu.memory_space<vmem>>, vector<256x128xf32>
    tpu.vector_store %arg12[%c0_24, %c0_25], %35 {strides = array<i32>} : memref<256x128xf32, #tpu.memory_space<vmem>>, vector<256x128xf32>,
    %c0_26 = arith.constant 0 : index
    %c0_27 = arith.constant 0 : index
    %37 = vector.load %arg12[%c0_26, %c0_27] : memref<256x128xf32, #tpu.memory_space<vmem>>, vector<256x128xf32>
    %c0_28 = arith.constant 0 : index
    %c0_29 = arith.constant 0 : index
    %38 = vector.load %arg4[%c0_28, %c0_29] : memref<1x128xf32, #tpu.memory_space<vmem>>, vector<1x128xf32>
    %39 = vector.shape_cast %38 : vector<1x128xf32> to vector<128xf32>
    %40 = vector.shape_cast %39 : vector<128xf32> to vector<1x128xf32>
    %41 = vector.broadcast %40 : vector<1x128xf32> to vector<256x128xf32>
    %42 = arith.addf %37, %41 : vector<256x128xf32>
    %43 = vector.shape_cast %42 : vector<256x128xf32> to vector<16x16x128xf32>
    %c0_30 = arith.constant 0 : index
    %c0_31 = arith.constant 0 : index
    %c0_32 = arith.constant 0 : index
    %44 = vector.load %arg10[%c0_30, %c0_31, %c0_32] : memref<16x16x128xf32, #tpu.memory_space<vmem>>, vector<16x16x128xf32>
    tpu.vector_store %arg10[%c0_30, %c0_31, %c0_32], %43 {strides = array<i32>} : memref<16x16x128xf32, #tpu.memory_space<vmem>>, vector<16x16x128xf32>,
    %c1_i32 = arith.constant 1 : i32
    %45 = arith.addi %1, %c1_i32 : i32
    %c1_i32_33 = arith.constant 1 : i32
    %c1_i32_34 = arith.constant 1 : i32
    %c0_i32_35 = arith.constant 0 : i32
    %46 = tpu.memref_slice %arg7[%arg0, %45, %c1_i32_34, %c0_i32_35] : memref<2x18x18x128xf32, #tpu.memory_space<any>> -> memref<1x16x16x128xf32, #tpu.memory_space<any>>
    %47 = tpu.memref_squeeze %46 : memref<1x16x16x128xf32, #tpu.memory_space<any>> -> memref<16x16x128xf32, #tpu.memory_space<any>>
    %48 = tpu.memref_slice %arg11[%c1_i32_33] : memref<2x!tpu.dma_semaphore, #tpu.memory_space<semaphore_mem>> -> memref<1x!tpu.dma_semaphore, #tpu.memory_space<semaphore_mem>>
    %49 = tpu.memref_squeeze %48 : memref<1x!tpu.dma_semaphore, #tpu.memory_space<semaphore_mem>> -> memref<!tpu.dma_semaphore, #tpu.memory_space<semaphore_mem>>
    tpu.enqueue_dma source(%arg10 : memref<16x16x128xf32, #tpu.memory_space<vmem>>) target(%47 : memref<16x16x128xf32, #tpu.memory_space<any>>) target_semaphore(%49 : memref<!tpu.dma_semaphore, #tpu.memory_space<semaphore_mem>>)
    %cst_36 = arith.constant dense<0.000000e+00> : vector<128xf32>
    %50 = vector.multi_reduction <add>, %42, %cst_36 [0] : vector<256x128xf32> to vector<128xf32>
    %51 = vector.shape_cast %50 : vector<128xf32> to vector<1x128xf32>
    %52 = arith.mulf %42, %42 : vector<256x128xf32>
    %cst_37 = arith.constant dense<0.000000e+00> : vector<128xf32>
    %53 = vector.multi_reduction <add>, %52, %cst_37 [0] : vector<256x128xf32> to vector<128xf32>
    %54 = vector.shape_cast %53 : vector<128xf32> to vector<1x128xf32>
    %55 = tpu.concatenate %51, %54 in 0 : vector<1x128xf32>, vector<1x128xf32> -> vector<2x128xf32>
    %c0_38 = arith.constant 0 : index
    %c0_39 = arith.constant 0 : index
    %c0_40 = arith.constant 0 : index
    %c0_41 = arith.constant 0 : index
    %56 = vector.load %arg8[%c0_38, %c0_39, %c0_40, %c0_41] : memref<1x1x2x128xf32, #tpu.memory_space<vmem>>, vector<1x1x2x128xf32>
    %57 = vector.shape_cast %56 : vector<1x1x2x128xf32> to vector<2x128xf32>
    %58 = vector.shape_cast %55 : vector<2x128xf32> to vector<1x1x2x128xf32>
    tpu.vector_store %arg8[%c0_38, %c0_39, %c0_40, %c0_41], %58 {strides = array<i32>} : memref<1x1x2x128xf32, #tpu.memory_space<vmem>>, vector<1x1x2x128xf32>,
    %c1_i32_42 = arith.constant 1 : i32
    %c1_i32_43 = arith.constant 1 : i32
    %c0_i32_44 = arith.constant 0 : i32
    %59 = tpu.memref_slice %arg7[%arg0, %45, %c1_i32_43, %c0_i32_44] : memref<2x18x18x128xf32, #tpu.memory_space<any>> -> memref<1x16x16x128xf32, #tpu.memory_space<any>>
    %60 = tpu.memref_squeeze %59 : memref<1x16x16x128xf32, #tpu.memory_space<any>> -> memref<16x16x128xf32, #tpu.memory_space<any>>
    %61 = tpu.memref_slice %arg11[%c1_i32_42] : memref<2x!tpu.dma_semaphore, #tpu.memory_space<semaphore_mem>> -> memref<1x!tpu.dma_semaphore, #tpu.memory_space<semaphore_mem>>
    %62 = tpu.memref_squeeze %61 : memref<1x!tpu.dma_semaphore, #tpu.memory_space<semaphore_mem>> -> memref<!tpu.dma_semaphore, #tpu.memory_space<semaphore_mem>>
    tpu.wait_dma2 semaphore(%62 : memref<!tpu.dma_semaphore, #tpu.memory_space<semaphore_mem>>) src(%arg10 : memref<16x16x128xf32, #tpu.memory_space<vmem>>) dst(%60 : memref<16x16x128xf32, #tpu.memory_space<any>>)
    return
  }
  func.func @transform_1(%arg0: i32, %arg1: i32) -> (i32, i32, i32) {
    %c0_i32 = arith.constant 0 : i32
    %c0_i32_0 = arith.constant 0 : i32
    %c0_i32_1 = arith.constant 0 : i32
    %c0_i32_2 = arith.constant 0 : i32
    return %c0_i32, %c0_i32_0, %c0_i32_1 : i32, i32, i32
  }
  func.func @transform_2(%arg0: i32, %arg1: i32) -> (i32, i32) {
    %c0_i32 = arith.constant 0 : i32
    %c0_i32_0 = arith.constant 0 : i32
    %c0_i32_1 = arith.constant 0 : i32
    return %c0_i32, %c0_i32_0 : i32, i32
  }
  func.func @transform_3(%arg0: i32, %arg1: i32) -> (i32, i32) {
    %c0_i32 = arith.constant 0 : i32
    %c0_i32_0 = arith.constant 0 : i32
    %c0_i32_1 = arith.constant 0 : i32
    return %c0_i32, %c0_i32_0 : i32, i32
  }
  func.func @transform_4(%arg0: i32, %arg1: i32) -> (i32, i32) {
    %c0_i32 = arith.constant 0 : i32
    %c0_i32_0 = arith.constant 0 : i32
    %c0_i32_1 = arith.constant 0 : i32
    return %c0_i32, %c0_i32_0 : i32, i32
  }
  func.func @transform_6(%arg0: i32, %arg1: i32) -> (i32, i32, i32, i32) {
    %c0_i32 = arith.constant 0 : i32
    %c0_i32_0 = arith.constant 0 : i32
    %c0_i32_1 = arith.constant 0 : i32
    return %arg0, %arg1, %c0_i32, %c0_i32_0 : i32, i32, i32, i32
  }
}

module attributes {stable_mosaic.version = 11 : i64} {
  func.func @_conv_stats_kernel(%arg0: i32, %arg1: i32, %arg2: memref<2x18x18x128xf32, #tpu.memory_space<any>>, %arg3: memref<3x384x128xf32, #tpu.memory_space<vmem>>, %arg4: memref<1x128xf32, #tpu.memory_space<vmem>>, %arg5: memref<1x128xf32, #tpu.memory_space<vmem>>, %arg6: memref<1x128xf32, #tpu.memory_space<vmem>>, %arg7: memref<1x16x16x128xf32, #tpu.memory_space<vmem>>, %arg8: memref<1x1x2x128xf32, #tpu.memory_space<vmem>>, %arg9: memref<18x18x128xf32, #tpu.memory_space<vmem>>, %arg10: memref<16x16x128xf32, #tpu.memory_space<vmem>>, %arg11: memref<2x!tpu.dma_semaphore, #tpu.memory_space<semaphore_mem>>, %arg12: memref<256x128xf32, #tpu.memory_space<vmem>>) attributes {dimension_semantics = [#tpu.dimension_semantics<parallel>, #tpu.dimension_semantics<parallel>], iteration_bounds = array<i64: 2, 1>, scalar_prefetch = 0 : i64, scratch_operands = 4 : i64, tpu.core_type = #tpu.core_type<tc>, window_params = [{}, {pipeline_mode = #tpu.pipeline_mode<synchronous>, transform_indices = @transform_1, window_bounds = array<i64: 3, 384, 128>}, {pipeline_mode = #tpu.pipeline_mode<synchronous>, transform_indices = @transform_2, window_bounds = array<i64: 1, 128>}, {pipeline_mode = #tpu.pipeline_mode<synchronous>, transform_indices = @transform_3, window_bounds = array<i64: 1, 128>}, {pipeline_mode = #tpu.pipeline_mode<synchronous>, transform_indices = @transform_4, window_bounds = array<i64: 1, 128>}, {transform_indices = @transform_5, window_bounds = array<i64: 1, 16, 16, 128>}, {transform_indices = @transform_6, window_bounds = array<i64: 1, 1, 2, 128>}]} {
    %c16_i32 = arith.constant 16 : i32
    %0 = arith.muli %arg1, %c16_i32 : i32
    %1 = tpu.assume_multiple %0, 16 : i32
    %c0_i32 = arith.constant 0 : i32
    %c0_i32_0 = arith.constant 0 : i32
    %c0_i32_1 = arith.constant 0 : i32
    %2 = tpu.memref_slice %arg2[%arg0, %1, %c0_i32_0, %c0_i32_1] : memref<2x18x18x128xf32, #tpu.memory_space<any>> -> memref<1x18x18x128xf32, #tpu.memory_space<any>>
    %3 = tpu.memref_squeeze %2 : memref<1x18x18x128xf32, #tpu.memory_space<any>> -> memref<18x18x128xf32, #tpu.memory_space<any>>
    %4 = tpu.memref_slice %arg11[%c0_i32] : memref<2x!tpu.dma_semaphore, #tpu.memory_space<semaphore_mem>> -> memref<1x!tpu.dma_semaphore, #tpu.memory_space<semaphore_mem>>
    %5 = tpu.memref_squeeze %4 : memref<1x!tpu.dma_semaphore, #tpu.memory_space<semaphore_mem>> -> memref<!tpu.dma_semaphore, #tpu.memory_space<semaphore_mem>>
    tpu.enqueue_dma source(%3 : memref<18x18x128xf32, #tpu.memory_space<any>>) target(%arg9 : memref<18x18x128xf32, #tpu.memory_space<vmem>>) target_semaphore(%5 : memref<!tpu.dma_semaphore, #tpu.memory_space<semaphore_mem>>)
    %c0_i32_2 = arith.constant 0 : i32
    %c0_i32_3 = arith.constant 0 : i32
    %c0_i32_4 = arith.constant 0 : i32
    %6 = tpu.memref_slice %arg2[%arg0, %1, %c0_i32_3, %c0_i32_4] : memref<2x18x18x128xf32, #tpu.memory_space<any>> -> memref<1x18x18x128xf32, #tpu.memory_space<any>>
    %7 = tpu.memref_squeeze %6 : memref<1x18x18x128xf32, #tpu.memory_space<any>> -> memref<18x18x128xf32, #tpu.memory_space<any>>
    %8 = tpu.memref_slice %arg11[%c0_i32_2] : memref<2x!tpu.dma_semaphore, #tpu.memory_space<semaphore_mem>> -> memref<1x!tpu.dma_semaphore, #tpu.memory_space<semaphore_mem>>
    %9 = tpu.memref_squeeze %8 : memref<1x!tpu.dma_semaphore, #tpu.memory_space<semaphore_mem>> -> memref<!tpu.dma_semaphore, #tpu.memory_space<semaphore_mem>>
    tpu.wait_dma2 semaphore(%9 : memref<!tpu.dma_semaphore, #tpu.memory_space<semaphore_mem>>) src(%7 : memref<18x18x128xf32, #tpu.memory_space<any>>) dst(%arg9 : memref<18x18x128xf32, #tpu.memory_space<vmem>>)
    %c0 = arith.constant 0 : index
    %c0_5 = arith.constant 0 : index
    %c0_6 = arith.constant 0 : index
    %10 = vector.load %arg9[%c0, %c0_5, %c0_6] : memref<18x18x128xf32, #tpu.memory_space<vmem>>, vector<18x18x128xf32>
    %c0_7 = arith.constant 0 : index
    %c0_8 = arith.constant 0 : index
    %11 = vector.load %arg5[%c0_7, %c0_8] : memref<1x128xf32, #tpu.memory_space<vmem>>, vector<1x128xf32>
    %12 = vector.shape_cast %11 : vector<1x128xf32> to vector<128xf32>
    %13 = vector.shape_cast %12 : vector<128xf32> to vector<1x1x128xf32>
    %14 = vector.broadcast %13 : vector<1x1x128xf32> to vector<18x18x128xf32>
    %15 = arith.mulf %10, %14 : vector<18x18x128xf32>
    %c0_9 = arith.constant 0 : index
    %c0_10 = arith.constant 0 : index
    %16 = vector.load %arg6[%c0_9, %c0_10] : memref<1x128xf32, #tpu.memory_space<vmem>>, vector<1x128xf32>
    %17 = vector.shape_cast %16 : vector<1x128xf32> to vector<128xf32>
    %18 = vector.shape_cast %17 : vector<128xf32> to vector<1x1x128xf32>
    %19 = vector.broadcast %18 : vector<1x1x128xf32> to vector<18x18x128xf32>
    %20 = arith.addf %15, %19 : vector<18x18x128xf32>
    %21 = math.absf %20 : vector<18x18x128xf32>
    %cst = arith.constant 0.000000e+00 : f32
    %22 = vector.broadcast %cst : f32 to vector<18x18x128xf32>
    %23 = arith.subf %22, %21 : vector<18x18x128xf32>
    %24 = math.exp %23 : vector<18x18x128xf32>
    %cst_11 = arith.constant 1.000000e+00 : f32
    %25 = vector.broadcast %cst_11 : f32 to vector<18x18x128xf32>
    %26 = arith.addf %25, %24 : vector<18x18x128xf32>
    %cst_12 = arith.constant 1.000000e+00 : f32
    %27 = vector.broadcast %cst_12 : f32 to vector<18x18x128xf32>
    %28 = arith.addf %27, %24 : vector<18x18x128xf32>
    %29 = arith.mulf %26, %28 : vector<18x18x128xf32>
    %cst_13 = arith.constant 0.000000e+00 : f32
    %30 = vector.broadcast %cst_13 : f32 to vector<18x18x128xf32>
    %31 = arith.cmpf oge, %20, %30 : vector<18x18x128xf32>
    %32 = arith.mulf %24, %24 : vector<18x18x128xf32>
    %cst_14 = arith.constant 1.000000e+00 : f32
    %33 = vector.broadcast %cst_14 : f32 to vector<18x18x128xf32>
    %34 = arith.select %31, %32, %33 : vector<18x18x128xi1>, vector<18x18x128xf32>
    %35 = arith.subf %29, %34 : vector<18x18x128xf32>
    %36 = arith.mulf %20, %35 : vector<18x18x128xf32>
    %37 = arith.addf %29, %34 : vector<18x18x128xf32>
    %38 = arith.divf %36, %37 : vector<18x18x128xf32>
    %39 = tpu.iota {dimensions = array<i32: 0>} : vector<18x18x128xi32>
    %c16_i32_15 = arith.constant 16 : i32
    %40 = arith.muli %arg1, %c16_i32_15 : i32
    %41 = vector.broadcast %40 : i32 to vector<18x18x128xi32>
    %42 = arith.addi %39, %41 : vector<18x18x128xi32>
    %43 = tpu.iota {dimensions = array<i32: 1>} : vector<18x18x128xi32>
    %c1_i32 = arith.constant 1 : i32
    %44 = vector.broadcast %c1_i32 : i32 to vector<18x18x128xi32>
    %45 = arith.cmpi sge, %42, %44 : vector<18x18x128xi32>
    %c16_i32_16 = arith.constant 16 : i32
    %46 = vector.broadcast %c16_i32_16 : i32 to vector<18x18x128xi32>
    %47 = arith.cmpi sle, %42, %46 : vector<18x18x128xi32>
    %48 = arith.andi %45, %47 : vector<18x18x128xi1>
    %c1_i32_17 = arith.constant 1 : i32
    %49 = vector.broadcast %c1_i32_17 : i32 to vector<18x18x128xi32>
    %50 = arith.cmpi sge, %43, %49 : vector<18x18x128xi32>
    %51 = arith.andi %48, %50 : vector<18x18x128xi1>
    %c16_i32_18 = arith.constant 16 : i32
    %52 = vector.broadcast %c16_i32_18 : i32 to vector<18x18x128xi32>
    %53 = arith.cmpi sle, %43, %52 : vector<18x18x128xi32>
    %54 = arith.andi %51, %53 : vector<18x18x128xi1>
    %cst_19 = arith.constant 0.000000e+00 : f32
    %55 = vector.broadcast %cst_19 : f32 to vector<18x18x128xf32>
    %56 = arith.select %54, %38, %55 : vector<18x18x128xi1>, vector<18x18x128xf32>
    %57 = vector.extract_strided_slice %56 {offsets = [0, 0, 0], sizes = [18, 16, 128], strides = [1, 1, 1]} : vector<18x18x128xf32> to vector<18x16x128xf32>
    %58 = vector.extract_strided_slice %56 {offsets = [0, 1, 0], sizes = [18, 16, 128], strides = [1, 1, 1]} : vector<18x18x128xf32> to vector<18x16x128xf32>
    %59 = vector.extract_strided_slice %56 {offsets = [0, 2, 0], sizes = [18, 16, 128], strides = [1, 1, 1]} : vector<18x18x128xf32> to vector<18x16x128xf32>
    %60 = tpu.concatenate %57, %58, %59 in 2 : vector<18x16x128xf32>, vector<18x16x128xf32>, vector<18x16x128xf32> -> vector<18x16x384xf32>
    %61 = vector.extract_strided_slice %60 {offsets = [0, 0, 0], sizes = [16, 16, 384], strides = [1, 1, 1]} : vector<18x16x384xf32> to vector<16x16x384xf32>
    %62 = vector.shape_cast %61 : vector<16x16x384xf32> to vector<256x384xf32>
    %c0_20 = arith.constant 0 : index
    %c0_21 = arith.constant 0 : index
    %c0_22 = arith.constant 0 : index
    %63 = vector.load %arg3[%c0_20, %c0_21, %c0_22] : memref<3x384x128xf32, #tpu.memory_space<vmem>>, vector<1x384x128xf32>
    %64 = vector.shape_cast %63 : vector<1x384x128xf32> to vector<384x128xf32>
    %cst_23 = arith.constant dense<0.000000e+00> : vector<256x128xf32>
    %65 = tpu.matmul %62, %64, %cst_23 {dimension_numbers = #tpu.dot_dimension_numbers<[1], [0], [0], [1], [0, 0, 1, 1], [], []>} : vector<256x384xf32>, vector<384x128xf32>, vector<256x128xf32> -> vector<256x128xf32>
    %c0_24 = arith.constant 0 : index
    %c0_25 = arith.constant 0 : index
    %66 = vector.load %arg12[%c0_24, %c0_25] : memref<256x128xf32, #tpu.memory_space<vmem>>, vector<256x128xf32>
    tpu.vector_store %arg12[%c0_24, %c0_25], %65 {strides = array<i32>} : memref<256x128xf32, #tpu.memory_space<vmem>>, vector<256x128xf32>,
    %c0_26 = arith.constant 0 : index
    %c0_27 = arith.constant 0 : index
    %67 = vector.load %arg12[%c0_26, %c0_27] : memref<256x128xf32, #tpu.memory_space<vmem>>, vector<256x128xf32>
    %68 = vector.extract_strided_slice %60 {offsets = [1, 0, 0], sizes = [16, 16, 384], strides = [1, 1, 1]} : vector<18x16x384xf32> to vector<16x16x384xf32>
    %69 = vector.shape_cast %68 : vector<16x16x384xf32> to vector<256x384xf32>
    %c1 = arith.constant 1 : index
    %c0_28 = arith.constant 0 : index
    %c0_29 = arith.constant 0 : index
    %70 = vector.load %arg3[%c1, %c0_28, %c0_29] : memref<3x384x128xf32, #tpu.memory_space<vmem>>, vector<1x384x128xf32>
    %71 = vector.shape_cast %70 : vector<1x384x128xf32> to vector<384x128xf32>
    %cst_30 = arith.constant dense<0.000000e+00> : vector<256x128xf32>
    %72 = tpu.matmul %69, %71, %cst_30 {dimension_numbers = #tpu.dot_dimension_numbers<[1], [0], [0], [1], [0, 0, 1, 1], [], []>} : vector<256x384xf32>, vector<384x128xf32>, vector<256x128xf32> -> vector<256x128xf32>
    %73 = arith.addf %67, %72 : vector<256x128xf32>
    %c0_31 = arith.constant 0 : index
    %c0_32 = arith.constant 0 : index
    %74 = vector.load %arg12[%c0_31, %c0_32] : memref<256x128xf32, #tpu.memory_space<vmem>>, vector<256x128xf32>
    tpu.vector_store %arg12[%c0_31, %c0_32], %73 {strides = array<i32>} : memref<256x128xf32, #tpu.memory_space<vmem>>, vector<256x128xf32>,
    %c0_33 = arith.constant 0 : index
    %c0_34 = arith.constant 0 : index
    %75 = vector.load %arg12[%c0_33, %c0_34] : memref<256x128xf32, #tpu.memory_space<vmem>>, vector<256x128xf32>
    %76 = vector.extract_strided_slice %60 {offsets = [2, 0, 0], sizes = [16, 16, 384], strides = [1, 1, 1]} : vector<18x16x384xf32> to vector<16x16x384xf32>
    %77 = vector.shape_cast %76 : vector<16x16x384xf32> to vector<256x384xf32>
    %c2 = arith.constant 2 : index
    %c0_35 = arith.constant 0 : index
    %c0_36 = arith.constant 0 : index
    %78 = vector.load %arg3[%c2, %c0_35, %c0_36] : memref<3x384x128xf32, #tpu.memory_space<vmem>>, vector<1x384x128xf32>
    %79 = vector.shape_cast %78 : vector<1x384x128xf32> to vector<384x128xf32>
    %cst_37 = arith.constant dense<0.000000e+00> : vector<256x128xf32>
    %80 = tpu.matmul %77, %79, %cst_37 {dimension_numbers = #tpu.dot_dimension_numbers<[1], [0], [0], [1], [0, 0, 1, 1], [], []>} : vector<256x384xf32>, vector<384x128xf32>, vector<256x128xf32> -> vector<256x128xf32>
    %81 = arith.addf %75, %80 : vector<256x128xf32>
    %c0_38 = arith.constant 0 : index
    %c0_39 = arith.constant 0 : index
    %82 = vector.load %arg12[%c0_38, %c0_39] : memref<256x128xf32, #tpu.memory_space<vmem>>, vector<256x128xf32>
    tpu.vector_store %arg12[%c0_38, %c0_39], %81 {strides = array<i32>} : memref<256x128xf32, #tpu.memory_space<vmem>>, vector<256x128xf32>,
    %c0_40 = arith.constant 0 : index
    %c0_41 = arith.constant 0 : index
    %83 = vector.load %arg12[%c0_40, %c0_41] : memref<256x128xf32, #tpu.memory_space<vmem>>, vector<256x128xf32>
    %c0_42 = arith.constant 0 : index
    %c0_43 = arith.constant 0 : index
    %84 = vector.load %arg4[%c0_42, %c0_43] : memref<1x128xf32, #tpu.memory_space<vmem>>, vector<1x128xf32>
    %85 = vector.shape_cast %84 : vector<1x128xf32> to vector<128xf32>
    %86 = vector.shape_cast %85 : vector<128xf32> to vector<1x128xf32>
    %87 = vector.broadcast %86 : vector<1x128xf32> to vector<256x128xf32>
    %88 = arith.addf %83, %87 : vector<256x128xf32>
    %89 = vector.shape_cast %88 : vector<256x128xf32> to vector<1x16x16x128xf32>
    %c0_44 = arith.constant 0 : index
    %c0_45 = arith.constant 0 : index
    %c0_46 = arith.constant 0 : index
    %c0_47 = arith.constant 0 : index
    %90 = vector.load %arg7[%c0_44, %c0_45, %c0_46, %c0_47] : memref<1x16x16x128xf32, #tpu.memory_space<vmem>>, vector<1x16x16x128xf32>
    tpu.vector_store %arg7[%c0_44, %c0_45, %c0_46, %c0_47], %89 {strides = array<i32>} : memref<1x16x16x128xf32, #tpu.memory_space<vmem>>, vector<1x16x16x128xf32>,
    %cst_48 = arith.constant dense<0.000000e+00> : vector<128xf32>
    %91 = vector.multi_reduction <add>, %88, %cst_48 [0] : vector<256x128xf32> to vector<128xf32>
    %92 = vector.shape_cast %91 : vector<128xf32> to vector<1x128xf32>
    %93 = arith.mulf %88, %88 : vector<256x128xf32>
    %cst_49 = arith.constant dense<0.000000e+00> : vector<128xf32>
    %94 = vector.multi_reduction <add>, %93, %cst_49 [0] : vector<256x128xf32> to vector<128xf32>
    %95 = vector.shape_cast %94 : vector<128xf32> to vector<1x128xf32>
    %96 = tpu.concatenate %92, %95 in 0 : vector<1x128xf32>, vector<1x128xf32> -> vector<2x128xf32>
    %c0_50 = arith.constant 0 : index
    %c0_51 = arith.constant 0 : index
    %c0_52 = arith.constant 0 : index
    %c0_53 = arith.constant 0 : index
    %97 = vector.load %arg8[%c0_50, %c0_51, %c0_52, %c0_53] : memref<1x1x2x128xf32, #tpu.memory_space<vmem>>, vector<1x1x2x128xf32>
    %98 = vector.shape_cast %97 : vector<1x1x2x128xf32> to vector<2x128xf32>
    %99 = vector.shape_cast %96 : vector<2x128xf32> to vector<1x1x2x128xf32>
    tpu.vector_store %arg8[%c0_50, %c0_51, %c0_52, %c0_53], %99 {strides = array<i32>} : memref<1x1x2x128xf32, #tpu.memory_space<vmem>>, vector<1x1x2x128xf32>,
    return
  }
  func.func @transform_1(%arg0: i32, %arg1: i32) -> (i32, i32, i32) {
    %c0_i32 = arith.constant 0 : i32
    %c0_i32_0 = arith.constant 0 : i32
    %c0_i32_1 = arith.constant 0 : i32
    %c0_i32_2 = arith.constant 0 : i32
    return %c0_i32, %c0_i32_0, %c0_i32_1 : i32, i32, i32
  }
  func.func @transform_2(%arg0: i32, %arg1: i32) -> (i32, i32) {
    %c0_i32 = arith.constant 0 : i32
    %c0_i32_0 = arith.constant 0 : i32
    %c0_i32_1 = arith.constant 0 : i32
    return %c0_i32, %c0_i32_0 : i32, i32
  }
  func.func @transform_3(%arg0: i32, %arg1: i32) -> (i32, i32) {
    %c0_i32 = arith.constant 0 : i32
    %c0_i32_0 = arith.constant 0 : i32
    %c0_i32_1 = arith.constant 0 : i32
    return %c0_i32, %c0_i32_0 : i32, i32
  }
  func.func @transform_4(%arg0: i32, %arg1: i32) -> (i32, i32) {
    %c0_i32 = arith.constant 0 : i32
    %c0_i32_0 = arith.constant 0 : i32
    %c0_i32_1 = arith.constant 0 : i32
    return %c0_i32, %c0_i32_0 : i32, i32
  }
  func.func @transform_5(%arg0: i32, %arg1: i32) -> (i32, i32, i32, i32) {
    %c0_i32 = arith.constant 0 : i32
    %c0_i32_0 = arith.constant 0 : i32
    %c0_i32_1 = arith.constant 0 : i32
    return %arg0, %arg1, %c0_i32, %c0_i32_0 : i32, i32, i32, i32
  }
  func.func @transform_6(%arg0: i32, %arg1: i32) -> (i32, i32, i32, i32) {
    %c0_i32 = arith.constant 0 : i32
    %c0_i32_0 = arith.constant 0 : i32
    %c0_i32_1 = arith.constant 0 : i32
    return %arg0, %arg1, %c0_i32, %c0_i32_0 : i32, i32, i32, i32
  }
}

module attributes {stable_mosaic.version = 11 : i64} {
  func.func @_bn_mish_apply_kernel(%arg0: i32, %arg1: i32, %arg2: memref<1x16x16x128xf32, #tpu.memory_space<vmem>>, %arg3: memref<1x128xf32, #tpu.memory_space<vmem>>, %arg4: memref<1x128xf32, #tpu.memory_space<vmem>>, %arg5: memref<1x16x16x128xf32, #tpu.memory_space<vmem>>) attributes {dimension_semantics = [#tpu.dimension_semantics<parallel>, #tpu.dimension_semantics<parallel>], iteration_bounds = array<i64: 2, 1>, scalar_prefetch = 0 : i64, scratch_operands = 0 : i64, tpu.core_type = #tpu.core_type<tc>, window_params = [{transform_indices = @transform_0, window_bounds = array<i64: 1, 16, 16, 128>}, {pipeline_mode = #tpu.pipeline_mode<synchronous>, transform_indices = @transform_1, window_bounds = array<i64: 1, 128>}, {pipeline_mode = #tpu.pipeline_mode<synchronous>, transform_indices = @transform_2, window_bounds = array<i64: 1, 128>}, {transform_indices = @transform_3, window_bounds = array<i64: 1, 16, 16, 128>}]} {
    %c0 = arith.constant 0 : index
    %c0_0 = arith.constant 0 : index
    %c0_1 = arith.constant 0 : index
    %c0_2 = arith.constant 0 : index
    %0 = vector.load %arg2[%c0, %c0_0, %c0_1, %c0_2] : memref<1x16x16x128xf32, #tpu.memory_space<vmem>>, vector<1x16x16x128xf32>
    %c0_3 = arith.constant 0 : index
    %c0_4 = arith.constant 0 : index
    %1 = vector.load %arg3[%c0_3, %c0_4] : memref<1x128xf32, #tpu.memory_space<vmem>>, vector<1x128xf32>
    %2 = vector.shape_cast %1 : vector<1x128xf32> to vector<128xf32>
    %3 = vector.shape_cast %2 : vector<128xf32> to vector<1x1x1x128xf32>
    %4 = vector.broadcast %3 : vector<1x1x1x128xf32> to vector<1x16x16x128xf32>
    %5 = arith.mulf %0, %4 : vector<1x16x16x128xf32>
    %c0_5 = arith.constant 0 : index
    %c0_6 = arith.constant 0 : index
    %6 = vector.load %arg4[%c0_5, %c0_6] : memref<1x128xf32, #tpu.memory_space<vmem>>, vector<1x128xf32>
    %7 = vector.shape_cast %6 : vector<1x128xf32> to vector<128xf32>
    %8 = vector.shape_cast %7 : vector<128xf32> to vector<1x1x1x128xf32>
    %9 = vector.broadcast %8 : vector<1x1x1x128xf32> to vector<1x16x16x128xf32>
    %10 = arith.addf %5, %9 : vector<1x16x16x128xf32>
    %11 = math.absf %10 : vector<1x16x16x128xf32>
    %cst = arith.constant 0.000000e+00 : f32
    %12 = vector.broadcast %cst : f32 to vector<1x16x16x128xf32>
    %13 = arith.subf %12, %11 : vector<1x16x16x128xf32>
    %14 = math.exp %13 : vector<1x16x16x128xf32>
    %cst_7 = arith.constant 1.000000e+00 : f32
    %15 = vector.broadcast %cst_7 : f32 to vector<1x16x16x128xf32>
    %16 = arith.addf %15, %14 : vector<1x16x16x128xf32>
    %cst_8 = arith.constant 1.000000e+00 : f32
    %17 = vector.broadcast %cst_8 : f32 to vector<1x16x16x128xf32>
    %18 = arith.addf %17, %14 : vector<1x16x16x128xf32>
    %19 = arith.mulf %16, %18 : vector<1x16x16x128xf32>
    %cst_9 = arith.constant 0.000000e+00 : f32
    %20 = vector.broadcast %cst_9 : f32 to vector<1x16x16x128xf32>
    %21 = arith.cmpf oge, %10, %20 : vector<1x16x16x128xf32>
    %22 = arith.mulf %14, %14 : vector<1x16x16x128xf32>
    %cst_10 = arith.constant 1.000000e+00 : f32
    %23 = vector.broadcast %cst_10 : f32 to vector<1x16x16x128xf32>
    %24 = arith.select %21, %22, %23 : vector<1x16x16x128xi1>, vector<1x16x16x128xf32>
    %25 = arith.subf %19, %24 : vector<1x16x16x128xf32>
    %26 = arith.mulf %10, %25 : vector<1x16x16x128xf32>
    %27 = arith.addf %19, %24 : vector<1x16x16x128xf32>
    %28 = arith.divf %26, %27 : vector<1x16x16x128xf32>
    %c0_11 = arith.constant 0 : index
    %c0_12 = arith.constant 0 : index
    %c0_13 = arith.constant 0 : index
    %c0_14 = arith.constant 0 : index
    %29 = vector.load %arg5[%c0_11, %c0_12, %c0_13, %c0_14] : memref<1x16x16x128xf32, #tpu.memory_space<vmem>>, vector<1x16x16x128xf32>
    tpu.vector_store %arg5[%c0_11, %c0_12, %c0_13, %c0_14], %28 {strides = array<i32>} : memref<1x16x16x128xf32, #tpu.memory_space<vmem>>, vector<1x16x16x128xf32>,
    return
  }
  func.func @transform_0(%arg0: i32, %arg1: i32) -> (i32, i32, i32, i32) {
    %c0_i32 = arith.constant 0 : i32
    %c0_i32_0 = arith.constant 0 : i32
    %c0_i32_1 = arith.constant 0 : i32
    return %arg0, %arg1, %c0_i32, %c0_i32_0 : i32, i32, i32, i32
  }
  func.func @transform_1(%arg0: i32, %arg1: i32) -> (i32, i32) {
    %c0_i32 = arith.constant 0 : i32
    %c0_i32_0 = arith.constant 0 : i32
    %c0_i32_1 = arith.constant 0 : i32
    return %c0_i32, %c0_i32_0 : i32, i32
  }
  func.func @transform_2(%arg0: i32, %arg1: i32) -> (i32, i32) {
    %c0_i32 = arith.constant 0 : i32
    %c0_i32_0 = arith.constant 0 : i32
    %c0_i32_1 = arith.constant 0 : i32
    return %c0_i32, %c0_i32_0 : i32, i32
  }
  func.func @transform_3(%arg0: i32, %arg1: i32) -> (i32, i32, i32, i32) {
    %c0_i32 = arith.constant 0 : i32
    %c0_i32_0 = arith.constant 0 : i32
    %c0_i32_1 = arith.constant 0 : i32
    return %arg0, %arg1, %c0_i32, %c0_i32_0 : i32, i32, i32, i32
  }
}

</mosaic_0001>

<llo_original>
// kernel: double_conv.5
$region0: #{double_conv.5}
  #allocation0 [shape = 'u32[]', space=smem, size = 0x4, offset = 0x4, fixed_abs, tag = 'smem constant byte address 0x4 - core index']
  #allocation1 [shape = 'u32[144,128]{1,0:T(1,128)}', space=vmem, size = 0x12000, scoped, tag = 'internal scratch']
  %s0 = inlined_call_operand.vmem [shape: f32[2,16,16,128], index: 0, kind: input, shape index: {}]
  %s1 = inlined_call_operand.vmem [shape: f32[1,128], index: 1, kind: input, shape index: {}]
  %s2 = inlined_call_operand.vmem [shape: f32[1,128], index: 2, kind: input, shape index: {}]
  %s3 = inlined_call_operand.vmem [shape: f32[2,16,16,128], index: 3, kind: output, shape index: {}]
  %s4 = sld [smem:[#allocation0]]
  $region45: #{double_conv.5} parent=0
    _
  %s6 = ssub.s32 1, %s4
  %s7 = scalar_select 0, %s6, %s4
  loop: start=0, step=1, limit=4
  $region2: #{double_conv.5} parent=0 // loop_pre_header
    _
  $region3: #{double_conv.5} parent=0 // loop_header
    %s9 = sphi 0, %s13
    %p10 = scmp.ge.s32.totalorder %s9, 4
    %s16 = sphi 0, %s28
    %s17 = sphi 0, %s24
    %s18 = sphi 0, %s16
    %s19 = sphi 0, %s17
    %s20 = sphi 0, %s18
    %s21 = sphi 0, %s19
    %s33 = sphi 0, %s35
    %s36 = sphi 0, %s33
    %s37 = sphi 0, %s36
    %s53 = sphi 0, %s37
    %s57 = sphi 0, %s57
    %s59 = sphi 0, %s57
    %s60 = sphi 0, %s59
    %s74 = sphi 0, %s60
    %s78 = sphi 0, %s78
    %s80 = sphi 0, %s78
    %s81 = sphi 0, %s80
    %s95 = sphi 0, %s81
    %s103 = sphi 0, %s105
    %s106 = sphi 0, %s103
    %s107 = sphi 0, %s106
    %s123 = sphi 0, %s107
  $region4: #{double_conv.5} parent=0 // loop_header_branch
    %12 = sbr.rel (%p10) target = $region8
  $region5: #{double_conv.5} parent=0 // loop_body
    %s14 = ssub.s32 %s9, 1
    %s15 = ssub.s32 %s9, 2
    %s22 = sadd.s32 1, %s17
    %p23 = scmp.ge.s32.totalorder %s22, 1
    %s24 = scalar_select %p23, 0, %s22
    %s25 = sadd.s32 1, %s16
    %s26 = scalar_select %p23, %s25, %s16
    %p27 = scmp.ge.s32.totalorder %s26, 2
    %s28 = scalar_select %p27, 0, %s26
    %s29 = ssub.s32 %s16, %s28
    %s30 = ssub.s32 %s17, %s24
    %s31 = sor.u32 %s29, %s30
    %p32 = scmp.eq.s32.totalorder %s31, 0
    %s34 = sadd.s32 %s33, 1
    %s35 = scalar_select %p32, %s33, %s34
    %p38 = pneg %p32
    %p39 = scmp.eq.s32.totalorder %s9, 1
    %p40 = por %p38, %p39
    %p41 = scmp.ne.s32.totalorder %s33, %s36
    %p42 = scmp.eq.s32.totalorder %s9, 0
    %p43 = por %p41, %p42
    %p44 = scmp.ne.s32.totalorder %s33, %s36
    %p45 = scmp.eq.s32.totalorder %s14, 1
    %p46 = por %p44, %p45
    %p47 = scmp.ne.s32.totalorder %s36, %s37
    %p48 = scmp.eq.s32.totalorder %s14, 0
    %p49 = por %p47, %p48
    %p50 = scmp.ne.s32.totalorder %s36, %s37
    %p51 = scmp.eq.s32.totalorder %s15, 1
    %p52 = por %p50, %p51
    %p54 = scmp.ne.s32.totalorder %s37, %s53
    %p55 = scmp.eq.s32.totalorder %s15, 0
    %p56 = por %p54, %p55
    %s58 = sadd.s32 %s57, 1
    %p61 = scmp.eq.s32.totalorder %s9, 1
    %p62 = scmp.ne.s32.totalorder %s57, %s59
    %p63 = scmp.eq.s32.totalorder %s9, 0
    %p64 = por %p62, %p63
    %p65 = scmp.ne.s32.totalorder %s57, %s59
    %p66 = scmp.eq.s32.totalorder %s14, 1
    %p67 = por %p65, %p66
    %p68 = scmp.ne.s32.totalorder %s59, %s60
    %p69 = scmp.eq.s32.totalorder %s14, 0
    %p70 = por %p68, %p69
    %p71 = scmp.ne.s32.totalorder %s59, %s60
    %p72 = scmp.eq.s32.totalorder %s15, 1
    %p73 = por %p71, %p72
    %p75 = scmp.ne.s32.totalorder %s60, %s74
    %p76 = scmp.eq.s32.totalorder %s15, 0
    %p77 = por %p75, %p76
    %s79 = sadd.s32 %s78, 1
    %p82 = scmp.eq.s32.totalorder %s9, 1
    %p83 = scmp.ne.s32.totalorder %s78, %s80
    %p84 = scmp.eq.s32.totalorder %s9, 0
    %p85 = por %p83, %p84
    %p86 = scmp.ne.s32.totalorder %s78, %s80
    %p87 = scmp.eq.s32.totalorder %s14, 1
    %p88 = por %p86, %p87
    %p89 = scmp.ne.s32.totalorder %s80, %s81
    %p90 = scmp.eq.s32.totalorder %s14, 0
    %p91 = por %p89, %p90
    %p92 = scmp.ne.s32.totalorder %s80, %s81
    %p93 = scmp.eq.s32.totalorder %s15, 1
    %p94 = por %p92, %p93
    %p96 = scmp.ne.s32.totalorder %s81, %s95
    %p97 = scmp.eq.s32.totalorder %s15, 0
    %p98 = por %p96, %p97
    %s99 = ssub.s32 %s16, %s28
    %s100 = ssub.s32 %s17, %s24
    %s101 = sor.u32 %s99, %s100
    %p102 = scmp.eq.s32.totalorder %s101, 0
    %s104 = sadd.s32 %s103, 1
    %s105 = scalar_select %p102, %s103, %s104
    %p108 = pneg %p102
    %p109 = scmp.eq.s32.totalorder %s9, 1
    %p110 = por %p108, %p109
    %p111 = scmp.ne.s32.totalorder %s103, %s106
    %p112 = scmp.eq.s32.totalorder %s9, 0
    %p113 = por %p111, %p112
    %p114 = scmp.ne.s32.totalorder %s103, %s106
    %p115 = scmp.eq.s32.totalorder %s14, 1
    %p116 = por %p114, %p115
    %p117 = scmp.ne.s32.totalorder %s106, %s107
    %p118 = scmp.eq.s32.totalorder %s14, 0
    %p119 = por %p117, %p118
    %p120 = scmp.ne.s32.totalorder %s106, %s107
    %p121 = scmp.eq.s32.totalorder %s15, 1
    %p122 = por %p120, %p121
    %p124 = scmp.ne.s32.totalorder %s107, %s123
    %p125 = scmp.eq.s32.totalorder %s15, 0
    %p126 = por %p124, %p125
    %p127 = scmp.le.s32.totalorder 1, %s9
    %p128 = scmp.lt.s32.totalorder %s9, 3
    %p129 = pnand %p127, %p128
    %p130 = pneg %p129
    // Predicated region
    $region9: #{double_conv.5} parent=5 // pred_check
      _
    $region10: #{double_conv.5} parent=5 // pred_check_branch
      %132 = sbr.rel (%p129) target = $region12
    $region11: #{double_conv.5} parent=5 // pred_region
      %s133 = ssub.s32 %s9, 1
      // Predicated region
      $region13: #{double_conv.5} parent=11 // pred_check
        %p134 = pneg %p70
      $region14: #{double_conv.5} parent=11 // pred_check_branch
        %136 = sbr.rel (%p134) target = $region16
      $region15: #{double_conv.5} parent=11 // pred_region
        _
      $region16: #{double_conv.5} parent=11 // pred_fallthru
        _
      // Predicated region
      $region17: #{double_conv.5} parent=11 // pred_check
        %p137 = pneg %p91
      $region18: #{double_conv.5} parent=11 // pred_check_branch
        %139 = sbr.rel (%p137) target = $region20
      $region19: #{double_conv.5} parent=11 // pred_region
        _
      $region20: #{double_conv.5} parent=11 // pred_fallthru
        _
    $region12: #{double_conv.5} parent=5 // pred_fallthru
      _
    %p140 = scmp.lt.s32.totalorder %s9, 2
    // Predicated region
    $region21: #{double_conv.5} parent=5 // pred_check
      %p141 = pneg %p140
    $region22: #{double_conv.5} parent=5 // pred_check_branch
      %143 = sbr.rel (%p141) target = $region24
    $region23: #{double_conv.5} parent=5 // pred_region
      // Predicated region
      $region25: #{double_conv.5} parent=23 // pred_check
        %p144 = pneg %p43
      $region26: #{double_conv.5} parent=23 // pred_check_branch
        %146 = sbr.rel (%p144) target = $region28
      $region27: #{double_conv.5} parent=23 // pred_region
        %s147 = smul.u32 16, %s17
        %p148 = scmp.lt.s32.totalorder %s16, 1
        %s149 = scalar_select %p148, %s16, 1
        %p150 = scmp.lt.s32.totalorder %s147, 15
        %s151 = scalar_select %p150, %s147, 15
        %s152 = smul.addr %s151, 2
        %s153 = smul.addr %s149, 32
        %s154 = sadd.s32 %s152, %s153
        %s155 = smul.addr %s154, 8
        %s156 = scalar_lea.vmem %s0, %s155
        %s157 = smul.u32 16, %s17
      $region28: #{double_conv.5} parent=23 // pred_fallthru
        _
    $region24: #{double_conv.5} parent=5 // pred_fallthru
      _
    %p158 = scmp.le.s32.totalorder 1, %s9
    %p159 = scmp.lt.s32.totalorder %s9, 3
    %p160 = pnand %p158, %p159
    %p161 = pneg %p160
    // Predicated region
    $region29: #{double_conv.5} parent=5 // pred_check
      _
    $region30: #{double_conv.5} parent=5 // pred_check_branch
      %163 = sbr.rel (%p160) target = $region32
    $region31: #{double_conv.5} parent=5 // pred_region
      %s164 = ssub.s32 %s9, 1
      %s165 = smul.u32 16, %s19
      %p166 = scmp.lt.s32.totalorder %s18, 1
      %s167 = scalar_select %p166, %s18, 1
      %p168 = scmp.lt.s32.totalorder %s165, 15
      %s169 = scalar_select %p168, %s165, 15
      %s170 = smul.addr %s169, 2
      %s171 = smul.addr %s167, 32
      %s172 = sadd.s32 %s170, %s171
      %s173 = smul.addr %s172, 8
      %s174 = scalar_lea.vmem %s0, %s173
      %p175 = pneg %p49
      %p176 = pneg %p46
      %p177 = pneg %p70
      %p178 = pneg %p67
      %p179 = pneg %p91
      %p180 = pneg %p88
      %p181 = pneg %p119
      %p182 = pneg %p116
      %s183 = smul.u32 16, %s19
      %p184 = scmp.lt.s32.totalorder %s18, 1
      %s185 = scalar_select %p184, %s18, 1
      %p186 = scmp.lt.s32.totalorder %s183, 15
      %s187 = scalar_select %p186, %s183, 15
      %s188 = smul.addr %s187, 2
      %s189 = smul.addr %s185, 32
      %s190 = sadd.s32 %s188, %s189
      %s191 = smul.addr %s190, 8
      %s192 = scalar_lea.vmem %s3, %s191
      %s193 = smul.u32 16, %s19
      %p194 = scmp.lt.s32.totalorder %s18, 1
      %s195 = scalar_select %p194, %s18, 1
      %p196 = scmp.lt.s32.totalorder %s193, 15
      %s197 = scalar_select %p196, %s193, 15
      %s198 = smul.addr %s197, 2
      %s199 = smul.addr %s195, 32
      %s200 = sadd.s32 %s198, %s199
      %s201 = smul.addr %s200, 8
      %s202 = scalar_lea.vmem %s0, %s201
      %s203 = smul.u32 16, %s19
      %s204 = smul.u32 16, %s19
      %p205 = scmp.lt.s32.totalorder %s18, 1
      %s206 = scalar_select %p205, %s18, 1
      %p207 = scmp.lt.s32.totalorder %s204, 15
      %s208 = scalar_select %p207, %s204, 15
      %s209 = smul.addr %s208, 2
      %s210 = smul.addr %s206, 32
      %s211 = sadd.s32 %s209, %s210
      %s212 = smul.addr %s211, 8
      %s213 = scalar_lea.vmem %s3, %s212
      %s214 = smul.u32 16, %s19
      %v215 = vld [vmem:[%s202] sm:$0xff]
      %v216 = vld [vmem:[%s202 + $0x8] sm:$0xff]
      %v217 = vld [vmem:[%s202 + $0x10] sm:$0xff]
      %v218 = vld [vmem:[%s202 + $0x18] sm:$0xff]
      %v219 = vld [vmem:[%s202 + $0x20] sm:$0xff]
      %v220 = vld [vmem:[%s202 + $0x28] sm:$0xff]
      %v221 = vld [vmem:[%s202 + $0x30] sm:$0xff]
      %v222 = vld [vmem:[%s202 + $0x38] sm:$0xff]
      %v223 = vld [vmem:[%s202 + $0x40] sm:$0xff]
      %v224 = vld [vmem:[%s202 + $0x48] sm:$0xff]
      %v225 = vld [vmem:[%s202 + $0x50] sm:$0xff]
      %v226 = vld [vmem:[%s202 + $0x58] sm:$0xff]
      %v227 = vld [vmem:[%s202 + $0x60] sm:$0xff]
      %v228 = vld [vmem:[%s202 + $0x68] sm:$0xff]
      %v229 = vld [vmem:[%s202 + $0x70] sm:$0xff]
      %v230 = vld [vmem:[%s202 + $0x78] sm:$0xff]
      %v231 = vld [vmem:[%s202 + $0x80] sm:$0xff]
      %v232 = vld [vmem:[%s202 + $0x88] sm:$0xff]
      %v233 = vld [vmem:[%s202 + $0x90] sm:$0xff]
      %v234 = vld [vmem:[%s202 + $0x98] sm:$0xff]
      %v235 = vld [vmem:[%s202 + $0xa0] sm:$0xff]
      %v236 = vld [vmem:[%s202 + $0xa8] sm:$0xff]
      %v237 = vld [vmem:[%s202 + $0xb0] sm:$0xff]
      %v238 = vld [vmem:[%s202 + $0xb8] sm:$0xff]
      %v239 = vld [vmem:[%s202 + $0xc0] sm:$0xff]
      %v240 = vld [vmem:[%s202 + $0xc8] sm:$0xff]
      %v241 = vld [vmem:[%s202 + $0xd0] sm:$0xff]
      %v242 = vld [vmem:[%s202 + $0xd8] sm:$0xff]
      %v243 = vld [vmem:[%s202 + $0xe0] sm:$0xff]
      %v244 = vld [vmem:[%s202 + $0xe8] sm:$0xff]
      %v245 = vld [vmem:[%s202 + $0xf0] sm:$0xff]
      %v246 = vld [vmem:[%s202 + $0xf8] sm:$0xff]
      %v247 = vld [vmem:[%s1] sm:$0x1]
      %v249 = vlaneseq
      %v250 = vshrl.u32 %v249, 7
      %v251 = vsub.s32 0, %v250
      %v252 = vrot.slane %v247, %v251
      %v254 = vmul.f32 %v215, %v252
      %v255 = vmul.f32 %v216, %v252
      %v256 = vmul.f32 %v217, %v252
      %v257 = vmul.f32 %v218, %v252
      %v258 = vmul.f32 %v219, %v252
      %v259 = vmul.f32 %v220, %v252
      %v260 = vmul.f32 %v221, %v252
      %v261 = vmul.f32 %v222, %v252
      %v262 = vmul.f32 %v223, %v252
      %v263 = vmul.f32 %v224, %v252
      %v264 = vmul.f32 %v225, %v252
      %v265 = vmul.f32 %v226, %v252
      %v266 = vmul.f32 %v227, %v252
      %v267 = vmul.f32 %v228, %v252
      %v268 = vmul.f32 %v229, %v252
      %v269 = vmul.f32 %v230, %v252
      %v270 = vmul.f32 %v231, %v252
      %v271 = vmul.f32 %v232, %v252
      %v272 = vmul.f32 %v233, %v252
      %v273 = vmul.f32 %v234, %v252
      %v274 = vmul.f32 %v235, %v252
      %v275 = vmul.f32 %v236, %v252
      %v276 = vmul.f32 %v237, %v252
      %v277 = vmul.f32 %v238, %v252
      %v278 = vmul.f32 %v239, %v252
      %v279 = vmul.f32 %v240, %v252
      %v280 = vmul.f32 %v241, %v252
      %v281 = vmul.f32 %v242, %v252
      %v282 = vmul.f32 %v243, %v252
      %v283 = vmul.f32 %v244, %v252
      %v284 = vmul.f32 %v245, %v252
      %v285 = vmul.f32 %v246, %v252
      %v286 = vld [vmem:[%s2] sm:$0x1]
      %v288 = vlaneseq
      %v289 = vshrl.u32 %v288, 7
      %v290 = vsub.s32 0, %v289
      %v291 = vrot.slane %v286, %v290
      %v293 = vadd.f32 %v254, %v291
      %v294 = vadd.f32 %v255, %v291
      %v295 = vadd.f32 %v256, %v291
      %v296 = vadd.f32 %v257, %v291
      %v297 = vadd.f32 %v258, %v291
      %v298 = vadd.f32 %v259, %v291
      %v299 = vadd.f32 %v260, %v291
      %v300 = vadd.f32 %v261, %v291
      %v301 = vadd.f32 %v262, %v291
      %v302 = vadd.f32 %v263, %v291
      %v303 = vadd.f32 %v264, %v291
      %v304 = vadd.f32 %v265, %v291
      %v305 = vadd.f32 %v266, %v291
      %v306 = vadd.f32 %v267, %v291
      %v307 = vadd.f32 %v268, %v291
      %v308 = vadd.f32 %v269, %v291
      %v309 = vadd.f32 %v270, %v291
      %v310 = vadd.f32 %v271, %v291
      %v311 = vadd.f32 %v272, %v291
      %v312 = vadd.f32 %v273, %v291
      %v313 = vadd.f32 %v274, %v291
      %v314 = vadd.f32 %v275, %v291
      %v315 = vadd.f32 %v276, %v291
      %v316 = vadd.f32 %v277, %v291
      %v317 = vadd.f32 %v278, %v291
      %v318 = vadd.f32 %v279, %v291
      %v319 = vadd.f32 %v280, %v291
      %v320 = vadd.f32 %v281, %v291
      %v321 = vadd.f32 %v282, %v291
      %v322 = vadd.f32 %v283, %v291
      %v323 = vadd.f32 %v284, %v291
      %v324 = vadd.f32 %v285, %v291
      %v325 = vand.u32 2147483647, %v293
      %v326 = vand.u32 2147483647, %v294
      %v327 = vand.u32 2147483647, %v295
      %v328 = vand.u32 2147483647, %v296
      %v329 = vand.u32 2147483647, %v297
      %v330 = vand.u32 2147483647, %v298
      %v331 = vand.u32 2147483647, %v299
      %v332 = vand.u32 2147483647, %v300
      %v333 = vand.u32 2147483647, %v301
      %v334 = vand.u32 2147483647, %v302
      %v335 = vand.u32 2147483647, %v303
      %v336 = vand.u32 2147483647, %v304
      %v337 = vand.u32 2147483647, %v305
      %v338 = vand.u32 2147483647, %v306
      %v339 = vand.u32 2147483647, %v307
      %v340 = vand.u32 2147483647, %v308
      %v341 = vand.u32 2147483647, %v309
      %v342 = vand.u32 2147483647, %v310
      %v343 = vand.u32 2147483647, %v311
      %v344 = vand.u32 2147483647, %v312
      %v345 = vand.u32 2147483647, %v313
      %v346 = vand.u32 2147483647, %v314
      %v347 = vand.u32 2147483647, %v315
      %v348 = vand.u32 2147483647, %v316
      %v349 = vand.u32 2147483647, %v317
      %v350 = vand.u32 2147483647, %v318
      %v351 = vand.u32 2147483647, %v319
      %v352 = vand.u32 2147483647, %v320
      %v353 = vand.u32 2147483647, %v321
      %v354 = vand.u32 2147483647, %v322
      %v355 = vand.u32 2147483647, %v323
      %v356 = vand.u32 2147483647, %v324
      %v357 = vsub.f32 0.0, %v325
      %v358 = vsub.f32 0.0, %v326
      %v359 = vsub.f32 0.0, %v327
      %v360 = vsub.f32 0.0, %v328
      %v361 = vsub.f32 0.0, %v329
      %v362 = vsub.f32 0.0, %v330
      %v363 = vsub.f32 0.0, %v331
      %v364 = vsub.f32 0.0, %v332
      %v365 = vsub.f32 0.0, %v333
      %v366 = vsub.f32 0.0, %v334
      %v367 = vsub.f32 0.0, %v335
      %v368 = vsub.f32 0.0, %v336
      %v369 = vsub.f32 0.0, %v337
      %v370 = vsub.f32 0.0, %v338
      %v371 = vsub.f32 0.0, %v339
      %v372 = vsub.f32 0.0, %v340
      %v373 = vsub.f32 0.0, %v341
      %v374 = vsub.f32 0.0, %v342
      %v375 = vsub.f32 0.0, %v343
      %v376 = vsub.f32 0.0, %v344
      %v377 = vsub.f32 0.0, %v345
      %v378 = vsub.f32 0.0, %v346
      %v379 = vsub.f32 0.0, %v347
      %v380 = vsub.f32 0.0, %v348
      %v381 = vsub.f32 0.0, %v349
      %v382 = vsub.f32 0.0, %v350
      %v383 = vsub.f32 0.0, %v351
      %v384 = vsub.f32 0.0, %v352
      %v385 = vsub.f32 0.0, %v353
      %v386 = vsub.f32 0.0, %v354
      %v387 = vsub.f32 0.0, %v355
      %v388 = vsub.f32 0.0, %v356
      %v389 = vmul.f32 %v357, 1.442695
      %v390 = vpow.pop %v389
      %v391 = vmul.f32 %v358, 1.442695
      %v392 = vpow.pop %v391
      %v393 = vmul.f32 %v359, 1.442695
      %v394 = vpow.pop %v393
      %v395 = vmul.f32 %v360, 1.442695
      %v396 = vpow.pop %v395
      %v397 = vmul.f32 %v361, 1.442695
      %v398 = vpow.pop %v397
      %v399 = vmul.f32 %v362, 1.442695
      %v400 = vpow.pop %v399
      %v401 = vmul.f32 %v363, 1.442695
      %v402 = vpow.pop %v401
      %v403 = vmul.f32 %v364, 1.442695
      %v404 = vpow.pop %v403
      %v405 = vmul.f32 %v365, 1.442695
      %v406 = vpow.pop %v405
      %v407 = vmul.f32 %v366, 1.442695
      %v408 = vpow.pop %v407
      %v409 = vmul.f32 %v367, 1.442695
      %v410 = vpow.pop %v409
      %v411 = vmul.f32 %v368, 1.442695
      %v412 = vpow.pop %v411
      %v413 = vmul.f32 %v369, 1.442695
      %v414 = vpow.pop %v413
      %v415 = vmul.f32 %v370, 1.442695
      %v416 = vpow.pop %v415
      %v417 = vmul.f32 %v371, 1.442695
      %v418 = vpow.pop %v417
      %v419 = vmul.f32 %v372, 1.442695
      %v420 = vpow.pop %v419
      %v421 = vmul.f32 %v373, 1.442695
      %v422 = vpow.pop %v421
      %v423 = vmul.f32 %v374, 1.442695
      %v424 = vpow.pop %v423
      %v425 = vmul.f32 %v375, 1.442695
      %v426 = vpow.pop %v425
      %v427 = vmul.f32 %v376, 1.442695
      %v428 = vpow.pop %v427
      %v429 = vmul.f32 %v377, 1.442695
      %v430 = vpow.pop %v429
      %v431 = vmul.f32 %v378, 1.442695
      %v432 = vpow.pop %v431
      %v433 = vmul.f32 %v379, 1.442695
      %v434 = vpow.pop %v433
      %v435 = vmul.f32 %v380, 1.442695
      %v436 = vpow.pop %v435
      %v437 = vmul.f32 %v381, 1.442695
      %v438 = vpow.pop %v437
      %v439 = vmul.f32 %v382, 1.442695
      %v440 = vpow.pop %v439
      %v441 = vmul.f32 %v383, 1.442695
      %v442 = vpow.pop %v441
      %v443 = vmul.f32 %v384, 1.442695
      %v444 = vpow.pop %v443
      %v445 = vmul.f32 %v385, 1.442695
      %v446 = vpow.pop %v445
      %v447 = vmul.f32 %v386, 1.442695
      %v448 = vpow.pop %v447
      %v449 = vmul.f32 %v387, 1.442695
      %v450 = vpow.pop %v449
      %v451 = vmul.f32 %v388, 1.442695
      %v452 = vpow.pop %v451
      %v453 = vadd.f32 %v390, 1.0
      %v454 = vadd.f32 %v392, 1.0
      %v455 = vadd.f32 %v394, 1.0
      %v456 = vadd.f32 %v396, 1.0
      %v457 = vadd.f32 %v398, 1.0
      %v458 = vadd.f32 %v400, 1.0
      %v459 = vadd.f32 %v402, 1.0
      %v460 = vadd.f32 %v404, 1.0
      %v461 = vadd.f32 %v406, 1.0
      %v462 = vadd.f32 %v408, 1.0
      %v463 = vadd.f32 %v410, 1.0
      %v464 = vadd.f32 %v412, 1.0
      %v465 = vadd.f32 %v414, 1.0
      %v466 = vadd.f32 %v416, 1.0
      %v467 = vadd.f32 %v418, 1.0
      %v468 = vadd.f32 %v420, 1.0
      %v469 = vadd.f32 %v422, 1.0
      %v470 = vadd.f32 %v424, 1.0
      %v471 = vadd.f32 %v426, 1.0
      %v472 = vadd.f32 %v428, 1.0
      %v473 = vadd.f32 %v430, 1.0
      %v474 = vadd.f32 %v432, 1.0
      %v475 = vadd.f32 %v434, 1.0
      %v476 = vadd.f32 %v436, 1.0
      %v477 = vadd.f32 %v438, 1.0
      %v478 = vadd.f32 %v440, 1.0
      %v479 = vadd.f32 %v442, 1.0
      %v480 = vadd.f32 %v444, 1.0
      %v481 = vadd.f32 %v446, 1.0
      %v482 = vadd.f32 %v448, 1.0
      %v483 = vadd.f32 %v450, 1.0
      %v484 = vadd.f32 %v452, 1.0
      %v485 = vmul.f32 %v453, %v453
      %v486 = vmul.f32 %v454, %v454
      %v487 = vmul.f32 %v455, %v455
      %v488 = vmul.f32 %v456, %v456
      %v489 = vmul.f32 %v457, %v457
      %v490 = vmul.f32 %v458, %v458
      %v491 = vmul.f32 %v459, %v459
      %v492 = vmul.f32 %v460, %v460
      %v493 = vmul.f32 %v461, %v461
      %v494 = vmul.f32 %v462, %v462
      %v495 = vmul.f32 %v463, %v463
      %v496 = vmul.f32 %v464, %v464
      %v497 = vmul.f32 %v465, %v465
      %v498 = vmul.f32 %v466, %v466
      %v499 = vmul.f32 %v467, %v467
      %v500 = vmul.f32 %v468, %v468
      %v501 = vmul.f32 %v469, %v469
      %v502 = vmul.f32 %v470, %v470
      %v503 = vmul.f32 %v471, %v471
      %v504 = vmul.f32 %v472, %v472
      %v505 = vmul.f32 %v473, %v473
      %v506 = vmul.f32 %v474, %v474
      %v507 = vmul.f32 %v475, %v475
      %v508 = vmul.f32 %v476, %v476
      %v509 = vmul.f32 %v477, %v477
      %v510 = vmul.f32 %v478, %v478
      %v511 = vmul.f32 %v479, %v479
      %v512 = vmul.f32 %v480, %v480
      %v513 = vmul.f32 %v481, %v481
      %v514 = vmul.f32 %v482, %v482
      %v515 = vmul.f32 %v483, %v483
      %v516 = vmul.f32 %v484, %v484
      %vm517 = vcmp.ge.f32.partialorder %v293, 0.0
      %vm518 = vcmp.ge.f32.partialorder %v294, 0.0
      %vm519 = vcmp.ge.f32.partialorder %v295, 0.0
      %vm520 = vcmp.ge.f32.partialorder %v296, 0.0
      %vm521 = vcmp.ge.f32.partialorder %v297, 0.0
      %vm522 = vcmp.ge.f32.partialorder %v298, 0.0
      %vm523 = vcmp.ge.f32.partialorder %v299, 0.0
      %vm524 = vcmp.ge.f32.partialorder %v300, 0.0
      %vm525 = vcmp.ge.f32.partialorder %v301, 0.0
      %vm526 = vcmp.ge.f32.partialorder %v302, 0.0
      %vm527 = vcmp.ge.f32.partialorder %v303, 0.0
      %vm528 = vcmp.ge.f32.partialorder %v304, 0.0
      %vm529 = vcmp.ge.f32.partialorder %v305, 0.0
      %vm530 = vcmp.ge.f32.partialorder %v306, 0.0
      %vm531 = vcmp.ge.f32.partialorder %v307, 0.0
      %vm532 = vcmp.ge.f32.partialorder %v308, 0.0
      %vm533 = vcmp.ge.f32.partialorder %v309, 0.0
      %vm534 = vcmp.ge.f32.partialorder %v310, 0.0
      %vm535 = vcmp.ge.f32.partialorder %v311, 0.0
      %vm536 = vcmp.ge.f32.partialorder %v312, 0.0
      %vm537 = vcmp.ge.f32.partialorder %v313, 0.0
      %vm538 = vcmp.ge.f32.partialorder %v314, 0.0
      %vm539 = vcmp.ge.f32.partialorder %v315, 0.0
      %vm540 = vcmp.ge.f32.partialorder %v316, 0.0
      %vm541 = vcmp.ge.f32.partialorder %v317, 0.0
      %vm542 = vcmp.ge.f32.partialorder %v318, 0.0
      %vm543 = vcmp.ge.f32.partialorder %v319, 0.0
      %vm544 = vcmp.ge.f32.partialorder %v320, 0.0
      %vm545 = vcmp.ge.f32.partialorder %v321, 0.0
      %vm546 = vcmp.ge.f32.partialorder %v322, 0.0
      %vm547 = vcmp.ge.f32.partialorder %v323, 0.0
      %vm548 = vcmp.ge.f32.partialorder %v324, 0.0
      %v549 = vmul.f32 %v390, %v390
      %v550 = vmul.f32 %v392, %v392
      %v551 = vmul.f32 %v394, %v394
      %v552 = vmul.f32 %v396, %v396
      %v553 = vmul.f32 %v398, %v398
      %v554 = vmul.f32 %v400, %v400
      %v555 = vmul.f32 %v402, %v402
      %v556 = vmul.f32 %v404, %v404
      %v557 = vmul.f32 %v406, %v406
      %v558 = vmul.f32 %v408, %v408
      %v559 = vmul.f32 %v410, %v410
      %v560 = vmul.f32 %v412, %v412
      %v561 = vmul.f32 %v414, %v414
      %v562 = vmul.f32 %v416, %v416
      %v563 = vmul.f32 %v418, %v418
      %v564 = vmul.f32 %v420, %v420
      %v565 = vmul.f32 %v422, %v422
      %v566 = vmul.f32 %v424, %v424
      %v567 = vmul.f32 %v426, %v426
      %v568 = vmul.f32 %v428, %v428
      %v569 = vmul.f32 %v430, %v430
      %v570 = vmul.f32 %v432, %v432
      %v571 = vmul.f32 %v434, %v434
      %v572 = vmul.f32 %v436, %v436
      %v573 = vmul.f32 %v438, %v438
      %v574 = vmul.f32 %v440, %v440
      %v575 = vmul.f32 %v442, %v442
      %v576 = vmul.f32 %v444, %v444
      %v577 = vmul.f32 %v446, %v446
      %v578 = vmul.f32 %v448, %v448
      %v579 = vmul.f32 %v450, %v450
      %v580 = vmul.f32 %v452, %v452
      %v581 = vsel %vm517, %v549, 1.0
      %v582 = vsel %vm518, %v550, 1.0
      %v583 = vsel %vm519, %v551, 1.0
      %v584 = vsel %vm520, %v552, 1.0
      %v585 = vsel %vm521, %v553, 1.0
      %v586 = vsel %vm522, %v554, 1.0
      %v587 = vsel %vm523, %v555, 1.0
      %v588 = vsel %vm524, %v556, 1.0
      %v589 = vsel %vm525, %v557, 1.0
      %v590 = vsel %vm526, %v558, 1.0
      %v591 = vsel %vm527, %v559, 1.0
      %v592 = vsel %vm528, %v560, 1.0
      %v593 = vsel %vm529, %v561, 1.0
      %v594 = vsel %vm530, %v562, 1.0
      %v595 = vsel %vm531, %v563, 1.0
      %v596 = vsel %vm532, %v564, 1.0
      %v597 = vsel %vm533, %v565, 1.0
      %v598 = vsel %vm534, %v566, 1.0
      %v599 = vsel %vm535, %v567, 1.0
      %v600 = vsel %vm536, %v568, 1.0
      %v601 = vsel %vm537, %v569, 1.0
      %v602 = vsel %vm538, %v570, 1.0
      %v603 = vsel %vm539, %v571, 1.0
      %v604 = vsel %vm540, %v572, 1.0
      %v605 = vsel %vm541, %v573, 1.0
      %v606 = vsel %vm542, %v574, 1.0
      %v607 = vsel %vm543, %v575, 1.0
      %v608 = vsel %vm544, %v576, 1.0
      %v609 = vsel %vm545, %v577, 1.0
      %v610 = vsel %vm546, %v578, 1.0
      %v611 = vsel %vm547, %v579, 1.0
      %v612 = vsel %vm548, %v580, 1.0
      %v613 = vsub.f32 %v485, %v581
      %v614 = vsub.f32 %v486, %v582
      %v615 = vsub.f32 %v487, %v583
      %v616 = vsub.f32 %v488, %v584
      %v617 = vsub.f32 %v489, %v585
      %v618 = vsub.f32 %v490, %v586
      %v619 = vsub.f32 %v491, %v587
      %v620 = vsub.f32 %v492, %v588
      %v621 = vsub.f32 %v493, %v589
      %v622 = vsub.f32 %v494, %v590
      %v623 = vsub.f32 %v495, %v591
      %v624 = vsub.f32 %v496, %v592
      %v625 = vsub.f32 %v497, %v593
      %v626 = vsub.f32 %v498, %v594
      %v627 = vsub.f32 %v499, %v595
      %v628 = vsub.f32 %v500, %v596
      %v629 = vsub.f32 %v501, %v597
      %v630 = vsub.f32 %v502, %v598
      %v631 = vsub.f32 %v503, %v599
      %v632 = vsub.f32 %v504, %v600
      %v633 = vsub.f32 %v505, %v601
      %v634 = vsub.f32 %v506, %v602
      %v635 = vsub.f32 %v507, %v603
      %v636 = vsub.f32 %v508, %v604
      %v637 = vsub.f32 %v509, %v605
      %v638 = vsub.f32 %v510, %v606
      %v639 = vsub.f32 %v511, %v607
      %v640 = vsub.f32 %v512, %v608
      %v641 = vsub.f32 %v513, %v609
      %v642 = vsub.f32 %v514, %v610
      %v643 = vsub.f32 %v515, %v611
      %v644 = vsub.f32 %v516, %v612
      %v645 = vmul.f32 %v293, %v613
      %v646 = vmul.f32 %v294, %v614
      %v647 = vmul.f32 %v295, %v615
      %v648 = vmul.f32 %v296, %v616
      %v649 = vmul.f32 %v297, %v617
      %v650 = vmul.f32 %v298, %v618
      %v651 = vmul.f32 %v299, %v619
      %v652 = vmul.f32 %v300, %v620
      %v653 = vmul.f32 %v301, %v621
      %v654 = vmul.f32 %v302, %v622
      %v655 = vmul.f32 %v303, %v623
      %v656 = vmul.f32 %v304, %v624
      %v657 = vmul.f32 %v305, %v625
      %v658 = vmul.f32 %v306, %v626
      %v659 = vmul.f32 %v307, %v627
      %v660 = vmul.f32 %v308, %v628
      %v661 = vmul.f32 %v309, %v629
      %v662 = vmul.f32 %v310, %v630
      %v663 = vmul.f32 %v311, %v631
      %v664 = vmul.f32 %v312, %v632
      %v665 = vmul.f32 %v313, %v633
      %v666 = vmul.f32 %v314, %v634
      %v667 = vmul.f32 %v315, %v635
      %v668 = vmul.f32 %v316, %v636
      %v669 = vmul.f32 %v317, %v637
      %v670 = vmul.f32 %v318, %v638
      %v671 = vmul.f32 %v319, %v639
      %v672 = vmul.f32 %v320, %v640
      %v673 = vmul.f32 %v321, %v641
      %v674 = vmul.f32 %v322, %v642
      %v675 = vmul.f32 %v323, %v643
      %v676 = vmul.f32 %v324, %v644
      %v677 = vadd.f32 %v485, %v581
      %v678 = vadd.f32 %v486, %v582
      %v679 = vadd.f32 %v487, %v583
      %v680 = vadd.f32 %v488, %v584
      %v681 = vadd.f32 %v489, %v585
      %v682 = vadd.f32 %v490, %v586
      %v683 = vadd.f32 %v491, %v587
      %v684 = vadd.f32 %v492, %v588
      %v685 = vadd.f32 %v493, %v589
      %v686 = vadd.f32 %v494, %v590
      %v687 = vadd.f32 %v495, %v591
      %v688 = vadd.f32 %v496, %v592
      %v689 = vadd.f32 %v497, %v593
      %v690 = vadd.f32 %v498, %v594
      %v691 = vadd.f32 %v499, %v595
      %v692 = vadd.f32 %v500, %v596
      %v693 = vadd.f32 %v501, %v597
      %v694 = vadd.f32 %v502, %v598
      %v695 = vadd.f32 %v503, %v599
      %v696 = vadd.f32 %v504, %v600
      %v697 = vadd.f32 %v505, %v601
      %v698 = vadd.f32 %v506, %v602
      %v699 = vadd.f32 %v507, %v603
      %v700 = vadd.f32 %v508, %v604
      %v701 = vadd.f32 %v509, %v605
      %v702 = vadd.f32 %v510, %v606
      %v703 = vadd.f32 %v511, %v607
      %v704 = vadd.f32 %v512, %v608
      %v705 = vadd.f32 %v513, %v609
      %v706 = vadd.f32 %v514, %v610
      %v707 = vadd.f32 %v515, %v611
      %v708 = vadd.f32 %v516, %v612
      %v709 = vrcp.pop %v677
      %v710 = vmul.f32 %v645, %v709
      %v711 = vrcp.pop %v678
      %v712 = vmul.f32 %v646, %v711
      %v713 = vrcp.pop %v679
      %v714 = vmul.f32 %v647, %v713
      %v715 = vrcp.pop %v680
      %v716 = vmul.f32 %v648, %v715
      %v717 = vrcp.pop %v681
      %v718 = vmul.f32 %v649, %v717
      %v719 = vrcp.pop %v682
      %v720 = vmul.f32 %v650, %v719
      %v721 = vrcp.pop %v683
      %v722 = vmul.f32 %v651, %v721
      %v723 = vrcp.pop %v684
      %v724 = vmul.f32 %v652, %v723
      %v725 = vrcp.pop %v685
      %v726 = vmul.f32 %v653, %v725
      %v727 = vrcp.pop %v686
      %v728 = vmul.f32 %v654, %v727
      %v729 = vrcp.pop %v687
      %v730 = vmul.f32 %v655, %v729
      %v731 = vrcp.pop %v688
      %v732 = vmul.f32 %v656, %v731
      %v733 = vrcp.pop %v689
      %v734 = vmul.f32 %v657, %v733
      %v735 = vrcp.pop %v690
      %v736 = vmul.f32 %v658, %v735
      %v737 = vrcp.pop %v691
      %v738 = vmul.f32 %v659, %v737
      %v739 = vrcp.pop %v692
      %v740 = vmul.f32 %v660, %v739
      %v741 = vrcp.pop %v693
      %v742 = vmul.f32 %v661, %v741
      %v743 = vrcp.pop %v694
      %v744 = vmul.f32 %v662, %v743
      %v745 = vrcp.pop %v695
      %v746 = vmul.f32 %v663, %v745
      %v747 = vrcp.pop %v696
      %v748 = vmul.f32 %v664, %v747
      %v749 = vrcp.pop %v697
      %v750 = vmul.f32 %v665, %v749
      %v751 = vrcp.pop %v698
      %v752 = vmul.f32 %v666, %v751
      %v753 = vrcp.pop %v699
      %v754 = vmul.f32 %v667, %v753
      %v755 = vrcp.pop %v700
      %v756 = vmul.f32 %v668, %v755
      %v757 = vrcp.pop %v701
      %v758 = vmul.f32 %v669, %v757
      %v759 = vrcp.pop %v702
      %v760 = vmul.f32 %v670, %v759
      %v761 = vrcp.pop %v703
      %v762 = vmul.f32 %v671, %v761
      %v763 = vrcp.pop %v704
      %v764 = vmul.f32 %v672, %v763
      %v765 = vrcp.pop %v705
      %v766 = vmul.f32 %v673, %v765
      %v767 = vrcp.pop %v706
      %v768 = vmul.f32 %v674, %v767
      %v769 = vrcp.pop %v707
      %v770 = vmul.f32 %v675, %v769
      %v771 = vrcp.pop %v708
      %v772 = vmul.f32 %v676, %v771
      %773 = vst [vmem:[%s213] sm:$0xff] %v710
      %774 = vst [vmem:[%s213 + $0x8] sm:$0xff] %v712
      %775 = vst [vmem:[%s213 + $0x10] sm:$0xff] %v714
      %776 = vst [vmem:[%s213 + $0x18] sm:$0xff] %v716
      %777 = vst [vmem:[%s213 + $0x20] sm:$0xff] %v718
      %778 = vst [vmem:[%s213 + $0x28] sm:$0xff] %v720
      %779 = vst [vmem:[%s213 + $0x30] sm:$0xff] %v722
      %780 = vst [vmem:[%s213 + $0x38] sm:$0xff] %v724
      %781 = vst [vmem:[%s213 + $0x40] sm:$0xff] %v726
      %782 = vst [vmem:[%s213 + $0x48] sm:$0xff] %v728
      %783 = vst [vmem:[%s213 + $0x50] sm:$0xff] %v730
      %784 = vst [vmem:[%s213 + $0x58] sm:$0xff] %v732
      %785 = vst [vmem:[%s213 + $0x60] sm:$0xff] %v734
      %786 = vst [vmem:[%s213 + $0x68] sm:$0xff] %v736
      %787 = vst [vmem:[%s213 + $0x70] sm:$0xff] %v738
      %788 = vst [vmem:[%s213 + $0x78] sm:$0xff] %v740
      %789 = vst [vmem:[%s213 + $0x80] sm:$0xff] %v742
      %790 = vst [vmem:[%s213 + $0x88] sm:$0xff] %v744
      %791 = vst [vmem:[%s213 + $0x90] sm:$0xff] %v746
      %792 = vst [vmem:[%s213 + $0x98] sm:$0xff] %v748
      %793 = vst [vmem:[%s213 + $0xa0] sm:$0xff] %v750
      %794 = vst [vmem:[%s213 + $0xa8] sm:$0xff] %v752
      %795 = vst [vmem:[%s213 + $0xb0] sm:$0xff] %v754
      %796 = vst [vmem:[%s213 + $0xb8] sm:$0xff] %v756
      %797 = vst [vmem:[%s213 + $0xc0] sm:$0xff] %v758
      %798 = vst [vmem:[%s213 + $0xc8] sm:$0xff] %v760
      %799 = vst [vmem:[%s213 + $0xd0] sm:$0xff] %v762
      %800 = vst [vmem:[%s213 + $0xd8] sm:$0xff] %v764
      %801 = vst [vmem:[%s213 + $0xe0] sm:$0xff] %v766
      %802 = vst [vmem:[%s213 + $0xe8] sm:$0xff] %v768
      %803 = vst [vmem:[%s213 + $0xf0] sm:$0xff] %v770
      %804 = vst [vmem:[%s213 + $0xf8] sm:$0xff] %v772
      %s805 = smul.u32 16, %s19
      %p806 = scmp.lt.s32.totalorder %s18, 1
      %s807 = scalar_select %p806, %s18, 1
      %p808 = scmp.lt.s32.totalorder %s805, 15
      %s809 = scalar_select %p808, %s805, 15
      %s810 = smul.addr %s809, 2
      %s811 = smul.addr %s807, 32
      %s812 = sadd.s32 %s810, %s811
      %s813 = smul.addr %s812, 8
      %s814 = scalar_lea.vmem %s3, %s813
      // Predicated region
      $region33: #{double_conv.5} parent=31 // pred_check
        %p815 = pneg %p116
      $region34: #{double_conv.5} parent=31 // pred_check_branch
        %817 = sbr.rel (%p815) target = $region36
      $region35: #{double_conv.5} parent=31 // pred_region
        %s818 = smul.u32 16, %s19
      $region36: #{double_conv.5} parent=31 // pred_fallthru
        _
    $region32: #{double_conv.5} parent=5 // pred_fallthru
      _
    %p819 = scmp.le.s32.totalorder 2, %s9
    // Predicated region
    $region37: #{double_conv.5} parent=5 // pred_check
      %p820 = pneg %p819
    $region38: #{double_conv.5} parent=5 // pred_check_branch
      %822 = sbr.rel (%p820) target = $region40
    $region39: #{double_conv.5} parent=5 // pred_region
      %s823 = ssub.s32 %s9, 2
      // Predicated region
      $region41: #{double_conv.5} parent=39 // pred_check
        %p824 = pneg %p122
      $region42: #{double_conv.5} parent=39 // pred_check_branch
        %826 = sbr.rel (%p824) target = $region44
      $region43: #{double_conv.5} parent=39 // pred_region
        %s827 = smul.u32 16, %s21
        %p828 = scmp.lt.s32.totalorder %s20, 1
        %s829 = scalar_select %p828, %s20, 1
        %p830 = scmp.lt.s32.totalorder %s827, 15
        %s831 = scalar_select %p830, %s827, 15
        %s832 = smul.addr %s831, 2
        %s833 = smul.addr %s829, 32
        %s834 = sadd.s32 %s832, %s833
        %s835 = smul.addr %s834, 8
        %s836 = scalar_lea.vmem %s3, %s835
      $region44: #{double_conv.5} parent=39 // pred_fallthru
        _
    $region40: #{double_conv.5} parent=5 // pred_fallthru
      _
  $region6: #{double_conv.5} parent=0 // loop_footer
    %s13 = sadd.s32 1, %s9
  $region7: #{double_conv.5} parent=0 // loop_footer_branch
    %8 = sbr.rel target = $region3
  $region8: #{double_conv.5} parent=0 // loop_exit
    _

// kernel: double_conv.3
$region0: #{double_conv.3}
  #allocation0 [shape = 'u32[]', space=smem, size = 0x4, offset = 0x4, fixed_abs, tag = 'smem constant byte address 0x4 - core index']
  #allocation1 [shape = 'u32[144,128]{1,0:T(1,128)}', space=vmem, size = 0x12000, scoped, tag = 'internal scratch']
  #allocation2 [shape = 'f32[18,18,128]{2,1,0:T(8,128)}', space=vmem, size = 0x36000, scoped, tag = 'scratch operand']
  #allocation3 [shape = 'f32[16,16,128]{2,1,0:T(8,128)}', space=vmem, size = 0x20000, scoped, tag = 'scratch operand']
  #allocation4 [shape = 's32[2]{0}', space=sflag, size = 0x8, scoped, tag = 'scratch operand']
  #allocation5 [shape = 'f32[256,128]{1,0:T(8,128)}', space=vmem, size = 0x20000, scoped, tag = 'scratch operand']
  #allocation6 [shape = 's32[]', space=sflag, size = 0x4, offset = 0, fixed_abs, tag = 'sflag constant byte address 0x0 - dummy sync flag']
  #allocation7 [shape = 's32[]', space=sflag, size = 0x4, offset = 0, fixed_abs, tag = 'sflag constant byte address 0x0 - dummy sync flag']
  %s0 = inlined_call_operand.vmem [shape: f32[2,18,18,128], index: 0, kind: input, shape index: {}]
  %s1 = inlined_call_operand.vmem [shape: f32[3,384,128], index: 1, kind: input, shape index: {}]
  %s2 = inlined_call_operand.vmem [shape: f32[1,128], index: 2, kind: input, shape index: {}]
  %s3 = inlined_call_operand.vmem [shape: f32[1,128], index: 3, kind: input, shape index: {}]
  %s4 = inlined_call_operand.vmem [shape: f32[1,128], index: 4, kind: input, shape index: {}]
  %s5 = inlined_call_operand.vmem [shape: f32[2,18,18,128], index: 5, kind: output, shape index: {0}]
  %s6 = inlined_call_operand.vmem [shape: f32[2,1,2,128], index: 6, kind: output, shape index: {1}]
  %7 = xla_tuple %s5, %s6
  %s8 = sld [smem:[#allocation0]]
  $region120: #{double_conv.3} parent=0
    _
  %s10 = ssub.s32 1, %s8
  %s11 = scalar_select 0, %s10, %s8
  loop: start=0, step=1, limit=4
  $region2: #{double_conv.3} parent=0 // loop_pre_header
    _
  $region3: #{double_conv.3} parent=0 // loop_header
    %s13 = sphi 0, %s17
    %p14 = scmp.ge.s32.totalorder %s13, 4
    %s20 = sphi 0, %s32
    %s21 = sphi 0, %s28
    %s22 = sphi 0, %s20
    %s23 = sphi 0, %s21
    %s24 = sphi 0, %s22
    %s25 = sphi 0, %s23
    %s33 = sphi 0, %s33
    %s35 = sphi 0, %s33
    %s36 = sphi 0, %s35
    %s50 = sphi 0, %s36
    %s54 = sphi 0, %s54
    %s56 = sphi 0, %s54
    %s57 = sphi 0, %s56
    %s71 = sphi 0, %s57
    %s75 = sphi 0, %s75
    %s77 = sphi 0, %s75
    %s78 = sphi 0, %s77
    %s92 = sphi 0, %s78
    %s96 = sphi 0, %s96
    %s98 = sphi 0, %s96
    %s99 = sphi 0, %s98
    %s113 = sphi 0, %s99
    %s121 = sphi 0, %s123
    %s124 = sphi 0, %s121
    %s125 = sphi 0, %s124
    %s141 = sphi 0, %s125
  $region4: #{double_conv.3} parent=0 // loop_header_branch
    %16 = sbr.rel (%p14) target = $region8
  $region5: #{double_conv.3} parent=0 // loop_body
    %s18 = ssub.s32 %s13, 1
    %s19 = ssub.s32 %s13, 2
    %s26 = sadd.s32 1, %s21
    %p27 = scmp.ge.s32.totalorder %s26, 1
    %s28 = scalar_select %p27, 0, %s26
    %s29 = sadd.s32 1, %s20
    %s30 = scalar_select %p27, %s29, %s20
    %p31 = scmp.ge.s32.totalorder %s30, 2
    %s32 = scalar_select %p31, 0, %s30
    %s34 = sadd.s32 %s33, 1
    %p37 = scmp.eq.s32.totalorder %s13, 1
    %p38 = scmp.ne.s32.totalorder %s33, %s35
    %p39 = scmp.eq.s32.totalorder %s13, 0
    %p40 = por %p38, %p39
    %p41 = scmp.ne.s32.totalorder %s33, %s35
    %p42 = scmp.eq.s32.totalorder %s18, 1
    %p43 = por %p41, %p42
    %p44 = scmp.ne.s32.totalorder %s35, %s36
    %p45 = scmp.eq.s32.totalorder %s18, 0
    %p46 = por %p44, %p45
    %p47 = scmp.ne.s32.totalorder %s35, %s36
    %p48 = scmp.eq.s32.totalorder %s19, 1
    %p49 = por %p47, %p48
    %p51 = scmp.ne.s32.totalorder %s36, %s50
    %p52 = scmp.eq.s32.totalorder %s19, 0
    %p53 = por %p51, %p52
    %s55 = sadd.s32 %s54, 1
    %p58 = scmp.eq.s32.totalorder %s13, 1
    %p59 = scmp.ne.s32.totalorder %s54, %s56
    %p60 = scmp.eq.s32.totalorder %s13, 0
    %p61 = por %p59, %p60
    %p62 = scmp.ne.s32.totalorder %s54, %s56
    %p63 = scmp.eq.s32.totalorder %s18, 1
    %p64 = por %p62, %p63
    %p65 = scmp.ne.s32.totalorder %s56, %s57
    %p66 = scmp.eq.s32.totalorder %s18, 0
    %p67 = por %p65, %p66
    %p68 = scmp.ne.s32.totalorder %s56, %s57
    %p69 = scmp.eq.s32.totalorder %s19, 1
    %p70 = por %p68, %p69
    %p72 = scmp.ne.s32.totalorder %s57, %s71
    %p73 = scmp.eq.s32.totalorder %s19, 0
    %p74 = por %p72, %p73
    %s76 = sadd.s32 %s75, 1
    %p79 = scmp.eq.s32.totalorder %s13, 1
    %p80 = scmp.ne.s32.totalorder %s75, %s77
    %p81 = scmp.eq.s32.totalorder %s13, 0
    %p82 = por %p80, %p81
    %p83 = scmp.ne.s32.totalorder %s75, %s77
    %p84 = scmp.eq.s32.totalorder %s18, 1
    %p85 = por %p83, %p84
    %p86 = scmp.ne.s32.totalorder %s77, %s78
    %p87 = scmp.eq.s32.totalorder %s18, 0
    %p88 = por %p86, %p87
    %p89 = scmp.ne.s32.totalorder %s77, %s78
    %p90 = scmp.eq.s32.totalorder %s19, 1
    %p91 = por %p89, %p90
    %p93 = scmp.ne.s32.totalorder %s78, %s92
    %p94 = scmp.eq.s32.totalorder %s19, 0
    %p95 = por %p93, %p94
    %s97 = sadd.s32 %s96, 1
    %p100 = scmp.eq.s32.totalorder %s13, 1
    %p101 = scmp.ne.s32.totalorder %s96, %s98
    %p102 = scmp.eq.s32.totalorder %s13, 0
    %p103 = por %p101, %p102
    %p104 = scmp.ne.s32.totalorder %s96, %s98
    %p105 = scmp.eq.s32.totalorder %s18, 1
    %p106 = por %p104, %p105
    %p107 = scmp.ne.s32.totalorder %s98, %s99
    %p108 = scmp.eq.s32.totalorder %s18, 0
    %p109 = por %p107, %p108
    %p110 = scmp.ne.s32.totalorder %s98, %s99
    %p111 = scmp.eq.s32.totalorder %s19, 1
    %p112 = por %p110, %p111
    %p114 = scmp.ne.s32.totalorder %s99, %s113
    %p115 = scmp.eq.s32.totalorder %s19, 0
    %p116 = por %p114, %p115
    %s117 = ssub.s32 %s20, %s32
    %s118 = ssub.s32 %s21, %s28
    %s119 = sor.u32 %s117, %s118
    %p120 = scmp.eq.s32.totalorder %s119, 0
    %s122 = sadd.s32 %s121, 1
    %s123 = scalar_select %p120, %s121, %s122
    %p126 = pneg %p120
    %p127 = scmp.eq.s32.totalorder %s13, 1
    %p128 = por %p126, %p127
    %p129 = scmp.ne.s32.totalorder %s121, %s124
    %p130 = scmp.eq.s32.totalorder %s13, 0
    %p131 = por %p129, %p130
    %p132 = scmp.ne.s32.totalorder %s121, %s124
    %p133 = scmp.eq.s32.totalorder %s18, 1
    %p134 = por %p132, %p133
    %p135 = scmp.ne.s32.totalorder %s124, %s125
    %p136 = scmp.eq.s32.totalorder %s18, 0
    %p137 = por %p135, %p136
    %p138 = scmp.ne.s32.totalorder %s124, %s125
    %p139 = scmp.eq.s32.totalorder %s19, 1
    %p140 = por %p138, %p139
    %p142 = scmp.ne.s32.totalorder %s125, %s141
    %p143 = scmp.eq.s32.totalorder %s19, 0
    %p144 = por %p142, %p143
    %p145 = scmp.le.s32.totalorder 1, %s13
    %p146 = scmp.lt.s32.totalorder %s13, 3
    %p147 = pnand %p145, %p146
    %p148 = pneg %p147
    // Predicated region
    $region9: #{double_conv.3} parent=5 // pred_check
      _
    $region10: #{double_conv.3} parent=5 // pred_check_branch
      %150 = sbr.rel (%p147) target = $region12
    $region11: #{double_conv.3} parent=5 // pred_region
      %s151 = ssub.s32 %s13, 1
      // Predicated region
      $region13: #{double_conv.3} parent=11 // pred_check
        %p152 = pneg %p46
      $region14: #{double_conv.3} parent=11 // pred_check_branch
        %154 = sbr.rel (%p152) target = $region16
      $region15: #{double_conv.3} parent=11 // pred_region
        _
      $region16: #{double_conv.3} parent=11 // pred_fallthru
        _
      // Predicated region
      $region17: #{double_conv.3} parent=11 // pred_check
        %p155 = pneg %p67
      $region18: #{double_conv.3} parent=11 // pred_check_branch
        %157 = sbr.rel (%p155) target = $region20
      $region19: #{double_conv.3} parent=11 // pred_region
        _
      $region20: #{double_conv.3} parent=11 // pred_fallthru
        _
      // Predicated region
      $region21: #{double_conv.3} parent=11 // pred_check
        %p158 = pneg %p88
      $region22: #{double_conv.3} parent=11 // pred_check_branch
        %160 = sbr.rel (%p158) target = $region24
      $region23: #{double_conv.3} parent=11 // pred_region
        _
      $region24: #{double_conv.3} parent=11 // pred_fallthru
        _
      // Predicated region
      $region25: #{double_conv.3} parent=11 // pred_check
        %p161 = pneg %p109
      $region26: #{double_conv.3} parent=11 // pred_check_branch
        %163 = sbr.rel (%p161) target = $region28
      $region27: #{double_conv.3} parent=11 // pred_region
        _
      $region28: #{double_conv.3} parent=11 // pred_fallthru
        _
    $region12: #{double_conv.3} parent=5 // pred_fallthru
      _
    %p164 = scmp.lt.s32.totalorder %s13, 2
    // Predicated region
    $region29: #{double_conv.3} parent=5 // pred_check
      %p165 = pneg %p164
    $region30: #{double_conv.3} parent=5 // pred_check_branch
      %167 = sbr.rel (%p165) target = $region32
    $region31: #{double_conv.3} parent=5 // pred_region
      _
    $region32: #{double_conv.3} parent=5 // pred_fallthru
      _
    %p168 = scmp.le.s32.totalorder 1, %s13
    %p169 = scmp.lt.s32.totalorder %s13, 3
    %p170 = pnand %p168, %p169
    %p171 = pneg %p170
    // Predicated region
    $region33: #{double_conv.3} parent=5 // pred_check
      _
    $region34: #{double_conv.3} parent=5 // pred_check_branch
      %173 = sbr.rel (%p170) target = $region36
    $region35: #{double_conv.3} parent=5 // pred_region
      %s174 = ssub.s32 %s13, 1
      %p175 = pneg %p46
      %p176 = pneg %p43
      %p177 = pneg %p67
      %p178 = pneg %p64
      %p179 = pneg %p88
      %p180 = pneg %p85
      %p181 = pneg %p109
      %p182 = pneg %p106
      %p183 = pneg %p137
      %p184 = pneg %p134
      %p185 = scmp.lt.s32.totalorder %s22, 1
      %s186 = scalar_select %p185, %s22, 1
      %p187 = scmp.lt.s32.totalorder %s23, 0
      %s188 = scalar_select %p187, %s23, 0
      %s189 = sadd.s32 %s188, %s186
      %s190 = smul.addr %s189, 2
      %s191 = scalar_lea.vmem %s6, %s190
      %p192 = scmp.lt.s32.totalorder %s22, 1
      %s193 = scalar_select %p192, %s22, 1
      %p194 = scmp.lt.s32.totalorder %s23, 0
      %s195 = scalar_select %p194, %s23, 0
      %s196 = sadd.s32 %s195, %s193
      %s197 = smul.addr %s196, 2
      %s198 = scalar_lea.vmem %s6, %s197
      %s199 = smul.u32 %s23, 16
      %s200 = smul.u32 %s199, 24
      %s201 = smul.u32 %s22, 432
      %s202 = sadd.s32 %s200, %s201
      %s203 = scalar_lea.vmem %s0, %s202
      %p205 = scmp.lt.u32.totalorder 18, 8
      %p206 = pneg %p205
      // Predicated region
      $region37: #{double_conv.3} parent=35 // pred_check
        _
      $region38: #{double_conv.3} parent=35 // pred_check_branch
        %208 = sbr.rel (%p205) target = $region40
      $region39: #{double_conv.3} parent=35 // pred_region
        %s257 = sand.u32 18, 7
        %p258 = scmp.eq.s32.totalorder %s257, 0
        %p259 = pneg %p258
        // Predicated region
        $region52: #{double_conv.3} parent=39 // pred_check
          _
        $region53: #{double_conv.3} parent=39 // pred_check_branch
          %261 = sbr.rel (%p258) target = $region55
        $region54: #{double_conv.3} parent=39 // pred_region
          %s262 = sand.u32 18, 7
          %s263 = ssub.s32 18, %s262
          %s264 = scalar_lea.vmem %s203, %s263
          %s265 = ssub.s32 18, %s262
          %s266 = scalar_lea.vmem [#allocation2], %s265
          loop: start=0, step=1, limit=1
          $region56: #{double_conv.3} parent=54 // loop_pre_header
            _
          $region57: #{double_conv.3} parent=54 // loop_header
            %s268 = sphi 0, %s272
            %p269 = scmp.ge.s32.totalorder %s268, 1
            %s273 = sphi %s203, %s203
            %s274 = sphi [#allocation2], [#allocation2]
          $region58: #{double_conv.3} parent=54 // loop_header_branch
            %271 = sbr.rel (%p269) target = $region62
          $region59: #{double_conv.3} parent=54 // loop_body
            %v275 = vld [vmem:[%s273] sm:$0xff]
            %276 = vst [vmem:[%s274] sm:$0xff] %v275
            %v277 = vld [vmem:[%s273 + $0x8] sm:$0xff]
            %278 = vst [vmem:[%s274 + $0x8] sm:$0xff] %v277
            %v279 = vld [vmem:[%s273 + $0x18] sm:$0xff]
            %280 = vst [vmem:[%s274 + $0x18] sm:$0xff] %v279
            %v281 = vld [vmem:[%s273 + $0x20] sm:$0xff]
            %282 = vst [vmem:[%s274 + $0x20] sm:$0xff] %v281
            %v283 = vld [vmem:[%s273 + $0x30] sm:$0xff]
            %284 = vst [vmem:[%s274 + $0x30] sm:$0xff] %v283
            %v285 = vld [vmem:[%s273 + $0x38] sm:$0xff]
            %286 = vst [vmem:[%s274 + $0x38] sm:$0xff] %v285
            %v287 = vld [vmem:[%s273 + $0x48] sm:$0xff]
            %288 = vst [vmem:[%s274 + $0x48] sm:$0xff] %v287
            %v289 = vld [vmem:[%s273 + $0x50] sm:$0xff]
            %290 = vst [vmem:[%s274 + $0x50] sm:$0xff] %v289
            %v291 = vld [vmem:[%s273 + $0x60] sm:$0xff]
            %292 = vst [vmem:[%s274 + $0x60] sm:$0xff] %v291
            %v293 = vld [vmem:[%s273 + $0x68] sm:$0xff]
            %294 = vst [vmem:[%s274 + $0x68] sm:$0xff] %v293
            %v295 = vld [vmem:[%s273 + $0x78] sm:$0xff]
            %296 = vst [vmem:[%s274 + $0x78] sm:$0xff] %v295
            %v297 = vld [vmem:[%s273 + $0x80] sm:$0xff]
            %298 = vst [vmem:[%s274 + $0x80] sm:$0xff] %v297
            %v299 = vld [vmem:[%s273 + $0x90] sm:$0xff]
            %300 = vst [vmem:[%s274 + $0x90] sm:$0xff] %v299
            %v301 = vld [vmem:[%s273 + $0x98] sm:$0xff]
            %302 = vst [vmem:[%s274 + $0x98] sm:$0xff] %v301
            %v303 = vld [vmem:[%s273 + $0xa8] sm:$0xff]
            %304 = vst [vmem:[%s274 + $0xa8] sm:$0xff] %v303
            %v305 = vld [vmem:[%s273 + $0xb0] sm:$0xff]
            %306 = vst [vmem:[%s274 + $0xb0] sm:$0xff] %v305
            %v307 = vld [vmem:[%s273 + $0xc0] sm:$0xff]
            %308 = vst [vmem:[%s274 + $0xc0] sm:$0xff] %v307
            %v309 = vld [vmem:[%s273 + $0xc8] sm:$0xff]
            %310 = vst [vmem:[%s274 + $0xc8] sm:$0xff] %v309
            %v311 = vld [vmem:[%s273 + $0xd8] sm:$0xff]
            %312 = vst [vmem:[%s274 + $0xd8] sm:$0xff] %v311
            %v313 = vld [vmem:[%s273 + $0xe0] sm:$0xff]
            %314 = vst [vmem:[%s274 + $0xe0] sm:$0xff] %v313
            %v315 = vld [vmem:[%s273 + $0xf0] sm:$0xff]
            %316 = vst [vmem:[%s274 + $0xf0] sm:$0xff] %v315
            %v317 = vld [vmem:[%s273 + $0xf8] sm:$0xff]
            %318 = vst [vmem:[%s274 + $0xf8] sm:$0xff] %v317
            %v319 = vld [vmem:[%s273 + $0x108] sm:$0xff]
            %320 = vst [vmem:[%s274 + $0x108] sm:$0xff] %v319
            %v321 = vld [vmem:[%s273 + $0x110] sm:$0xff]
            %322 = vst [vmem:[%s274 + $0x110] sm:$0xff] %v321
            %v323 = vld [vmem:[%s273 + $0x120] sm:$0xff]
            %324 = vst [vmem:[%s274 + $0x120] sm:$0xff] %v323
            %v325 = vld [vmem:[%s273 + $0x128] sm:$0xff]
            %326 = vst [vmem:[%s274 + $0x128] sm:$0xff] %v325
            %v327 = vld [vmem:[%s273 + $0x138] sm:$0xff]
            %328 = vst [vmem:[%s274 + $0x138] sm:$0xff] %v327
            %v329 = vld [vmem:[%s273 + $0x140] sm:$0xff]
            %330 = vst [vmem:[%s274 + $0x140] sm:$0xff] %v329
            %v331 = vld [vmem:[%s273 + $0x150] sm:$0xff]
            %332 = vst [vmem:[%s274 + $0x150] sm:$0xff] %v331
            %v333 = vld [vmem:[%s273 + $0x158] sm:$0xff]
            %334 = vst [vmem:[%s274 + $0x158] sm:$0xff] %v333
            %v335 = vld [vmem:[%s273 + $0x168] sm:$0xff]
            %336 = vst [vmem:[%s274 + $0x168] sm:$0xff] %v335
            %v337 = vld [vmem:[%s273 + $0x170] sm:$0xff]
            %338 = vst [vmem:[%s274 + $0x170] sm:$0xff] %v337
            %v339 = vld [vmem:[%s273 + $0x180] sm:$0xff]
            %340 = vst [vmem:[%s274 + $0x180] sm:$0xff] %v339
            %v341 = vld [vmem:[%s273 + $0x188] sm:$0xff]
            %342 = vst [vmem:[%s274 + $0x188] sm:$0xff] %v341
            %v343 = vld [vmem:[%s273 + $0x198] sm:$0xff]
            %344 = vst [vmem:[%s274 + $0x198] sm:$0xff] %v343
            %v345 = vld [vmem:[%s273 + $0x1a0] sm:$0xff]
            %346 = vst [vmem:[%s274 + $0x1a0] sm:$0xff] %v345
          $region60: #{double_conv.3} parent=54 // loop_footer
            %s272 = sadd.s32 1, %s268
          $region61: #{double_conv.3} parent=54 // loop_footer_branch
            %267 = sbr.rel target = $region57
          $region62: #{double_conv.3} parent=54 // loop_exit
            _
          %s347 = sshllo.u32 0, %s262
          loop: start=0, step=1, limit=1
          $region63: #{double_conv.3} parent=54 // loop_pre_header
            _
          $region64: #{double_conv.3} parent=54 // loop_header
            %s349 = sphi 0, %s353
            %p350 = scmp.ge.s32.totalorder %s349, 1
            %s354 = sphi %s264, %s264
            %s355 = sphi %s266, %s266
          $region65: #{double_conv.3} parent=54 // loop_header_branch
            %352 = sbr.rel (%p350) target = $region69
          $region66: #{double_conv.3} parent=54 // loop_body
            %v356 = vld [vmem:[%s354] sm:%s347]
            %357 = vst [vmem:[%s355] sm:%s347] %v356
            %v358 = vld [vmem:[%s354 + $0x18] sm:%s347]
            %359 = vst [vmem:[%s355 + $0x18] sm:%s347] %v358
            %v360 = vld [vmem:[%s354 + $0x30] sm:%s347]
            %361 = vst [vmem:[%s355 + $0x30] sm:%s347] %v360
            %v362 = vld [vmem:[%s354 + $0x48] sm:%s347]
            %363 = vst [vmem:[%s355 + $0x48] sm:%s347] %v362
            %v364 = vld [vmem:[%s354 + $0x60] sm:%s347]
            %365 = vst [vmem:[%s355 + $0x60] sm:%s347] %v364
            %v366 = vld [vmem:[%s354 + $0x78] sm:%s347]
            %367 = vst [vmem:[%s355 + $0x78] sm:%s347] %v366
            %v368 = vld [vmem:[%s354 + $0x90] sm:%s347]
            %369 = vst [vmem:[%s355 + $0x90] sm:%s347] %v368
            %v370 = vld [vmem:[%s354 + $0xa8] sm:%s347]
            %371 = vst [vmem:[%s355 + $0xa8] sm:%s347] %v370
            %v372 = vld [vmem:[%s354 + $0xc0] sm:%s347]
            %373 = vst [vmem:[%s355 + $0xc0] sm:%s347] %v372
            %v374 = vld [vmem:[%s354 + $0xd8] sm:%s347]
            %375 = vst [vmem:[%s355 + $0xd8] sm:%s347] %v374
            %v376 = vld [vmem:[%s354 + $0xf0] sm:%s347]
            %377 = vst [vmem:[%s355 + $0xf0] sm:%s347] %v376
            %v378 = vld [vmem:[%s354 + $0x108] sm:%s347]
            %379 = vst [vmem:[%s355 + $0x108] sm:%s347] %v378
            %v380 = vld [vmem:[%s354 + $0x120] sm:%s347]
            %381 = vst [vmem:[%s355 + $0x120] sm:%s347] %v380
            %v382 = vld [vmem:[%s354 + $0x138] sm:%s347]
            %383 = vst [vmem:[%s355 + $0x138] sm:%s347] %v382
            %v384 = vld [vmem:[%s354 + $0x150] sm:%s347]
            %385 = vst [vmem:[%s355 + $0x150] sm:%s347] %v384
            %v386 = vld [vmem:[%s354 + $0x168] sm:%s347]
            %387 = vst [vmem:[%s355 + $0x168] sm:%s347] %v386
            %v388 = vld [vmem:[%s354 + $0x180] sm:%s347]
            %389 = vst [vmem:[%s355 + $0x180] sm:%s347] %v388
            %v390 = vld [vmem:[%s354 + $0x198] sm:%s347]
            %391 = vst [vmem:[%s355 + $0x198] sm:%s347] %v390
          $region67: #{double_conv.3} parent=54 // loop_footer
            %s353 = sadd.s32 1, %s349
          $region68: #{double_conv.3} parent=54 // loop_footer_branch
            %348 = sbr.rel target = $region64
          $region69: #{double_conv.3} parent=54 // loop_exit
            _
        $region55: #{double_conv.3} parent=39 // pred_fallthru
          _
      $region40: #{double_conv.3} parent=35 // pred_fallthru
        _
      // Predicated region
      $region41: #{double_conv.3} parent=35 // pred_check
        %p209 = pneg %p205
      $region42: #{double_conv.3} parent=35 // pred_check_branch
        %211 = sbr.rel (%p209) target = $region44
      $region43: #{double_conv.3} parent=35 // pred_region
        %s212 = sshllo.u32 0, 18
        loop: start=0, step=1, limit=1
        $region45: #{double_conv.3} parent=43 // loop_pre_header
          _
        $region46: #{double_conv.3} parent=43 // loop_header
          %s214 = sphi 0, %s218
          %p215 = scmp.ge.s32.totalorder %s214, 1
          %s219 = sphi %s203, %s203
          %s220 = sphi [#allocation2], [#allocation2]
        $region47: #{double_conv.3} parent=43 // loop_header_branch
          %217 = sbr.rel (%p215) target = $region51
        $region48: #{double_conv.3} parent=43 // loop_body
          %v221 = vld [vmem:[%s219] sm:%s212]
          %222 = vst [vmem:[%s220] sm:%s212] %v221
          %v223 = vld [vmem:[%s219 + $0x18] sm:%s212]
          %224 = vst [vmem:[%s220 + $0x18] sm:%s212] %v223
          %v225 = vld [vmem:[%s219 + $0x30] sm:%s212]
          %226 = vst [vmem:[%s220 + $0x30] sm:%s212] %v225
          %v227 = vld [vmem:[%s219 + $0x48] sm:%s212]
          %228 = vst [vmem:[%s220 + $0x48] sm:%s212] %v227
          %v229 = vld [vmem:[%s219 + $0x60] sm:%s212]
          %230 = vst [vmem:[%s220 + $0x60] sm:%s212] %v229
          %v231 = vld [vmem:[%s219 + $0x78] sm:%s212]
          %232 = vst [vmem:[%s220 + $0x78] sm:%s212] %v231
          %v233 = vld [vmem:[%s219 + $0x90] sm:%s212]
          %234 = vst [vmem:[%s220 + $0x90] sm:%s212] %v233
          %v235 = vld [vmem:[%s219 + $0xa8] sm:%s212]
          %236 = vst [vmem:[%s220 + $0xa8] sm:%s212] %v235
          %v237 = vld [vmem:[%s219 + $0xc0] sm:%s212]
          %238 = vst [vmem:[%s220 + $0xc0] sm:%s212] %v237
          %v239 = vld [vmem:[%s219 + $0xd8] sm:%s212]
          %240 = vst [vmem:[%s220 + $0xd8] sm:%s212] %v239
          %v241 = vld [vmem:[%s219 + $0xf0] sm:%s212]
          %242 = vst [vmem:[%s220 + $0xf0] sm:%s212] %v241
          %v243 = vld [vmem:[%s219 + $0x108] sm:%s212]
          %244 = vst [vmem:[%s220 + $0x108] sm:%s212] %v243
          %v245 = vld [vmem:[%s219 + $0x120] sm:%s212]
          %246 = vst [vmem:[%s220 + $0x120] sm:%s212] %v245
          %v247 = vld [vmem:[%s219 + $0x138] sm:%s212]
          %248 = vst [vmem:[%s220 + $0x138] sm:%s212] %v247
          %v249 = vld [vmem:[%s219 + $0x150] sm:%s212]
          %250 = vst [vmem:[%s220 + $0x150] sm:%s212] %v249
          %v251 = vld [vmem:[%s219 + $0x168] sm:%s212]
          %252 = vst [vmem:[%s220 + $0x168] sm:%s212] %v251
          %v253 = vld [vmem:[%s219 + $0x180] sm:%s212]
          %254 = vst [vmem:[%s220 + $0x180] sm:%s212] %v253
          %v255 = vld [vmem:[%s219 + $0x198] sm:%s212]
          %256 = vst [vmem:[%s220 + $0x198] sm:%s212] %v255
        $region49: #{double_conv.3} parent=43 // loop_footer
          %s218 = sadd.s32 1, %s214
        $region50: #{double_conv.3} parent=43 // loop_footer_branch
          %213 = sbr.rel target = $region46
        $region51: #{double_conv.3} parent=43 // loop_exit
          _
      $region44: #{double_conv.3} parent=35 // pred_fallthru
        _
      // Predicated region
      $region70: #{double_conv.3} parent=35 // pred_check
        _
      $region71: #{double_conv.3} parent=35 // pred_check_branch
        %394 = sbr.rel (0) target = $region73
      $region72: #{double_conv.3} parent=35 // pred_region
        %395 = vsyncadd [#allocation4], 5184
      $region73: #{double_conv.3} parent=35 // pred_fallthru
        _
      %s396 = smul.u32 18, 18
      %s397 = smul.u32 %s396, 1
      %s398 = sshll.u32 %s397, 4
      %399 = dma.done [#allocation4], %s398
      %v400 = vld [vmem:[#allocation2] sm:$0xff]
      %v401 = vld [vmem:[#allocation2 + $0x8] sm:$0xff]
      %v402 = vld [vmem:[#allocation2 + $0x10] sm:$0x3]
      %v403 = vld [vmem:[#allocation2 + $0x18] sm:$0xff]
      %v404 = vld [vmem:[#allocation2 + $0x20] sm:$0xff]
      %v405 = vld [vmem:[#allocation2 + $0x28] sm:$0x3]
      %v406 = vld [vmem:[#allocation2 + $0x30] sm:$0xff]
      %v407 = vld [vmem:[#allocation2 + $0x38] sm:$0xff]
      %v408 = vld [vmem:[#allocation2 + $0x40] sm:$0x3]
      %v409 = vld [vmem:[#allocation2 + $0x48] sm:$0xff]
      %v410 = vld [vmem:[#allocation2 + $0x50] sm:$0xff]
      %v411 = vld [vmem:[#allocation2 + $0x58] sm:$0x3]
      %v412 = vld [vmem:[#allocation2 + $0x60] sm:$0xff]
      %v413 = vld [vmem:[#allocation2 + $0x68] sm:$0xff]
      %v414 = vld [vmem:[#allocation2 + $0x70] sm:$0x3]
      %v415 = vld [vmem:[#allocation2 + $0x78] sm:$0xff]
      %v416 = vld [vmem:[#allocation2 + $0x80] sm:$0xff]
      %v417 = vld [vmem:[#allocation2 + $0x88] sm:$0x3]
      %v418 = vld [vmem:[#allocation2 + $0x90] sm:$0xff]
      %v419 = vld [vmem:[#allocation2 + $0x98] sm:$0xff]
      %v420 = vld [vmem:[#allocation2 + $0xa0] sm:$0x3]
      %v421 = vld [vmem:[#allocation2 + $0xa8] sm:$0xff]
      %v422 = vld [vmem:[#allocation2 + $0xb0] sm:$0xff]
      %v423 = vld [vmem:[#allocation2 + $0xb8] sm:$0x3]
      %v424 = vld [vmem:[#allocation2 + $0xc0] sm:$0xff]
      %v425 = vld [vmem:[#allocation2 + $0xc8] sm:$0xff]
      %v426 = vld [vmem:[#allocation2 + $0xd0] sm:$0x3]
      %v427 = vld [vmem:[#allocation2 + $0xd8] sm:$0xff]
      %v428 = vld [vmem:[#allocation2 + $0xe0] sm:$0xff]
      %v429 = vld [vmem:[#allocation2 + $0xe8] sm:$0x3]
      %v430 = vld [vmem:[#allocation2 + $0xf0] sm:$0xff]
      %v431 = vld [vmem:[#allocation2 + $0xf8] sm:$0xff]
      %v432 = vld [vmem:[#allocation2 + $0x100] sm:$0x3]
      %v433 = vld [vmem:[#allocation2 + $0x108] sm:$0xff]
      %v434 = vld [vmem:[#allocation2 + $0x110] sm:$0xff]
      %v435 = vld [vmem:[#allocation2 + $0x118] sm:$0x3]
      %v436 = vld [vmem:[#allocation2 + $0x120] sm:$0xff]
      %v437 = vld [vmem:[#allocation2 + $0x128] sm:$0xff]
      %v438 = vld [vmem:[#allocation2 + $0x130] sm:$0x3]
      %v439 = vld [vmem:[#allocation2 + $0x138] sm:$0xff]
      %v440 = vld [vmem:[#allocation2 + $0x140] sm:$0xff]
      %v441 = vld [vmem:[#allocation2 + $0x148] sm:$0x3]
      %v442 = vld [vmem:[#allocation2 + $0x150] sm:$0xff]
      %v443 = vld [vmem:[#allocation2 + $0x158] sm:$0xff]
      %v444 = vld [vmem:[#allocation2 + $0x160] sm:$0x3]
      %v445 = vld [vmem:[#allocation2 + $0x168] sm:$0xff]
      %v446 = vld [vmem:[#allocation2 + $0x170] sm:$0xff]
      %v447 = vld [vmem:[#allocation2 + $0x178] sm:$0x3]
      %v448 = vld [vmem:[#allocation2 + $0x180] sm:$0xff]
      %v449 = vld [vmem:[#allocation2 + $0x188] sm:$0xff]
      %v450 = vld [vmem:[#allocation2 + $0x190] sm:$0x3]
      %v451 = vld [vmem:[#allocation2 + $0x198] sm:$0xff]
      %v452 = vld [vmem:[#allocation2 + $0x1a0] sm:$0xff]
      %v453 = vld [vmem:[#allocation2 + $0x1a8] sm:$0x3]
      %vm508 = vcmask 1046528
      %v509 = vrot.slane %v400, 1
      %v510 = vrot.slane %v401, 1
      %v511 = vsel %vm508, %v509, %v510
      %v512 = vrot.slane %v402, 1
      %v513 = vsel %vm508, %v510, %v512
      %v514 = vrot.slane %v403, 1
      %v515 = vrot.slane %v404, 1
      %v516 = vsel %vm508, %v514, %v515
      %v517 = vrot.slane %v405, 1
      %v518 = vsel %vm508, %v515, %v517
      %v519 = vrot.slane %v406, 1
      %v520 = vrot.slane %v407, 1
      %v521 = vsel %vm508, %v519, %v520
      %v522 = vrot.slane %v408, 1
      %v523 = vsel %vm508, %v520, %v522
      %v524 = vrot.slane %v409, 1
      %v525 = vrot.slane %v410, 1
      %v526 = vsel %vm508, %v524, %v525
      %v527 = vrot.slane %v411, 1
      %v528 = vsel %vm508, %v525, %v527
      %v529 = vrot.slane %v412, 1
      %v530 = vrot.slane %v413, 1
      %v531 = vsel %vm508, %v529, %v530
      %v532 = vrot.slane %v414, 1
      %v533 = vsel %vm508, %v530, %v532
      %v534 = vrot.slane %v415, 1
      %v535 = vrot.slane %v416, 1
      %v536 = vsel %vm508, %v534, %v535
      %v537 = vrot.slane %v417, 1
      %v538 = vsel %vm508, %v535, %v537
      %v539 = vrot.slane %v418, 1
      %v540 = vrot.slane %v419, 1
      %v541 = vsel %vm508, %v539, %v540
      %v542 = vrot.slane %v420, 1
      %v543 = vsel %vm508, %v540, %v542
      %v544 = vrot.slane %v421, 1
      %v545 = vrot.slane %v422, 1
      %v546 = vsel %vm508, %v544, %v545
      %v547 = vrot.slane %v423, 1
      %v548 = vsel %vm508, %v545, %v547
      %v549 = vrot.slane %v424, 1
      %v550 = vrot.slane %v425, 1
      %v551 = vsel %vm508, %v549, %v550
      %v552 = vrot.slane %v426, 1
      %v553 = vsel %vm508, %v550, %v552
      %v554 = vrot.slane %v427, 1
      %v555 = vrot.slane %v428, 1
      %v556 = vsel %vm508, %v554, %v555
      %v557 = vrot.slane %v429, 1
      %v558 = vsel %vm508, %v555, %v557
      %v559 = vrot.slane %v430, 1
      %v560 = vrot.slane %v431, 1
      %v561 = vsel %vm508, %v559, %v560
      %v562 = vrot.slane %v432, 1
      %v563 = vsel %vm508, %v560, %v562
      %v564 = vrot.slane %v433, 1
      %v565 = vrot.slane %v434, 1
      %v566 = vsel %vm508, %v564, %v565
      %v567 = vrot.slane %v435, 1
      %v568 = vsel %vm508, %v565, %v567
      %v569 = vrot.slane %v436, 1
      %v570 = vrot.slane %v437, 1
      %v571 = vsel %vm508, %v569, %v570
      %v572 = vrot.slane %v438, 1
      %v573 = vsel %vm508, %v570, %v572
      %v574 = vrot.slane %v439, 1
      %v575 = vrot.slane %v440, 1
      %v576 = vsel %vm508, %v574, %v575
      %v577 = vrot.slane %v441, 1
      %v578 = vsel %vm508, %v575, %v577
      %v579 = vrot.slane %v442, 1
      %v580 = vrot.slane %v443, 1
      %v581 = vsel %vm508, %v579, %v580
      %v582 = vrot.slane %v444, 1
      %v583 = vsel %vm508, %v580, %v582
      %v584 = vrot.slane %v445, 1
      %v585 = vrot.slane %v446, 1
      %v586 = vsel %vm508, %v584, %v585
      %v587 = vrot.slane %v447, 1
      %v588 = vsel %vm508, %v585, %v587
      %v589 = vrot.slane %v448, 1
      %v590 = vrot.slane %v449, 1
      %v591 = vsel %vm508, %v589, %v590
      %v592 = vrot.slane %v450, 1
      %v593 = vsel %vm508, %v590, %v592
      %v594 = vrot.slane %v451, 1
      %v595 = vrot.slane %v452, 1
      %v596 = vsel %vm508, %v594, %v595
      %v597 = vrot.slane %v453, 1
      %v598 = vsel %vm508, %v595, %v597
      %vm635 = vcmask 1045504
      %v636 = vrot.slane %v400, 2
      %v637 = vrot.slane %v401, 2
      %v638 = vsel %vm635, %v636, %v637
      %v639 = vrot.slane %v402, 2
      %v640 = vsel %vm635, %v637, %v639
      %v641 = vrot.slane %v403, 2
      %v642 = vrot.slane %v404, 2
      %v643 = vsel %vm635, %v641, %v642
      %v644 = vrot.slane %v405, 2
      %v645 = vsel %vm635, %v642, %v644
      %v646 = vrot.slane %v406, 2
      %v647 = vrot.slane %v407, 2
      %v648 = vsel %vm635, %v646, %v647
      %v649 = vrot.slane %v408, 2
      %v650 = vsel %vm635, %v647, %v649
      %v651 = vrot.slane %v409, 2
      %v652 = vrot.slane %v410, 2
      %v653 = vsel %vm635, %v651, %v652
      %v654 = vrot.slane %v411, 2
      %v655 = vsel %vm635, %v652, %v654
      %v656 = vrot.slane %v412, 2
      %v657 = vrot.slane %v413, 2
      %v658 = vsel %vm635, %v656, %v657
      %v659 = vrot.slane %v414, 2
      %v660 = vsel %vm635, %v657, %v659
      %v661 = vrot.slane %v415, 2
      %v662 = vrot.slane %v416, 2
      %v663 = vsel %vm635, %v661, %v662
      %v664 = vrot.slane %v417, 2
      %v665 = vsel %vm635, %v662, %v664
      %v666 = vrot.slane %v418, 2
      %v667 = vrot.slane %v419, 2
      %v668 = vsel %vm635, %v666, %v667
      %v669 = vrot.slane %v420, 2
      %v670 = vsel %vm635, %v667, %v669
      %v671 = vrot.slane %v421, 2
      %v672 = vrot.slane %v422, 2
      %v673 = vsel %vm635, %v671, %v672
      %v674 = vrot.slane %v423, 2
      %v675 = vsel %vm635, %v672, %v674
      %v676 = vrot.slane %v424, 2
      %v677 = vrot.slane %v425, 2
      %v678 = vsel %vm635, %v676, %v677
      %v679 = vrot.slane %v426, 2
      %v680 = vsel %vm635, %v677, %v679
      %v681 = vrot.slane %v427, 2
      %v682 = vrot.slane %v428, 2
      %v683 = vsel %vm635, %v681, %v682
      %v684 = vrot.slane %v429, 2
      %v685 = vsel %vm635, %v682, %v684
      %v686 = vrot.slane %v430, 2
      %v687 = vrot.slane %v431, 2
      %v688 = vsel %vm635, %v686, %v687
      %v689 = vrot.slane %v432, 2
      %v690 = vsel %vm635, %v687, %v689
      %v691 = vrot.slane %v433, 2
      %v692 = vrot.slane %v434, 2
      %v693 = vsel %vm635, %v691, %v692
      %v694 = vrot.slane %v435, 2
      %v695 = vsel %vm635, %v692, %v694
      %v696 = vrot.slane %v436, 2
      %v697 = vrot.slane %v437, 2
      %v698 = vsel %vm635, %v696, %v697
      %v699 = vrot.slane %v438, 2
      %v700 = vsel %vm635, %v697, %v699
      %v701 = vrot.slane %v439, 2
      %v702 = vrot.slane %v440, 2
      %v703 = vsel %vm635, %v701, %v702
      %v704 = vrot.slane %v441, 2
      %v705 = vsel %vm635, %v702, %v704
      %v706 = vrot.slane %v442, 2
      %v707 = vrot.slane %v443, 2
      %v708 = vsel %vm635, %v706, %v707
      %v709 = vrot.slane %v444, 2
      %v710 = vsel %vm635, %v707, %v709
      %v711 = vrot.slane %v445, 2
      %v712 = vrot.slane %v446, 2
      %v713 = vsel %vm635, %v711, %v712
      %v714 = vrot.slane %v447, 2
      %v715 = vsel %vm635, %v712, %v714
      %v716 = vrot.slane %v448, 2
      %v717 = vrot.slane %v449, 2
      %v718 = vsel %vm635, %v716, %v717
      %v719 = vrot.slane %v450, 2
      %v720 = vsel %vm635, %v717, %v719
      %v721 = vrot.slane %v451, 2
      %v722 = vrot.slane %v452, 2
      %v723 = vsel %vm635, %v721, %v722
      %v724 = vrot.slane %v453, 2
      %v725 = vsel %vm635, %v722, %v724
      %v762 = vld [vmem:[%s1] sm:$0xff]
      %v763 = vld [vmem:[%s1 + $0x8] sm:$0xff]
      %v764 = vld [vmem:[%s1 + $0x10] sm:$0xff]
      %v765 = vld [vmem:[%s1 + $0x18] sm:$0xff]
      %v766 = vld [vmem:[%s1 + $0x20] sm:$0xff]
      %v767 = vld [vmem:[%s1 + $0x28] sm:$0xff]
      %v768 = vld [vmem:[%s1 + $0x30] sm:$0xff]
      %v769 = vld [vmem:[%s1 + $0x38] sm:$0xff]
      %v770 = vld [vmem:[%s1 + $0x40] sm:$0xff]
      %v771 = vld [vmem:[%s1 + $0x48] sm:$0xff]
      %v772 = vld [vmem:[%s1 + $0x50] sm:$0xff]
      %v773 = vld [vmem:[%s1 + $0x58] sm:$0xff]
      %v774 = vld [vmem:[%s1 + $0x60] sm:$0xff]
      %v775 = vld [vmem:[%s1 + $0x68] sm:$0xff]
      %v776 = vld [vmem:[%s1 + $0x70] sm:$0xff]
      %v777 = vld [vmem:[%s1 + $0x78] sm:$0xff]
      %v778 = vld [vmem:[%s1 + $0x80] sm:$0xff]
      %v779 = vld [vmem:[%s1 + $0x88] sm:$0xff]
      %v780 = vld [vmem:[%s1 + $0x90] sm:$0xff]
      %v781 = vld [vmem:[%s1 + $0x98] sm:$0xff]
      %v782 = vld [vmem:[%s1 + $0xa0] sm:$0xff]
      %v783 = vld [vmem:[%s1 + $0xa8] sm:$0xff]
      %v784 = vld [vmem:[%s1 + $0xb0] sm:$0xff]
      %v785 = vld [vmem:[%s1 + $0xb8] sm:$0xff]
      %v786 = vld [vmem:[%s1 + $0xc0] sm:$0xff]
      %v787 = vld [vmem:[%s1 + $0xc8] sm:$0xff]
      %v788 = vld [vmem:[%s1 + $0xd0] sm:$0xff]
      %v789 = vld [vmem:[%s1 + $0xd8] sm:$0xff]
      %v790 = vld [vmem:[%s1 + $0xe0] sm:$0xff]
      %v791 = vld [vmem:[%s1 + $0xe8] sm:$0xff]
      %v792 = vld [vmem:[%s1 + $0xf0] sm:$0xff]
      %v793 = vld [vmem:[%s1 + $0xf8] sm:$0xff]
      %v794 = vld [vmem:[%s1 + $0x100] sm:$0xff]
      %v795 = vld [vmem:[%s1 + $0x108] sm:$0xff]
      %v796 = vld [vmem:[%s1 + $0x110] sm:$0xff]
      %v797 = vld [vmem:[%s1 + $0x118] sm:$0xff]
      %v798 = vld [vmem:[%s1 + $0x120] sm:$0xff]
      %v799 = vld [vmem:[%s1 + $0x128] sm:$0xff]
      %v800 = vld [vmem:[%s1 + $0x130] sm:$0xff]
      %v801 = vld [vmem:[%s1 + $0x138] sm:$0xff]
      %v802 = vld [vmem:[%s1 + $0x140] sm:$0xff]
      %v803 = vld [vmem:[%s1 + $0x148] sm:$0xff]
      %v804 = vld [vmem:[%s1 + $0x150] sm:$0xff]
      %v805 = vld [vmem:[%s1 + $0x158] sm:$0xff]
      %v806 = vld [vmem:[%s1 + $0x160] sm:$0xff]
      %v807 = vld [vmem:[%s1 + $0x168] sm:$0xff]
      %v808 = vld [vmem:[%s1 + $0x170] sm:$0xff]
      %v809 = vld [vmem:[%s1 + $0x178] sm:$0xff]
      %810 = vmatprep.subr.mxu0 0.0
      %811 = vmatpush1.msra.mxu0 %v762
      %812 = vmatprep.subr.mxu0 0.0
      %813 = vmatpush1.msra.mxu0 %v763
      %814 = vmatprep.subr.mxu0 0.0
      %815 = vmatpush1.msra.mxu0 %v764
      %816 = vmatprep.subr.mxu0 0.0
      %817 = vmatpush1.msra.mxu0 %v765
      %818 = vmatprep.subr.mxu0 0.0
      %819 = vmatpush1.msra.mxu0 %v766
      %820 = vmatprep.subr.mxu0 0.0
      %821 = vmatpush1.msra.mxu0 %v767
      %822 = vmatprep.subr.mxu0 0.0
      %823 = vmatpush1.msra.mxu0 %v768
      %824 = vmatprep.subr.mxu0 0.0
      %825 = vmatpush1.msra.mxu0 %v769
      %826 = vmatprep.subr.mxu0 0.0
      %827 = vmatpush1.msra.mxu0 %v770
      %828 = vmatprep.subr.mxu0 0.0
      %829 = vmatpush1.msra.mxu0 %v771
      %830 = vmatprep.subr.mxu0 0.0
      %831 = vmatpush1.msra.mxu0 %v772
      %832 = vmatprep.subr.mxu0 0.0
      %833 = vmatpush1.msra.mxu0 %v773
      %834 = vmatprep.subr.mxu0 0.0
      %835 = vmatpush1.msra.mxu0 %v774
      %836 = vmatprep.subr.mxu0 0.0
      %837 = vmatpush1.msra.mxu0 %v775
      %838 = vmatprep.subr.mxu0 0.0
      %839 = vmatpush1.msra.mxu0 %v776
      %840 = vmatprep.subr.mxu0 0.0
      %841 = vmatpush1.msra.mxu0 %v777
      %842 = vmatprep.subr.mxu0 0.0
      %843 = vmatpush1.msra.mxu0 %v778
      %844 = vmatprep.subr.mxu0 0.0
      %845 = vmatpush1.msra.mxu0 %v779
      %846 = vmatprep.subr.mxu0 0.0
      %847 = vmatpush1.msra.mxu0 %v780
      %848 = vmatprep.subr.mxu0 0.0
      %849 = vmatpush1.msra.mxu0 %v781
      %850 = vmatprep.subr.mxu0 0.0
      %851 = vmatpush1.msra.mxu0 %v782
      %852 = vmatprep.subr.mxu0 0.0
      %853 = vmatpush1.msra.mxu0 %v783
      %854 = vmatprep.subr.mxu0 0.0
      %855 = vmatpush1.msra.mxu0 %v784
      %856 = vmatprep.subr.mxu0 0.0
      %857 = vmatpush1.msra.mxu0 %v785
      %858 = vmatprep.subr.mxu0 0.0
      %859 = vmatpush1.msra.mxu0 %v786
      %860 = vmatprep.subr.mxu0 0.0
      %861 = vmatpush1.msra.mxu0 %v787
      %862 = vmatprep.subr.mxu0 0.0
      %863 = vmatpush1.msra.mxu0 %v788
      %864 = vmatprep.subr.mxu0 0.0
      %865 = vmatpush1.msra.mxu0 %v789
      %866 = vmatprep.subr.mxu0 0.0
      %867 = vmatpush1.msra.mxu0 %v790
      %868 = vmatprep.subr.mxu0 0.0
      %869 = vmatpush1.msra.mxu0 %v791
      %870 = vmatprep.subr.mxu0 0.0
      %871 = vmatpush1.msra.mxu0 %v792
      %872 = vmatprep.subr.mxu0 0.0
      %873 = vmatpush1.msra.mxu0 %v793
      %874 = vmatprep.mubr.f32.mxu0 %v511
      %875 = vmatmul.mubr.f32.gmra.mrb[0].mxu0 %v400
      %v876 = vpop.f32.mrb[0].mxu0
      %v877 = vadd.f32 0.0, %v876
      %v878 = vpop.f32.mrb[0].mxu0
      %879 = vmatprep.mubr.f32.mxu0 %v513
      %880 = vmatmul.mubr.f32.gmra.mrb[0].mxu0 %v401
      %v881 = vpop.f32.mrb[0].mxu0
      %v882 = vadd.f32 0.0, %v881
      %v883 = vpop.f32.mrb[0].mxu0
      %884 = vmatprep.mubr.f32.mxu0 %v516
      %885 = vmatmul.mubr.f32.gmra.mrb[0].mxu0 %v403
      %v886 = vpop.f32.mrb[0].mxu0
      %v887 = vadd.f32 0.0, %v886
      %v888 = vpop.f32.mrb[0].mxu0
      %889 = vmatprep.mubr.f32.mxu0 %v518
      %890 = vmatmul.mubr.f32.gmra.mrb[0].mxu0 %v404
      %v891 = vpop.f32.mrb[0].mxu0
      %v892 = vadd.f32 0.0, %v891
      %v893 = vpop.f32.mrb[0].mxu0
      %894 = vmatprep.mubr.f32.mxu0 %v521
      %895 = vmatmul.mubr.f32.gmra.mrb[0].mxu0 %v406
      %v896 = vpop.f32.mrb[0].mxu0
      %v897 = vadd.f32 0.0, %v896
      %v898 = vpop.f32.mrb[0].mxu0
      %899 = vmatprep.mubr.f32.mxu0 %v523
      %900 = vmatmul.mubr.f32.gmra.mrb[0].mxu0 %v407
      %v901 = vpop.f32.mrb[0].mxu0
      %v902 = vadd.f32 0.0, %v901
      %v903 = vpop.f32.mrb[0].mxu0
      %904 = vmatprep.mubr.f32.mxu0 %v526
      %905 = vmatmul.mubr.f32.gmra.mrb[0].mxu0 %v409
      %v906 = vpop.f32.mrb[0].mxu0
      %v907 = vadd.f32 0.0, %v906
      %v908 = vpop.f32.mrb[0].mxu0
      %909 = vmatprep.mubr.f32.mxu0 %v528
      %910 = vmatmul.mubr.f32.gmra.mrb[0].mxu0 %v410
      %v911 = vpop.f32.mrb[0].mxu0
      %v912 = vadd.f32 0.0, %v911
      %v913 = vpop.f32.mrb[0].mxu0
      %914 = vmatprep.mubr.f32.mxu0 %v531
      %915 = vmatmul.mubr.f32.gmra.mrb[0].mxu0 %v412
      %v916 = vpop.f32.mrb[0].mxu0
      %v917 = vadd.f32 0.0, %v916
      %v918 = vpop.f32.mrb[0].mxu0
      %919 = vmatprep.mubr.f32.mxu0 %v533
      %920 = vmatmul.mubr.f32.gmra.mrb[0].mxu0 %v413
      %v921 = vpop.f32.mrb[0].mxu0
      %v922 = vadd.f32 0.0, %v921
      %v923 = vpop.f32.mrb[0].mxu0
      %924 = vmatprep.mubr.f32.mxu0 %v536
      %925 = vmatmul.mubr.f32.gmra.mrb[0].mxu0 %v415
      %v926 = vpop.f32.mrb[0].mxu0
      %v927 = vadd.f32 0.0, %v926
      %v928 = vpop.f32.mrb[0].mxu0
      %929 = vmatprep.mubr.f32.mxu0 %v538
      %930 = vmatmul.mubr.f32.gmra.mrb[0].mxu0 %v416
      %v931 = vpop.f32.mrb[0].mxu0
      %v932 = vadd.f32 0.0, %v931
      %v933 = vpop.f32.mrb[0].mxu0
      %934 = vmatprep.mubr.f32.mxu0 %v541
      %935 = vmatmul.mubr.f32.gmra.mrb[0].mxu0 %v418
      %v936 = vpop.f32.mrb[0].mxu0
      %v937 = vadd.f32 0.0, %v936
      %v938 = vpop.f32.mrb[0].mxu0
      %939 = vmatprep.mubr.f32.mxu0 %v543
      %940 = vmatmul.mubr.f32.gmra.mrb[0].mxu0 %v419
      %v941 = vpop.f32.mrb[0].mxu0
      %v942 = vadd.f32 0.0, %v941
      %v943 = vpop.f32.mrb[0].mxu0
      %944 = vmatprep.mubr.f32.mxu0 %v546
      %945 = vmatmul.mubr.f32.gmra.mrb[0].mxu0 %v421
      %v946 = vpop.f32.mrb[0].mxu0
      %v947 = vadd.f32 0.0, %v946
      %v948 = vpop.f32.mrb[0].mxu0
      %949 = vmatprep.mubr.f32.mxu0 %v548
      %950 = vmatmul.mubr.f32.gmra.mrb[0].mxu0 %v422
      %v951 = vpop.f32.mrb[0].mxu0
      %v952 = vadd.f32 0.0, %v951
      %v953 = vpop.f32.mrb[0].mxu0
      %954 = vmatprep.mubr.f32.mxu0 %v551
      %955 = vmatmul.mubr.f32.gmra.mrb[0].mxu0 %v424
      %v956 = vpop.f32.mrb[0].mxu0
      %v957 = vadd.f32 0.0, %v956
      %v958 = vpop.f32.mrb[0].mxu0
      %959 = vmatprep.mubr.f32.mxu0 %v553
      %960 = vmatmul.mubr.f32.gmra.mrb[0].mxu0 %v425
      %v961 = vpop.f32.mrb[0].mxu0
      %v962 = vadd.f32 0.0, %v961
      %v963 = vpop.f32.mrb[0].mxu0
      %964 = vmatprep.mubr.f32.mxu0 %v556
      %965 = vmatmul.mubr.f32.gmra.mrb[0].mxu0 %v427
      %v966 = vpop.f32.mrb[0].mxu0
      %v967 = vadd.f32 0.0, %v966
      %v968 = vpop.f32.mrb[0].mxu0
      %969 = vmatprep.mubr.f32.mxu0 %v558
      %970 = vmatmul.mubr.f32.gmra.mrb[0].mxu0 %v428
      %v971 = vpop.f32.mrb[0].mxu0
      %v972 = vadd.f32 0.0, %v971
      %v973 = vpop.f32.mrb[0].mxu0
      %974 = vmatprep.mubr.f32.mxu0 %v561
      %975 = vmatmul.mubr.f32.gmra.mrb[0].mxu0 %v430
      %v976 = vpop.f32.mrb[0].mxu0
      %v977 = vadd.f32 0.0, %v976
      %v978 = vpop.f32.mrb[0].mxu0
      %979 = vmatprep.mubr.f32.mxu0 %v563
      %980 = vmatmul.mubr.f32.gmra.mrb[0].mxu0 %v431
      %v981 = vpop.f32.mrb[0].mxu0
      %v982 = vadd.f32 0.0, %v981
      %v983 = vpop.f32.mrb[0].mxu0
      %984 = vmatprep.mubr.f32.mxu0 %v566
      %985 = vmatmul.mubr.f32.gmra.mrb[0].mxu0 %v433
      %v986 = vpop.f32.mrb[0].mxu0
      %v987 = vadd.f32 0.0, %v986
      %v988 = vpop.f32.mrb[0].mxu0
      %989 = vmatprep.mubr.f32.mxu0 %v568
      %990 = vmatmul.mubr.f32.gmra.mrb[0].mxu0 %v434
      %v991 = vpop.f32.mrb[0].mxu0
      %v992 = vadd.f32 0.0, %v991
      %v993 = vpop.f32.mrb[0].mxu0
      %994 = vmatprep.mubr.f32.mxu0 %v571
      %995 = vmatmul.mubr.f32.gmra.mrb[0].mxu0 %v436
      %v996 = vpop.f32.mrb[0].mxu0
      %v997 = vadd.f32 0.0, %v996
      %v998 = vpop.f32.mrb[0].mxu0
      %999 = vmatprep.mubr.f32.mxu0 %v573
      %1000 = vmatmul.mubr.f32.gmra.mrb[0].mxu0 %v437
      %v1001 = vpop.f32.mrb[0].mxu0
      %v1002 = vadd.f32 0.0, %v1001
      %v1003 = vpop.f32.mrb[0].mxu0
      %1004 = vmatprep.mubr.f32.mxu0 %v576
      %1005 = vmatmul.mubr.f32.gmra.mrb[0].mxu0 %v439
      %v1006 = vpop.f32.mrb[0].mxu0
      %v1007 = vadd.f32 0.0, %v1006
      %v1008 = vpop.f32.mrb[0].mxu0
      %1009 = vmatprep.mubr.f32.mxu0 %v578
      %1010 = vmatmul.mubr.f32.gmra.mrb[0].mxu0 %v440
      %v1011 = vpop.f32.mrb[0].mxu0
      %v1012 = vadd.f32 0.0, %v1011
      %v1013 = vpop.f32.mrb[0].mxu0
      %1014 = vmatprep.mubr.f32.mxu0 %v581
      %1015 = vmatmul.mubr.f32.gmra.mrb[0].mxu0 %v442
      %v1016 = vpop.f32.mrb[0].mxu0
      %v1017 = vadd.f32 0.0, %v1016
      %v1018 = vpop.f32.mrb[0].mxu0
      %1019 = vmatprep.mubr.f32.mxu0 %v583
      %1020 = vmatmul.mubr.f32.gmra.mrb[0].mxu0 %v443
      %v1021 = vpop.f32.mrb[0].mxu0
      %v1022 = vadd.f32 0.0, %v1021
      %v1023 = vpop.f32.mrb[0].mxu0
      %1024 = vmatprep.mubr.f32.mxu0 %v586
      %1025 = vmatmul.mubr.f32.gmra.mrb[0].mxu0 %v445
      %v1026 = vpop.f32.mrb[0].mxu0
      %v1027 = vadd.f32 0.0, %v1026
      %v1028 = vpop.f32.mrb[0].mxu0
      %1029 = vmatprep.mubr.f32.mxu0 %v588
      %1030 = vmatmul.mubr.f32.gmra.mrb[0].mxu0 %v446
      %v1031 = vpop.f32.mrb[0].mxu0
      %v1032 = vadd.f32 0.0, %v1031
      %v1033 = vpop.f32.mrb[0].mxu0
      %1034 = vdwg.mxu0
      %1035 = vmatprep.subr.mxu0 0.0
      %1036 = vmatpush1.msra.mxu0 %v794
      %1037 = vmatprep.subr.mxu0 0.0
      %1038 = vmatpush1.msra.mxu0 %v795
      %1039 = vmatprep.subr.mxu0 0.0
      %1040 = vmatpush1.msra.mxu0 %v796
      %1041 = vmatprep.subr.mxu0 0.0
      %1042 = vmatpush1.msra.mxu0 %v797
      %1043 = vmatprep.subr.mxu0 0.0
      %1044 = vmatpush1.msra.mxu0 %v798
      %1045 = vmatprep.subr.mxu0 0.0
      %1046 = vmatpush1.msra.mxu0 %v799
      %1047 = vmatprep.subr.mxu0 0.0
      %1048 = vmatpush1.msra.mxu0 %v800
      %1049 = vmatprep.subr.mxu0 0.0
      %1050 = vmatpush1.msra.mxu0 %v801
      %1051 = vmatprep.subr.mxu0 0.0
      %1052 = vmatpush1.msra.mxu0 %v802
      %1053 = vmatprep.subr.mxu0 0.0
      %1054 = vmatpush1.msra.mxu0 %v803
      %1055 = vmatprep.subr.mxu0 0.0
      %1056 = vmatpush1.msra.mxu0 %v804
      %1057 = vmatprep.subr.mxu0 0.0
      %1058 = vmatpush1.msra.mxu0 %v805
      %1059 = vmatprep.subr.mxu0 0.0
      %1060 = vmatpush1.msra.mxu0 %v806
      %1061 = vmatprep.subr.mxu0 0.0
      %1062 = vmatpush1.msra.mxu0 %v807
      %1063 = vmatprep.subr.mxu0 0.0
      %1064 = vmatpush1.msra.mxu0 %v808
      %1065 = vmatprep.subr.mxu0 0.0
      %1066 = vmatpush1.msra.mxu0 %v809
      %1067 = vmatprep.subr.mxu0 0.0
      %1068 = vmatpush1.msra.mxu0 0.0
      %1069 = vmatprep.subr.mxu0 0.0
      %1070 = vmatpush1.msra.mxu0 0.0
      %1071 = vmatprep.subr.mxu0 0.0
      %1072 = vmatpush1.msra.mxu0 0.0
      %1073 = vmatprep.subr.mxu0 0.0
      %1074 = vmatpush1.msra.mxu0 0.0
      %1075 = vmatprep.subr.mxu0 0.0
      %1076 = vmatpush1.msra.mxu0 0.0
      %1077 = vmatprep.subr.mxu0 0.0
      %1078 = vmatpush1.msra.mxu0 0.0
      %1079 = vmatprep.subr.mxu0 0.0
      %1080 = vmatpush1.msra.mxu0 0.0
      %1081 = vmatprep.subr.mxu0 0.0
      %1082 = vmatpush1.msra.mxu0 0.0
      %1083 = vmatprep.subr.mxu0 0.0
      %1084 = vmatpush1.msra.mxu0 0.0
      %1085 = vmatprep.subr.mxu0 0.0
      %1086 = vmatpush1.msra.mxu0 0.0
      %1087 = vmatprep.subr.mxu0 0.0
      %1088 = vmatpush1.msra.mxu0 0.0
      %1089 = vmatprep.subr.mxu0 0.0
      %1090 = vmatpush1.msra.mxu0 0.0
      %1091 = vmatprep.subr.mxu0 0.0
      %1092 = vmatpush1.msra.mxu0 0.0
      %1093 = vmatprep.subr.mxu0 0.0
      %1094 = vmatpush1.msra.mxu0 0.0
      %1095 = vmatprep.subr.mxu0 0.0
      %1096 = vmatpush1.msra.mxu0 0.0
      %1097 = vmatprep.subr.mxu0 0.0
      %1098 = vmatpush1.msra.mxu0 0.0
      %1099 = vmatprep.mubr.f32.mxu0 0.0
      %1100 = vmatmul.mubr.f32.gmra.mrb[0].mxu0 %v638
      %v1101 = vpop.f32.mrb[0].mxu0
      %v1102 = vadd.f32 %v877, %v1101
      %v1103 = vpop.f32.mrb[0].mxu0
      %1104 = vmatprep.mubr.f32.mxu0 0.0
      %1105 = vmatmul.mubr.f32.gmra.mrb[0].mxu0 %v640
      %v1106 = vpop.f32.mrb[0].mxu0
      %v1107 = vadd.f32 %v882, %v1106
      %v1108 = vpop.f32.mrb[0].mxu0
      %1109 = vmatprep.mubr.f32.mxu0 0.0
      %1110 = vmatmul.mubr.f32.gmra.mrb[0].mxu0 %v643
      %v1111 = vpop.f32.mrb[0].mxu0
      %v1112 = vadd.f32 %v887, %v1111
      %v1113 = vpop.f32.mrb[0].mxu0
      %1114 = vmatprep.mubr.f32.mxu0 0.0
      %1115 = vmatmul.mubr.f32.gmra.mrb[0].mxu0 %v645
      %v1116 = vpop.f32.mrb[0].mxu0
      %v1117 = vadd.f32 %v892, %v1116
      %v1118 = vpop.f32.mrb[0].mxu0
      %1119 = vmatprep.mubr.f32.mxu0 0.0
      %1120 = vmatmul.mubr.f32.gmra.mrb[0].mxu0 %v648
      %v1121 = vpop.f32.mrb[0].mxu0
      %v1122 = vadd.f32 %v897, %v1121
      %v1123 = vpop.f32.mrb[0].mxu0
      %1124 = vmatprep.mubr.f32.mxu0 0.0
      %1125 = vmatmul.mubr.f32.gmra.mrb[0].mxu0 %v650
      %v1126 = vpop.f32.mrb[0].mxu0
      %v1127 = vadd.f32 %v902, %v1126
      %v1128 = vpop.f32.mrb[0].mxu0
      %1129 = vmatprep.mubr.f32.mxu0 0.0
      %1130 = vmatmul.mubr.f32.gmra.mrb[0].mxu0 %v653
      %v1131 = vpop.f32.mrb[0].mxu0
      %v1132 = vadd.f32 %v907, %v1131
      %v1133 = vpop.f32.mrb[0].mxu0
      %1134 = vmatprep.mubr.f32.mxu0 0.0
      %1135 = vmatmul.mubr.f32.gmra.mrb[0].mxu0 %v655
      %v1136 = vpop.f32.mrb[0].mxu0
      %v1137 = vadd.f32 %v912, %v1136
      %v1138 = vpop.f32.mrb[0].mxu0
      %1139 = vmatprep.mubr.f32.mxu0 0.0
      %1140 = vmatmul.mubr.f32.gmra.mrb[0].mxu0 %v658
      %v1141 = vpop.f32.mrb[0].mxu0
      %v1142 = vadd.f32 %v917, %v1141
      %v1143 = vpop.f32.mrb[0].mxu0
      %1144 = vmatprep.mubr.f32.mxu0 0.0
      %1145 = vmatmul.mubr.f32.gmra.mrb[0].mxu0 %v660
      %v1146 = vpop.f32.mrb[0].mxu0
      %v1147 = vadd.f32 %v922, %v1146
      %v1148 = vpop.f32.mrb[0].mxu0
      %1149 = vmatprep.mubr.f32.mxu0 0.0
      %1150 = vmatmul.mubr.f32.gmra.mrb[0].mxu0 %v663
      %v1151 = vpop.f32.mrb[0].mxu0
      %v1152 = vadd.f32 %v927, %v1151
      %v1153 = vpop.f32.mrb[0].mxu0
      %1154 = vmatprep.mubr.f32.mxu0 0.0
      %1155 = vmatmul.mubr.f32.gmra.mrb[0].mxu0 %v665
      %v1156 = vpop.f32.mrb[0].mxu0
      %v1157 = vadd.f32 %v932, %v1156
      %v1158 = vpop.f32.mrb[0].mxu0
      %1159 = vmatprep.mubr.f32.mxu0 0.0
      %1160 = vmatmul.mubr.f32.gmra.mrb[0].mxu0 %v668
      %v1161 = vpop.f32.mrb[0].mxu0
      %v1162 = vadd.f32 %v937, %v1161
      %v1163 = vpop.f32.mrb[0].mxu0
      %1164 = vmatprep.mubr.f32.mxu0 0.0
      %1165 = vmatmul.mubr.f32.gmra.mrb[0].mxu0 %v670
      %v1166 = vpop.f32.mrb[0].mxu0
      %v1167 = vadd.f32 %v942, %v1166
      %v1168 = vpop.f32.mrb[0].mxu0
      %1169 = vmatprep.mubr.f32.mxu0 0.0
      %1170 = vmatmul.mubr.f32.gmra.mrb[0].mxu0 %v673
      %v1171 = vpop.f32.mrb[0].mxu0
      %v1172 = vadd.f32 %v947, %v1171
      %v1173 = vpop.f32.mrb[0].mxu0
      %1174 = vmatprep.mubr.f32.mxu0 0.0
      %1175 = vmatmul.mubr.f32.gmra.mrb[0].mxu0 %v675
      %v1176 = vpop.f32.mrb[0].mxu0
      %v1177 = vadd.f32 %v952, %v1176
      %v1178 = vpop.f32.mrb[0].mxu0
      %1179 = vmatprep.mubr.f32.mxu0 0.0
      %1180 = vmatmul.mubr.f32.gmra.mrb[0].mxu0 %v678
      %v1181 = vpop.f32.mrb[0].mxu0
      %v1182 = vadd.f32 %v957, %v1181
      %v1183 = vpop.f32.mrb[0].mxu0
      %1184 = vmatprep.mubr.f32.mxu0 0.0
      %1185 = vmatmul.mubr.f32.gmra.mrb[0].mxu0 %v680
      %v1186 = vpop.f32.mrb[0].mxu0
      %v1187 = vadd.f32 %v962, %v1186
      %v1188 = vpop.f32.mrb[0].mxu0
      %1189 = vmatprep.mubr.f32.mxu0 0.0
      %1190 = vmatmul.mubr.f32.gmra.mrb[0].mxu0 %v683
      %v1191 = vpop.f32.mrb[0].mxu0
      %v1192 = vadd.f32 %v967, %v1191
      %v1193 = vpop.f32.mrb[0].mxu0
      %1194 = vmatprep.mubr.f32.mxu0 0.0
      %1195 = vmatmul.mubr.f32.gmra.mrb[0].mxu0 %v685
      %v1196 = vpop.f32.mrb[0].mxu0
      %v1197 = vadd.f32 %v972, %v1196
      %v1198 = vpop.f32.mrb[0].mxu0
      %1199 = vmatprep.mubr.f32.mxu0 0.0
      %1200 = vmatmul.mubr.f32.gmra.mrb[0].mxu0 %v688
      %v1201 = vpop.f32.mrb[0].mxu0
      %v1202 = vadd.f32 %v977, %v1201
      %v1203 = vpop.f32.mrb[0].mxu0
      %1204 = vmatprep.mubr.f32.mxu0 0.0
      %1205 = vmatmul.mubr.f32.gmra.mrb[0].mxu0 %v690
      %v1206 = vpop.f32.mrb[0].mxu0
      %v1207 = vadd.f32 %v982, %v1206
      %v1208 = vpop.f32.mrb[0].mxu0
      %1209 = vmatprep.mubr.f32.mxu0 0.0
      %1210 = vmatmul.mubr.f32.gmra.mrb[0].mxu0 %v693
      %v1211 = vpop.f32.mrb[0].mxu0
      %v1212 = vadd.f32 %v987, %v1211
      %v1213 = vpop.f32.mrb[0].mxu0
      %1214 = vmatprep.mubr.f32.mxu0 0.0
      %1215 = vmatmul.mubr.f32.gmra.mrb[0].mxu0 %v695
      %v1216 = vpop.f32.mrb[0].mxu0
      %v1217 = vadd.f32 %v992, %v1216
      %v1218 = vpop.f32.mrb[0].mxu0
      %1219 = vmatprep.mubr.f32.mxu0 0.0
      %1220 = vmatmul.mubr.f32.gmra.mrb[0].mxu0 %v698
      %v1221 = vpop.f32.mrb[0].mxu0
      %v1222 = vadd.f32 %v997, %v1221
      %v1223 = vpop.f32.mrb[0].mxu0
      %1224 = vmatprep.mubr.f32.mxu0 0.0
      %1225 = vmatmul.mubr.f32.gmra.mrb[0].mxu0 %v700
      %v1226 = vpop.f32.mrb[0].mxu0
      %v1227 = vadd.f32 %v1002, %v1226
      %v1228 = vpop.f32.mrb[0].mxu0
      %1229 = vmatprep.mubr.f32.mxu0 0.0
      %1230 = vmatmul.mubr.f32.gmra.mrb[0].mxu0 %v703
      %v1231 = vpop.f32.mrb[0].mxu0
      %v1232 = vadd.f32 %v1007, %v1231
      %v1233 = vpop.f32.mrb[0].mxu0
      %1234 = vmatprep.mubr.f32.mxu0 0.0
      %1235 = vmatmul.mubr.f32.gmra.mrb[0].mxu0 %v705
      %v1236 = vpop.f32.mrb[0].mxu0
      %v1237 = vadd.f32 %v1012, %v1236
      %v1238 = vpop.f32.mrb[0].mxu0
      %1239 = vmatprep.mubr.f32.mxu0 0.0
      %1240 = vmatmul.mubr.f32.gmra.mrb[0].mxu0 %v708
      %v1241 = vpop.f32.mrb[0].mxu0
      %v1242 = vadd.f32 %v1017, %v1241
      %v1243 = vpop.f32.mrb[0].mxu0
      %1244 = vmatprep.mubr.f32.mxu0 0.0
      %1245 = vmatmul.mubr.f32.gmra.mrb[0].mxu0 %v710
      %v1246 = vpop.f32.mrb[0].mxu0
      %v1247 = vadd.f32 %v1022, %v1246
      %v1248 = vpop.f32.mrb[0].mxu0
      %1249 = vmatprep.mubr.f32.mxu0 0.0
      %1250 = vmatmul.mubr.f32.gmra.mrb[0].mxu0 %v713
      %v1251 = vpop.f32.mrb[0].mxu0
      %v1252 = vadd.f32 %v1027, %v1251
      %v1253 = vpop.f32.mrb[0].mxu0
      %1254 = vmatprep.mubr.f32.mxu0 0.0
      %1255 = vmatmul.mubr.f32.gmra.mrb[0].mxu0 %v715
      %v1256 = vpop.f32.mrb[0].mxu0
      %v1257 = vadd.f32 %v1032, %v1256
      %v1258 = vpop.f32.mrb[0].mxu0
      %1259 = vdwg.mxu0
      %1260 = vst [vmem:[#allocation5] sm:$0xff] %v1102
      %1261 = vst [vmem:[#allocation5 + $0x8] sm:$0xff] %v1107
      %1262 = vst [vmem:[#allocation5 + $0x10] sm:$0xff] %v1112
      %1263 = vst [vmem:[#allocation5 + $0x18] sm:$0xff] %v1117
      %1264 = vst [vmem:[#allocation5 + $0x20] sm:$0xff] %v1122
      %1265 = vst [vmem:[#allocation5 + $0x28] sm:$0xff] %v1127
      %1266 = vst [vmem:[#allocation5 + $0x30] sm:$0xff] %v1132
      %1267 = vst [vmem:[#allocation5 + $0x38] sm:$0xff] %v1137
      %1268 = vst [vmem:[#allocation5 + $0x40] sm:$0xff] %v1142
      %1269 = vst [vmem:[#allocation5 + $0x48] sm:$0xff] %v1147
      %1270 = vst [vmem:[#allocation5 + $0x50] sm:$0xff] %v1152
      %1271 = vst [vmem:[#allocation5 + $0x58] sm:$0xff] %v1157
      %1272 = vst [vmem:[#allocation5 + $0x60] sm:$0xff] %v1162
      %1273 = vst [vmem:[#allocation5 + $0x68] sm:$0xff] %v1167
      %1274 = vst [vmem:[#allocation5 + $0x70] sm:$0xff] %v1172
      %1275 = vst [vmem:[#allocation5 + $0x78] sm:$0xff] %v1177
      %1276 = vst [vmem:[#allocation5 + $0x80] sm:$0xff] %v1182
      %1277 = vst [vmem:[#allocation5 + $0x88] sm:$0xff] %v1187
      %1278 = vst [vmem:[#allocation5 + $0x90] sm:$0xff] %v1192
      %1279 = vst [vmem:[#allocation5 + $0x98] sm:$0xff] %v1197
      %1280 = vst [vmem:[#allocation5 + $0xa0] sm:$0xff] %v1202
      %1281 = vst [vmem:[#allocation5 + $0xa8] sm:$0xff] %v1207
      %1282 = vst [vmem:[#allocation5 + $0xb0] sm:$0xff] %v1212
      %1283 = vst [vmem:[#allocation5 + $0xb8] sm:$0xff] %v1217
      %1284 = vst [vmem:[#allocation5 + $0xc0] sm:$0xff] %v1222
      %1285 = vst [vmem:[#allocation5 + $0xc8] sm:$0xff] %v1227
      %1286 = vst [vmem:[#allocation5 + $0xd0] sm:$0xff] %v1232
      %1287 = vst [vmem:[#allocation5 + $0xd8] sm:$0xff] %v1237
      %1288 = vst [vmem:[#allocation5 + $0xe0] sm:$0xff] %v1242
      %1289 = vst [vmem:[#allocation5 + $0xe8] sm:$0xff] %v1247
      %1290 = vst [vmem:[#allocation5 + $0xf0] sm:$0xff] %v1252
      %1291 = vst [vmem:[#allocation5 + $0xf8] sm:$0xff] %v1257
      %v1292 = vld [vmem:[#allocation5] sm:$0xff]
      %v1293 = vld [vmem:[#allocation5 + $0x8] sm:$0xff]
      %v1294 = vld [vmem:[#allocation5 + $0x10] sm:$0xff]
      %v1295 = vld [vmem:[#allocation5 + $0x18] sm:$0xff]
      %v1296 = vld [vmem:[#allocation5 + $0x20] sm:$0xff]
      %v1297 = vld [vmem:[#allocation5 + $0x28] sm:$0xff]
      %v1298 = vld [vmem:[#allocation5 + $0x30] sm:$0xff]
      %v1299 = vld [vmem:[#allocation5 + $0x38] sm:$0xff]
      %v1300 = vld [vmem:[#allocation5 + $0x40] sm:$0xff]
      %v1301 = vld [vmem:[#allocation5 + $0x48] sm:$0xff]
      %v1302 = vld [vmem:[#allocation5 + $0x50] sm:$0xff]
      %v1303 = vld [vmem:[#allocation5 + $0x58] sm:$0xff]
      %v1304 = vld [vmem:[#allocation5 + $0x60] sm:$0xff]
      %v1305 = vld [vmem:[#allocation5 + $0x68] sm:$0xff]
      %v1306 = vld [vmem:[#allocation5 + $0x70] sm:$0xff]
      %v1307 = vld [vmem:[#allocation5 + $0x78] sm:$0xff]
      %v1308 = vld [vmem:[#allocation5 + $0x80] sm:$0xff]
      %v1309 = vld [vmem:[#allocation5 + $0x88] sm:$0xff]
      %v1310 = vld [vmem:[#allocation5 + $0x90] sm:$0xff]
      %v1311 = vld [vmem:[#allocation5 + $0x98] sm:$0xff]
      %v1312 = vld [vmem:[#allocation5 + $0xa0] sm:$0xff]
      %v1313 = vld [vmem:[#allocation5 + $0xa8] sm:$0xff]
      %v1314 = vld [vmem:[#allocation5 + $0xb0] sm:$0xff]
      %v1315 = vld [vmem:[#allocation5 + $0xb8] sm:$0xff]
      %v1316 = vld [vmem:[#allocation5 + $0xc0] sm:$0xff]
      %v1317 = vld [vmem:[#allocation5 + $0xc8] sm:$0xff]
      %v1318 = vld [vmem:[#allocation5 + $0xd0] sm:$0xff]
      %v1319 = vld [vmem:[#allocation5 + $0xd8] sm:$0xff]
      %v1320 = vld [vmem:[#allocation5 + $0xe0] sm:$0xff]
      %v1321 = vld [vmem:[#allocation5 + $0xe8] sm:$0xff]
      %v1322 = vld [vmem:[#allocation5 + $0xf0] sm:$0xff]
      %v1323 = vld [vmem:[#allocation5 + $0xf8] sm:$0xff]
      %s1324 = scalar_lea.vmem %s1, 384
      %v1325 = vld [vmem:[%s1324] sm:$0xff]
      %v1326 = vld [vmem:[%s1324 + $0x8] sm:$0xff]
      %v1327 = vld [vmem:[%s1324 + $0x10] sm:$0xff]
      %v1328 = vld [vmem:[%s1324 + $0x18] sm:$0xff]
      %v1329 = vld [vmem:[%s1324 + $0x20] sm:$0xff]
      %v1330 = vld [vmem:[%s1324 + $0x28] sm:$0xff]
      %v1331 = vld [vmem:[%s1324 + $0x30] sm:$0xff]
      %v1332 = vld [vmem:[%s1324 + $0x38] sm:$0xff]
      %v1333 = vld [vmem:[%s1324 + $0x40] sm:$0xff]
      %v1334 = vld [vmem:[%s1324 + $0x48] sm:$0xff]
      %v1335 = vld [vmem:[%s1324 + $0x50] sm:$0xff]
      %v1336 = vld [vmem:[%s1324 + $0x58] sm:$0xff]
      %v1337 = vld [vmem:[%s1324 + $0x60] sm:$0xff]
      %v1338 = vld [vmem:[%s1324 + $0x68] sm:$0xff]
      %v1339 = vld [vmem:[%s1324 + $0x70] sm:$0xff]
      %v1340 = vld [vmem:[%s1324 + $0x78] sm:$0xff]
      %v1341 = vld [vmem:[%s1324 + $0x80] sm:$0xff]
      %v1342 = vld [vmem:[%s1324 + $0x88] sm:$0xff]
      %v1343 = vld [vmem:[%s1324 + $0x90] sm:$0xff]
      %v1344 = vld [vmem:[%s1324 + $0x98] sm:$0xff]
      %v1345 = vld [vmem:[%s1324 + $0xa0] sm:$0xff]
      %v1346 = vld [vmem:[%s1324 + $0xa8] sm:$0xff]
      %v1347 = vld [vmem:[%s1324 + $0xb0] sm:$0xff]
      %v1348 = vld [vmem:[%s1324 + $0xb8] sm:$0xff]
      %v1349 = vld [vmem:[%s1324 + $0xc0] sm:$0xff]
      %v1350 = vld [vmem:[%s1324 + $0xc8] sm:$0xff]
      %v1351 = vld [vmem:[%s1324 + $0xd0] sm:$0xff]
      %v1352 = vld [vmem:[%s1324 + $0xd8] sm:$0xff]
      %v1353 = vld [vmem:[%s1324 + $0xe0] sm:$0xff]
      %v1354 = vld [vmem:[%s1324 + $0xe8] sm:$0xff]
      %v1355 = vld [vmem:[%s1324 + $0xf0] sm:$0xff]
      %v1356 = vld [vmem:[%s1324 + $0xf8] sm:$0xff]
      %v1357 = vld [vmem:[%s1324 + $0x100] sm:$0xff]
      %v1358 = vld [vmem:[%s1324 + $0x108] sm:$0xff]
      %v1359 = vld [vmem:[%s1324 + $0x110] sm:$0xff]
      %v1360 = vld [vmem:[%s1324 + $0x118] sm:$0xff]
      %v1361 = vld [vmem:[%s1324 + $0x120] sm:$0xff]
      %v1362 = vld [vmem:[%s1324 + $0x128] sm:$0xff]
      %v1363 = vld [vmem:[%s1324 + $0x130] sm:$0xff]
      %v1364 = vld [vmem:[%s1324 + $0x138] sm:$0xff]
      %v1365 = vld [vmem:[%s1324 + $0x140] sm:$0xff]
      %v1366 = vld [vmem:[%s1324 + $0x148] sm:$0xff]
      %v1367 = vld [vmem:[%s1324 + $0x150] sm:$0xff]
      %v1368 = vld [vmem:[%s1324 + $0x158] sm:$0xff]
      %v1369 = vld [vmem:[%s1324 + $0x160] sm:$0xff]
      %v1370 = vld [vmem:[%s1324 + $0x168] sm:$0xff]
      %v1371 = vld [vmem:[%s1324 + $0x170] sm:$0xff]
      %v1372 = vld [vmem:[%s1324 + $0x178] sm:$0xff]
      %1373 = vmatprep.subr.mxu0 0.0
      %1374 = vmatpush1.msra.mxu0 %v1325
      %1375 = vmatprep.subr.mxu0 0.0
      %1376 = vmatpush1.msra.mxu0 %v1326
      %1377 = vmatprep.subr.mxu0 0.0
      %1378 = vmatpush1.msra.mxu0 %v1327
      %1379 = vmatprep.subr.mxu0 0.0
      %1380 = vmatpush1.msra.mxu0 %v1328
      %1381 = vmatprep.subr.mxu0 0.0
      %1382 = vmatpush1.msra.mxu0 %v1329
      %1383 = vmatprep.subr.mxu0 0.0
      %1384 = vmatpush1.msra.mxu0 %v1330
      %1385 = vmatprep.subr.mxu0 0.0
      %1386 = vmatpush1.msra.mxu0 %v1331
      %1387 = vmatprep.subr.mxu0 0.0
      %1388 = vmatpush1.msra.mxu0 %v1332
      %1389 = vmatprep.subr.mxu0 0.0
      %1390 = vmatpush1.msra.mxu0 %v1333
      %1391 = vmatprep.subr.mxu0 0.0
      %1392 = vmatpush1.msra.mxu0 %v1334
      %1393 = vmatprep.subr.mxu0 0.0
      %1394 = vmatpush1.msra.mxu0 %v1335
      %1395 = vmatprep.subr.mxu0 0.0
      %1396 = vmatpush1.msra.mxu0 %v1336
      %1397 = vmatprep.subr.mxu0 0.0
      %1398 = vmatpush1.msra.mxu0 %v1337
      %1399 = vmatprep.subr.mxu0 0.0
      %1400 = vmatpush1.msra.mxu0 %v1338
      %1401 = vmatprep.subr.mxu0 0.0
      %1402 = vmatpush1.msra.mxu0 %v1339
      %1403 = vmatprep.subr.mxu0 0.0
      %1404 = vmatpush1.msra.mxu0 %v1340
      %1405 = vmatprep.subr.mxu0 0.0
      %1406 = vmatpush1.msra.mxu0 %v1341
      %1407 = vmatprep.subr.mxu0 0.0
      %1408 = vmatpush1.msra.mxu0 %v1342
      %1409 = vmatprep.subr.mxu0 0.0
      %1410 = vmatpush1.msra.mxu0 %v1343
      %1411 = vmatprep.subr.mxu0 0.0
      %1412 = vmatpush1.msra.mxu0 %v1344
      %1413 = vmatprep.subr.mxu0 0.0
      %1414 = vmatpush1.msra.mxu0 %v1345
      %1415 = vmatprep.subr.mxu0 0.0
      %1416 = vmatpush1.msra.mxu0 %v1346
      %1417 = vmatprep.subr.mxu0 0.0
      %1418 = vmatpush1.msra.mxu0 %v1347
      %1419 = vmatprep.subr.mxu0 0.0
      %1420 = vmatpush1.msra.mxu0 %v1348
      %1421 = vmatprep.subr.mxu0 0.0
      %1422 = vmatpush1.msra.mxu0 %v1349
      %1423 = vmatprep.subr.mxu0 0.0
      %1424 = vmatpush1.msra.mxu0 %v1350
      %1425 = vmatprep.subr.mxu0 0.0
      %1426 = vmatpush1.msra.mxu0 %v1351
      %1427 = vmatprep.subr.mxu0 0.0
      %1428 = vmatpush1.msra.mxu0 %v1352
      %1429 = vmatprep.subr.mxu0 0.0
      %1430 = vmatpush1.msra.mxu0 %v1353
      %1431 = vmatprep.subr.mxu0 0.0
      %1432 = vmatpush1.msra.mxu0 %v1354
      %1433 = vmatprep.subr.mxu0 0.0
      %1434 = vmatpush1.msra.mxu0 %v1355
      %1435 = vmatprep.subr.mxu0 0.0
      %1436 = vmatpush1.msra.mxu0 %v1356
      %1437 = vmatprep.mubr.f32.mxu0 %v516
      %1438 = vmatmul.mubr.f32.gmra.mrb[0].mxu0 %v403
      %v1439 = vpop.f32.mrb[0].mxu0
      %v1440 = vadd.f32 0.0, %v1439
      %v1441 = vpop.f32.mrb[0].mxu0
      %1442 = vmatprep.mubr.f32.mxu0 %v518
      %1443 = vmatmul.mubr.f32.gmra.mrb[0].mxu0 %v404
      %v1444 = vpop.f32.mrb[0].mxu0
      %v1445 = vadd.f32 0.0, %v1444
      %v1446 = vpop.f32.mrb[0].mxu0
      %1447 = vmatprep.mubr.f32.mxu0 %v521
      %1448 = vmatmul.mubr.f32.gmra.mrb[0].mxu0 %v406
      %v1449 = vpop.f32.mrb[0].mxu0
      %v1450 = vadd.f32 0.0, %v1449
      %v1451 = vpop.f32.mrb[0].mxu0
      %1452 = vmatprep.mubr.f32.mxu0 %v523
      %1453 = vmatmul.mubr.f32.gmra.mrb[0].mxu0 %v407
      %v1454 = vpop.f32.mrb[0].mxu0
      %v1455 = vadd.f32 0.0, %v1454
      %v1456 = vpop.f32.mrb[0].mxu0
      %1457 = vmatprep.mubr.f32.mxu0 %v526
      %1458 = vmatmul.mubr.f32.gmra.mrb[0].mxu0 %v409
      %v1459 = vpop.f32.mrb[0].mxu0
      %v1460 = vadd.f32 0.0, %v1459
      %v1461 = vpop.f32.mrb[0].mxu0
      %1462 = vmatprep.mubr.f32.mxu0 %v528
      %1463 = vmatmul.mubr.f32.gmra.mrb[0].mxu0 %v410
      %v1464 = vpop.f32.mrb[0].mxu0
      %v1465 = vadd.f32 0.0, %v1464
      %v1466 = vpop.f32.mrb[0].mxu0
      %1467 = vmatprep.mubr.f32.mxu0 %v531
      %1468 = vmatmul.mubr.f32.gmra.mrb[0].mxu0 %v412
      %v1469 = vpop.f32.mrb[0].mxu0
      %v1470 = vadd.f32 0.0, %v1469
      %v1471 = vpop.f32.mrb[0].mxu0
      %1472 = vmatprep.mubr.f32.mxu0 %v533
      %1473 = vmatmul.mubr.f32.gmra.mrb[0].mxu0 %v413
      %v1474 = vpop.f32.mrb[0].mxu0
      %v1475 = vadd.f32 0.0, %v1474
      %v1476 = vpop.f32.mrb[0].mxu0
      %1477 = vmatprep.mubr.f32.mxu0 %v536
      %1478 = vmatmul.mubr.f32.gmra.mrb[0].mxu0 %v415
      %v1479 = vpop.f32.mrb[0].mxu0
      %v1480 = vadd.f32 0.0, %v1479
      %v1481 = vpop.f32.mrb[0].mxu0
      %1482 = vmatprep.mubr.f32.mxu0 %v538
      %1483 = vmatmul.mubr.f32.gmra.mrb[0].mxu0 %v416
      %v1484 = vpop.f32.mrb[0].mxu0
      %v1485 = vadd.f32 0.0, %v1484
      %v1486 = vpop.f32.mrb[0].mxu0
      %1487 = vmatprep.mubr.f32.mxu0 %v541
      %1488 = vmatmul.mubr.f32.gmra.mrb[0].mxu0 %v418
      %v1489 = vpop.f32.mrb[0].mxu0
      %v1490 = vadd.f32 0.0, %v1489
      %v1491 = vpop.f32.mrb[0].mxu0
      %1492 = vmatprep.mubr.f32.mxu0 %v543
      %1493 = vmatmul.mubr.f32.gmra.mrb[0].mxu0 %v419
      %v1494 = vpop.f32.mrb[0].mxu0
      %v1495 = vadd.f32 0.0, %v1494
      %v1496 = vpop.f32.mrb[0].mxu0
      %1497 = vmatprep.mubr.f32.mxu0 %v546
      %1498 = vmatmul.mubr.f32.gmra.mrb[0].mxu0 %v421
      %v1499 = vpop.f32.mrb[0].mxu0
      %v1500 = vadd.f32 0.0, %v1499
      %v1501 = vpop.f32.mrb[0].mxu0
      %1502 = vmatprep.mubr.f32.mxu0 %v548
      %1503 = vmatmul.mubr.f32.gmra.mrb[0].mxu0 %v422
      %v1504 = vpop.f32.mrb[0].mxu0
      %v1505 = vadd.f32 0.0, %v1504
      %v1506 = vpop.f32.mrb[0].mxu0
      %1507 = vmatprep.mubr.f32.mxu0 %v551
      %1508 = vmatmul.mubr.f32.gmra.mrb[0].mxu0 %v424
      %v1509 = vpop.f32.mrb[0].mxu0
      %v1510 = vadd.f32 0.0, %v1509
      %v1511 = vpop.f32.mrb[0].mxu0
      %1512 = vmatprep.mubr.f32.mxu0 %v553
      %1513 = vmatmul.mubr.f32.gmra.mrb[0].mxu0 %v425
      %v1514 = vpop.f32.mrb[0].mxu0
      %v1515 = vadd.f32 0.0, %v1514
      %v1516 = vpop.f32.mrb[0].mxu0
      %1517 = vmatprep.mubr.f32.mxu0 %v556
      %1518 = vmatmul.mubr.f32.gmra.mrb[0].mxu0 %v427
      %v1519 = vpop.f32.mrb[0].mxu0
      %v1520 = vadd.f32 0.0, %v1519
      %v1521 = vpop.f32.mrb[0].mxu0
      %1522 = vmatprep.mubr.f32.mxu0 %v558
      %1523 = vmatmul.mubr.f32.gmra.mrb[0].mxu0 %v428
      %v1524 = vpop.f32.mrb[0].mxu0
      %v1525 = vadd.f32 0.0, %v1524
      %v1526 = vpop.f32.mrb[0].mxu0
      %1527 = vmatprep.mubr.f32.mxu0 %v561
      %1528 = vmatmul.mubr.f32.gmra.mrb[0].mxu0 %v430
      %v1529 = vpop.f32.mrb[0].mxu0
      %v1530 = vadd.f32 0.0, %v1529
      %v1531 = vpop.f32.mrb[0].mxu0
      %1532 = vmatprep.mubr.f32.mxu0 %v563
      %1533 = vmatmul.mubr.f32.gmra.mrb[0].mxu0 %v431
      %v1534 = vpop.f32.mrb[0].mxu0
      %v1535 = vadd.f32 0.0, %v1534
      %v1536 = vpop.f32.mrb[0].mxu0
      %1537 = vmatprep.mubr.f32.mxu0 %v566
      %1538 = vmatmul.mubr.f32.gmra.mrb[0].mxu0 %v433
      %v1539 = vpop.f32.mrb[0].mxu0
      %v1540 = vadd.f32 0.0, %v1539
      %v1541 = vpop.f32.mrb[0].mxu0
      %1542 = vmatprep.mubr.f32.mxu0 %v568
      %1543 = vmatmul.mubr.f32.gmra.mrb[0].mxu0 %v434
      %v1544 = vpop.f32.mrb[0].mxu0
      %v1545 = vadd.f32 0.0, %v1544
      %v1546 = vpop.f32.mrb[0].mxu0
      %1547 = vmatprep.mubr.f32.mxu0 %v571
      %1548 = vmatmul.mubr.f32.gmra.mrb[0].mxu0 %v436
      %v1549 = vpop.f32.mrb[0].mxu0
      %v1550 = vadd.f32 0.0, %v1549
      %v1551 = vpop.f32.mrb[0].mxu0
      %1552 = vmatprep.mubr.f32.mxu0 %v573
      %1553 = vmatmul.mubr.f32.gmra.mrb[0].mxu0 %v437
      %v1554 = vpop.f32.mrb[0].mxu0
      %v1555 = vadd.f32 0.0, %v1554
      %v1556 = vpop.f32.mrb[0].mxu0
      %1557 = vmatprep.mubr.f32.mxu0 %v576
      %1558 = vmatmul.mubr.f32.gmra.mrb[0].mxu0 %v439
      %v1559 = vpop.f32.mrb[0].mxu0
      %v1560 = vadd.f32 0.0, %v1559
      %v1561 = vpop.f32.mrb[0].mxu0
      %1562 = vmatprep.mubr.f32.mxu0 %v578
      %1563 = vmatmul.mubr.f32.gmra.mrb[0].mxu0 %v440
      %v1564 = vpop.f32.mrb[0].mxu0
      %v1565 = vadd.f32 0.0, %v1564
      %v1566 = vpop.f32.mrb[0].mxu0
      %1567 = vmatprep.mubr.f32.mxu0 %v581
      %1568 = vmatmul.mubr.f32.gmra.mrb[0].mxu0 %v442
      %v1569 = vpop.f32.mrb[0].mxu0
      %v1570 = vadd.f32 0.0, %v1569
      %v1571 = vpop.f32.mrb[0].mxu0
      %1572 = vmatprep.mubr.f32.mxu0 %v583
      %1573 = vmatmul.mubr.f32.gmra.mrb[0].mxu0 %v443
      %v1574 = vpop.f32.mrb[0].mxu0
      %v1575 = vadd.f32 0.0, %v1574
      %v1576 = vpop.f32.mrb[0].mxu0
      %1577 = vmatprep.mubr.f32.mxu0 %v586
      %1578 = vmatmul.mubr.f32.gmra.mrb[0].mxu0 %v445
      %v1579 = vpop.f32.mrb[0].mxu0
      %v1580 = vadd.f32 0.0, %v1579
      %v1581 = vpop.f32.mrb[0].mxu0
      %1582 = vmatprep.mubr.f32.mxu0 %v588
      %1583 = vmatmul.mubr.f32.gmra.mrb[0].mxu0 %v446
      %v1584 = vpop.f32.mrb[0].mxu0
      %v1585 = vadd.f32 0.0, %v1584
      %v1586 = vpop.f32.mrb[0].mxu0
      %1587 = vmatprep.mubr.f32.mxu0 %v591
      %1588 = vmatmul.mubr.f32.gmra.mrb[0].mxu0 %v448
      %v1589 = vpop.f32.mrb[0].mxu0
      %v1590 = vadd.f32 0.0, %v1589
      %v1591 = vpop.f32.mrb[0].mxu0
      %1592 = vmatprep.mubr.f32.mxu0 %v593
      %1593 = vmatmul.mubr.f32.gmra.mrb[0].mxu0 %v449
      %v1594 = vpop.f32.mrb[0].mxu0
      %v1595 = vadd.f32 0.0, %v1594
      %v1596 = vpop.f32.mrb[0].mxu0
      %1597 = vdwg.mxu0
      %1598 = vmatprep.subr.mxu0 0.0
      %1599 = vmatpush1.msra.mxu0 %v1357
      %1600 = vmatprep.subr.mxu0 0.0
      %1601 = vmatpush1.msra.mxu0 %v1358
      %1602 = vmatprep.subr.mxu0 0.0
      %1603 = vmatpush1.msra.mxu0 %v1359
      %1604 = vmatprep.subr.mxu0 0.0
      %1605 = vmatpush1.msra.mxu0 %v1360
      %1606 = vmatprep.subr.mxu0 0.0
      %1607 = vmatpush1.msra.mxu0 %v1361
      %1608 = vmatprep.subr.mxu0 0.0
      %1609 = vmatpush1.msra.mxu0 %v1362
      %1610 = vmatprep.subr.mxu0 0.0
      %1611 = vmatpush1.msra.mxu0 %v1363
      %1612 = vmatprep.subr.mxu0 0.0
      %1613 = vmatpush1.msra.mxu0 %v1364
      %1614 = vmatprep.subr.mxu0 0.0
      %1615 = vmatpush1.msra.mxu0 %v1365
      %1616 = vmatprep.subr.mxu0 0.0
      %1617 = vmatpush1.msra.mxu0 %v1366
      %1618 = vmatprep.subr.mxu0 0.0
      %1619 = vmatpush1.msra.mxu0 %v1367
      %1620 = vmatprep.subr.mxu0 0.0
      %1621 = vmatpush1.msra.mxu0 %v1368
      %1622 = vmatprep.subr.mxu0 0.0
      %1623 = vmatpush1.msra.mxu0 %v1369
      %1624 = vmatprep.subr.mxu0 0.0
      %1625 = vmatpush1.msra.mxu0 %v1370
      %1626 = vmatprep.subr.mxu0 0.0
      %1627 = vmatpush1.msra.mxu0 %v1371
      %1628 = vmatprep.subr.mxu0 0.0
      %1629 = vmatpush1.msra.mxu0 %v1372
      %1630 = vmatprep.subr.mxu0 0.0
      %1631 = vmatpush1.msra.mxu0 0.0
      %1632 = vmatprep.subr.mxu0 0.0
      %1633 = vmatpush1.msra.mxu0 0.0
      %1634 = vmatprep.subr.mxu0 0.0
      %1635 = vmatpush1.msra.mxu0 0.0
      %1636 = vmatprep.subr.mxu0 0.0
      %1637 = vmatpush1.msra.mxu0 0.0
      %1638 = vmatprep.subr.mxu0 0.0
      %1639 = vmatpush1.msra.mxu0 0.0
      %1640 = vmatprep.subr.mxu0 0.0
      %1641 = vmatpush1.msra.mxu0 0.0
      %1642 = vmatprep.subr.mxu0 0.0
      %1643 = vmatpush1.msra.mxu0 0.0
      %1644 = vmatprep.subr.mxu0 0.0
      %1645 = vmatpush1.msra.mxu0 0.0
      %1646 = vmatprep.subr.mxu0 0.0
      %1647 = vmatpush1.msra.mxu0 0.0
      %1648 = vmatprep.subr.mxu0 0.0
      %1649 = vmatpush1.msra.mxu0 0.0
      %1650 = vmatprep.subr.mxu0 0.0
      %1651 = vmatpush1.msra.mxu0 0.0
      %1652 = vmatprep.subr.mxu0 0.0
      %1653 = vmatpush1.msra.mxu0 0.0
      %1654 = vmatprep.subr.mxu0 0.0
      %1655 = vmatpush1.msra.mxu0 0.0
      %1656 = vmatprep.subr.mxu0 0.0
      %1657 = vmatpush1.msra.mxu0 0.0
      %1658 = vmatprep.subr.mxu0 0.0
      %1659 = vmatpush1.msra.mxu0 0.0
      %1660 = vmatprep.subr.mxu0 0.0
      %1661 = vmatpush1.msra.mxu0 0.0
      %1662 = vmatprep.mubr.f32.mxu0 0.0
      %1663 = vmatmul.mubr.f32.gmra.mrb[0].mxu0 %v643
      %v1664 = vpop.f32.mrb[0].mxu0
      %v1665 = vadd.f32 %v1440, %v1664
      %v1666 = vpop.f32.mrb[0].mxu0
      %1667 = vmatprep.mubr.f32.mxu0 0.0
      %1668 = vmatmul.mubr.f32.gmra.mrb[0].mxu0 %v645
      %v1669 = vpop.f32.mrb[0].mxu0
      %v1670 = vadd.f32 %v1445, %v1669
      %v1671 = vpop.f32.mrb[0].mxu0
      %1672 = vmatprep.mubr.f32.mxu0 0.0
      %1673 = vmatmul.mubr.f32.gmra.mrb[0].mxu0 %v648
      %v1674 = vpop.f32.mrb[0].mxu0
      %v1675 = vadd.f32 %v1450, %v1674
      %v1676 = vpop.f32.mrb[0].mxu0
      %1677 = vmatprep.mubr.f32.mxu0 0.0
      %1678 = vmatmul.mubr.f32.gmra.mrb[0].mxu0 %v650
      %v1679 = vpop.f32.mrb[0].mxu0
      %v1680 = vadd.f32 %v1455, %v1679
      %v1681 = vpop.f32.mrb[0].mxu0
      %1682 = vmatprep.mubr.f32.mxu0 0.0
      %1683 = vmatmul.mubr.f32.gmra.mrb[0].mxu0 %v653
      %v1684 = vpop.f32.mrb[0].mxu0
      %v1685 = vadd.f32 %v1460, %v1684
      %v1686 = vpop.f32.mrb[0].mxu0
      %1687 = vmatprep.mubr.f32.mxu0 0.0
      %1688 = vmatmul.mubr.f32.gmra.mrb[0].mxu0 %v655
      %v1689 = vpop.f32.mrb[0].mxu0
      %v1690 = vadd.f32 %v1465, %v1689
      %v1691 = vpop.f32.mrb[0].mxu0
      %1692 = vmatprep.mubr.f32.mxu0 0.0
      %1693 = vmatmul.mubr.f32.gmra.mrb[0].mxu0 %v658
      %v1694 = vpop.f32.mrb[0].mxu0
      %v1695 = vadd.f32 %v1470, %v1694
      %v1696 = vpop.f32.mrb[0].mxu0
      %1697 = vmatprep.mubr.f32.mxu0 0.0
      %1698 = vmatmul.mubr.f32.gmra.mrb[0].mxu0 %v660
      %v1699 = vpop.f32.mrb[0].mxu0
      %v1700 = vadd.f32 %v1475, %v1699
      %v1701 = vpop.f32.mrb[0].mxu0
      %1702 = vmatprep.mubr.f32.mxu0 0.0
      %1703 = vmatmul.mubr.f32.gmra.mrb[0].mxu0 %v663
      %v1704 = vpop.f32.mrb[0].mxu0
      %v1705 = vadd.f32 %v1480, %v1704
      %v1706 = vpop.f32.mrb[0].mxu0
      %1707 = vmatprep.mubr.f32.mxu0 0.0
      %1708 = vmatmul.mubr.f32.gmra.mrb[0].mxu0 %v665
      %v1709 = vpop.f32.mrb[0].mxu0
      %v1710 = vadd.f32 %v1485, %v1709
      %v1711 = vpop.f32.mrb[0].mxu0
      %1712 = vmatprep.mubr.f32.mxu0 0.0
      %1713 = vmatmul.mubr.f32.gmra.mrb[0].mxu0 %v668
      %v1714 = vpop.f32.mrb[0].mxu0
      %v1715 = vadd.f32 %v1490, %v1714
      %v1716 = vpop.f32.mrb[0].mxu0
      %1717 = vmatprep.mubr.f32.mxu0 0.0
      %1718 = vmatmul.mubr.f32.gmra.mrb[0].mxu0 %v670
      %v1719 = vpop.f32.mrb[0].mxu0
      %v1720 = vadd.f32 %v1495, %v1719
      %v1721 = vpop.f32.mrb[0].mxu0
      %1722 = vmatprep.mubr.f32.mxu0 0.0
      %1723 = vmatmul.mubr.f32.gmra.mrb[0].mxu0 %v673
      %v1724 = vpop.f32.mrb[0].mxu0
      %v1725 = vadd.f32 %v1500, %v1724
      %v1726 = vpop.f32.mrb[0].mxu0
      %1727 = vmatprep.mubr.f32.mxu0 0.0
      %1728 = vmatmul.mubr.f32.gmra.mrb[0].mxu0 %v675
      %v1729 = vpop.f32.mrb[0].mxu0
      %v1730 = vadd.f32 %v1505, %v1729
      %v1731 = vpop.f32.mrb[0].mxu0
      %1732 = vmatprep.mubr.f32.mxu0 0.0
      %1733 = vmatmul.mubr.f32.gmra.mrb[0].mxu0 %v678
      %v1734 = vpop.f32.mrb[0].mxu0
      %v1735 = vadd.f32 %v1510, %v1734
      %v1736 = vpop.f32.mrb[0].mxu0
      %1737 = vmatprep.mubr.f32.mxu0 0.0
      %1738 = vmatmul.mubr.f32.gmra.mrb[0].mxu0 %v680
      %v1739 = vpop.f32.mrb[0].mxu0
      %v1740 = vadd.f32 %v1515, %v1739
      %v1741 = vpop.f32.mrb[0].mxu0
      %1742 = vmatprep.mubr.f32.mxu0 0.0
      %1743 = vmatmul.mubr.f32.gmra.mrb[0].mxu0 %v683
      %v1744 = vpop.f32.mrb[0].mxu0
      %v1745 = vadd.f32 %v1520, %v1744
      %v1746 = vpop.f32.mrb[0].mxu0
      %1747 = vmatprep.mubr.f32.mxu0 0.0
      %1748 = vmatmul.mubr.f32.gmra.mrb[0].mxu0 %v685
      %v1749 = vpop.f32.mrb[0].mxu0
      %v1750 = vadd.f32 %v1525, %v1749
      %v1751 = vpop.f32.mrb[0].mxu0
      %1752 = vmatprep.mubr.f32.mxu0 0.0
      %1753 = vmatmul.mubr.f32.gmra.mrb[0].mxu0 %v688
      %v1754 = vpop.f32.mrb[0].mxu0
      %v1755 = vadd.f32 %v1530, %v1754
      %v1756 = vpop.f32.mrb[0].mxu0
      %1757 = vmatprep.mubr.f32.mxu0 0.0
      %1758 = vmatmul.mubr.f32.gmra.mrb[0].mxu0 %v690
      %v1759 = vpop.f32.mrb[0].mxu0
      %v1760 = vadd.f32 %v1535, %v1759
      %v1761 = vpop.f32.mrb[0].mxu0
      %1762 = vmatprep.mubr.f32.mxu0 0.0
      %1763 = vmatmul.mubr.f32.gmra.mrb[0].mxu0 %v693
      %v1764 = vpop.f32.mrb[0].mxu0
      %v1765 = vadd.f32 %v1540, %v1764
      %v1766 = vpop.f32.mrb[0].mxu0
      %1767 = vmatprep.mubr.f32.mxu0 0.0
      %1768 = vmatmul.mubr.f32.gmra.mrb[0].mxu0 %v695
      %v1769 = vpop.f32.mrb[0].mxu0
      %v1770 = vadd.f32 %v1545, %v1769
      %v1771 = vpop.f32.mrb[0].mxu0
      %1772 = vmatprep.mubr.f32.mxu0 0.0
      %1773 = vmatmul.mubr.f32.gmra.mrb[0].mxu0 %v698
      %v1774 = vpop.f32.mrb[0].mxu0
      %v1775 = vadd.f32 %v1550, %v1774
      %v1776 = vpop.f32.mrb[0].mxu0
      %1777 = vmatprep.mubr.f32.mxu0 0.0
      %1778 = vmatmul.mubr.f32.gmra.mrb[0].mxu0 %v700
      %v1779 = vpop.f32.mrb[0].mxu0
      %v1780 = vadd.f32 %v1555, %v1779
      %v1781 = vpop.f32.mrb[0].mxu0
      %1782 = vmatprep.mubr.f32.mxu0 0.0
      %1783 = vmatmul.mubr.f32.gmra.mrb[0].mxu0 %v703
      %v1784 = vpop.f32.mrb[0].mxu0
      %v1785 = vadd.f32 %v1560, %v1784
      %v1786 = vpop.f32.mrb[0].mxu0
      %1787 = vmatprep.mubr.f32.mxu0 0.0
      %1788 = vmatmul.mubr.f32.gmra.mrb[0].mxu0 %v705
      %v1789 = vpop.f32.mrb[0].mxu0
      %v1790 = vadd.f32 %v1565, %v1789
      %v1791 = vpop.f32.mrb[0].mxu0
      %1792 = vmatprep.mubr.f32.mxu0 0.0
      %1793 = vmatmul.mubr.f32.gmra.mrb[0].mxu0 %v708
      %v1794 = vpop.f32.mrb[0].mxu0
      %v1795 = vadd.f32 %v1570, %v1794
      %v1796 = vpop.f32.mrb[0].mxu0
      %1797 = vmatprep.mubr.f32.mxu0 0.0
      %1798 = vmatmul.mubr.f32.gmra.mrb[0].mxu0 %v710
      %v1799 = vpop.f32.mrb[0].mxu0
      %v1800 = vadd.f32 %v1575, %v1799
      %v1801 = vpop.f32.mrb[0].mxu0
      %1802 = vmatprep.mubr.f32.mxu0 0.0
      %1803 = vmatmul.mubr.f32.gmra.mrb[0].mxu0 %v713
      %v1804 = vpop.f32.mrb[0].mxu0
      %v1805 = vadd.f32 %v1580, %v1804
      %v1806 = vpop.f32.mrb[0].mxu0
      %1807 = vmatprep.mubr.f32.mxu0 0.0
      %1808 = vmatmul.mubr.f32.gmra.mrb[0].mxu0 %v715
      %v1809 = vpop.f32.mrb[0].mxu0
      %v1810 = vadd.f32 %v1585, %v1809
      %v1811 = vpop.f32.mrb[0].mxu0
      %1812 = vmatprep.mubr.f32.mxu0 0.0
      %1813 = vmatmul.mubr.f32.gmra.mrb[0].mxu0 %v718
      %v1814 = vpop.f32.mrb[0].mxu0
      %v1815 = vadd.f32 %v1590, %v1814
      %v1816 = vpop.f32.mrb[0].mxu0
      %1817 = vmatprep.mubr.f32.mxu0 0.0
      %1818 = vmatmul.mubr.f32.gmra.mrb[0].mxu0 %v720
      %v1819 = vpop.f32.mrb[0].mxu0
      %v1820 = vadd.f32 %v1595, %v1819
      %v1821 = vpop.f32.mrb[0].mxu0
      %1822 = vdwg.mxu0
      %v1823 = vadd.f32 %v1292, %v1665
      %v1824 = vadd.f32 %v1293, %v1670
      %v1825 = vadd.f32 %v1294, %v1675
      %v1826 = vadd.f32 %v1295, %v1680
      %v1827 = vadd.f32 %v1296, %v1685
      %v1828 = vadd.f32 %v1297, %v1690
      %v1829 = vadd.f32 %v1298, %v1695
      %v1830 = vadd.f32 %v1299, %v1700
      %v1831 = vadd.f32 %v1300, %v1705
      %v1832 = vadd.f32 %v1301, %v1710
      %v1833 = vadd.f32 %v1302, %v1715
      %v1834 = vadd.f32 %v1303, %v1720
      %v1835 = vadd.f32 %v1304, %v1725
      %v1836 = vadd.f32 %v1305, %v1730
      %v1837 = vadd.f32 %v1306, %v1735
      %v1838 = vadd.f32 %v1307, %v1740
      %v1839 = vadd.f32 %v1308, %v1745
      %v1840 = vadd.f32 %v1309, %v1750
      %v1841 = vadd.f32 %v1310, %v1755
      %v1842 = vadd.f32 %v1311, %v1760
      %v1843 = vadd.f32 %v1312, %v1765
      %v1844 = vadd.f32 %v1313, %v1770
      %v1845 = vadd.f32 %v1314, %v1775
      %v1846 = vadd.f32 %v1315, %v1780
      %v1847 = vadd.f32 %v1316, %v1785
      %v1848 = vadd.f32 %v1317, %v1790
      %v1849 = vadd.f32 %v1318, %v1795
      %v1850 = vadd.f32 %v1319, %v1800
      %v1851 = vadd.f32 %v1320, %v1805
      %v1852 = vadd.f32 %v1321, %v1810
      %v1853 = vadd.f32 %v1322, %v1815
      %v1854 = vadd.f32 %v1323, %v1820
      %1855 = vst [vmem:[#allocation5] sm:$0xff] %v1823
      %1856 = vst [vmem:[#allocation5 + $0x8] sm:$0xff] %v1824
      %1857 = vst [vmem:[#allocation5 + $0x10] sm:$0xff] %v1825
      %1858 = vst [vmem:[#allocation5 + $0x18] sm:$0xff] %v1826
      %1859 = vst [vmem:[#allocation5 + $0x20] sm:$0xff] %v1827
      %1860 = vst [vmem:[#allocation5 + $0x28] sm:$0xff] %v1828
      %1861 = vst [vmem:[#allocation5 + $0x30] sm:$0xff] %v1829
      %1862 = vst [vmem:[#allocation5 + $0x38] sm:$0xff] %v1830
      %1863 = vst [vmem:[#allocation5 + $0x40] sm:$0xff] %v1831
      %1864 = vst [vmem:[#allocation5 + $0x48] sm:$0xff] %v1832
      %1865 = vst [vmem:[#allocation5 + $0x50] sm:$0xff] %v1833
      %1866 = vst [vmem:[#allocation5 + $0x58] sm:$0xff] %v1834
      %1867 = vst [vmem:[#allocation5 + $0x60] sm:$0xff] %v1835
      %1868 = vst [vmem:[#allocation5 + $0x68] sm:$0xff] %v1836
      %1869 = vst [vmem:[#allocation5 + $0x70] sm:$0xff] %v1837
      %1870 = vst [vmem:[#allocation5 + $0x78] sm:$0xff] %v1838
      %1871 = vst [vmem:[#allocation5 + $0x80] sm:$0xff] %v1839
      %1872 = vst [vmem:[#allocation5 + $0x88] sm:$0xff] %v1840
      %1873 = vst [vmem:[#allocation5 + $0x90] sm:$0xff] %v1841
      %1874 = vst [vmem:[#allocation5 + $0x98] sm:$0xff] %v1842
      %1875 = vst [vmem:[#allocation5 + $0xa0] sm:$0xff] %v1843
      %1876 = vst [vmem:[#allocation5 + $0xa8] sm:$0xff] %v1844
      %1877 = vst [vmem:[#allocation5 + $0xb0] sm:$0xff] %v1845
      %1878 = vst [vmem:[#allocation5 + $0xb8] sm:$0xff] %v1846
      %1879 = vst [vmem:[#allocation5 + $0xc0] sm:$0xff] %v1847
      %1880 = vst [vmem:[#allocation5 + $0xc8] sm:$0xff] %v1848
      %1881 = vst [vmem:[#allocation5 + $0xd0] sm:$0xff] %v1849
      %1882 = vst [vmem:[#allocation5 + $0xd8] sm:$0xff] %v1850
      %1883 = vst [vmem:[#allocation5 + $0xe0] sm:$0xff] %v1851
      %1884 = vst [vmem:[#allocation5 + $0xe8] sm:$0xff] %v1852
      %1885 = vst [vmem:[#allocation5 + $0xf0] sm:$0xff] %v1853
      %1886 = vst [vmem:[#allocation5 + $0xf8] sm:$0xff] %v1854
      %v1887 = vld [vmem:[#allocation5] sm:$0xff]
      %v1888 = vld [vmem:[#allocation5 + $0x8] sm:$0xff]
      %v1889 = vld [vmem:[#allocation5 + $0x10] sm:$0xff]
      %v1890 = vld [vmem:[#allocation5 + $0x18] sm:$0xff]
      %v1891 = vld [vmem:[#allocation5 + $0x20] sm:$0xff]
      %v1892 = vld [vmem:[#allocation5 + $0x28] sm:$0xff]
      %v1893 = vld [vmem:[#allocation5 + $0x30] sm:$0xff]
      %v1894 = vld [vmem:[#allocation5 + $0x38] sm:$0xff]
      %v1895 = vld [vmem:[#allocation5 + $0x40] sm:$0xff]
      %v1896 = vld [vmem:[#allocation5 + $0x48] sm:$0xff]
      %v1897 = vld [vmem:[#allocation5 + $0x50] sm:$0xff]
      %v1898 = vld [vmem:[#allocation5 + $0x58] sm:$0xff]
      %v1899 = vld [vmem:[#allocation5 + $0x60] sm:$0xff]
      %v1900 = vld [vmem:[#allocation5 + $0x68] sm:$0xff]
      %v1901 = vld [vmem:[#allocation5 + $0x70] sm:$0xff]
      %v1902 = vld [vmem:[#allocation5 + $0x78] sm:$0xff]
      %v1903 = vld [vmem:[#allocation5 + $0x80] sm:$0xff]
      %v1904 = vld [vmem:[#allocation5 + $0x88] sm:$0xff]
      %v1905 = vld [vmem:[#allocation5 + $0x90] sm:$0xff]
      %v1906 = vld [vmem:[#allocation5 + $0x98] sm:$0xff]
      %v1907 = vld [vmem:[#allocation5 + $0xa0] sm:$0xff]
      %v1908 = vld [vmem:[#allocation5 + $0xa8] sm:$0xff]
      %v1909 = vld [vmem:[#allocation5 + $0xb0] sm:$0xff]
      %v1910 = vld [vmem:[#allocation5 + $0xb8] sm:$0xff]
      %v1911 = vld [vmem:[#allocation5 + $0xc0] sm:$0xff]
      %v1912 = vld [vmem:[#allocation5 + $0xc8] sm:$0xff]
      %v1913 = vld [vmem:[#allocation5 + $0xd0] sm:$0xff]
      %v1914 = vld [vmem:[#allocation5 + $0xd8] sm:$0xff]
      %v1915 = vld [vmem:[#allocation5 + $0xe0] sm:$0xff]
      %v1916 = vld [vmem:[#allocation5 + $0xe8] sm:$0xff]
      %v1917 = vld [vmem:[#allocation5 + $0xf0] sm:$0xff]
      %v1918 = vld [vmem:[#allocation5 + $0xf8] sm:$0xff]
      %s1919 = scalar_lea.vmem %s1, 768
      %v1920 = vld [vmem:[%s1919] sm:$0xff]
      %v1921 = vld [vmem:[%s1919 + $0x8] sm:$0xff]
      %v1922 = vld [vmem:[%s1919 + $0x10] sm:$0xff]
      %v1923 = vld [vmem:[%s1919 + $0x18] sm:$0xff]
      %v1924 = vld [vmem:[%s1919 + $0x20] sm:$0xff]
      %v1925 = vld [vmem:[%s1919 + $0x28] sm:$0xff]
      %v1926 = vld [vmem:[%s1919 + $0x30] sm:$0xff]
      %v1927 = vld [vmem:[%s1919 + $0x38] sm:$0xff]
      %v1928 = vld [vmem:[%s1919 + $0x40] sm:$0xff]
      %v1929 = vld [vmem:[%s1919 + $0x48] sm:$0xff]
      %v1930 = vld [vmem:[%s1919 + $0x50] sm:$0xff]
      %v1931 = vld [vmem:[%s1919 + $0x58] sm:$0xff]
      %v1932 = vld [vmem:[%s1919 + $0x60] sm:$0xff]
      %v1933 = vld [vmem:[%s1919 + $0x68] sm:$0xff]
      %v1934 = vld [vmem:[%s1919 + $0x70] sm:$0xff]
      %v1935 = vld [vmem:[%s1919 + $0x78] sm:$0xff]
      %v1936 = vld [vmem:[%s1919 + $0x80] sm:$0xff]
      %v1937 = vld [vmem:[%s1919 + $0x88] sm:$0xff]
      %v1938 = vld [vmem:[%s1919 + $0x90] sm:$0xff]
      %v1939 = vld [vmem:[%s1919 + $0x98] sm:$0xff]
      %v1940 = vld [vmem:[%s1919 + $0xa0] sm:$0xff]
      %v1941 = vld [vmem:[%s1919 + $0xa8] sm:$0xff]
      %v1942 = vld [vmem:[%s1919 + $0xb0] sm:$0xff]
      %v1943 = vld [vmem:[%s1919 + $0xb8] sm:$0xff]
      %v1944 = vld [vmem:[%s1919 + $0xc0] sm:$0xff]
      %v1945 = vld [vmem:[%s1919 + $0xc8] sm:$0xff]
      %v1946 = vld [vmem:[%s1919 + $0xd0] sm:$0xff]
      %v1947 = vld [vmem:[%s1919 + $0xd8] sm:$0xff]
      %v1948 = vld [vmem:[%s1919 + $0xe0] sm:$0xff]
      %v1949 = vld [vmem:[%s1919 + $0xe8] sm:$0xff]
      %v1950 = vld [vmem:[%s1919 + $0xf0] sm:$0xff]
      %v1951 = vld [vmem:[%s1919 + $0xf8] sm:$0xff]
      %v1952 = vld [vmem:[%s1919 + $0x100] sm:$0xff]
      %v1953 = vld [vmem:[%s1919 + $0x108] sm:$0xff]
      %v1954 = vld [vmem:[%s1919 + $0x110] sm:$0xff]
      %v1955 = vld [vmem:[%s1919 + $0x118] sm:$0xff]
      %v1956 = vld [vmem:[%s1919 + $0x120] sm:$0xff]
      %v1957 = vld [vmem:[%s1919 + $0x128] sm:$0xff]
      %v1958 = vld [vmem:[%s1919 + $0x130] sm:$0xff]
      %v1959 = vld [vmem:[%s1919 + $0x138] sm:$0xff]
      %v1960 = vld [vmem:[%s1919 + $0x140] sm:$0xff]
      %v1961 = vld [vmem:[%s1919 + $0x148] sm:$0xff]
      %v1962 = vld [vmem:[%s1919 + $0x150] sm:$0xff]
      %v1963 = vld [vmem:[%s1919 + $0x158] sm:$0xff]
      %v1964 = vld [vmem:[%s1919 + $0x160] sm:$0xff]
      %v1965 = vld [vmem:[%s1919 + $0x168] sm:$0xff]
      %v1966 = vld [vmem:[%s1919 + $0x170] sm:$0xff]
      %v1967 = vld [vmem:[%s1919 + $0x178] sm:$0xff]
      %1968 = vmatprep.subr.mxu0 0.0
      %1969 = vmatpush1.msra.mxu0 %v1920
      %1970 = vmatprep.subr.mxu0 0.0
      %1971 = vmatpush1.msra.mxu0 %v1921
      %1972 = vmatprep.subr.mxu0 0.0
      %1973 = vmatpush1.msra.mxu0 %v1922
      %1974 = vmatprep.subr.mxu0 0.0
      %1975 = vmatpush1.msra.mxu0 %v1923
      %1976 = vmatprep.subr.mxu0 0.0
      %1977 = vmatpush1.msra.mxu0 %v1924
      %1978 = vmatprep.subr.mxu0 0.0
      %1979 = vmatpush1.msra.mxu0 %v1925
      %1980 = vmatprep.subr.mxu0 0.0
      %1981 = vmatpush1.msra.mxu0 %v1926
      %1982 = vmatprep.subr.mxu0 0.0
      %1983 = vmatpush1.msra.mxu0 %v1927
      %1984 = vmatprep.subr.mxu0 0.0
      %1985 = vmatpush1.msra.mxu0 %v1928
      %1986 = vmatprep.subr.mxu0 0.0
      %1987 = vmatpush1.msra.mxu0 %v1929
      %1988 = vmatprep.subr.mxu0 0.0
      %1989 = vmatpush1.msra.mxu0 %v1930
      %1990 = vmatprep.subr.mxu0 0.0
      %1991 = vmatpush1.msra.mxu0 %v1931
      %1992 = vmatprep.subr.mxu0 0.0
      %1993 = vmatpush1.msra.mxu0 %v1932
      %1994 = vmatprep.subr.mxu0 0.0
      %1995 = vmatpush1.msra.mxu0 %v1933
      %1996 = vmatprep.subr.mxu0 0.0
      %1997 = vmatpush1.msra.mxu0 %v1934
      %1998 = vmatprep.subr.mxu0 0.0
      %1999 = vmatpush1.msra.mxu0 %v1935
      %2000 = vmatprep.subr.mxu0 0.0
      %2001 = vmatpush1.msra.mxu0 %v1936
      %2002 = vmatprep.subr.mxu0 0.0
      %2003 = vmatpush1.msra.mxu0 %v1937
      %2004 = vmatprep.subr.mxu0 0.0
      %2005 = vmatpush1.msra.mxu0 %v1938
      %2006 = vmatprep.subr.mxu0 0.0
      %2007 = vmatpush1.msra.mxu0 %v1939
      %2008 = vmatprep.subr.mxu0 0.0
      %2009 = vmatpush1.msra.mxu0 %v1940
      %2010 = vmatprep.subr.mxu0 0.0
      %2011 = vmatpush1.msra.mxu0 %v1941
      %2012 = vmatprep.subr.mxu0 0.0
      %2013 = vmatpush1.msra.mxu0 %v1942
      %2014 = vmatprep.subr.mxu0 0.0
      %2015 = vmatpush1.msra.mxu0 %v1943
      %2016 = vmatprep.subr.mxu0 0.0
      %2017 = vmatpush1.msra.mxu0 %v1944
      %2018 = vmatprep.subr.mxu0 0.0
      %2019 = vmatpush1.msra.mxu0 %v1945
      %2020 = vmatprep.subr.mxu0 0.0
      %2021 = vmatpush1.msra.mxu0 %v1946
      %2022 = vmatprep.subr.mxu0 0.0
      %2023 = vmatpush1.msra.mxu0 %v1947
      %2024 = vmatprep.subr.mxu0 0.0
      %2025 = vmatpush1.msra.mxu0 %v1948
      %2026 = vmatprep.subr.mxu0 0.0
      %2027 = vmatpush1.msra.mxu0 %v1949
      %2028 = vmatprep.subr.mxu0 0.0
      %2029 = vmatpush1.msra.mxu0 %v1950
      %2030 = vmatprep.subr.mxu0 0.0
      %2031 = vmatpush1.msra.mxu0 %v1951
      %2032 = vmatprep.mubr.f32.mxu0 %v521
      %2033 = vmatmul.mubr.f32.gmra.mrb[0].mxu0 %v406
      %v2034 = vpop.f32.mrb[0].mxu0
      %v2035 = vadd.f32 0.0, %v2034
      %v2036 = vpop.f32.mrb[0].mxu0
      %2037 = vmatprep.mubr.f32.mxu0 %v523
      %2038 = vmatmul.mubr.f32.gmra.mrb[0].mxu0 %v407
      %v2039 = vpop.f32.mrb[0].mxu0
      %v2040 = vadd.f32 0.0, %v2039
      %v2041 = vpop.f32.mrb[0].mxu0
      %2042 = vmatprep.mubr.f32.mxu0 %v526
      %2043 = vmatmul.mubr.f32.gmra.mrb[0].mxu0 %v409
      %v2044 = vpop.f32.mrb[0].mxu0
      %v2045 = vadd.f32 0.0, %v2044
      %v2046 = vpop.f32.mrb[0].mxu0
      %2047 = vmatprep.mubr.f32.mxu0 %v528
      %2048 = vmatmul.mubr.f32.gmra.mrb[0].mxu0 %v410
      %v2049 = vpop.f32.mrb[0].mxu0
      %v2050 = vadd.f32 0.0, %v2049
      %v2051 = vpop.f32.mrb[0].mxu0
      %2052 = vmatprep.mubr.f32.mxu0 %v531
      %2053 = vmatmul.mubr.f32.gmra.mrb[0].mxu0 %v412
      %v2054 = vpop.f32.mrb[0].mxu0
      %v2055 = vadd.f32 0.0, %v2054
      %v2056 = vpop.f32.mrb[0].mxu0
      %2057 = vmatprep.mubr.f32.mxu0 %v533
      %2058 = vmatmul.mubr.f32.gmra.mrb[0].mxu0 %v413
      %v2059 = vpop.f32.mrb[0].mxu0
      %v2060 = vadd.f32 0.0, %v2059
      %v2061 = vpop.f32.mrb[0].mxu0
      %2062 = vmatprep.mubr.f32.mxu0 %v536
      %2063 = vmatmul.mubr.f32.gmra.mrb[0].mxu0 %v415
      %v2064 = vpop.f32.mrb[0].mxu0
      %v2065 = vadd.f32 0.0, %v2064
      %v2066 = vpop.f32.mrb[0].mxu0
      %2067 = vmatprep.mubr.f32.mxu0 %v538
      %2068 = vmatmul.mubr.f32.gmra.mrb[0].mxu0 %v416
      %v2069 = vpop.f32.mrb[0].mxu0
      %v2070 = vadd.f32 0.0, %v2069
      %v2071 = vpop.f32.mrb[0].mxu0
      %2072 = vmatprep.mubr.f32.mxu0 %v541
      %2073 = vmatmul.mubr.f32.gmra.mrb[0].mxu0 %v418
      %v2074 = vpop.f32.mrb[0].mxu0
      %v2075 = vadd.f32 0.0, %v2074
      %v2076 = vpop.f32.mrb[0].mxu0
      %2077 = vmatprep.mubr.f32.mxu0 %v543
      %2078 = vmatmul.mubr.f32.gmra.mrb[0].mxu0 %v419
      %v2079 = vpop.f32.mrb[0].mxu0
      %v2080 = vadd.f32 0.0, %v2079
      %v2081 = vpop.f32.mrb[0].mxu0
      %2082 = vmatprep.mubr.f32.mxu0 %v546
      %2083 = vmatmul.mubr.f32.gmra.mrb[0].mxu0 %v421
      %v2084 = vpop.f32.mrb[0].mxu0
      %v2085 = vadd.f32 0.0, %v2084
      %v2086 = vpop.f32.mrb[0].mxu0
      %2087 = vmatprep.mubr.f32.mxu0 %v548
      %2088 = vmatmul.mubr.f32.gmra.mrb[0].mxu0 %v422
      %v2089 = vpop.f32.mrb[0].mxu0
      %v2090 = vadd.f32 0.0, %v2089
      %v2091 = vpop.f32.mrb[0].mxu0
      %2092 = vmatprep.mubr.f32.mxu0 %v551
      %2093 = vmatmul.mubr.f32.gmra.mrb[0].mxu0 %v424
      %v2094 = vpop.f32.mrb[0].mxu0
      %v2095 = vadd.f32 0.0, %v2094
      %v2096 = vpop.f32.mrb[0].mxu0
      %2097 = vmatprep.mubr.f32.mxu0 %v553
      %2098 = vmatmul.mubr.f32.gmra.mrb[0].mxu0 %v425
      %v2099 = vpop.f32.mrb[0].mxu0
      %v2100 = vadd.f32 0.0, %v2099
      %v2101 = vpop.f32.mrb[0].mxu0
      %2102 = vmatprep.mubr.f32.mxu0 %v556
      %2103 = vmatmul.mubr.f32.gmra.mrb[0].mxu0 %v427
      %v2104 = vpop.f32.mrb[0].mxu0
      %v2105 = vadd.f32 0.0, %v2104
      %v2106 = vpop.f32.mrb[0].mxu0
      %2107 = vmatprep.mubr.f32.mxu0 %v558
      %2108 = vmatmul.mubr.f32.gmra.mrb[0].mxu0 %v428
      %v2109 = vpop.f32.mrb[0].mxu0
      %v2110 = vadd.f32 0.0, %v2109
      %v2111 = vpop.f32.mrb[0].mxu0
      %2112 = vmatprep.mubr.f32.mxu0 %v561
      %2113 = vmatmul.mubr.f32.gmra.mrb[0].mxu0 %v430
      %v2114 = vpop.f32.mrb[0].mxu0
      %v2115 = vadd.f32 0.0, %v2114
      %v2116 = vpop.f32.mrb[0].mxu0
      %2117 = vmatprep.mubr.f32.mxu0 %v563
      %2118 = vmatmul.mubr.f32.gmra.mrb[0].mxu0 %v431
      %v2119 = vpop.f32.mrb[0].mxu0
      %v2120 = vadd.f32 0.0, %v2119
      %v2121 = vpop.f32.mrb[0].mxu0
      %2122 = vmatprep.mubr.f32.mxu0 %v566
      %2123 = vmatmul.mubr.f32.gmra.mrb[0].mxu0 %v433
      %v2124 = vpop.f32.mrb[0].mxu0
      %v2125 = vadd.f32 0.0, %v2124
      %v2126 = vpop.f32.mrb[0].mxu0
      %2127 = vmatprep.mubr.f32.mxu0 %v568
      %2128 = vmatmul.mubr.f32.gmra.mrb[0].mxu0 %v434
      %v2129 = vpop.f32.mrb[0].mxu0
      %v2130 = vadd.f32 0.0, %v2129
      %v2131 = vpop.f32.mrb[0].mxu0
      %2132 = vmatprep.mubr.f32.mxu0 %v571
      %2133 = vmatmul.mubr.f32.gmra.mrb[0].mxu0 %v436
      %v2134 = vpop.f32.mrb[0].mxu0
      %v2135 = vadd.f32 0.0, %v2134
      %v2136 = vpop.f32.mrb[0].mxu0
      %2137 = vmatprep.mubr.f32.mxu0 %v573
      %2138 = vmatmul.mubr.f32.gmra.mrb[0].mxu0 %v437
      %v2139 = vpop.f32.mrb[0].mxu0
      %v2140 = vadd.f32 0.0, %v2139
      %v2141 = vpop.f32.mrb[0].mxu0
      %2142 = vmatprep.mubr.f32.mxu0 %v576
      %2143 = vmatmul.mubr.f32.gmra.mrb[0].mxu0 %v439
      %v2144 = vpop.f32.mrb[0].mxu0
      %v2145 = vadd.f32 0.0, %v2144
      %v2146 = vpop.f32.mrb[0].mxu0
      %2147 = vmatprep.mubr.f32.mxu0 %v578
      %2148 = vmatmul.mubr.f32.gmra.mrb[0].mxu0 %v440
      %v2149 = vpop.f32.mrb[0].mxu0
      %v2150 = vadd.f32 0.0, %v2149
      %v2151 = vpop.f32.mrb[0].mxu0
      %2152 = vmatprep.mubr.f32.mxu0 %v581
      %2153 = vmatmul.mubr.f32.gmra.mrb[0].mxu0 %v442
      %v2154 = vpop.f32.mrb[0].mxu0
      %v2155 = vadd.f32 0.0, %v2154
      %v2156 = vpop.f32.mrb[0].mxu0
      %2157 = vmatprep.mubr.f32.mxu0 %v583
      %2158 = vmatmul.mubr.f32.gmra.mrb[0].mxu0 %v443
      %v2159 = vpop.f32.mrb[0].mxu0
      %v2160 = vadd.f32 0.0, %v2159
      %v2161 = vpop.f32.mrb[0].mxu0
      %2162 = vmatprep.mubr.f32.mxu0 %v586
      %2163 = vmatmul.mubr.f32.gmra.mrb[0].mxu0 %v445
      %v2164 = vpop.f32.mrb[0].mxu0
      %v2165 = vadd.f32 0.0, %v2164
      %v2166 = vpop.f32.mrb[0].mxu0
      %2167 = vmatprep.mubr.f32.mxu0 %v588
      %2168 = vmatmul.mubr.f32.gmra.mrb[0].mxu0 %v446
      %v2169 = vpop.f32.mrb[0].mxu0
      %v2170 = vadd.f32 0.0, %v2169
      %v2171 = vpop.f32.mrb[0].mxu0
      %2172 = vmatprep.mubr.f32.mxu0 %v591
      %2173 = vmatmul.mubr.f32.gmra.mrb[0].mxu0 %v448
      %v2174 = vpop.f32.mrb[0].mxu0
      %v2175 = vadd.f32 0.0, %v2174
      %v2176 = vpop.f32.mrb[0].mxu0
      %2177 = vmatprep.mubr.f32.mxu0 %v593
      %2178 = vmatmul.mubr.f32.gmra.mrb[0].mxu0 %v449
      %v2179 = vpop.f32.mrb[0].mxu0
      %v2180 = vadd.f32 0.0, %v2179
      %v2181 = vpop.f32.mrb[0].mxu0
      %2182 = vmatprep.mubr.f32.mxu0 %v596
      %2183 = vmatmul.mubr.f32.gmra.mrb[0].mxu0 %v451
      %v2184 = vpop.f32.mrb[0].mxu0
      %v2185 = vadd.f32 0.0, %v2184
      %v2186 = vpop.f32.mrb[0].mxu0
      %2187 = vmatprep.mubr.f32.mxu0 %v598
      %2188 = vmatmul.mubr.f32.gmra.mrb[0].mxu0 %v452
      %v2189 = vpop.f32.mrb[0].mxu0
      %v2190 = vadd.f32 0.0, %v2189
      %v2191 = vpop.f32.mrb[0].mxu0
      %2192 = vdwg.mxu0
      %2193 = vmatprep.subr.mxu0 0.0
      %2194 = vmatpush1.msra.mxu0 %v1952
      %2195 = vmatprep.subr.mxu0 0.0
      %2196 = vmatpush1.msra.mxu0 %v1953
      %2197 = vmatprep.subr.mxu0 0.0
      %2198 = vmatpush1.msra.mxu0 %v1954
      %2199 = vmatprep.subr.mxu0 0.0
      %2200 = vmatpush1.msra.mxu0 %v1955
      %2201 = vmatprep.subr.mxu0 0.0
      %2202 = vmatpush1.msra.mxu0 %v1956
      %2203 = vmatprep.subr.mxu0 0.0
      %2204 = vmatpush1.msra.mxu0 %v1957
      %2205 = vmatprep.subr.mxu0 0.0
      %2206 = vmatpush1.msra.mxu0 %v1958
      %2207 = vmatprep.subr.mxu0 0.0
      %2208 = vmatpush1.msra.mxu0 %v1959
      %2209 = vmatprep.subr.mxu0 0.0
      %2210 = vmatpush1.msra.mxu0 %v1960
      %2211 = vmatprep.subr.mxu0 0.0
      %2212 = vmatpush1.msra.mxu0 %v1961
      %2213 = vmatprep.subr.mxu0 0.0
      %2214 = vmatpush1.msra.mxu0 %v1962
      %2215 = vmatprep.subr.mxu0 0.0
      %2216 = vmatpush1.msra.mxu0 %v1963
      %2217 = vmatprep.subr.mxu0 0.0
      %2218 = vmatpush1.msra.mxu0 %v1964
      %2219 = vmatprep.subr.mxu0 0.0
      %2220 = vmatpush1.msra.mxu0 %v1965
      %2221 = vmatprep.subr.mxu0 0.0
      %2222 = vmatpush1.msra.mxu0 %v1966
      %2223 = vmatprep.subr.mxu0 0.0
      %2224 = vmatpush1.msra.mxu0 %v1967
      %2225 = vmatprep.subr.mxu0 0.0
      %2226 = vmatpush1.msra.mxu0 0.0
      %2227 = vmatprep.subr.mxu0 0.0
      %2228 = vmatpush1.msra.mxu0 0.0
      %2229 = vmatprep.subr.mxu0 0.0
      %2230 = vmatpush1.msra.mxu0 0.0
      %2231 = vmatprep.subr.mxu0 0.0
      %2232 = vmatpush1.msra.mxu0 0.0
      %2233 = vmatprep.subr.mxu0 0.0
      %2234 = vmatpush1.msra.mxu0 0.0
      %2235 = vmatprep.subr.mxu0 0.0
      %2236 = vmatpush1.msra.mxu0 0.0
      %2237 = vmatprep.subr.mxu0 0.0
      %2238 = vmatpush1.msra.mxu0 0.0
      %2239 = vmatprep.subr.mxu0 0.0
      %2240 = vmatpush1.msra.mxu0 0.0
      %2241 = vmatprep.subr.mxu0 0.0
      %2242 = vmatpush1.msra.mxu0 0.0
      %2243 = vmatprep.subr.mxu0 0.0
      %2244 = vmatpush1.msra.mxu0 0.0
      %2245 = vmatprep.subr.mxu0 0.0
      %2246 = vmatpush1.msra.mxu0 0.0
      %2247 = vmatprep.subr.mxu0 0.0
      %2248 = vmatpush1.msra.mxu0 0.0
      %2249 = vmatprep.subr.mxu0 0.0
      %2250 = vmatpush1.msra.mxu0 0.0
      %2251 = vmatprep.subr.mxu0 0.0
      %2252 = vmatpush1.msra.mxu0 0.0
      %2253 = vmatprep.subr.mxu0 0.0
      %2254 = vmatpush1.msra.mxu0 0.0
      %2255 = vmatprep.subr.mxu0 0.0
      %2256 = vmatpush1.msra.mxu0 0.0
      %2257 = vmatprep.mubr.f32.mxu0 0.0
      %2258 = vmatmul.mubr.f32.gmra.mrb[0].mxu0 %v648
      %v2259 = vpop.f32.mrb[0].mxu0
      %v2260 = vadd.f32 %v2035, %v2259
      %v2261 = vpop.f32.mrb[0].mxu0
      %2262 = vmatprep.mubr.f32.mxu0 0.0
      %2263 = vmatmul.mubr.f32.gmra.mrb[0].mxu0 %v650
      %v2264 = vpop.f32.mrb[0].mxu0
      %v2265 = vadd.f32 %v2040, %v2264
      %v2266 = vpop.f32.mrb[0].mxu0
      %2267 = vmatprep.mubr.f32.mxu0 0.0
      %2268 = vmatmul.mubr.f32.gmra.mrb[0].mxu0 %v653
      %v2269 = vpop.f32.mrb[0].mxu0
      %v2270 = vadd.f32 %v2045, %v2269
      %v2271 = vpop.f32.mrb[0].mxu0
      %2272 = vmatprep.mubr.f32.mxu0 0.0
      %2273 = vmatmul.mubr.f32.gmra.mrb[0].mxu0 %v655
      %v2274 = vpop.f32.mrb[0].mxu0
      %v2275 = vadd.f32 %v2050, %v2274
      %v2276 = vpop.f32.mrb[0].mxu0
      %2277 = vmatprep.mubr.f32.mxu0 0.0
      %2278 = vmatmul.mubr.f32.gmra.mrb[0].mxu0 %v658
      %v2279 = vpop.f32.mrb[0].mxu0
      %v2280 = vadd.f32 %v2055, %v2279
      %v2281 = vpop.f32.mrb[0].mxu0
      %2282 = vmatprep.mubr.f32.mxu0 0.0
      %2283 = vmatmul.mubr.f32.gmra.mrb[0].mxu0 %v660
      %v2284 = vpop.f32.mrb[0].mxu0
      %v2285 = vadd.f32 %v2060, %v2284
      %v2286 = vpop.f32.mrb[0].mxu0
      %2287 = vmatprep.mubr.f32.mxu0 0.0
      %2288 = vmatmul.mubr.f32.gmra.mrb[0].mxu0 %v663
      %v2289 = vpop.f32.mrb[0].mxu0
      %v2290 = vadd.f32 %v2065, %v2289
      %v2291 = vpop.f32.mrb[0].mxu0
      %2292 = vmatprep.mubr.f32.mxu0 0.0
      %2293 = vmatmul.mubr.f32.gmra.mrb[0].mxu0 %v665
      %v2294 = vpop.f32.mrb[0].mxu0
      %v2295 = vadd.f32 %v2070, %v2294
      %v2296 = vpop.f32.mrb[0].mxu0
      %2297 = vmatprep.mubr.f32.mxu0 0.0
      %2298 = vmatmul.mubr.f32.gmra.mrb[0].mxu0 %v668
      %v2299 = vpop.f32.mrb[0].mxu0
      %v2300 = vadd.f32 %v2075, %v2299
      %v2301 = vpop.f32.mrb[0].mxu0
      %2302 = vmatprep.mubr.f32.mxu0 0.0
      %2303 = vmatmul.mubr.f32.gmra.mrb[0].mxu0 %v670
      %v2304 = vpop.f32.mrb[0].mxu0
      %v2305 = vadd.f32 %v2080, %v2304
      %v2306 = vpop.f32.mrb[0].mxu0
      %2307 = vmatprep.mubr.f32.mxu0 0.0
      %2308 = vmatmul.mubr.f32.gmra.mrb[0].mxu0 %v673
      %v2309 = vpop.f32.mrb[0].mxu0
      %v2310 = vadd.f32 %v2085, %v2309
      %v2311 = vpop.f32.mrb[0].mxu0
      %2312 = vmatprep.mubr.f32.mxu0 0.0
      %2313 = vmatmul.mubr.f32.gmra.mrb[0].mxu0 %v675
      %v2314 = vpop.f32.mrb[0].mxu0
      %v2315 = vadd.f32 %v2090, %v2314
      %v2316 = vpop.f32.mrb[0].mxu0
      %2317 = vmatprep.mubr.f32.mxu0 0.0
      %2318 = vmatmul.mubr.f32.gmra.mrb[0].mxu0 %v678
      %v2319 = vpop.f32.mrb[0].mxu0
      %v2320 = vadd.f32 %v2095, %v2319
      %v2321 = vpop.f32.mrb[0].mxu0
      %2322 = vmatprep.mubr.f32.mxu0 0.0
      %2323 = vmatmul.mubr.f32.gmra.mrb[0].mxu0 %v680
      %v2324 = vpop.f32.mrb[0].mxu0
      %v2325 = vadd.f32 %v2100, %v2324
      %v2326 = vpop.f32.mrb[0].mxu0
      %2327 = vmatprep.mubr.f32.mxu0 0.0
      %2328 = vmatmul.mubr.f32.gmra.mrb[0].mxu0 %v683
      %v2329 = vpop.f32.mrb[0].mxu0
      %v2330 = vadd.f32 %v2105, %v2329
      %v2331 = vpop.f32.mrb[0].mxu0
      %2332 = vmatprep.mubr.f32.mxu0 0.0
      %2333 = vmatmul.mubr.f32.gmra.mrb[0].mxu0 %v685
      %v2334 = vpop.f32.mrb[0].mxu0
      %v2335 = vadd.f32 %v2110, %v2334
      %v2336 = vpop.f32.mrb[0].mxu0
      %2337 = vmatprep.mubr.f32.mxu0 0.0
      %2338 = vmatmul.mubr.f32.gmra.mrb[0].mxu0 %v688
      %v2339 = vpop.f32.mrb[0].mxu0
      %v2340 = vadd.f32 %v2115, %v2339
      %v2341 = vpop.f32.mrb[0].mxu0
      %2342 = vmatprep.mubr.f32.mxu0 0.0
      %2343 = vmatmul.mubr.f32.gmra.mrb[0].mxu0 %v690
      %v2344 = vpop.f32.mrb[0].mxu0
      %v2345 = vadd.f32 %v2120, %v2344
      %v2346 = vpop.f32.mrb[0].mxu0
      %2347 = vmatprep.mubr.f32.mxu0 0.0
      %2348 = vmatmul.mubr.f32.gmra.mrb[0].mxu0 %v693
      %v2349 = vpop.f32.mrb[0].mxu0
      %v2350 = vadd.f32 %v2125, %v2349
      %v2351 = vpop.f32.mrb[0].mxu0
      %2352 = vmatprep.mubr.f32.mxu0 0.0
      %2353 = vmatmul.mubr.f32.gmra.mrb[0].mxu0 %v695
      %v2354 = vpop.f32.mrb[0].mxu0
      %v2355 = vadd.f32 %v2130, %v2354
      %v2356 = vpop.f32.mrb[0].mxu0
      %2357 = vmatprep.mubr.f32.mxu0 0.0
      %2358 = vmatmul.mubr.f32.gmra.mrb[0].mxu0 %v698
      %v2359 = vpop.f32.mrb[0].mxu0
      %v2360 = vadd.f32 %v2135, %v2359
      %v2361 = vpop.f32.mrb[0].mxu0
      %2362 = vmatprep.mubr.f32.mxu0 0.0
      %2363 = vmatmul.mubr.f32.gmra.mrb[0].mxu0 %v700
      %v2364 = vpop.f32.mrb[0].mxu0
      %v2365 = vadd.f32 %v2140, %v2364
      %v2366 = vpop.f32.mrb[0].mxu0
      %2367 = vmatprep.mubr.f32.mxu0 0.0
      %2368 = vmatmul.mubr.f32.gmra.mrb[0].mxu0 %v703
      %v2369 = vpop.f32.mrb[0].mxu0
      %v2370 = vadd.f32 %v2145, %v2369
      %v2371 = vpop.f32.mrb[0].mxu0
      %2372 = vmatprep.mubr.f32.mxu0 0.0
      %2373 = vmatmul.mubr.f32.gmra.mrb[0].mxu0 %v705
      %v2374 = vpop.f32.mrb[0].mxu0
      %v2375 = vadd.f32 %v2150, %v2374
      %v2376 = vpop.f32.mrb[0].mxu0
      %2377 = vmatprep.mubr.f32.mxu0 0.0
      %2378 = vmatmul.mubr.f32.gmra.mrb[0].mxu0 %v708
      %v2379 = vpop.f32.mrb[0].mxu0
      %v2380 = vadd.f32 %v2155, %v2379
      %v2381 = vpop.f32.mrb[0].mxu0
      %2382 = vmatprep.mubr.f32.mxu0 0.0
      %2383 = vmatmul.mubr.f32.gmra.mrb[0].mxu0 %v710
      %v2384 = vpop.f32.mrb[0].mxu0
      %v2385 = vadd.f32 %v2160, %v2384
      %v2386 = vpop.f32.mrb[0].mxu0
      %2387 = vmatprep.mubr.f32.mxu0 0.0
      %2388 = vmatmul.mubr.f32.gmra.mrb[0].mxu0 %v713
      %v2389 = vpop.f32.mrb[0].mxu0
      %v2390 = vadd.f32 %v2165, %v2389
      %v2391 = vpop.f32.mrb[0].mxu0
      %2392 = vmatprep.mubr.f32.mxu0 0.0
      %2393 = vmatmul.mubr.f32.gmra.mrb[0].mxu0 %v715
      %v2394 = vpop.f32.mrb[0].mxu0
      %v2395 = vadd.f32 %v2170, %v2394
      %v2396 = vpop.f32.mrb[0].mxu0
      %2397 = vmatprep.mubr.f32.mxu0 0.0
      %2398 = vmatmul.mubr.f32.gmra.mrb[0].mxu0 %v718
      %v2399 = vpop.f32.mrb[0].mxu0
      %v2400 = vadd.f32 %v2175, %v2399
      %v2401 = vpop.f32.mrb[0].mxu0
      %2402 = vmatprep.mubr.f32.mxu0 0.0
      %2403 = vmatmul.mubr.f32.gmra.mrb[0].mxu0 %v720
      %v2404 = vpop.f32.mrb[0].mxu0
      %v2405 = vadd.f32 %v2180, %v2404
      %v2406 = vpop.f32.mrb[0].mxu0
      %2407 = vmatprep.mubr.f32.mxu0 0.0
      %2408 = vmatmul.mubr.f32.gmra.mrb[0].mxu0 %v723
      %v2409 = vpop.f32.mrb[0].mxu0
      %v2410 = vadd.f32 %v2185, %v2409
      %v2411 = vpop.f32.mrb[0].mxu0
      %2412 = vmatprep.mubr.f32.mxu0 0.0
      %2413 = vmatmul.mubr.f32.gmra.mrb[0].mxu0 %v725
      %v2414 = vpop.f32.mrb[0].mxu0
      %v2415 = vadd.f32 %v2190, %v2414
      %v2416 = vpop.f32.mrb[0].mxu0
      %2417 = vdwg.mxu0
      %v2418 = vadd.f32 %v1887, %v2260
      %v2419 = vadd.f32 %v1888, %v2265
      %v2420 = vadd.f32 %v1889, %v2270
      %v2421 = vadd.f32 %v1890, %v2275
      %v2422 = vadd.f32 %v1891, %v2280
      %v2423 = vadd.f32 %v1892, %v2285
      %v2424 = vadd.f32 %v1893, %v2290
      %v2425 = vadd.f32 %v1894, %v2295
      %v2426 = vadd.f32 %v1895, %v2300
      %v2427 = vadd.f32 %v1896, %v2305
      %v2428 = vadd.f32 %v1897, %v2310
      %v2429 = vadd.f32 %v1898, %v2315
      %v2430 = vadd.f32 %v1899, %v2320
      %v2431 = vadd.f32 %v1900, %v2325
      %v2432 = vadd.f32 %v1901, %v2330
      %v2433 = vadd.f32 %v1902, %v2335
      %v2434 = vadd.f32 %v1903, %v2340
      %v2435 = vadd.f32 %v1904, %v2345
      %v2436 = vadd.f32 %v1905, %v2350
      %v2437 = vadd.f32 %v1906, %v2355
      %v2438 = vadd.f32 %v1907, %v2360
      %v2439 = vadd.f32 %v1908, %v2365
      %v2440 = vadd.f32 %v1909, %v2370
      %v2441 = vadd.f32 %v1910, %v2375
      %v2442 = vadd.f32 %v1911, %v2380
      %v2443 = vadd.f32 %v1912, %v2385
      %v2444 = vadd.f32 %v1913, %v2390
      %v2445 = vadd.f32 %v1914, %v2395
      %v2446 = vadd.f32 %v1915, %v2400
      %v2447 = vadd.f32 %v1916, %v2405
      %v2448 = vadd.f32 %v1917, %v2410
      %v2449 = vadd.f32 %v1918, %v2415
      %2450 = vst [vmem:[#allocation5] sm:$0xff] %v2418
      %2451 = vst [vmem:[#allocation5 + $0x8] sm:$0xff] %v2419
      %2452 = vst [vmem:[#allocation5 + $0x10] sm:$0xff] %v2420
      %2453 = vst [vmem:[#allocation5 + $0x18] sm:$0xff] %v2421
      %2454 = vst [vmem:[#allocation5 + $0x20] sm:$0xff] %v2422
      %2455 = vst [vmem:[#allocation5 + $0x28] sm:$0xff] %v2423
      %2456 = vst [vmem:[#allocation5 + $0x30] sm:$0xff] %v2424
      %2457 = vst [vmem:[#allocation5 + $0x38] sm:$0xff] %v2425
      %2458 = vst [vmem:[#allocation5 + $0x40] sm:$0xff] %v2426
      %2459 = vst [vmem:[#allocation5 + $0x48] sm:$0xff] %v2427
      %2460 = vst [vmem:[#allocation5 + $0x50] sm:$0xff] %v2428
      %2461 = vst [vmem:[#allocation5 + $0x58] sm:$0xff] %v2429
      %2462 = vst [vmem:[#allocation5 + $0x60] sm:$0xff] %v2430
      %2463 = vst [vmem:[#allocation5 + $0x68] sm:$0xff] %v2431
      %2464 = vst [vmem:[#allocation5 + $0x70] sm:$0xff] %v2432
      %2465 = vst [vmem:[#allocation5 + $0x78] sm:$0xff] %v2433
      %2466 = vst [vmem:[#allocation5 + $0x80] sm:$0xff] %v2434
      %2467 = vst [vmem:[#allocation5 + $0x88] sm:$0xff] %v2435
      %2468 = vst [vmem:[#allocation5 + $0x90] sm:$0xff] %v2436
      %2469 = vst [vmem:[#allocation5 + $0x98] sm:$0xff] %v2437
      %2470 = vst [vmem:[#allocation5 + $0xa0] sm:$0xff] %v2438
      %2471 = vst [vmem:[#allocation5 + $0xa8] sm:$0xff] %v2439
      %2472 = vst [vmem:[#allocation5 + $0xb0] sm:$0xff] %v2440
      %2473 = vst [vmem:[#allocation5 + $0xb8] sm:$0xff] %v2441
      %2474 = vst [vmem:[#allocation5 + $0xc0] sm:$0xff] %v2442
      %2475 = vst [vmem:[#allocation5 + $0xc8] sm:$0xff] %v2443
      %2476 = vst [vmem:[#allocation5 + $0xd0] sm:$0xff] %v2444
      %2477 = vst [vmem:[#allocation5 + $0xd8] sm:$0xff] %v2445
      %2478 = vst [vmem:[#allocation5 + $0xe0] sm:$0xff] %v2446
      %2479 = vst [vmem:[#allocation5 + $0xe8] sm:$0xff] %v2447
      %2480 = vst [vmem:[#allocation5 + $0xf0] sm:$0xff] %v2448
      %2481 = vst [vmem:[#allocation5 + $0xf8] sm:$0xff] %v2449
      %v2482 = vld [vmem:[#allocation5] sm:$0xff]
      %v2483 = vld [vmem:[#allocation5 + $0x8] sm:$0xff]
      %v2484 = vld [vmem:[#allocation5 + $0x10] sm:$0xff]
      %v2485 = vld [vmem:[#allocation5 + $0x18] sm:$0xff]
      %v2486 = vld [vmem:[#allocation5 + $0x20] sm:$0xff]
      %v2487 = vld [vmem:[#allocation5 + $0x28] sm:$0xff]
      %v2488 = vld [vmem:[#allocation5 + $0x30] sm:$0xff]
      %v2489 = vld [vmem:[#allocation5 + $0x38] sm:$0xff]
      %v2490 = vld [vmem:[#allocation5 + $0x40] sm:$0xff]
      %v2491 = vld [vmem:[#allocation5 + $0x48] sm:$0xff]
      %v2492 = vld [vmem:[#allocation5 + $0x50] sm:$0xff]
      %v2493 = vld [vmem:[#allocation5 + $0x58] sm:$0xff]
      %v2494 = vld [vmem:[#allocation5 + $0x60] sm:$0xff]
      %v2495 = vld [vmem:[#allocation5 + $0x68] sm:$0xff]
      %v2496 = vld [vmem:[#allocation5 + $0x70] sm:$0xff]
      %v2497 = vld [vmem:[#allocation5 + $0x78] sm:$0xff]
      %v2498 = vld [vmem:[#allocation5 + $0x80] sm:$0xff]
      %v2499 = vld [vmem:[#allocation5 + $0x88] sm:$0xff]
      %v2500 = vld [vmem:[#allocation5 + $0x90] sm:$0xff]
      %v2501 = vld [vmem:[#allocation5 + $0x98] sm:$0xff]
      %v2502 = vld [vmem:[#allocation5 + $0xa0] sm:$0xff]
      %v2503 = vld [vmem:[#allocation5 + $0xa8] sm:$0xff]
      %v2504 = vld [vmem:[#allocation5 + $0xb0] sm:$0xff]
      %v2505 = vld [vmem:[#allocation5 + $0xb8] sm:$0xff]
      %v2506 = vld [vmem:[#allocation5 + $0xc0] sm:$0xff]
      %v2507 = vld [vmem:[#allocation5 + $0xc8] sm:$0xff]
      %v2508 = vld [vmem:[#allocation5 + $0xd0] sm:$0xff]
      %v2509 = vld [vmem:[#allocation5 + $0xd8] sm:$0xff]
      %v2510 = vld [vmem:[#allocation5 + $0xe0] sm:$0xff]
      %v2511 = vld [vmem:[#allocation5 + $0xe8] sm:$0xff]
      %v2512 = vld [vmem:[#allocation5 + $0xf0] sm:$0xff]
      %v2513 = vld [vmem:[#allocation5 + $0xf8] sm:$0xff]
      %v2514 = vld [vmem:[%s2] sm:$0x1]
      %v2516 = vlaneseq
      %v2517 = vshrl.u32 %v2516, 7
      %v2518 = vsub.s32 0, %v2517
      %v2519 = vrot.slane %v2514, %v2518
      %v2521 = vadd.f32 %v2482, %v2519
      %v2522 = vadd.f32 %v2483, %v2519
      %v2523 = vadd.f32 %v2484, %v2519
      %v2524 = vadd.f32 %v2485, %v2519
      %v2525 = vadd.f32 %v2486, %v2519
      %v2526 = vadd.f32 %v2487, %v2519
      %v2527 = vadd.f32 %v2488, %v2519
      %v2528 = vadd.f32 %v2489, %v2519
      %v2529 = vadd.f32 %v2490, %v2519
      %v2530 = vadd.f32 %v2491, %v2519
      %v2531 = vadd.f32 %v2492, %v2519
      %v2532 = vadd.f32 %v2493, %v2519
      %v2533 = vadd.f32 %v2494, %v2519
      %v2534 = vadd.f32 %v2495, %v2519
      %v2535 = vadd.f32 %v2496, %v2519
      %v2536 = vadd.f32 %v2497, %v2519
      %v2537 = vadd.f32 %v2498, %v2519
      %v2538 = vadd.f32 %v2499, %v2519
      %v2539 = vadd.f32 %v2500, %v2519
      %v2540 = vadd.f32 %v2501, %v2519
      %v2541 = vadd.f32 %v2502, %v2519
      %v2542 = vadd.f32 %v2503, %v2519
      %v2543 = vadd.f32 %v2504, %v2519
      %v2544 = vadd.f32 %v2505, %v2519
      %v2545 = vadd.f32 %v2506, %v2519
      %v2546 = vadd.f32 %v2507, %v2519
      %v2547 = vadd.f32 %v2508, %v2519
      %v2548 = vadd.f32 %v2509, %v2519
      %v2549 = vadd.f32 %v2510, %v2519
      %v2550 = vadd.f32 %v2511, %v2519
      %v2551 = vadd.f32 %v2512, %v2519
      %v2552 = vadd.f32 %v2513, %v2519
      %2553 = vst [vmem:[#allocation3] sm:$0xff] %v2521
      %2554 = vst [vmem:[#allocation3 + $0x8] sm:$0xff] %v2522
      %2555 = vst [vmem:[#allocation3 + $0x10] sm:$0xff] %v2523
      %2556 = vst [vmem:[#allocation3 + $0x18] sm:$0xff] %v2524
      %2557 = vst [vmem:[#allocation3 + $0x20] sm:$0xff] %v2525
      %2558 = vst [vmem:[#allocation3 + $0x28] sm:$0xff] %v2526
      %2559 = vst [vmem:[#allocation3 + $0x30] sm:$0xff] %v2527
      %2560 = vst [vmem:[#allocation3 + $0x38] sm:$0xff] %v2528
      %2561 = vst [vmem:[#allocation3 + $0x40] sm:$0xff] %v2529
      %2562 = vst [vmem:[#allocation3 + $0x48] sm:$0xff] %v2530
      %2563 = vst [vmem:[#allocation3 + $0x50] sm:$0xff] %v2531
      %2564 = vst [vmem:[#allocation3 + $0x58] sm:$0xff] %v2532
      %2565 = vst [vmem:[#allocation3 + $0x60] sm:$0xff] %v2533
      %2566 = vst [vmem:[#allocation3 + $0x68] sm:$0xff] %v2534
      %2567 = vst [vmem:[#allocation3 + $0x70] sm:$0xff] %v2535
      %2568 = vst [vmem:[#allocation3 + $0x78] sm:$0xff] %v2536
      %2569 = vst [vmem:[#allocation3 + $0x80] sm:$0xff] %v2537
      %2570 = vst [vmem:[#allocation3 + $0x88] sm:$0xff] %v2538
      %2571 = vst [vmem:[#allocation3 + $0x90] sm:$0xff] %v2539
      %2572 = vst [vmem:[#allocation3 + $0x98] sm:$0xff] %v2540
      %2573 = vst [vmem:[#allocation3 + $0xa0] sm:$0xff] %v2541
      %2574 = vst [vmem:[#allocation3 + $0xa8] sm:$0xff] %v2542
      %2575 = vst [vmem:[#allocation3 + $0xb0] sm:$0xff] %v2543
      %2576 = vst [vmem:[#allocation3 + $0xb8] sm:$0xff] %v2544
      %2577 = vst [vmem:[#allocation3 + $0xc0] sm:$0xff] %v2545
      %2578 = vst [vmem:[#allocation3 + $0xc8] sm:$0xff] %v2546
      %2579 = vst [vmem:[#allocation3 + $0xd0] sm:$0xff] %v2547
      %2580 = vst [vmem:[#allocation3 + $0xd8] sm:$0xff] %v2548
      %2581 = vst [vmem:[#allocation3 + $0xe0] sm:$0xff] %v2549
      %2582 = vst [vmem:[#allocation3 + $0xe8] sm:$0xff] %v2550
      %2583 = vst [vmem:[#allocation3 + $0xf0] sm:$0xff] %v2551
      %2584 = vst [vmem:[#allocation3 + $0xf8] sm:$0xff] %v2552
      %s2585 = sadd.s32 %s199, 1
      %s2586 = smul.u32 %s2585, 24
      %s2587 = sadd.s32 1, %s2586
      %s2588 = sadd.s32 %s2587, %s201
      %s2589 = scalar_lea.vmem %s5, %s2588
      %s2590 = scalar_lea.sflag [#allocation4], 1
      %p2592 = scmp.lt.u32.totalorder 16, 8
      %p2593 = pneg %p2592
      // Predicated region
      $region74: #{double_conv.3} parent=35 // pred_check
        _
      $region75: #{double_conv.3} parent=35 // pred_check_branch
        %2595 = sbr.rel (%p2592) target = $region77
      $region76: #{double_conv.3} parent=35 // pred_region
        %s2640 = sand.u32 16, 7
        %p2641 = scmp.eq.s32.totalorder %s2640, 0
        // Predicated region
        $region89: #{double_conv.3} parent=76 // pred_check
          %p2642 = pneg %p2641
        $region90: #{double_conv.3} parent=76 // pred_check_branch
          %2644 = sbr.rel (%p2642) target = $region92
        $region91: #{double_conv.3} parent=76 // pred_region
          loop: start=0, step=1, limit=1
          $region93: #{double_conv.3} parent=91 // loop_pre_header
            _
          $region94: #{double_conv.3} parent=91 // loop_header
            %s2646 = sphi 0, %s2650
            %p2647 = scmp.ge.s32.totalorder %s2646, 1
            %s2651 = sphi [#allocation3], [#allocation3]
            %s2652 = sphi %s2589, %s2589
          $region95: #{double_conv.3} parent=91 // loop_header_branch
            %2649 = sbr.rel (%p2647) target = $region99
          $region96: #{double_conv.3} parent=91 // loop_body
            %v2653 = vld [vmem:[%s2651] sm:$0xff]
            %2654 = vst [vmem:[%s2652] sm:$0xff] %v2653
            %v2655 = vld [vmem:[%s2651 + $0x8] sm:$0xff]
            %2656 = vst [vmem:[%s2652 + $0x8] sm:$0xff] %v2655
            %v2657 = vld [vmem:[%s2651 + $0x10] sm:$0xff]
            %2658 = vst [vmem:[%s2652 + $0x18] sm:$0xff] %v2657
            %v2659 = vld [vmem:[%s2651 + $0x18] sm:$0xff]
            %2660 = vst [vmem:[%s2652 + $0x20] sm:$0xff] %v2659
            %v2661 = vld [vmem:[%s2651 + $0x20] sm:$0xff]
            %2662 = vst [vmem:[%s2652 + $0x30] sm:$0xff] %v2661
            %v2663 = vld [vmem:[%s2651 + $0x28] sm:$0xff]
            %2664 = vst [vmem:[%s2652 + $0x38] sm:$0xff] %v2663
            %v2665 = vld [vmem:[%s2651 + $0x30] sm:$0xff]
            %2666 = vst [vmem:[%s2652 + $0x48] sm:$0xff] %v2665
            %v2667 = vld [vmem:[%s2651 + $0x38] sm:$0xff]
            %2668 = vst [vmem:[%s2652 + $0x50] sm:$0xff] %v2667
            %v2669 = vld [vmem:[%s2651 + $0x40] sm:$0xff]
            %2670 = vst [vmem:[%s2652 + $0x60] sm:$0xff] %v2669
            %v2671 = vld [vmem:[%s2651 + $0x48] sm:$0xff]
            %2672 = vst [vmem:[%s2652 + $0x68] sm:$0xff] %v2671
            %v2673 = vld [vmem:[%s2651 + $0x50] sm:$0xff]
            %2674 = vst [vmem:[%s2652 + $0x78] sm:$0xff] %v2673
            %v2675 = vld [vmem:[%s2651 + $0x58] sm:$0xff]
            %2676 = vst [vmem:[%s2652 + $0x80] sm:$0xff] %v2675
            %v2677 = vld [vmem:[%s2651 + $0x60] sm:$0xff]
            %2678 = vst [vmem:[%s2652 + $0x90] sm:$0xff] %v2677
            %v2679 = vld [vmem:[%s2651 + $0x68] sm:$0xff]
            %2680 = vst [vmem:[%s2652 + $0x98] sm:$0xff] %v2679
            %v2681 = vld [vmem:[%s2651 + $0x70] sm:$0xff]
            %2682 = vst [vmem:[%s2652 + $0xa8] sm:$0xff] %v2681
            %v2683 = vld [vmem:[%s2651 + $0x78] sm:$0xff]
            %2684 = vst [vmem:[%s2652 + $0xb0] sm:$0xff] %v2683
            %v2685 = vld [vmem:[%s2651 + $0x80] sm:$0xff]
            %2686 = vst [vmem:[%s2652 + $0xc0] sm:$0xff] %v2685
            %v2687 = vld [vmem:[%s2651 + $0x88] sm:$0xff]
            %2688 = vst [vmem:[%s2652 + $0xc8] sm:$0xff] %v2687
            %v2689 = vld [vmem:[%s2651 + $0x90] sm:$0xff]
            %2690 = vst [vmem:[%s2652 + $0xd8] sm:$0xff] %v2689
            %v2691 = vld [vmem:[%s2651 + $0x98] sm:$0xff]
            %2692 = vst [vmem:[%s2652 + $0xe0] sm:$0xff] %v2691
            %v2693 = vld [vmem:[%s2651 + $0xa0] sm:$0xff]
            %2694 = vst [vmem:[%s2652 + $0xf0] sm:$0xff] %v2693
            %v2695 = vld [vmem:[%s2651 + $0xa8] sm:$0xff]
            %2696 = vst [vmem:[%s2652 + $0xf8] sm:$0xff] %v2695
            %v2697 = vld [vmem:[%s2651 + $0xb0] sm:$0xff]
            %2698 = vst [vmem:[%s2652 + $0x108] sm:$0xff] %v2697
            %v2699 = vld [vmem:[%s2651 + $0xb8] sm:$0xff]
            %2700 = vst [vmem:[%s2652 + $0x110] sm:$0xff] %v2699
            %v2701 = vld [vmem:[%s2651 + $0xc0] sm:$0xff]
            %2702 = vst [vmem:[%s2652 + $0x120] sm:$0xff] %v2701
            %v2703 = vld [vmem:[%s2651 + $0xc8] sm:$0xff]
            %2704 = vst [vmem:[%s2652 + $0x128] sm:$0xff] %v2703
            %v2705 = vld [vmem:[%s2651 + $0xd0] sm:$0xff]
            %2706 = vst [vmem:[%s2652 + $0x138] sm:$0xff] %v2705
            %v2707 = vld [vmem:[%s2651 + $0xd8] sm:$0xff]
            %2708 = vst [vmem:[%s2652 + $0x140] sm:$0xff] %v2707
            %v2709 = vld [vmem:[%s2651 + $0xe0] sm:$0xff]
            %2710 = vst [vmem:[%s2652 + $0x150] sm:$0xff] %v2709
            %v2711 = vld [vmem:[%s2651 + $0xe8] sm:$0xff]
            %2712 = vst [vmem:[%s2652 + $0x158] sm:$0xff] %v2711
            %v2713 = vld [vmem:[%s2651 + $0xf0] sm:$0xff]
            %2714 = vst [vmem:[%s2652 + $0x168] sm:$0xff] %v2713
            %v2715 = vld [vmem:[%s2651 + $0xf8] sm:$0xff]
            %2716 = vst [vmem:[%s2652 + $0x170] sm:$0xff] %v2715
          $region97: #{double_conv.3} parent=91 // loop_footer
            %s2650 = sadd.s32 1, %s2646
          $region98: #{double_conv.3} parent=91 // loop_footer_branch
            %2645 = sbr.rel target = $region94
          $region99: #{double_conv.3} parent=91 // loop_exit
            _
        $region92: #{double_conv.3} parent=76 // pred_fallthru
          _
        %p2717 = pneg %p2641
        // Predicated region
        $region100: #{double_conv.3} parent=76 // pred_check
          _
        $region101: #{double_conv.3} parent=76 // pred_check_branch
          %2719 = sbr.rel (%p2641) target = $region103
        $region102: #{double_conv.3} parent=76 // pred_region
          %s2720 = sand.u32 16, 7
        $region103: #{double_conv.3} parent=76 // pred_fallthru
          _
      $region77: #{double_conv.3} parent=35 // pred_fallthru
        _
      // Predicated region
      $region78: #{double_conv.3} parent=35 // pred_check
        %p2596 = pneg %p2592
      $region79: #{double_conv.3} parent=35 // pred_check_branch
        %2598 = sbr.rel (%p2596) target = $region81
      $region80: #{double_conv.3} parent=35 // pred_region
        %s2599 = sshllo.u32 0, 16
        loop: start=0, step=1, limit=1
        $region82: #{double_conv.3} parent=80 // loop_pre_header
          _
        $region83: #{double_conv.3} parent=80 // loop_header
          %s2601 = sphi 0, %s2605
          %p2602 = scmp.ge.s32.totalorder %s2601, 1
          %s2606 = sphi [#allocation3], [#allocation3]
          %s2607 = sphi %s2589, %s2589
        $region84: #{double_conv.3} parent=80 // loop_header_branch
          %2604 = sbr.rel (%p2602) target = $region88
        $region85: #{double_conv.3} parent=80 // loop_body
          %v2608 = vld [vmem:[%s2606] sm:%s2599]
          %2609 = vst [vmem:[%s2607] sm:%s2599] %v2608
          %v2610 = vld [vmem:[%s2606 + $0x10] sm:%s2599]
          %2611 = vst [vmem:[%s2607 + $0x18] sm:%s2599] %v2610
          %v2612 = vld [vmem:[%s2606 + $0x20] sm:%s2599]
          %2613 = vst [vmem:[%s2607 + $0x30] sm:%s2599] %v2612
          %v2614 = vld [vmem:[%s2606 + $0x30] sm:%s2599]
          %2615 = vst [vmem:[%s2607 + $0x48] sm:%s2599] %v2614
          %v2616 = vld [vmem:[%s2606 + $0x40] sm:%s2599]
          %2617 = vst [vmem:[%s2607 + $0x60] sm:%s2599] %v2616
          %v2618 = vld [vmem:[%s2606 + $0x50] sm:%s2599]
          %2619 = vst [vmem:[%s2607 + $0x78] sm:%s2599] %v2618
          %v2620 = vld [vmem:[%s2606 + $0x60] sm:%s2599]
          %2621 = vst [vmem:[%s2607 + $0x90] sm:%s2599] %v2620
          %v2622 = vld [vmem:[%s2606 + $0x70] sm:%s2599]
          %2623 = vst [vmem:[%s2607 + $0xa8] sm:%s2599] %v2622
          %v2624 = vld [vmem:[%s2606 + $0x80] sm:%s2599]
          %2625 = vst [vmem:[%s2607 + $0xc0] sm:%s2599] %v2624
          %v2626 = vld [vmem:[%s2606 + $0x90] sm:%s2599]
          %2627 = vst [vmem:[%s2607 + $0xd8] sm:%s2599] %v2626
          %v2628 = vld [vmem:[%s2606 + $0xa0] sm:%s2599]
          %2629 = vst [vmem:[%s2607 + $0xf0] sm:%s2599] %v2628
          %v2630 = vld [vmem:[%s2606 + $0xb0] sm:%s2599]
          %2631 = vst [vmem:[%s2607 + $0x108] sm:%s2599] %v2630
          %v2632 = vld [vmem:[%s2606 + $0xc0] sm:%s2599]
          %2633 = vst [vmem:[%s2607 + $0x120] sm:%s2599] %v2632
          %v2634 = vld [vmem:[%s2606 + $0xd0] sm:%s2599]
          %2635 = vst [vmem:[%s2607 + $0x138] sm:%s2599] %v2634
          %v2636 = vld [vmem:[%s2606 + $0xe0] sm:%s2599]
          %2637 = vst [vmem:[%s2607 + $0x150] sm:%s2599] %v2636
          %v2638 = vld [vmem:[%s2606 + $0xf0] sm:%s2599]
          %2639 = vst [vmem:[%s2607 + $0x168] sm:%s2599] %v2638
        $region86: #{double_conv.3} parent=80 // loop_footer
          %s2605 = sadd.s32 1, %s2601
        $region87: #{double_conv.3} parent=80 // loop_footer_branch
          %2600 = sbr.rel target = $region83
        $region88: #{double_conv.3} parent=80 // loop_exit
          _
      $region81: #{double_conv.3} parent=35 // pred_fallthru
        _
      // Predicated region
      $region104: #{double_conv.3} parent=35 // pred_check
        _
      $region105: #{double_conv.3} parent=35 // pred_check_branch
        %2723 = sbr.rel (0) target = $region107
      $region106: #{double_conv.3} parent=35 // pred_region
        %2724 = vsyncadd %s2590, 4096
      $region107: #{double_conv.3} parent=35 // pred_fallthru
        _
      %v2725 = vadd.f32 %v2521, %v2522
      %v2726 = vadd.f32 %v2725, %v2523
      %v2727 = vadd.f32 %v2726, %v2524
      %v2728 = vadd.f32 %v2727, %v2525
      %v2729 = vadd.f32 %v2728, %v2526
      %v2730 = vadd.f32 %v2729, %v2527
      %v2731 = vadd.f32 %v2730, %v2528
      %v2732 = vadd.f32 %v2731, %v2529
      %v2733 = vadd.f32 %v2732, %v2530
      %v2734 = vadd.f32 %v2733, %v2531
      %v2735 = vadd.f32 %v2734, %v2532
      %v2736 = vadd.f32 %v2735, %v2533
      %v2737 = vadd.f32 %v2736, %v2534
      %v2738 = vadd.f32 %v2737, %v2535
      %v2739 = vadd.f32 %v2738, %v2536
      %v2740 = vadd.f32 %v2739, %v2537
      %v2741 = vadd.f32 %v2740, %v2538
      %v2742 = vadd.f32 %v2741, %v2539
      %v2743 = vadd.f32 %v2742, %v2540
      %v2744 = vadd.f32 %v2743, %v2541
      %v2745 = vadd.f32 %v2744, %v2542
      %v2746 = vadd.f32 %v2745, %v2543
      %v2747 = vadd.f32 %v2746, %v2544
      %v2748 = vadd.f32 %v2747, %v2545
      %v2749 = vadd.f32 %v2748, %v2546
      %v2750 = vadd.f32 %v2749, %v2547
      %v2751 = vadd.f32 %v2750, %v2548
      %v2752 = vadd.f32 %v2751, %v2549
      %v2753 = vadd.f32 %v2752, %v2550
      %v2754 = vadd.f32 %v2753, %v2551
      %v2755 = vadd.f32 %v2754, %v2552
      %v2756 = vrot.slane %v2755, 4
      %v2757 = vadd.f32 %v2755, %v2756
      %v2758 = vrot.slane %v2757, 2
      %v2759 = vadd.f32 %v2757, %v2758
      %v2760 = vrot.slane %v2759, 1
      %v2761 = vadd.f32 %v2759, %v2760
      %v2762 = vmul.f32 %v2521, %v2521
      %v2763 = vmul.f32 %v2522, %v2522
      %v2764 = vmul.f32 %v2523, %v2523
      %v2765 = vmul.f32 %v2524, %v2524
      %v2766 = vmul.f32 %v2525, %v2525
      %v2767 = vmul.f32 %v2526, %v2526
      %v2768 = vmul.f32 %v2527, %v2527
      %v2769 = vmul.f32 %v2528, %v2528
      %v2770 = vmul.f32 %v2529, %v2529
      %v2771 = vmul.f32 %v2530, %v2530
      %v2772 = vmul.f32 %v2531, %v2531
      %v2773 = vmul.f32 %v2532, %v2532
      %v2774 = vmul.f32 %v2533, %v2533
      %v2775 = vmul.f32 %v2534, %v2534
      %v2776 = vmul.f32 %v2535, %v2535
      %v2777 = vmul.f32 %v2536, %v2536
      %v2778 = vmul.f32 %v2537, %v2537
      %v2779 = vmul.f32 %v2538, %v2538
      %v2780 = vmul.f32 %v2539, %v2539
      %v2781 = vmul.f32 %v2540, %v2540
      %v2782 = vmul.f32 %v2541, %v2541
      %v2783 = vmul.f32 %v2542, %v2542
      %v2784 = vmul.f32 %v2543, %v2543
      %v2785 = vmul.f32 %v2544, %v2544
      %v2786 = vmul.f32 %v2545, %v2545
      %v2787 = vmul.f32 %v2546, %v2546
      %v2788 = vmul.f32 %v2547, %v2547
      %v2789 = vmul.f32 %v2548, %v2548
      %v2790 = vmul.f32 %v2549, %v2549
      %v2791 = vmul.f32 %v2550, %v2550
      %v2792 = vmul.f32 %v2551, %v2551
      %v2793 = vmul.f32 %v2552, %v2552
      %v2794 = vadd.f32 %v2762, %v2763
      %v2795 = vadd.f32 %v2794, %v2764
      %v2796 = vadd.f32 %v2795, %v2765
      %v2797 = vadd.f32 %v2796, %v2766
      %v2798 = vadd.f32 %v2797, %v2767
      %v2799 = vadd.f32 %v2798, %v2768
      %v2800 = vadd.f32 %v2799, %v2769
      %v2801 = vadd.f32 %v2800, %v2770
      %v2802 = vadd.f32 %v2801, %v2771
      %v2803 = vadd.f32 %v2802, %v2772
      %v2804 = vadd.f32 %v2803, %v2773
      %v2805 = vadd.f32 %v2804, %v2774
      %v2806 = vadd.f32 %v2805, %v2775
      %v2807 = vadd.f32 %v2806, %v2776
      %v2808 = vadd.f32 %v2807, %v2777
      %v2809 = vadd.f32 %v2808, %v2778
      %v2810 = vadd.f32 %v2809, %v2779
      %v2811 = vadd.f32 %v2810, %v2780
      %v2812 = vadd.f32 %v2811, %v2781
      %v2813 = vadd.f32 %v2812, %v2782
      %v2814 = vadd.f32 %v2813, %v2783
      %v2815 = vadd.f32 %v2814, %v2784
      %v2816 = vadd.f32 %v2815, %v2785
      %v2817 = vadd.f32 %v2816, %v2786
      %v2818 = vadd.f32 %v2817, %v2787
      %v2819 = vadd.f32 %v2818, %v2788
      %v2820 = vadd.f32 %v2819, %v2789
      %v2821 = vadd.f32 %v2820, %v2790
      %v2822 = vadd.f32 %v2821, %v2791
      %v2823 = vadd.f32 %v2822, %v2792
      %v2824 = vadd.f32 %v2823, %v2793
      %v2825 = vrot.slane %v2824, 4
      %v2826 = vadd.f32 %v2824, %v2825
      %v2827 = vrot.slane %v2826, 2
      %v2828 = vadd.f32 %v2826, %v2827
      %v2829 = vrot.slane %v2828, 1
      %v2830 = vadd.f32 %v2828, %v2829
      %vm2831 = vcmask 1040384
      %v2832 = vsel %vm2831, %v2761, %v2830
      %2833 = vst [vmem:[%s198] sm:$0x3] %v2832
      %s2834 = smul.u32 16, 16
      %s2835 = smul.u32 %s2834, 1
      %s2836 = sshll.u32 %s2835, 4
      %2837 = dma.done %s2590, %s2836
      %p2838 = scmp.lt.s32.totalorder %s22, 1
      %s2839 = scalar_select %p2838, %s22, 1
      %p2840 = scmp.lt.s32.totalorder %s23, 0
      %s2841 = scalar_select %p2840, %s23, 0
      %s2842 = sadd.s32 %s2841, %s2839
      %s2843 = smul.addr %s2842, 2
      %s2844 = scalar_lea.vmem %s6, %s2843
      // Predicated region
      $region108: #{double_conv.3} parent=35 // pred_check
        %p2845 = pneg %p134
      $region109: #{double_conv.3} parent=35 // pred_check_branch
        %2847 = sbr.rel (%p2845) target = $region111
      $region110: #{double_conv.3} parent=35 // pred_region
        _
      $region111: #{double_conv.3} parent=35 // pred_fallthru
        _
    $region36: #{double_conv.3} parent=5 // pred_fallthru
      _
    %p2848 = scmp.le.s32.totalorder 2, %s13
    // Predicated region
    $region112: #{double_conv.3} parent=5 // pred_check
      %p2849 = pneg %p2848
    $region113: #{double_conv.3} parent=5 // pred_check_branch
      %2851 = sbr.rel (%p2849) target = $region115
    $region114: #{double_conv.3} parent=5 // pred_region
      %s2852 = ssub.s32 %s13, 2
      // Predicated region
      $region116: #{double_conv.3} parent=114 // pred_check
        %p2853 = pneg %p140
      $region117: #{double_conv.3} parent=114 // pred_check_branch
        %2855 = sbr.rel (%p2853) target = $region119
      $region118: #{double_conv.3} parent=114 // pred_region
        %p2856 = scmp.lt.s32.totalorder %s24, 1
        %s2857 = scalar_select %p2856, %s24, 1
        %p2858 = scmp.lt.s32.totalorder %s25, 0
        %s2859 = scalar_select %p2858, %s25, 0
        %s2860 = sadd.s32 %s2859, %s2857
        %s2861 = smul.addr %s2860, 2
        %s2862 = scalar_lea.vmem %s6, %s2861
      $region119: #{double_conv.3} parent=114 // pred_fallthru
        _
    $region115: #{double_conv.3} parent=5 // pred_fallthru
      _
  $region6: #{double_conv.3} parent=0 // loop_footer
    %s17 = sadd.s32 1, %s13
  $region7: #{double_conv.3} parent=0 // loop_footer_branch
    %12 = sbr.rel target = $region3
  $region8: #{double_conv.3} parent=0 // loop_exit
    _
  %2863 = vsyncmov [#allocation4]
  %s2864 = vpop.sfrf %2863
  %p2865 = scmp.eq.s32.totalorder %s2864, 0
  %p2866 = pneg %p2865
  %2868 = shalt.err (%p2866)
  %s2869 = scalar_lea.sflag [#allocation4], 1
  %2870 = vsyncmov %s2869
  %s2871 = vpop.sfrf %2870
  %p2872 = scmp.eq.s32.totalorder %s2871, 0
  %p2873 = pneg %p2872
  %2875 = shalt.err (%p2873)

// kernel: double_conv.4
$region0: #{double_conv.4}
  #allocation0 [shape = 'u32[]', space=smem, size = 0x4, offset = 0x4, fixed_abs, tag = 'smem constant byte address 0x4 - core index']
  #allocation1 [shape = 'u32[144,128]{1,0:T(1,128)}', space=vmem, size = 0x12000, scoped, tag = 'internal scratch']
  #allocation2 [shape = 'f32[18,18,128]{2,1,0:T(8,128)}', space=vmem, size = 0x36000, scoped, tag = 'scratch operand']
  #allocation3 [shape = 'f32[16,16,128]{2,1,0:T(8,128)}', space=vmem, size = 0x20000, scoped, tag = 'scratch operand']
  #allocation4 [shape = 's32[2]{0}', space=sflag, size = 0x8, scoped, tag = 'scratch operand']
  #allocation5 [shape = 'f32[256,128]{1,0:T(8,128)}', space=vmem, size = 0x20000, scoped, tag = 'scratch operand']
  #allocation6 [shape = 's32[]', space=sflag, size = 0x4, offset = 0, fixed_abs, tag = 'sflag constant byte address 0x0 - dummy sync flag']
  %s0 = inlined_call_operand.vmem [shape: f32[2,18,18,128], index: 0, kind: input, shape index: {}]
  %s1 = inlined_call_operand.vmem [shape: f32[3,384,128], index: 1, kind: input, shape index: {}]
  %s2 = inlined_call_operand.vmem [shape: f32[1,128], index: 2, kind: input, shape index: {}]
  %s3 = inlined_call_operand.vmem [shape: f32[1,128], index: 3, kind: input, shape index: {}]
  %s4 = inlined_call_operand.vmem [shape: f32[1,128], index: 4, kind: input, shape index: {}]
  %s5 = inlined_call_operand.vmem [shape: f32[2,16,16,128], index: 5, kind: output, shape index: {0}]
  %s6 = inlined_call_operand.vmem [shape: f32[2,1,2,128], index: 6, kind: output, shape index: {1}]
  %7 = xla_tuple %s5, %s6
  %s8 = sld [smem:[#allocation0]]
  $region94: #{double_conv.4} parent=0
    _
  %s10 = ssub.s32 1, %s8
  %s11 = scalar_select 0, %s10, %s8
  loop: start=0, step=1, limit=4
  $region2: #{double_conv.4} parent=0 // loop_pre_header
    _
  $region3: #{double_conv.4} parent=0 // loop_header
    %s13 = sphi 0, %s17
    %p14 = scmp.ge.s32.totalorder %s13, 4
    %s20 = sphi 0, %s32
    %s21 = sphi 0, %s28
    %s22 = sphi 0, %s20
    %s23 = sphi 0, %s21
    %s24 = sphi 0, %s22
    %s25 = sphi 0, %s23
    %s33 = sphi 0, %s33
    %s35 = sphi 0, %s33
    %s36 = sphi 0, %s35
    %s50 = sphi 0, %s36
    %s54 = sphi 0, %s54
    %s56 = sphi 0, %s54
    %s57 = sphi 0, %s56
    %s71 = sphi 0, %s57
    %s75 = sphi 0, %s75
    %s77 = sphi 0, %s75
    %s78 = sphi 0, %s77
    %s92 = sphi 0, %s78
    %s96 = sphi 0, %s96
    %s98 = sphi 0, %s96
    %s99 = sphi 0, %s98
    %s113 = sphi 0, %s99
    %s121 = sphi 0, %s123
    %s124 = sphi 0, %s121
    %s125 = sphi 0, %s124
    %s141 = sphi 0, %s125
    %s149 = sphi 0, %s151
    %s152 = sphi 0, %s149
    %s153 = sphi 0, %s152
    %s169 = sphi 0, %s153
  $region4: #{double_conv.4} parent=0 // loop_header_branch
    %16 = sbr.rel (%p14) target = $region8
  $region5: #{double_conv.4} parent=0 // loop_body
    %s18 = ssub.s32 %s13, 1
    %s19 = ssub.s32 %s13, 2
    %s26 = sadd.s32 1, %s21
    %p27 = scmp.ge.s32.totalorder %s26, 1
    %s28 = scalar_select %p27, 0, %s26
    %s29 = sadd.s32 1, %s20
    %s30 = scalar_select %p27, %s29, %s20
    %p31 = scmp.ge.s32.totalorder %s30, 2
    %s32 = scalar_select %p31, 0, %s30
    %s34 = sadd.s32 %s33, 1
    %p37 = scmp.eq.s32.totalorder %s13, 1
    %p38 = scmp.ne.s32.totalorder %s33, %s35
    %p39 = scmp.eq.s32.totalorder %s13, 0
    %p40 = por %p38, %p39
    %p41 = scmp.ne.s32.totalorder %s33, %s35
    %p42 = scmp.eq.s32.totalorder %s18, 1
    %p43 = por %p41, %p42
    %p44 = scmp.ne.s32.totalorder %s35, %s36
    %p45 = scmp.eq.s32.totalorder %s18, 0
    %p46 = por %p44, %p45
    %p47 = scmp.ne.s32.totalorder %s35, %s36
    %p48 = scmp.eq.s32.totalorder %s19, 1
    %p49 = por %p47, %p48
    %p51 = scmp.ne.s32.totalorder %s36, %s50
    %p52 = scmp.eq.s32.totalorder %s19, 0
    %p53 = por %p51, %p52
    %s55 = sadd.s32 %s54, 1
    %p58 = scmp.eq.s32.totalorder %s13, 1
    %p59 = scmp.ne.s32.totalorder %s54, %s56
    %p60 = scmp.eq.s32.totalorder %s13, 0
    %p61 = por %p59, %p60
    %p62 = scmp.ne.s32.totalorder %s54, %s56
    %p63 = scmp.eq.s32.totalorder %s18, 1
    %p64 = por %p62, %p63
    %p65 = scmp.ne.s32.totalorder %s56, %s57
    %p66 = scmp.eq.s32.totalorder %s18, 0
    %p67 = por %p65, %p66
    %p68 = scmp.ne.s32.totalorder %s56, %s57
    %p69 = scmp.eq.s32.totalorder %s19, 1
    %p70 = por %p68, %p69
    %p72 = scmp.ne.s32.totalorder %s57, %s71
    %p73 = scmp.eq.s32.totalorder %s19, 0
    %p74 = por %p72, %p73
    %s76 = sadd.s32 %s75, 1
    %p79 = scmp.eq.s32.totalorder %s13, 1
    %p80 = scmp.ne.s32.totalorder %s75, %s77
    %p81 = scmp.eq.s32.totalorder %s13, 0
    %p82 = por %p80, %p81
    %p83 = scmp.ne.s32.totalorder %s75, %s77
    %p84 = scmp.eq.s32.totalorder %s18, 1
    %p85 = por %p83, %p84
    %p86 = scmp.ne.s32.totalorder %s77, %s78
    %p87 = scmp.eq.s32.totalorder %s18, 0
    %p88 = por %p86, %p87
    %p89 = scmp.ne.s32.totalorder %s77, %s78
    %p90 = scmp.eq.s32.totalorder %s19, 1
    %p91 = por %p89, %p90
    %p93 = scmp.ne.s32.totalorder %s78, %s92
    %p94 = scmp.eq.s32.totalorder %s19, 0
    %p95 = por %p93, %p94
    %s97 = sadd.s32 %s96, 1
    %p100 = scmp.eq.s32.totalorder %s13, 1
    %p101 = scmp.ne.s32.totalorder %s96, %s98
    %p102 = scmp.eq.s32.totalorder %s13, 0
    %p103 = por %p101, %p102
    %p104 = scmp.ne.s32.totalorder %s96, %s98
    %p105 = scmp.eq.s32.totalorder %s18, 1
    %p106 = por %p104, %p105
    %p107 = scmp.ne.s32.totalorder %s98, %s99
    %p108 = scmp.eq.s32.totalorder %s18, 0
    %p109 = por %p107, %p108
    %p110 = scmp.ne.s32.totalorder %s98, %s99
    %p111 = scmp.eq.s32.totalorder %s19, 1
    %p112 = por %p110, %p111
    %p114 = scmp.ne.s32.totalorder %s99, %s113
    %p115 = scmp.eq.s32.totalorder %s19, 0
    %p116 = por %p114, %p115
    %s117 = ssub.s32 %s20, %s32
    %s118 = ssub.s32 %s21, %s28
    %s119 = sor.u32 %s117, %s118
    %p120 = scmp.eq.s32.totalorder %s119, 0
    %s122 = sadd.s32 %s121, 1
    %s123 = scalar_select %p120, %s121, %s122
    %p126 = pneg %p120
    %p127 = scmp.eq.s32.totalorder %s13, 1
    %p128 = por %p126, %p127
    %p129 = scmp.ne.s32.totalorder %s121, %s124
    %p130 = scmp.eq.s32.totalorder %s13, 0
    %p131 = por %p129, %p130
    %p132 = scmp.ne.s32.totalorder %s121, %s124
    %p133 = scmp.eq.s32.totalorder %s18, 1
    %p134 = por %p132, %p133
    %p135 = scmp.ne.s32.totalorder %s124, %s125
    %p136 = scmp.eq.s32.totalorder %s18, 0
    %p137 = por %p135, %p136
    %p138 = scmp.ne.s32.totalorder %s124, %s125
    %p139 = scmp.eq.s32.totalorder %s19, 1
    %p140 = por %p138, %p139
    %p142 = scmp.ne.s32.totalorder %s125, %s141
    %p143 = scmp.eq.s32.totalorder %s19, 0
    %p144 = por %p142, %p143
    %s145 = ssub.s32 %s20, %s32
    %s146 = ssub.s32 %s21, %s28
    %s147 = sor.u32 %s145, %s146
    %p148 = scmp.eq.s32.totalorder %s147, 0
    %s150 = sadd.s32 %s149, 1
    %s151 = scalar_select %p148, %s149, %s150
    %p154 = pneg %p148
    %p155 = scmp.eq.s32.totalorder %s13, 1
    %p156 = por %p154, %p155
    %p157 = scmp.ne.s32.totalorder %s149, %s152
    %p158 = scmp.eq.s32.totalorder %s13, 0
    %p159 = por %p157, %p158
    %p160 = scmp.ne.s32.totalorder %s149, %s152
    %p161 = scmp.eq.s32.totalorder %s18, 1
    %p162 = por %p160, %p161
    %p163 = scmp.ne.s32.totalorder %s152, %s153
    %p164 = scmp.eq.s32.totalorder %s18, 0
    %p165 = por %p163, %p164
    %p166 = scmp.ne.s32.totalorder %s152, %s153
    %p167 = scmp.eq.s32.totalorder %s19, 1
    %p168 = por %p166, %p167
    %p170 = scmp.ne.s32.totalorder %s153, %s169
    %p171 = scmp.eq.s32.totalorder %s19, 0
    %p172 = por %p170, %p171
    %p173 = scmp.le.s32.totalorder 1, %s13
    %p174 = scmp.lt.s32.totalorder %s13, 3
    %p175 = pnand %p173, %p174
    %p176 = pneg %p175
    // Predicated region
    $region9: #{double_conv.4} parent=5 // pred_check
      _
    $region10: #{double_conv.4} parent=5 // pred_check_branch
      %178 = sbr.rel (%p175) target = $region12
    $region11: #{double_conv.4} parent=5 // pred_region
      %s179 = ssub.s32 %s13, 1
      // Predicated region
      $region13: #{double_conv.4} parent=11 // pred_check
        %p180 = pneg %p46
      $region14: #{double_conv.4} parent=11 // pred_check_branch
        %182 = sbr.rel (%p180) target = $region16
      $region15: #{double_conv.4} parent=11 // pred_region
        _
      $region16: #{double_conv.4} parent=11 // pred_fallthru
        _
      // Predicated region
      $region17: #{double_conv.4} parent=11 // pred_check
        %p183 = pneg %p67
      $region18: #{double_conv.4} parent=11 // pred_check_branch
        %185 = sbr.rel (%p183) target = $region20
      $region19: #{double_conv.4} parent=11 // pred_region
        _
      $region20: #{double_conv.4} parent=11 // pred_fallthru
        _
      // Predicated region
      $region21: #{double_conv.4} parent=11 // pred_check
        %p186 = pneg %p88
      $region22: #{double_conv.4} parent=11 // pred_check_branch
        %188 = sbr.rel (%p186) target = $region24
      $region23: #{double_conv.4} parent=11 // pred_region
        _
      $region24: #{double_conv.4} parent=11 // pred_fallthru
        _
      // Predicated region
      $region25: #{double_conv.4} parent=11 // pred_check
        %p189 = pneg %p109
      $region26: #{double_conv.4} parent=11 // pred_check_branch
        %191 = sbr.rel (%p189) target = $region28
      $region27: #{double_conv.4} parent=11 // pred_region
        _
      $region28: #{double_conv.4} parent=11 // pred_fallthru
        _
    $region12: #{double_conv.4} parent=5 // pred_fallthru
      _
    %p192 = scmp.lt.s32.totalorder %s13, 2
    // Predicated region
    $region29: #{double_conv.4} parent=5 // pred_check
      %p193 = pneg %p192
    $region30: #{double_conv.4} parent=5 // pred_check_branch
      %195 = sbr.rel (%p193) target = $region32
    $region31: #{double_conv.4} parent=5 // pred_region
      _
    $region32: #{double_conv.4} parent=5 // pred_fallthru
      _
    %p196 = scmp.le.s32.totalorder 1, %s13
    %p197 = scmp.lt.s32.totalorder %s13, 3
    %p198 = pnand %p196, %p197
    %p199 = pneg %p198
    // Predicated region
    $region33: #{double_conv.4} parent=5 // pred_check
      _
    $region34: #{double_conv.4} parent=5 // pred_check_branch
      %201 = sbr.rel (%p198) target = $region36
    $region35: #{double_conv.4} parent=5 // pred_region
      %s202 = ssub.s32 %s13, 1
      %p203 = pneg %p46
      %p204 = pneg %p43
      %p205 = pneg %p67
      %p206 = pneg %p64
      %p207 = pneg %p88
      %p208 = pneg %p85
      %p209 = pneg %p109
      %p210 = pneg %p106
      %p211 = pneg %p137
      %p212 = pneg %p134
      %s213 = smul.u32 16, %s23
      %p214 = scmp.lt.s32.totalorder %s22, 1
      %s215 = scalar_select %p214, %s22, 1
      %p216 = scmp.lt.s32.totalorder %s213, 15
      %s217 = scalar_select %p216, %s213, 15
      %s218 = smul.addr %s217, 2
      %s219 = smul.addr %s215, 32
      %s220 = sadd.s32 %s218, %s219
      %s221 = smul.addr %s220, 8
      %s222 = scalar_lea.vmem %s5, %s221
      %p223 = pneg %p165
      %p224 = pneg %p162
      %p225 = scmp.lt.s32.totalorder %s22, 1
      %s226 = scalar_select %p225, %s22, 1
      %p227 = scmp.lt.s32.totalorder %s23, 0
      %s228 = scalar_select %p227, %s23, 0
      %s229 = sadd.s32 %s228, %s226
      %s230 = smul.addr %s229, 2
      %s231 = scalar_lea.vmem %s6, %s230
      %s232 = smul.u32 16, %s23
      %p233 = scmp.lt.s32.totalorder %s22, 1
      %s234 = scalar_select %p233, %s22, 1
      %p235 = scmp.lt.s32.totalorder %s232, 15
      %s236 = scalar_select %p235, %s232, 15
      %s237 = smul.addr %s236, 2
      %s238 = smul.addr %s234, 32
      %s239 = sadd.s32 %s237, %s238
      %s240 = smul.addr %s239, 8
      %s241 = scalar_lea.vmem %s5, %s240
      %s242 = smul.u32 16, %s23
      %p243 = scmp.lt.s32.totalorder %s22, 1
      %s244 = scalar_select %p243, %s22, 1
      %p245 = scmp.lt.s32.totalorder %s23, 0
      %s246 = scalar_select %p245, %s23, 0
      %s247 = sadd.s32 %s246, %s244
      %s248 = smul.addr %s247, 2
      %s249 = scalar_lea.vmem %s6, %s248
      %s250 = smul.u32 %s23, 16
      %s251 = smul.u32 %s250, 24
      %s252 = smul.u32 %s22, 432
      %s253 = sadd.s32 %s251, %s252
      %s254 = scalar_lea.vmem %s0, %s253
      %p256 = scmp.lt.u32.totalorder 18, 8
      %p257 = pneg %p256
      // Predicated region
      $region37: #{double_conv.4} parent=35 // pred_check
        _
      $region38: #{double_conv.4} parent=35 // pred_check_branch
        %259 = sbr.rel (%p256) target = $region40
      $region39: #{double_conv.4} parent=35 // pred_region
        %s308 = sand.u32 18, 7
        %p309 = scmp.eq.s32.totalorder %s308, 0
        %p310 = pneg %p309
        // Predicated region
        $region52: #{double_conv.4} parent=39 // pred_check
          _
        $region53: #{double_conv.4} parent=39 // pred_check_branch
          %312 = sbr.rel (%p309) target = $region55
        $region54: #{double_conv.4} parent=39 // pred_region
          %s313 = sand.u32 18, 7
          %s314 = ssub.s32 18, %s313
          %s315 = scalar_lea.vmem %s254, %s314
          %s316 = ssub.s32 18, %s313
          %s317 = scalar_lea.vmem [#allocation2], %s316
          loop: start=0, step=1, limit=1
          $region56: #{double_conv.4} parent=54 // loop_pre_header
            _
          $region57: #{double_conv.4} parent=54 // loop_header
            %s319 = sphi 0, %s323
            %p320 = scmp.ge.s32.totalorder %s319, 1
            %s324 = sphi %s254, %s254
            %s325 = sphi [#allocation2], [#allocation2]
          $region58: #{double_conv.4} parent=54 // loop_header_branch
            %322 = sbr.rel (%p320) target = $region62
          $region59: #{double_conv.4} parent=54 // loop_body
            %v326 = vld [vmem:[%s324] sm:$0xff]
            %327 = vst [vmem:[%s325] sm:$0xff] %v326
            %v328 = vld [vmem:[%s324 + $0x8] sm:$0xff]
            %329 = vst [vmem:[%s325 + $0x8] sm:$0xff] %v328
            %v330 = vld [vmem:[%s324 + $0x18] sm:$0xff]
            %331 = vst [vmem:[%s325 + $0x18] sm:$0xff] %v330
            %v332 = vld [vmem:[%s324 + $0x20] sm:$0xff]
            %333 = vst [vmem:[%s325 + $0x20] sm:$0xff] %v332
            %v334 = vld [vmem:[%s324 + $0x30] sm:$0xff]
            %335 = vst [vmem:[%s325 + $0x30] sm:$0xff] %v334
            %v336 = vld [vmem:[%s324 + $0x38] sm:$0xff]
            %337 = vst [vmem:[%s325 + $0x38] sm:$0xff] %v336
            %v338 = vld [vmem:[%s324 + $0x48] sm:$0xff]
            %339 = vst [vmem:[%s325 + $0x48] sm:$0xff] %v338
            %v340 = vld [vmem:[%s324 + $0x50] sm:$0xff]
            %341 = vst [vmem:[%s325 + $0x50] sm:$0xff] %v340
            %v342 = vld [vmem:[%s324 + $0x60] sm:$0xff]
            %343 = vst [vmem:[%s325 + $0x60] sm:$0xff] %v342
            %v344 = vld [vmem:[%s324 + $0x68] sm:$0xff]
            %345 = vst [vmem:[%s325 + $0x68] sm:$0xff] %v344
            %v346 = vld [vmem:[%s324 + $0x78] sm:$0xff]
            %347 = vst [vmem:[%s325 + $0x78] sm:$0xff] %v346
            %v348 = vld [vmem:[%s324 + $0x80] sm:$0xff]
            %349 = vst [vmem:[%s325 + $0x80] sm:$0xff] %v348
            %v350 = vld [vmem:[%s324 + $0x90] sm:$0xff]
            %351 = vst [vmem:[%s325 + $0x90] sm:$0xff] %v350
            %v352 = vld [vmem:[%s324 + $0x98] sm:$0xff]
            %353 = vst [vmem:[%s325 + $0x98] sm:$0xff] %v352
            %v354 = vld [vmem:[%s324 + $0xa8] sm:$0xff]
            %355 = vst [vmem:[%s325 + $0xa8] sm:$0xff] %v354
            %v356 = vld [vmem:[%s324 + $0xb0] sm:$0xff]
            %357 = vst [vmem:[%s325 + $0xb0] sm:$0xff] %v356
            %v358 = vld [vmem:[%s324 + $0xc0] sm:$0xff]
            %359 = vst [vmem:[%s325 + $0xc0] sm:$0xff] %v358
            %v360 = vld [vmem:[%s324 + $0xc8] sm:$0xff]
            %361 = vst [vmem:[%s325 + $0xc8] sm:$0xff] %v360
            %v362 = vld [vmem:[%s324 + $0xd8] sm:$0xff]
            %363 = vst [vmem:[%s325 + $0xd8] sm:$0xff] %v362
            %v364 = vld [vmem:[%s324 + $0xe0] sm:$0xff]
            %365 = vst [vmem:[%s325 + $0xe0] sm:$0xff] %v364
            %v366 = vld [vmem:[%s324 + $0xf0] sm:$0xff]
            %367 = vst [vmem:[%s325 + $0xf0] sm:$0xff] %v366
            %v368 = vld [vmem:[%s324 + $0xf8] sm:$0xff]
            %369 = vst [vmem:[%s325 + $0xf8] sm:$0xff] %v368
            %v370 = vld [vmem:[%s324 + $0x108] sm:$0xff]
            %371 = vst [vmem:[%s325 + $0x108] sm:$0xff] %v370
            %v372 = vld [vmem:[%s324 + $0x110] sm:$0xff]
            %373 = vst [vmem:[%s325 + $0x110] sm:$0xff] %v372
            %v374 = vld [vmem:[%s324 + $0x120] sm:$0xff]
            %375 = vst [vmem:[%s325 + $0x120] sm:$0xff] %v374
            %v376 = vld [vmem:[%s324 + $0x128] sm:$0xff]
            %377 = vst [vmem:[%s325 + $0x128] sm:$0xff] %v376
            %v378 = vld [vmem:[%s324 + $0x138] sm:$0xff]
            %379 = vst [vmem:[%s325 + $0x138] sm:$0xff] %v378
            %v380 = vld [vmem:[%s324 + $0x140] sm:$0xff]
            %381 = vst [vmem:[%s325 + $0x140] sm:$0xff] %v380
            %v382 = vld [vmem:[%s324 + $0x150] sm:$0xff]
            %383 = vst [vmem:[%s325 + $0x150] sm:$0xff] %v382
            %v384 = vld [vmem:[%s324 + $0x158] sm:$0xff]
            %385 = vst [vmem:[%s325 + $0x158] sm:$0xff] %v384
            %v386 = vld [vmem:[%s324 + $0x168] sm:$0xff]
            %387 = vst [vmem:[%s325 + $0x168] sm:$0xff] %v386
            %v388 = vld [vmem:[%s324 + $0x170] sm:$0xff]
            %389 = vst [vmem:[%s325 + $0x170] sm:$0xff] %v388
            %v390 = vld [vmem:[%s324 + $0x180] sm:$0xff]
            %391 = vst [vmem:[%s325 + $0x180] sm:$0xff] %v390
            %v392 = vld [vmem:[%s324 + $0x188] sm:$0xff]
            %393 = vst [vmem:[%s325 + $0x188] sm:$0xff] %v392
            %v394 = vld [vmem:[%s324 + $0x198] sm:$0xff]
            %395 = vst [vmem:[%s325 + $0x198] sm:$0xff] %v394
            %v396 = vld [vmem:[%s324 + $0x1a0] sm:$0xff]
            %397 = vst [vmem:[%s325 + $0x1a0] sm:$0xff] %v396
          $region60: #{double_conv.4} parent=54 // loop_footer
            %s323 = sadd.s32 1, %s319
          $region61: #{double_conv.4} parent=54 // loop_footer_branch
            %318 = sbr.rel target = $region57
          $region62: #{double_conv.4} parent=54 // loop_exit
            _
          %s398 = sshllo.u32 0, %s313
          loop: start=0, step=1, limit=1
          $region63: #{double_conv.4} parent=54 // loop_pre_header
            _
          $region64: #{double_conv.4} parent=54 // loop_header
            %s400 = sphi 0, %s404
            %p401 = scmp.ge.s32.totalorder %s400, 1
            %s405 = sphi %s315, %s315
            %s406 = sphi %s317, %s317
          $region65: #{double_conv.4} parent=54 // loop_header_branch
            %403 = sbr.rel (%p401) target = $region69
          $region66: #{double_conv.4} parent=54 // loop_body
            %v407 = vld [vmem:[%s405] sm:%s398]
            %408 = vst [vmem:[%s406] sm:%s398] %v407
            %v409 = vld [vmem:[%s405 + $0x18] sm:%s398]
            %410 = vst [vmem:[%s406 + $0x18] sm:%s398] %v409
            %v411 = vld [vmem:[%s405 + $0x30] sm:%s398]
            %412 = vst [vmem:[%s406 + $0x30] sm:%s398] %v411
            %v413 = vld [vmem:[%s405 + $0x48] sm:%s398]
            %414 = vst [vmem:[%s406 + $0x48] sm:%s398] %v413
            %v415 = vld [vmem:[%s405 + $0x60] sm:%s398]
            %416 = vst [vmem:[%s406 + $0x60] sm:%s398] %v415
            %v417 = vld [vmem:[%s405 + $0x78] sm:%s398]
            %418 = vst [vmem:[%s406 + $0x78] sm:%s398] %v417
            %v419 = vld [vmem:[%s405 + $0x90] sm:%s398]
            %420 = vst [vmem:[%s406 + $0x90] sm:%s398] %v419
            %v421 = vld [vmem:[%s405 + $0xa8] sm:%s398]
            %422 = vst [vmem:[%s406 + $0xa8] sm:%s398] %v421
            %v423 = vld [vmem:[%s405 + $0xc0] sm:%s398]
            %424 = vst [vmem:[%s406 + $0xc0] sm:%s398] %v423
            %v425 = vld [vmem:[%s405 + $0xd8] sm:%s398]
            %426 = vst [vmem:[%s406 + $0xd8] sm:%s398] %v425
            %v427 = vld [vmem:[%s405 + $0xf0] sm:%s398]
            %428 = vst [vmem:[%s406 + $0xf0] sm:%s398] %v427
            %v429 = vld [vmem:[%s405 + $0x108] sm:%s398]
            %430 = vst [vmem:[%s406 + $0x108] sm:%s398] %v429
            %v431 = vld [vmem:[%s405 + $0x120] sm:%s398]
            %432 = vst [vmem:[%s406 + $0x120] sm:%s398] %v431
            %v433 = vld [vmem:[%s405 + $0x138] sm:%s398]
            %434 = vst [vmem:[%s406 + $0x138] sm:%s398] %v433
            %v435 = vld [vmem:[%s405 + $0x150] sm:%s398]
            %436 = vst [vmem:[%s406 + $0x150] sm:%s398] %v435
            %v437 = vld [vmem:[%s405 + $0x168] sm:%s398]
            %438 = vst [vmem:[%s406 + $0x168] sm:%s398] %v437
            %v439 = vld [vmem:[%s405 + $0x180] sm:%s398]
            %440 = vst [vmem:[%s406 + $0x180] sm:%s398] %v439
            %v441 = vld [vmem:[%s405 + $0x198] sm:%s398]
            %442 = vst [vmem:[%s406 + $0x198] sm:%s398] %v441
          $region67: #{double_conv.4} parent=54 // loop_footer
            %s404 = sadd.s32 1, %s400
          $region68: #{double_conv.4} parent=54 // loop_footer_branch
            %399 = sbr.rel target = $region64
          $region69: #{double_conv.4} parent=54 // loop_exit
            _
        $region55: #{double_conv.4} parent=39 // pred_fallthru
          _
      $region40: #{double_conv.4} parent=35 // pred_fallthru
        _
      // Predicated region
      $region41: #{double_conv.4} parent=35 // pred_check
        %p260 = pneg %p256
      $region42: #{double_conv.4} parent=35 // pred_check_branch
        %262 = sbr.rel (%p260) target = $region44
      $region43: #{double_conv.4} parent=35 // pred_region
        %s263 = sshllo.u32 0, 18
        loop: start=0, step=1, limit=1
        $region45: #{double_conv.4} parent=43 // loop_pre_header
          _
        $region46: #{double_conv.4} parent=43 // loop_header
          %s265 = sphi 0, %s269
          %p266 = scmp.ge.s32.totalorder %s265, 1
          %s270 = sphi %s254, %s254
          %s271 = sphi [#allocation2], [#allocation2]
        $region47: #{double_conv.4} parent=43 // loop_header_branch
          %268 = sbr.rel (%p266) target = $region51
        $region48: #{double_conv.4} parent=43 // loop_body
          %v272 = vld [vmem:[%s270] sm:%s263]
          %273 = vst [vmem:[%s271] sm:%s263] %v272
          %v274 = vld [vmem:[%s270 + $0x18] sm:%s263]
          %275 = vst [vmem:[%s271 + $0x18] sm:%s263] %v274
          %v276 = vld [vmem:[%s270 + $0x30] sm:%s263]
          %277 = vst [vmem:[%s271 + $0x30] sm:%s263] %v276
          %v278 = vld [vmem:[%s270 + $0x48] sm:%s263]
          %279 = vst [vmem:[%s271 + $0x48] sm:%s263] %v278
          %v280 = vld [vmem:[%s270 + $0x60] sm:%s263]
          %281 = vst [vmem:[%s271 + $0x60] sm:%s263] %v280
          %v282 = vld [vmem:[%s270 + $0x78] sm:%s263]
          %283 = vst [vmem:[%s271 + $0x78] sm:%s263] %v282
          %v284 = vld [vmem:[%s270 + $0x90] sm:%s263]
          %285 = vst [vmem:[%s271 + $0x90] sm:%s263] %v284
          %v286 = vld [vmem:[%s270 + $0xa8] sm:%s263]
          %287 = vst [vmem:[%s271 + $0xa8] sm:%s263] %v286
          %v288 = vld [vmem:[%s270 + $0xc0] sm:%s263]
          %289 = vst [vmem:[%s271 + $0xc0] sm:%s263] %v288
          %v290 = vld [vmem:[%s270 + $0xd8] sm:%s263]
          %291 = vst [vmem:[%s271 + $0xd8] sm:%s263] %v290
          %v292 = vld [vmem:[%s270 + $0xf0] sm:%s263]
          %293 = vst [vmem:[%s271 + $0xf0] sm:%s263] %v292
          %v294 = vld [vmem:[%s270 + $0x108] sm:%s263]
          %295 = vst [vmem:[%s271 + $0x108] sm:%s263] %v294
          %v296 = vld [vmem:[%s270 + $0x120] sm:%s263]
          %297 = vst [vmem:[%s271 + $0x120] sm:%s263] %v296
          %v298 = vld [vmem:[%s270 + $0x138] sm:%s263]
          %299 = vst [vmem:[%s271 + $0x138] sm:%s263] %v298
          %v300 = vld [vmem:[%s270 + $0x150] sm:%s263]
          %301 = vst [vmem:[%s271 + $0x150] sm:%s263] %v300
          %v302 = vld [vmem:[%s270 + $0x168] sm:%s263]
          %303 = vst [vmem:[%s271 + $0x168] sm:%s263] %v302
          %v304 = vld [vmem:[%s270 + $0x180] sm:%s263]
          %305 = vst [vmem:[%s271 + $0x180] sm:%s263] %v304
          %v306 = vld [vmem:[%s270 + $0x198] sm:%s263]
          %307 = vst [vmem:[%s271 + $0x198] sm:%s263] %v306
        $region49: #{double_conv.4} parent=43 // loop_footer
          %s269 = sadd.s32 1, %s265
        $region50: #{double_conv.4} parent=43 // loop_footer_branch
          %264 = sbr.rel target = $region46
        $region51: #{double_conv.4} parent=43 // loop_exit
          _
      $region44: #{double_conv.4} parent=35 // pred_fallthru
        _
      // Predicated region
      $region70: #{double_conv.4} parent=35 // pred_check
        _
      $region71: #{double_conv.4} parent=35 // pred_check_branch
        %445 = sbr.rel (0) target = $region73
      $region72: #{double_conv.4} parent=35 // pred_region
        %446 = vsyncadd [#allocation4], 5184
      $region73: #{double_conv.4} parent=35 // pred_fallthru
        _
      %s447 = smul.u32 18, 18
      %s448 = smul.u32 %s447, 1
      %s449 = sshll.u32 %s448, 4
      %450 = dma.done [#allocation4], %s449
      %v451 = vld [vmem:[#allocation2] sm:$0xff]
      %v452 = vld [vmem:[#allocation2 + $0x8] sm:$0xff]
      %v453 = vld [vmem:[#allocation2 + $0x10] sm:$0x3]
      %v454 = vld [vmem:[#allocation2 + $0x18] sm:$0xff]
      %v455 = vld [vmem:[#allocation2 + $0x20] sm:$0xff]
      %v456 = vld [vmem:[#allocation2 + $0x28] sm:$0x3]
      %v457 = vld [vmem:[#allocation2 + $0x30] sm:$0xff]
      %v458 = vld [vmem:[#allocation2 + $0x38] sm:$0xff]
      %v459 = vld [vmem:[#allocation2 + $0x40] sm:$0x3]
      %v460 = vld [vmem:[#allocation2 + $0x48] sm:$0xff]
      %v461 = vld [vmem:[#allocation2 + $0x50] sm:$0xff]
      %v462 = vld [vmem:[#allocation2 + $0x58] sm:$0x3]
      %v463 = vld [vmem:[#allocation2 + $0x60] sm:$0xff]
      %v464 = vld [vmem:[#allocation2 + $0x68] sm:$0xff]
      %v465 = vld [vmem:[#allocation2 + $0x70] sm:$0x3]
      %v466 = vld [vmem:[#allocation2 + $0x78] sm:$0xff]
      %v467 = vld [vmem:[#allocation2 + $0x80] sm:$0xff]
      %v468 = vld [vmem:[#allocation2 + $0x88] sm:$0x3]
      %v469 = vld [vmem:[#allocation2 + $0x90] sm:$0xff]
      %v470 = vld [vmem:[#allocation2 + $0x98] sm:$0xff]
      %v471 = vld [vmem:[#allocation2 + $0xa0] sm:$0x3]
      %v472 = vld [vmem:[#allocation2 + $0xa8] sm:$0xff]
      %v473 = vld [vmem:[#allocation2 + $0xb0] sm:$0xff]
      %v474 = vld [vmem:[#allocation2 + $0xb8] sm:$0x3]
      %v475 = vld [vmem:[#allocation2 + $0xc0] sm:$0xff]
      %v476 = vld [vmem:[#allocation2 + $0xc8] sm:$0xff]
      %v477 = vld [vmem:[#allocation2 + $0xd0] sm:$0x3]
      %v478 = vld [vmem:[#allocation2 + $0xd8] sm:$0xff]
      %v479 = vld [vmem:[#allocation2 + $0xe0] sm:$0xff]
      %v480 = vld [vmem:[#allocation2 + $0xe8] sm:$0x3]
      %v481 = vld [vmem:[#allocation2 + $0xf0] sm:$0xff]
      %v482 = vld [vmem:[#allocation2 + $0xf8] sm:$0xff]
      %v483 = vld [vmem:[#allocation2 + $0x100] sm:$0x3]
      %v484 = vld [vmem:[#allocation2 + $0x108] sm:$0xff]
      %v485 = vld [vmem:[#allocation2 + $0x110] sm:$0xff]
      %v486 = vld [vmem:[#allocation2 + $0x118] sm:$0x3]
      %v487 = vld [vmem:[#allocation2 + $0x120] sm:$0xff]
      %v488 = vld [vmem:[#allocation2 + $0x128] sm:$0xff]
      %v489 = vld [vmem:[#allocation2 + $0x130] sm:$0x3]
      %v490 = vld [vmem:[#allocation2 + $0x138] sm:$0xff]
      %v491 = vld [vmem:[#allocation2 + $0x140] sm:$0xff]
      %v492 = vld [vmem:[#allocation2 + $0x148] sm:$0x3]
      %v493 = vld [vmem:[#allocation2 + $0x150] sm:$0xff]
      %v494 = vld [vmem:[#allocation2 + $0x158] sm:$0xff]
      %v495 = vld [vmem:[#allocation2 + $0x160] sm:$0x3]
      %v496 = vld [vmem:[#allocation2 + $0x168] sm:$0xff]
      %v497 = vld [vmem:[#allocation2 + $0x170] sm:$0xff]
      %v498 = vld [vmem:[#allocation2 + $0x178] sm:$0x3]
      %v499 = vld [vmem:[#allocation2 + $0x180] sm:$0xff]
      %v500 = vld [vmem:[#allocation2 + $0x188] sm:$0xff]
      %v501 = vld [vmem:[#allocation2 + $0x190] sm:$0x3]
      %v502 = vld [vmem:[#allocation2 + $0x198] sm:$0xff]
      %v503 = vld [vmem:[#allocation2 + $0x1a0] sm:$0xff]
      %v504 = vld [vmem:[#allocation2 + $0x1a8] sm:$0x3]
      %v505 = vld [vmem:[%s3] sm:$0x1]
      %v507 = vlaneseq
      %v508 = vshrl.u32 %v507, 7
      %v509 = vsub.s32 0, %v508
      %v510 = vrot.slane %v505, %v509
      %v512 = vmul.f32 %v451, %v510
      %v513 = vmul.f32 %v452, %v510
      %v514 = vmul.f32 %v453, %v510
      %v515 = vmul.f32 %v454, %v510
      %v516 = vmul.f32 %v455, %v510
      %v517 = vmul.f32 %v456, %v510
      %v518 = vmul.f32 %v457, %v510
      %v519 = vmul.f32 %v458, %v510
      %v520 = vmul.f32 %v459, %v510
      %v521 = vmul.f32 %v460, %v510
      %v522 = vmul.f32 %v461, %v510
      %v523 = vmul.f32 %v462, %v510
      %v524 = vmul.f32 %v463, %v510
      %v525 = vmul.f32 %v464, %v510
      %v526 = vmul.f32 %v465, %v510
      %v527 = vmul.f32 %v466, %v510
      %v528 = vmul.f32 %v467, %v510
      %v529 = vmul.f32 %v468, %v510
      %v530 = vmul.f32 %v469, %v510
      %v531 = vmul.f32 %v470, %v510
      %v532 = vmul.f32 %v471, %v510
      %v533 = vmul.f32 %v472, %v510
      %v534 = vmul.f32 %v473, %v510
      %v535 = vmul.f32 %v474, %v510
      %v536 = vmul.f32 %v475, %v510
      %v537 = vmul.f32 %v476, %v510
      %v538 = vmul.f32 %v477, %v510
      %v539 = vmul.f32 %v478, %v510
      %v540 = vmul.f32 %v479, %v510
      %v541 = vmul.f32 %v480, %v510
      %v542 = vmul.f32 %v481, %v510
      %v543 = vmul.f32 %v482, %v510
      %v544 = vmul.f32 %v483, %v510
      %v545 = vmul.f32 %v484, %v510
      %v546 = vmul.f32 %v485, %v510
      %v547 = vmul.f32 %v486, %v510
      %v548 = vmul.f32 %v487, %v510
      %v549 = vmul.f32 %v488, %v510
      %v550 = vmul.f32 %v489, %v510
      %v551 = vmul.f32 %v490, %v510
      %v552 = vmul.f32 %v491, %v510
      %v553 = vmul.f32 %v492, %v510
      %v554 = vmul.f32 %v493, %v510
      %v555 = vmul.f32 %v494, %v510
      %v556 = vmul.f32 %v495, %v510
      %v557 = vmul.f32 %v496, %v510
      %v558 = vmul.f32 %v497, %v510
      %v559 = vmul.f32 %v498, %v510
      %v560 = vmul.f32 %v499, %v510
      %v561 = vmul.f32 %v500, %v510
      %v562 = vmul.f32 %v501, %v510
      %v563 = vmul.f32 %v502, %v510
      %v564 = vmul.f32 %v503, %v510
      %v565 = vmul.f32 %v504, %v510
      %v566 = vld [vmem:[%s4] sm:$0x1]
      %v568 = vlaneseq
      %v569 = vshrl.u32 %v568, 7
      %v570 = vsub.s32 0, %v569
      %v571 = vrot.slane %v566, %v570
      %v573 = vadd.f32 %v512, %v571
      %v574 = vadd.f32 %v513, %v571
      %v575 = vadd.f32 %v514, %v571
      %v576 = vadd.f32 %v515, %v571
      %v577 = vadd.f32 %v516, %v571
      %v578 = vadd.f32 %v517, %v571
      %v579 = vadd.f32 %v518, %v571
      %v580 = vadd.f32 %v519, %v571
      %v581 = vadd.f32 %v520, %v571
      %v582 = vadd.f32 %v521, %v571
      %v583 = vadd.f32 %v522, %v571
      %v584 = vadd.f32 %v523, %v571
      %v585 = vadd.f32 %v524, %v571
      %v586 = vadd.f32 %v525, %v571
      %v587 = vadd.f32 %v526, %v571
      %v588 = vadd.f32 %v527, %v571
      %v589 = vadd.f32 %v528, %v571
      %v590 = vadd.f32 %v529, %v571
      %v591 = vadd.f32 %v530, %v571
      %v592 = vadd.f32 %v531, %v571
      %v593 = vadd.f32 %v532, %v571
      %v594 = vadd.f32 %v533, %v571
      %v595 = vadd.f32 %v534, %v571
      %v596 = vadd.f32 %v535, %v571
      %v597 = vadd.f32 %v536, %v571
      %v598 = vadd.f32 %v537, %v571
      %v599 = vadd.f32 %v538, %v571
      %v600 = vadd.f32 %v539, %v571
      %v601 = vadd.f32 %v540, %v571
      %v602 = vadd.f32 %v541, %v571
      %v603 = vadd.f32 %v542, %v571
      %v604 = vadd.f32 %v543, %v571
      %v605 = vadd.f32 %v544, %v571
      %v606 = vadd.f32 %v545, %v571
      %v607 = vadd.f32 %v546, %v571
      %v608 = vadd.f32 %v547, %v571
      %v609 = vadd.f32 %v548, %v571
      %v610 = vadd.f32 %v549, %v571
      %v611 = vadd.f32 %v550, %v571
      %v612 = vadd.f32 %v551, %v571
      %v613 = vadd.f32 %v552, %v571
      %v614 = vadd.f32 %v553, %v571
      %v615 = vadd.f32 %v554, %v571
      %v616 = vadd.f32 %v555, %v571
      %v617 = vadd.f32 %v556, %v571
      %v618 = vadd.f32 %v557, %v571
      %v619 = vadd.f32 %v558, %v571
      %v620 = vadd.f32 %v559, %v571
      %v621 = vadd.f32 %v560, %v571
      %v622 = vadd.f32 %v561, %v571
      %v623 = vadd.f32 %v562, %v571
      %v624 = vadd.f32 %v563, %v571
      %v625 = vadd.f32 %v564, %v571
      %v626 = vadd.f32 %v565, %v571
      %v627 = vand.u32 2147483647, %v573
      %v628 = vand.u32 2147483647, %v574
      %v629 = vand.u32 2147483647, %v575
      %v630 = vand.u32 2147483647, %v576
      %v631 = vand.u32 2147483647, %v577
      %v632 = vand.u32 2147483647, %v578
      %v633 = vand.u32 2147483647, %v579
      %v634 = vand.u32 2147483647, %v580
      %v635 = vand.u32 2147483647, %v581
      %v636 = vand.u32 2147483647, %v582
      %v637 = vand.u32 2147483647, %v583
      %v638 = vand.u32 2147483647, %v584
      %v639 = vand.u32 2147483647, %v585
      %v640 = vand.u32 2147483647, %v586
      %v641 = vand.u32 2147483647, %v587
      %v642 = vand.u32 2147483647, %v588
      %v643 = vand.u32 2147483647, %v589
      %v644 = vand.u32 2147483647, %v590
      %v645 = vand.u32 2147483647, %v591
      %v646 = vand.u32 2147483647, %v592
      %v647 = vand.u32 2147483647, %v593
      %v648 = vand.u32 2147483647, %v594
      %v649 = vand.u32 2147483647, %v595
      %v650 = vand.u32 2147483647, %v596
      %v651 = vand.u32 2147483647, %v597
      %v652 = vand.u32 2147483647, %v598
      %v653 = vand.u32 2147483647, %v599
      %v654 = vand.u32 2147483647, %v600
      %v655 = vand.u32 2147483647, %v601
      %v656 = vand.u32 2147483647, %v602
      %v657 = vand.u32 2147483647, %v603
      %v658 = vand.u32 2147483647, %v604
      %v659 = vand.u32 2147483647, %v605
      %v660 = vand.u32 2147483647, %v606
      %v661 = vand.u32 2147483647, %v607
      %v662 = vand.u32 2147483647, %v608
      %v663 = vand.u32 2147483647, %v609
      %v664 = vand.u32 2147483647, %v610
      %v665 = vand.u32 2147483647, %v611
      %v666 = vand.u32 2147483647, %v612
      %v667 = vand.u32 2147483647, %v613
      %v668 = vand.u32 2147483647, %v614
      %v669 = vand.u32 2147483647, %v615
      %v670 = vand.u32 2147483647, %v616
      %v671 = vand.u32 2147483647, %v617
      %v672 = vand.u32 2147483647, %v618
      %v673 = vand.u32 2147483647, %v619
      %v674 = vand.u32 2147483647, %v620
      %v675 = vand.u32 2147483647, %v621
      %v676 = vand.u32 2147483647, %v622
      %v677 = vand.u32 2147483647, %v623
      %v678 = vand.u32 2147483647, %v624
      %v679 = vand.u32 2147483647, %v625
      %v680 = vand.u32 2147483647, %v626
      %v681 = vsub.f32 0.0, %v627
      %v682 = vsub.f32 0.0, %v628
      %v683 = vsub.f32 0.0, %v629
      %v684 = vsub.f32 0.0, %v630
      %v685 = vsub.f32 0.0, %v631
      %v686 = vsub.f32 0.0, %v632
      %v687 = vsub.f32 0.0, %v633
      %v688 = vsub.f32 0.0, %v634
      %v689 = vsub.f32 0.0, %v635
      %v690 = vsub.f32 0.0, %v636
      %v691 = vsub.f32 0.0, %v637
      %v692 = vsub.f32 0.0, %v638
      %v693 = vsub.f32 0.0, %v639
      %v694 = vsub.f32 0.0, %v640
      %v695 = vsub.f32 0.0, %v641
      %v696 = vsub.f32 0.0, %v642
      %v697 = vsub.f32 0.0, %v643
      %v698 = vsub.f32 0.0, %v644
      %v699 = vsub.f32 0.0, %v645
      %v700 = vsub.f32 0.0, %v646
      %v701 = vsub.f32 0.0, %v647
      %v702 = vsub.f32 0.0, %v648
      %v703 = vsub.f32 0.0, %v649
      %v704 = vsub.f32 0.0, %v650
      %v705 = vsub.f32 0.0, %v651
      %v706 = vsub.f32 0.0, %v652
      %v707 = vsub.f32 0.0, %v653
      %v708 = vsub.f32 0.0, %v654
      %v709 = vsub.f32 0.0, %v655
      %v710 = vsub.f32 0.0, %v656
      %v711 = vsub.f32 0.0, %v657
      %v712 = vsub.f32 0.0, %v658
      %v713 = vsub.f32 0.0, %v659
      %v714 = vsub.f32 0.0, %v660
      %v715 = vsub.f32 0.0, %v661
      %v716 = vsub.f32 0.0, %v662
      %v717 = vsub.f32 0.0, %v663
      %v718 = vsub.f32 0.0, %v664
      %v719 = vsub.f32 0.0, %v665
      %v720 = vsub.f32 0.0, %v666
      %v721 = vsub.f32 0.0, %v667
      %v722 = vsub.f32 0.0, %v668
      %v723 = vsub.f32 0.0, %v669
      %v724 = vsub.f32 0.0, %v670
      %v725 = vsub.f32 0.0, %v671
      %v726 = vsub.f32 0.0, %v672
      %v727 = vsub.f32 0.0, %v673
      %v728 = vsub.f32 0.0, %v674
      %v729 = vsub.f32 0.0, %v675
      %v730 = vsub.f32 0.0, %v676
      %v731 = vsub.f32 0.0, %v677
      %v732 = vsub.f32 0.0, %v678
      %v733 = vsub.f32 0.0, %v679
      %v734 = vsub.f32 0.0, %v680
      %v735 = vmul.f32 %v681, 1.442695
      %v736 = vpow.pop %v735
      %v737 = vmul.f32 %v682, 1.442695
      %v738 = vpow.pop %v737
      %v739 = vmul.f32 %v683, 1.442695
      %v740 = vpow.pop %v739
      %v741 = vmul.f32 %v684, 1.442695
      %v742 = vpow.pop %v741
      %v743 = vmul.f32 %v685, 1.442695
      %v744 = vpow.pop %v743
      %v745 = vmul.f32 %v686, 1.442695
      %v746 = vpow.pop %v745
      %v747 = vmul.f32 %v687, 1.442695
      %v748 = vpow.pop %v747
      %v749 = vmul.f32 %v688, 1.442695
      %v750 = vpow.pop %v749
      %v751 = vmul.f32 %v689, 1.442695
      %v752 = vpow.pop %v751
      %v753 = vmul.f32 %v690, 1.442695
      %v754 = vpow.pop %v753
      %v755 = vmul.f32 %v691, 1.442695
      %v756 = vpow.pop %v755
      %v757 = vmul.f32 %v692, 1.442695
      %v758 = vpow.pop %v757
      %v759 = vmul.f32 %v693, 1.442695
      %v760 = vpow.pop %v759
      %v761 = vmul.f32 %v694, 1.442695
      %v762 = vpow.pop %v761
      %v763 = vmul.f32 %v695, 1.442695
      %v764 = vpow.pop %v763
      %v765 = vmul.f32 %v696, 1.442695
      %v766 = vpow.pop %v765
      %v767 = vmul.f32 %v697, 1.442695
      %v768 = vpow.pop %v767
      %v769 = vmul.f32 %v698, 1.442695
      %v770 = vpow.pop %v769
      %v771 = vmul.f32 %v699, 1.442695
      %v772 = vpow.pop %v771
      %v773 = vmul.f32 %v700, 1.442695
      %v774 = vpow.pop %v773
      %v775 = vmul.f32 %v701, 1.442695
      %v776 = vpow.pop %v775
      %v777 = vmul.f32 %v702, 1.442695
      %v778 = vpow.pop %v777
      %v779 = vmul.f32 %v703, 1.442695
      %v780 = vpow.pop %v779
      %v781 = vmul.f32 %v704, 1.442695
      %v782 = vpow.pop %v781
      %v783 = vmul.f32 %v705, 1.442695
      %v784 = vpow.pop %v783
      %v785 = vmul.f32 %v706, 1.442695
      %v786 = vpow.pop %v785
      %v787 = vmul.f32 %v707, 1.442695
      %v788 = vpow.pop %v787
      %v789 = vmul.f32 %v708, 1.442695
      %v790 = vpow.pop %v789
      %v791 = vmul.f32 %v709, 1.442695
      %v792 = vpow.pop %v791
      %v793 = vmul.f32 %v710, 1.442695
      %v794 = vpow.pop %v793
      %v795 = vmul.f32 %v711, 1.442695
      %v796 = vpow.pop %v795
      %v797 = vmul.f32 %v712, 1.442695
      %v798 = vpow.pop %v797
      %v799 = vmul.f32 %v713, 1.442695
      %v800 = vpow.pop %v799
      %v801 = vmul.f32 %v714, 1.442695
      %v802 = vpow.pop %v801
      %v803 = vmul.f32 %v715, 1.442695
      %v804 = vpow.pop %v803
      %v805 = vmul.f32 %v716, 1.442695
      %v806 = vpow.pop %v805
      %v807 = vmul.f32 %v717, 1.442695
      %v808 = vpow.pop %v807
      %v809 = vmul.f32 %v718, 1.442695
      %v810 = vpow.pop %v809
      %v811 = vmul.f32 %v719, 1.442695
      %v812 = vpow.pop %v811
      %v813 = vmul.f32 %v720, 1.442695
      %v814 = vpow.pop %v813
      %v815 = vmul.f32 %v721, 1.442695
      %v816 = vpow.pop %v815
      %v817 = vmul.f32 %v722, 1.442695
      %v818 = vpow.pop %v817
      %v819 = vmul.f32 %v723, 1.442695
      %v820 = vpow.pop %v819
      %v821 = vmul.f32 %v724, 1.442695
      %v822 = vpow.pop %v821
      %v823 = vmul.f32 %v725, 1.442695
      %v824 = vpow.pop %v823
      %v825 = vmul.f32 %v726, 1.442695
      %v826 = vpow.pop %v825
      %v827 = vmul.f32 %v727, 1.442695
      %v828 = vpow.pop %v827
      %v829 = vmul.f32 %v728, 1.442695
      %v830 = vpow.pop %v829
      %v831 = vmul.f32 %v729, 1.442695
      %v832 = vpow.pop %v831
      %v833 = vmul.f32 %v730, 1.442695
      %v834 = vpow.pop %v833
      %v835 = vmul.f32 %v731, 1.442695
      %v836 = vpow.pop %v835
      %v837 = vmul.f32 %v732, 1.442695
      %v838 = vpow.pop %v837
      %v839 = vmul.f32 %v733, 1.442695
      %v840 = vpow.pop %v839
      %v841 = vmul.f32 %v734, 1.442695
      %v842 = vpow.pop %v841
      %v843 = vadd.f32 %v736, 1.0
      %v844 = vadd.f32 %v738, 1.0
      %v845 = vadd.f32 %v740, 1.0
      %v846 = vadd.f32 %v742, 1.0
      %v847 = vadd.f32 %v744, 1.0
      %v848 = vadd.f32 %v746, 1.0
      %v849 = vadd.f32 %v748, 1.0
      %v850 = vadd.f32 %v750, 1.0
      %v851 = vadd.f32 %v752, 1.0
      %v852 = vadd.f32 %v754, 1.0
      %v853 = vadd.f32 %v756, 1.0
      %v854 = vadd.f32 %v758, 1.0
      %v855 = vadd.f32 %v760, 1.0
      %v856 = vadd.f32 %v762, 1.0
      %v857 = vadd.f32 %v764, 1.0
      %v858 = vadd.f32 %v766, 1.0
      %v859 = vadd.f32 %v768, 1.0
      %v860 = vadd.f32 %v770, 1.0
      %v861 = vadd.f32 %v772, 1.0
      %v862 = vadd.f32 %v774, 1.0
      %v863 = vadd.f32 %v776, 1.0
      %v864 = vadd.f32 %v778, 1.0
      %v865 = vadd.f32 %v780, 1.0
      %v866 = vadd.f32 %v782, 1.0
      %v867 = vadd.f32 %v784, 1.0
      %v868 = vadd.f32 %v786, 1.0
      %v869 = vadd.f32 %v788, 1.0
      %v870 = vadd.f32 %v790, 1.0
      %v871 = vadd.f32 %v792, 1.0
      %v872 = vadd.f32 %v794, 1.0
      %v873 = vadd.f32 %v796, 1.0
      %v874 = vadd.f32 %v798, 1.0
      %v875 = vadd.f32 %v800, 1.0
      %v876 = vadd.f32 %v802, 1.0
      %v877 = vadd.f32 %v804, 1.0
      %v878 = vadd.f32 %v806, 1.0
      %v879 = vadd.f32 %v808, 1.0
      %v880 = vadd.f32 %v810, 1.0
      %v881 = vadd.f32 %v812, 1.0
      %v882 = vadd.f32 %v814, 1.0
      %v883 = vadd.f32 %v816, 1.0
      %v884 = vadd.f32 %v818, 1.0
      %v885 = vadd.f32 %v820, 1.0
      %v886 = vadd.f32 %v822, 1.0
      %v887 = vadd.f32 %v824, 1.0
      %v888 = vadd.f32 %v826, 1.0
      %v889 = vadd.f32 %v828, 1.0
      %v890 = vadd.f32 %v830, 1.0
      %v891 = vadd.f32 %v832, 1.0
      %v892 = vadd.f32 %v834, 1.0
      %v893 = vadd.f32 %v836, 1.0
      %v894 = vadd.f32 %v838, 1.0
      %v895 = vadd.f32 %v840, 1.0
      %v896 = vadd.f32 %v842, 1.0
      %v897 = vmul.f32 %v843, %v843
      %v898 = vmul.f32 %v844, %v844
      %v899 = vmul.f32 %v845, %v845
      %v900 = vmul.f32 %v846, %v846
      %v901 = vmul.f32 %v847, %v847
      %v902 = vmul.f32 %v848, %v848
      %v903 = vmul.f32 %v849, %v849
      %v904 = vmul.f32 %v850, %v850
      %v905 = vmul.f32 %v851, %v851
      %v906 = vmul.f32 %v852, %v852
      %v907 = vmul.f32 %v853, %v853
      %v908 = vmul.f32 %v854, %v854
      %v909 = vmul.f32 %v855, %v855
      %v910 = vmul.f32 %v856, %v856
      %v911 = vmul.f32 %v857, %v857
      %v912 = vmul.f32 %v858, %v858
      %v913 = vmul.f32 %v859, %v859
      %v914 = vmul.f32 %v860, %v860
      %v915 = vmul.f32 %v861, %v861
      %v916 = vmul.f32 %v862, %v862
      %v917 = vmul.f32 %v863, %v863
      %v918 = vmul.f32 %v864, %v864
      %v919 = vmul.f32 %v865, %v865
      %v920 = vmul.f32 %v866, %v866
      %v921 = vmul.f32 %v867, %v867
      %v922 = vmul.f32 %v868, %v868
      %v923 = vmul.f32 %v869, %v869
      %v924 = vmul.f32 %v870, %v870
      %v925 = vmul.f32 %v871, %v871
      %v926 = vmul.f32 %v872, %v872
      %v927 = vmul.f32 %v873, %v873
      %v928 = vmul.f32 %v874, %v874
      %v929 = vmul.f32 %v875, %v875
      %v930 = vmul.f32 %v876, %v876
      %v931 = vmul.f32 %v877, %v877
      %v932 = vmul.f32 %v878, %v878
      %v933 = vmul.f32 %v879, %v879
      %v934 = vmul.f32 %v880, %v880
      %v935 = vmul.f32 %v881, %v881
      %v936 = vmul.f32 %v882, %v882
      %v937 = vmul.f32 %v883, %v883
      %v938 = vmul.f32 %v884, %v884
      %v939 = vmul.f32 %v885, %v885
      %v940 = vmul.f32 %v886, %v886
      %v941 = vmul.f32 %v887, %v887
      %v942 = vmul.f32 %v888, %v888
      %v943 = vmul.f32 %v889, %v889
      %v944 = vmul.f32 %v890, %v890
      %v945 = vmul.f32 %v891, %v891
      %v946 = vmul.f32 %v892, %v892
      %v947 = vmul.f32 %v893, %v893
      %v948 = vmul.f32 %v894, %v894
      %v949 = vmul.f32 %v895, %v895
      %v950 = vmul.f32 %v896, %v896
      %vm951 = vcmp.ge.f32.partialorder %v573, 0.0
      %vm952 = vcmp.ge.f32.partialorder %v574, 0.0
      %vm953 = vcmp.ge.f32.partialorder %v575, 0.0
      %vm954 = vcmp.ge.f32.partialorder %v576, 0.0
      %vm955 = vcmp.ge.f32.partialorder %v577, 0.0
      %vm956 = vcmp.ge.f32.partialorder %v578, 0.0
      %vm957 = vcmp.ge.f32.partialorder %v579, 0.0
      %vm958 = vcmp.ge.f32.partialorder %v580, 0.0
      %vm959 = vcmp.ge.f32.partialorder %v581, 0.0
      %vm960 = vcmp.ge.f32.partialorder %v582, 0.0
      %vm961 = vcmp.ge.f32.partialorder %v583, 0.0
      %vm962 = vcmp.ge.f32.partialorder %v584, 0.0
      %vm963 = vcmp.ge.f32.partialorder %v585, 0.0
      %vm964 = vcmp.ge.f32.partialorder %v586, 0.0
      %vm965 = vcmp.ge.f32.partialorder %v587, 0.0
      %vm966 = vcmp.ge.f32.partialorder %v588, 0.0
      %vm967 = vcmp.ge.f32.partialorder %v589, 0.0
      %vm968 = vcmp.ge.f32.partialorder %v590, 0.0
      %vm969 = vcmp.ge.f32.partialorder %v591, 0.0
      %vm970 = vcmp.ge.f32.partialorder %v592, 0.0
      %vm971 = vcmp.ge.f32.partialorder %v593, 0.0
      %vm972 = vcmp.ge.f32.partialorder %v594, 0.0
      %vm973 = vcmp.ge.f32.partialorder %v595, 0.0
      %vm974 = vcmp.ge.f32.partialorder %v596, 0.0
      %vm975 = vcmp.ge.f32.partialorder %v597, 0.0
      %vm976 = vcmp.ge.f32.partialorder %v598, 0.0
      %vm977 = vcmp.ge.f32.partialorder %v599, 0.0
      %vm978 = vcmp.ge.f32.partialorder %v600, 0.0
      %vm979 = vcmp.ge.f32.partialorder %v601, 0.0
      %vm980 = vcmp.ge.f32.partialorder %v602, 0.0
      %vm981 = vcmp.ge.f32.partialorder %v603, 0.0
      %vm982 = vcmp.ge.f32.partialorder %v604, 0.0
      %vm983 = vcmp.ge.f32.partialorder %v605, 0.0
      %vm984 = vcmp.ge.f32.partialorder %v606, 0.0
      %vm985 = vcmp.ge.f32.partialorder %v607, 0.0
      %vm986 = vcmp.ge.f32.partialorder %v608, 0.0
      %vm987 = vcmp.ge.f32.partialorder %v609, 0.0
      %vm988 = vcmp.ge.f32.partialorder %v610, 0.0
      %vm989 = vcmp.ge.f32.partialorder %v611, 0.0
      %vm990 = vcmp.ge.f32.partialorder %v612, 0.0
      %vm991 = vcmp.ge.f32.partialorder %v613, 0.0
      %vm992 = vcmp.ge.f32.partialorder %v614, 0.0
      %vm993 = vcmp.ge.f32.partialorder %v615, 0.0
      %vm994 = vcmp.ge.f32.partialorder %v616, 0.0
      %vm995 = vcmp.ge.f32.partialorder %v617, 0.0
      %vm996 = vcmp.ge.f32.partialorder %v618, 0.0
      %vm997 = vcmp.ge.f32.partialorder %v619, 0.0
      %vm998 = vcmp.ge.f32.partialorder %v620, 0.0
      %vm999 = vcmp.ge.f32.partialorder %v621, 0.0
      %vm1000 = vcmp.ge.f32.partialorder %v622, 0.0
      %vm1001 = vcmp.ge.f32.partialorder %v623, 0.0
      %vm1002 = vcmp.ge.f32.partialorder %v624, 0.0
      %vm1003 = vcmp.ge.f32.partialorder %v625, 0.0
      %vm1004 = vcmp.ge.f32.partialorder %v626, 0.0
      %v1005 = vmul.f32 %v736, %v736
      %v1006 = vmul.f32 %v738, %v738
      %v1007 = vmul.f32 %v740, %v740
      %v1008 = vmul.f32 %v742, %v742
      %v1009 = vmul.f32 %v744, %v744
      %v1010 = vmul.f32 %v746, %v746
      %v1011 = vmul.f32 %v748, %v748
      %v1012 = vmul.f32 %v750, %v750
      %v1013 = vmul.f32 %v752, %v752
      %v1014 = vmul.f32 %v754, %v754
      %v1015 = vmul.f32 %v756, %v756
      %v1016 = vmul.f32 %v758, %v758
      %v1017 = vmul.f32 %v760, %v760
      %v1018 = vmul.f32 %v762, %v762
      %v1019 = vmul.f32 %v764, %v764
      %v1020 = vmul.f32 %v766, %v766
      %v1021 = vmul.f32 %v768, %v768
      %v1022 = vmul.f32 %v770, %v770
      %v1023 = vmul.f32 %v772, %v772
      %v1024 = vmul.f32 %v774, %v774
      %v1025 = vmul.f32 %v776, %v776
      %v1026 = vmul.f32 %v778, %v778
      %v1027 = vmul.f32 %v780, %v780
      %v1028 = vmul.f32 %v782, %v782
      %v1029 = vmul.f32 %v784, %v784
      %v1030 = vmul.f32 %v786, %v786
      %v1031 = vmul.f32 %v788, %v788
      %v1032 = vmul.f32 %v790, %v790
      %v1033 = vmul.f32 %v792, %v792
      %v1034 = vmul.f32 %v794, %v794
      %v1035 = vmul.f32 %v796, %v796
      %v1036 = vmul.f32 %v798, %v798
      %v1037 = vmul.f32 %v800, %v800
      %v1038 = vmul.f32 %v802, %v802
      %v1039 = vmul.f32 %v804, %v804
      %v1040 = vmul.f32 %v806, %v806
      %v1041 = vmul.f32 %v808, %v808
      %v1042 = vmul.f32 %v810, %v810
      %v1043 = vmul.f32 %v812, %v812
      %v1044 = vmul.f32 %v814, %v814
      %v1045 = vmul.f32 %v816, %v816
      %v1046 = vmul.f32 %v818, %v818
      %v1047 = vmul.f32 %v820, %v820
      %v1048 = vmul.f32 %v822, %v822
      %v1049 = vmul.f32 %v824, %v824
      %v1050 = vmul.f32 %v826, %v826
      %v1051 = vmul.f32 %v828, %v828
      %v1052 = vmul.f32 %v830, %v830
      %v1053 = vmul.f32 %v832, %v832
      %v1054 = vmul.f32 %v834, %v834
      %v1055 = vmul.f32 %v836, %v836
      %v1056 = vmul.f32 %v838, %v838
      %v1057 = vmul.f32 %v840, %v840
      %v1058 = vmul.f32 %v842, %v842
      %v1059 = vsel %vm951, %v1005, 1.0
      %v1060 = vsel %vm952, %v1006, 1.0
      %v1061 = vsel %vm953, %v1007, 1.0
      %v1062 = vsel %vm954, %v1008, 1.0
      %v1063 = vsel %vm955, %v1009, 1.0
      %v1064 = vsel %vm956, %v1010, 1.0
      %v1065 = vsel %vm957, %v1011, 1.0
      %v1066 = vsel %vm958, %v1012, 1.0
      %v1067 = vsel %vm959, %v1013, 1.0
      %v1068 = vsel %vm960, %v1014, 1.0
      %v1069 = vsel %vm961, %v1015, 1.0
      %v1070 = vsel %vm962, %v1016, 1.0
      %v1071 = vsel %vm963, %v1017, 1.0
      %v1072 = vsel %vm964, %v1018, 1.0
      %v1073 = vsel %vm965, %v1019, 1.0
      %v1074 = vsel %vm966, %v1020, 1.0
      %v1075 = vsel %vm967, %v1021, 1.0
      %v1076 = vsel %vm968, %v1022, 1.0
      %v1077 = vsel %vm969, %v1023, 1.0
      %v1078 = vsel %vm970, %v1024, 1.0
      %v1079 = vsel %vm971, %v1025, 1.0
      %v1080 = vsel %vm972, %v1026, 1.0
      %v1081 = vsel %vm973, %v1027, 1.0
      %v1082 = vsel %vm974, %v1028, 1.0
      %v1083 = vsel %vm975, %v1029, 1.0
      %v1084 = vsel %vm976, %v1030, 1.0
      %v1085 = vsel %vm977, %v1031, 1.0
      %v1086 = vsel %vm978, %v1032, 1.0
      %v1087 = vsel %vm979, %v1033, 1.0
      %v1088 = vsel %vm980, %v1034, 1.0
      %v1089 = vsel %vm981, %v1035, 1.0
      %v1090 = vsel %vm982, %v1036, 1.0
      %v1091 = vsel %vm983, %v1037, 1.0
      %v1092 = vsel %vm984, %v1038, 1.0
      %v1093 = vsel %vm985, %v1039, 1.0
      %v1094 = vsel %vm986, %v1040, 1.0
      %v1095 = vsel %vm987, %v1041, 1.0
      %v1096 = vsel %vm988, %v1042, 1.0
      %v1097 = vsel %vm989, %v1043, 1.0
      %v1098 = vsel %vm990, %v1044, 1.0
      %v1099 = vsel %vm991, %v1045, 1.0
      %v1100 = vsel %vm992, %v1046, 1.0
      %v1101 = vsel %vm993, %v1047, 1.0
      %v1102 = vsel %vm994, %v1048, 1.0
      %v1103 = vsel %vm995, %v1049, 1.0
      %v1104 = vsel %vm996, %v1050, 1.0
      %v1105 = vsel %vm997, %v1051, 1.0
      %v1106 = vsel %vm998, %v1052, 1.0
      %v1107 = vsel %vm999, %v1053, 1.0
      %v1108 = vsel %vm1000, %v1054, 1.0
      %v1109 = vsel %vm1001, %v1055, 1.0
      %v1110 = vsel %vm1002, %v1056, 1.0
      %v1111 = vsel %vm1003, %v1057, 1.0
      %v1112 = vsel %vm1004, %v1058, 1.0
      %v1113 = vsub.f32 %v897, %v1059
      %v1114 = vsub.f32 %v898, %v1060
      %v1115 = vsub.f32 %v899, %v1061
      %v1116 = vsub.f32 %v900, %v1062
      %v1117 = vsub.f32 %v901, %v1063
      %v1118 = vsub.f32 %v902, %v1064
      %v1119 = vsub.f32 %v903, %v1065
      %v1120 = vsub.f32 %v904, %v1066
      %v1121 = vsub.f32 %v905, %v1067
      %v1122 = vsub.f32 %v906, %v1068
      %v1123 = vsub.f32 %v907, %v1069
      %v1124 = vsub.f32 %v908, %v1070
      %v1125 = vsub.f32 %v909, %v1071
      %v1126 = vsub.f32 %v910, %v1072
      %v1127 = vsub.f32 %v911, %v1073
      %v1128 = vsub.f32 %v912, %v1074
      %v1129 = vsub.f32 %v913, %v1075
      %v1130 = vsub.f32 %v914, %v1076
      %v1131 = vsub.f32 %v915, %v1077
      %v1132 = vsub.f32 %v916, %v1078
      %v1133 = vsub.f32 %v917, %v1079
      %v1134 = vsub.f32 %v918, %v1080
      %v1135 = vsub.f32 %v919, %v1081
      %v1136 = vsub.f32 %v920, %v1082
      %v1137 = vsub.f32 %v921, %v1083
      %v1138 = vsub.f32 %v922, %v1084
      %v1139 = vsub.f32 %v923, %v1085
      %v1140 = vsub.f32 %v924, %v1086
      %v1141 = vsub.f32 %v925, %v1087
      %v1142 = vsub.f32 %v926, %v1088
      %v1143 = vsub.f32 %v927, %v1089
      %v1144 = vsub.f32 %v928, %v1090
      %v1145 = vsub.f32 %v929, %v1091
      %v1146 = vsub.f32 %v930, %v1092
      %v1147 = vsub.f32 %v931, %v1093
      %v1148 = vsub.f32 %v932, %v1094
      %v1149 = vsub.f32 %v933, %v1095
      %v1150 = vsub.f32 %v934, %v1096
      %v1151 = vsub.f32 %v935, %v1097
      %v1152 = vsub.f32 %v936, %v1098
      %v1153 = vsub.f32 %v937, %v1099
      %v1154 = vsub.f32 %v938, %v1100
      %v1155 = vsub.f32 %v939, %v1101
      %v1156 = vsub.f32 %v940, %v1102
      %v1157 = vsub.f32 %v941, %v1103
      %v1158 = vsub.f32 %v942, %v1104
      %v1159 = vsub.f32 %v943, %v1105
      %v1160 = vsub.f32 %v944, %v1106
      %v1161 = vsub.f32 %v945, %v1107
      %v1162 = vsub.f32 %v946, %v1108
      %v1163 = vsub.f32 %v947, %v1109
      %v1164 = vsub.f32 %v948, %v1110
      %v1165 = vsub.f32 %v949, %v1111
      %v1166 = vsub.f32 %v950, %v1112
      %v1167 = vmul.f32 %v573, %v1113
      %v1168 = vmul.f32 %v574, %v1114
      %v1169 = vmul.f32 %v575, %v1115
      %v1170 = vmul.f32 %v576, %v1116
      %v1171 = vmul.f32 %v577, %v1117
      %v1172 = vmul.f32 %v578, %v1118
      %v1173 = vmul.f32 %v579, %v1119
      %v1174 = vmul.f32 %v580, %v1120
      %v1175 = vmul.f32 %v581, %v1121
      %v1176 = vmul.f32 %v582, %v1122
      %v1177 = vmul.f32 %v583, %v1123
      %v1178 = vmul.f32 %v584, %v1124
      %v1179 = vmul.f32 %v585, %v1125
      %v1180 = vmul.f32 %v586, %v1126
      %v1181 = vmul.f32 %v587, %v1127
      %v1182 = vmul.f32 %v588, %v1128
      %v1183 = vmul.f32 %v589, %v1129
      %v1184 = vmul.f32 %v590, %v1130
      %v1185 = vmul.f32 %v591, %v1131
      %v1186 = vmul.f32 %v592, %v1132
      %v1187 = vmul.f32 %v593, %v1133
      %v1188 = vmul.f32 %v594, %v1134
      %v1189 = vmul.f32 %v595, %v1135
      %v1190 = vmul.f32 %v596, %v1136
      %v1191 = vmul.f32 %v597, %v1137
      %v1192 = vmul.f32 %v598, %v1138
      %v1193 = vmul.f32 %v599, %v1139
      %v1194 = vmul.f32 %v600, %v1140
      %v1195 = vmul.f32 %v601, %v1141
      %v1196 = vmul.f32 %v602, %v1142
      %v1197 = vmul.f32 %v603, %v1143
      %v1198 = vmul.f32 %v604, %v1144
      %v1199 = vmul.f32 %v605, %v1145
      %v1200 = vmul.f32 %v606, %v1146
      %v1201 = vmul.f32 %v607, %v1147
      %v1202 = vmul.f32 %v608, %v1148
      %v1203 = vmul.f32 %v609, %v1149
      %v1204 = vmul.f32 %v610, %v1150
      %v1205 = vmul.f32 %v611, %v1151
      %v1206 = vmul.f32 %v612, %v1152
      %v1207 = vmul.f32 %v613, %v1153
      %v1208 = vmul.f32 %v614, %v1154
      %v1209 = vmul.f32 %v615, %v1155
      %v1210 = vmul.f32 %v616, %v1156
      %v1211 = vmul.f32 %v617, %v1157
      %v1212 = vmul.f32 %v618, %v1158
      %v1213 = vmul.f32 %v619, %v1159
      %v1214 = vmul.f32 %v620, %v1160
      %v1215 = vmul.f32 %v621, %v1161
      %v1216 = vmul.f32 %v622, %v1162
      %v1217 = vmul.f32 %v623, %v1163
      %v1218 = vmul.f32 %v624, %v1164
      %v1219 = vmul.f32 %v625, %v1165
      %v1220 = vmul.f32 %v626, %v1166
      %v1221 = vadd.f32 %v897, %v1059
      %v1222 = vadd.f32 %v898, %v1060
      %v1223 = vadd.f32 %v899, %v1061
      %v1224 = vadd.f32 %v900, %v1062
      %v1225 = vadd.f32 %v901, %v1063
      %v1226 = vadd.f32 %v902, %v1064
      %v1227 = vadd.f32 %v903, %v1065
      %v1228 = vadd.f32 %v904, %v1066
      %v1229 = vadd.f32 %v905, %v1067
      %v1230 = vadd.f32 %v906, %v1068
      %v1231 = vadd.f32 %v907, %v1069
      %v1232 = vadd.f32 %v908, %v1070
      %v1233 = vadd.f32 %v909, %v1071
      %v1234 = vadd.f32 %v910, %v1072
      %v1235 = vadd.f32 %v911, %v1073
      %v1236 = vadd.f32 %v912, %v1074
      %v1237 = vadd.f32 %v913, %v1075
      %v1238 = vadd.f32 %v914, %v1076
      %v1239 = vadd.f32 %v915, %v1077
      %v1240 = vadd.f32 %v916, %v1078
      %v1241 = vadd.f32 %v917, %v1079
      %v1242 = vadd.f32 %v918, %v1080
      %v1243 = vadd.f32 %v919, %v1081
      %v1244 = vadd.f32 %v920, %v1082
      %v1245 = vadd.f32 %v921, %v1083
      %v1246 = vadd.f32 %v922, %v1084
      %v1247 = vadd.f32 %v923, %v1085
      %v1248 = vadd.f32 %v924, %v1086
      %v1249 = vadd.f32 %v925, %v1087
      %v1250 = vadd.f32 %v926, %v1088
      %v1251 = vadd.f32 %v927, %v1089
      %v1252 = vadd.f32 %v928, %v1090
      %v1253 = vadd.f32 %v929, %v1091
      %v1254 = vadd.f32 %v930, %v1092
      %v1255 = vadd.f32 %v931, %v1093
      %v1256 = vadd.f32 %v932, %v1094
      %v1257 = vadd.f32 %v933, %v1095
      %v1258 = vadd.f32 %v934, %v1096
      %v1259 = vadd.f32 %v935, %v1097
      %v1260 = vadd.f32 %v936, %v1098
      %v1261 = vadd.f32 %v937, %v1099
      %v1262 = vadd.f32 %v938, %v1100
      %v1263 = vadd.f32 %v939, %v1101
      %v1264 = vadd.f32 %v940, %v1102
      %v1265 = vadd.f32 %v941, %v1103
      %v1266 = vadd.f32 %v942, %v1104
      %v1267 = vadd.f32 %v943, %v1105
      %v1268 = vadd.f32 %v944, %v1106
      %v1269 = vadd.f32 %v945, %v1107
      %v1270 = vadd.f32 %v946, %v1108
      %v1271 = vadd.f32 %v947, %v1109
      %v1272 = vadd.f32 %v948, %v1110
      %v1273 = vadd.f32 %v949, %v1111
      %v1274 = vadd.f32 %v950, %v1112
      %v1275 = vrcp.pop %v1221
      %v1276 = vmul.f32 %v1167, %v1275
      %v1277 = vrcp.pop %v1222
      %v1278 = vmul.f32 %v1168, %v1277
      %v1279 = vrcp.pop %v1223
      %v1280 = vmul.f32 %v1169, %v1279
      %v1281 = vrcp.pop %v1224
      %v1282 = vmul.f32 %v1170, %v1281
      %v1283 = vrcp.pop %v1225
      %v1284 = vmul.f32 %v1171, %v1283
      %v1285 = vrcp.pop %v1226
      %v1286 = vmul.f32 %v1172, %v1285
      %v1287 = vrcp.pop %v1227
      %v1288 = vmul.f32 %v1173, %v1287
      %v1289 = vrcp.pop %v1228
      %v1290 = vmul.f32 %v1174, %v1289
      %v1291 = vrcp.pop %v1229
      %v1292 = vmul.f32 %v1175, %v1291
      %v1293 = vrcp.pop %v1230
      %v1294 = vmul.f32 %v1176, %v1293
      %v1295 = vrcp.pop %v1231
      %v1296 = vmul.f32 %v1177, %v1295
      %v1297 = vrcp.pop %v1232
      %v1298 = vmul.f32 %v1178, %v1297
      %v1299 = vrcp.pop %v1233
      %v1300 = vmul.f32 %v1179, %v1299
      %v1301 = vrcp.pop %v1234
      %v1302 = vmul.f32 %v1180, %v1301
      %v1303 = vrcp.pop %v1235
      %v1304 = vmul.f32 %v1181, %v1303
      %v1305 = vrcp.pop %v1236
      %v1306 = vmul.f32 %v1182, %v1305
      %v1307 = vrcp.pop %v1237
      %v1308 = vmul.f32 %v1183, %v1307
      %v1309 = vrcp.pop %v1238
      %v1310 = vmul.f32 %v1184, %v1309
      %v1311 = vrcp.pop %v1239
      %v1312 = vmul.f32 %v1185, %v1311
      %v1313 = vrcp.pop %v1240
      %v1314 = vmul.f32 %v1186, %v1313
      %v1315 = vrcp.pop %v1241
      %v1316 = vmul.f32 %v1187, %v1315
      %v1317 = vrcp.pop %v1242
      %v1318 = vmul.f32 %v1188, %v1317
      %v1319 = vrcp.pop %v1243
      %v1320 = vmul.f32 %v1189, %v1319
      %v1321 = vrcp.pop %v1244
      %v1322 = vmul.f32 %v1190, %v1321
      %v1323 = vrcp.pop %v1245
      %v1324 = vmul.f32 %v1191, %v1323
      %v1325 = vrcp.pop %v1246
      %v1326 = vmul.f32 %v1192, %v1325
      %v1327 = vrcp.pop %v1247
      %v1328 = vmul.f32 %v1193, %v1327
      %v1329 = vrcp.pop %v1248
      %v1330 = vmul.f32 %v1194, %v1329
      %v1331 = vrcp.pop %v1249
      %v1332 = vmul.f32 %v1195, %v1331
      %v1333 = vrcp.pop %v1250
      %v1334 = vmul.f32 %v1196, %v1333
      %v1335 = vrcp.pop %v1251
      %v1336 = vmul.f32 %v1197, %v1335
      %v1337 = vrcp.pop %v1252
      %v1338 = vmul.f32 %v1198, %v1337
      %v1339 = vrcp.pop %v1253
      %v1340 = vmul.f32 %v1199, %v1339
      %v1341 = vrcp.pop %v1254
      %v1342 = vmul.f32 %v1200, %v1341
      %v1343 = vrcp.pop %v1255
      %v1344 = vmul.f32 %v1201, %v1343
      %v1345 = vrcp.pop %v1256
      %v1346 = vmul.f32 %v1202, %v1345
      %v1347 = vrcp.pop %v1257
      %v1348 = vmul.f32 %v1203, %v1347
      %v1349 = vrcp.pop %v1258
      %v1350 = vmul.f32 %v1204, %v1349
      %v1351 = vrcp.pop %v1259
      %v1352 = vmul.f32 %v1205, %v1351
      %v1353 = vrcp.pop %v1260
      %v1354 = vmul.f32 %v1206, %v1353
      %v1355 = vrcp.pop %v1261
      %v1356 = vmul.f32 %v1207, %v1355
      %v1357 = vrcp.pop %v1262
      %v1358 = vmul.f32 %v1208, %v1357
      %v1359 = vrcp.pop %v1263
      %v1360 = vmul.f32 %v1209, %v1359
      %v1361 = vrcp.pop %v1264
      %v1362 = vmul.f32 %v1210, %v1361
      %v1363 = vrcp.pop %v1265
      %v1364 = vmul.f32 %v1211, %v1363
      %v1365 = vrcp.pop %v1266
      %v1366 = vmul.f32 %v1212, %v1365
      %v1367 = vrcp.pop %v1267
      %v1368 = vmul.f32 %v1213, %v1367
      %v1369 = vrcp.pop %v1268
      %v1370 = vmul.f32 %v1214, %v1369
      %v1371 = vrcp.pop %v1269
      %v1372 = vmul.f32 %v1215, %v1371
      %v1373 = vrcp.pop %v1270
      %v1374 = vmul.f32 %v1216, %v1373
      %v1375 = vrcp.pop %v1271
      %v1376 = vmul.f32 %v1217, %v1375
      %v1377 = vrcp.pop %v1272
      %v1378 = vmul.f32 %v1218, %v1377
      %v1379 = vrcp.pop %v1273
      %v1380 = vmul.f32 %v1219, %v1379
      %v1381 = vrcp.pop %v1274
      %v1382 = vmul.f32 %v1220, %v1381
      %v1383 = vstv %s250
      %v1384 = vadd.s32 %v1383, 1
      %v1385 = vadd.s32 %v1383, 2
      %v1386 = vadd.s32 %v1383, 3
      %v1387 = vadd.s32 %v1383, 4
      %v1388 = vadd.s32 %v1383, 5
      %v1389 = vadd.s32 %v1383, 6
      %v1390 = vadd.s32 %v1383, 7
      %v1391 = vadd.s32 %v1383, 8
      %v1392 = vadd.s32 %v1383, 9
      %v1393 = vadd.s32 %v1383, 10
      %v1394 = vadd.s32 %v1383, 11
      %v1395 = vadd.s32 %v1383, 12
      %v1396 = vadd.s32 %v1383, 13
      %v1397 = vadd.s32 %v1383, 14
      %v1398 = vadd.s32 %v1383, 15
      %v1399 = vadd.s32 %v1383, 16
      %v1400 = vadd.s32 %v1383, 17
      %v1401 = vlaneseq
      %v1402 = vshrl.u32 %v1401, 7
      %v1403 = vadd.s32 %v1402, 8
      %v1404 = vadd.s32 %v1402, 16
      %vm1405 = vcmp.ge.s32.totalorder %v1383, 1
      %vm1406 = vcmp.ge.s32.totalorder %v1384, 1
      %vm1407 = vcmp.ge.s32.totalorder %v1385, 1
      %vm1408 = vcmp.ge.s32.totalorder %v1386, 1
      %vm1409 = vcmp.ge.s32.totalorder %v1387, 1
      %vm1410 = vcmp.ge.s32.totalorder %v1388, 1
      %vm1411 = vcmp.ge.s32.totalorder %v1389, 1
      %vm1412 = vcmp.ge.s32.totalorder %v1390, 1
      %vm1413 = vcmp.ge.s32.totalorder %v1391, 1
      %vm1414 = vcmp.ge.s32.totalorder %v1392, 1
      %vm1415 = vcmp.ge.s32.totalorder %v1393, 1
      %vm1416 = vcmp.ge.s32.totalorder %v1394, 1
      %vm1417 = vcmp.ge.s32.totalorder %v1395, 1
      %vm1418 = vcmp.ge.s32.totalorder %v1396, 1
      %vm1419 = vcmp.ge.s32.totalorder %v1397, 1
      %vm1420 = vcmp.ge.s32.totalorder %v1398, 1
      %vm1421 = vcmp.ge.s32.totalorder %v1399, 1
      %vm1422 = vcmp.ge.s32.totalorder %v1400, 1
      %vm1423 = vcmp.le.s32.totalorder %v1383, 16
      %vm1424 = vcmp.le.s32.totalorder %v1384, 16
      %vm1425 = vcmp.le.s32.totalorder %v1385, 16
      %vm1426 = vcmp.le.s32.totalorder %v1386, 16
      %vm1427 = vcmp.le.s32.totalorder %v1387, 16
      %vm1428 = vcmp.le.s32.totalorder %v1388, 16
      %vm1429 = vcmp.le.s32.totalorder %v1389, 16
      %vm1430 = vcmp.le.s32.totalorder %v1390, 16
      %vm1431 = vcmp.le.s32.totalorder %v1391, 16
      %vm1432 = vcmp.le.s32.totalorder %v1392, 16
      %vm1433 = vcmp.le.s32.totalorder %v1393, 16
      %vm1434 = vcmp.le.s32.totalorder %v1394, 16
      %vm1435 = vcmp.le.s32.totalorder %v1395, 16
      %vm1436 = vcmp.le.s32.totalorder %v1396, 16
      %vm1437 = vcmp.le.s32.totalorder %v1397, 16
      %vm1438 = vcmp.le.s32.totalorder %v1398, 16
      %vm1439 = vcmp.le.s32.totalorder %v1399, 16
      %vm1440 = vcmp.le.s32.totalorder %v1400, 16
      %vm1441 = vmand %vm1405, %vm1423
      %vm1442 = vmand %vm1406, %vm1424
      %vm1443 = vmand %vm1407, %vm1425
      %vm1444 = vmand %vm1408, %vm1426
      %vm1445 = vmand %vm1409, %vm1427
      %vm1446 = vmand %vm1410, %vm1428
      %vm1447 = vmand %vm1411, %vm1429
      %vm1448 = vmand %vm1412, %vm1430
      %vm1449 = vmand %vm1413, %vm1431
      %vm1450 = vmand %vm1414, %vm1432
      %vm1451 = vmand %vm1415, %vm1433
      %vm1452 = vmand %vm1416, %vm1434
      %vm1453 = vmand %vm1417, %vm1435
      %vm1454 = vmand %vm1418, %vm1436
      %vm1455 = vmand %vm1419, %vm1437
      %vm1456 = vmand %vm1420, %vm1438
      %vm1457 = vmand %vm1421, %vm1439
      %vm1458 = vmand %vm1422, %vm1440
      %vm1459 = vcmp.ge.s32.totalorder %v1402, 1
      %vm1460 = vcmp.ge.s32.totalorder %v1403, 1
      %vm1461 = vcmp.ge.s32.totalorder %v1404, 1
      %vm1462 = vmand %vm1441, %vm1459
      %vm1463 = vmand %vm1441, %vm1460
      %vm1464 = vmand %vm1441, %vm1461
      %vm1465 = vmand %vm1442, %vm1459
      %vm1466 = vmand %vm1442, %vm1460
      %vm1467 = vmand %vm1442, %vm1461
      %vm1468 = vmand %vm1443, %vm1459
      %vm1469 = vmand %vm1443, %vm1460
      %vm1470 = vmand %vm1443, %vm1461
      %vm1471 = vmand %vm1444, %vm1459
      %vm1472 = vmand %vm1444, %vm1460
      %vm1473 = vmand %vm1444, %vm1461
      %vm1474 = vmand %vm1445, %vm1459
      %vm1475 = vmand %vm1445, %vm1460
      %vm1476 = vmand %vm1445, %vm1461
      %vm1477 = vmand %vm1446, %vm1459
      %vm1478 = vmand %vm1446, %vm1460
      %vm1479 = vmand %vm1446, %vm1461
      %vm1480 = vmand %vm1447, %vm1459
      %vm1481 = vmand %vm1447, %vm1460
      %vm1482 = vmand %vm1447, %vm1461
      %vm1483 = vmand %vm1448, %vm1459
      %vm1484 = vmand %vm1448, %vm1460
      %vm1485 = vmand %vm1448, %vm1461
      %vm1486 = vmand %vm1449, %vm1459
      %vm1487 = vmand %vm1449, %vm1460
      %vm1488 = vmand %vm1449, %vm1461
      %vm1489 = vmand %vm1450, %vm1459
      %vm1490 = vmand %vm1450, %vm1460
      %vm1491 = vmand %vm1450, %vm1461
      %vm1492 = vmand %vm1451, %vm1459
      %vm1493 = vmand %vm1451, %vm1460
      %vm1494 = vmand %vm1451, %vm1461
      %vm1495 = vmand %vm1452, %vm1459
      %vm1496 = vmand %vm1452, %vm1460
      %vm1497 = vmand %vm1452, %vm1461
      %vm1498 = vmand %vm1453, %vm1459
      %vm1499 = vmand %vm1453, %vm1460
      %vm1500 = vmand %vm1453, %vm1461
      %vm1501 = vmand %vm1454, %vm1459
      %vm1502 = vmand %vm1454, %vm1460
      %vm1503 = vmand %vm1454, %vm1461
      %vm1504 = vmand %vm1455, %vm1459
      %vm1505 = vmand %vm1455, %vm1460
      %vm1506 = vmand %vm1455, %vm1461
      %vm1507 = vmand %vm1456, %vm1459
      %vm1508 = vmand %vm1456, %vm1460
      %vm1509 = vmand %vm1456, %vm1461
      %vm1510 = vmand %vm1457, %vm1459
      %vm1511 = vmand %vm1457, %vm1460
      %vm1512 = vmand %vm1457, %vm1461
      %vm1513 = vmand %vm1458, %vm1459
      %vm1514 = vmand %vm1458, %vm1460
      %vm1515 = vmand %vm1458, %vm1461
      %vm1516 = vcmp.le.s32.totalorder %v1402, 16
      %vm1517 = vcmp.le.s32.totalorder %v1403, 16
      %vm1518 = vcmp.le.s32.totalorder %v1404, 16
      %vm1519 = vmand %vm1462, %vm1516
      %vm1520 = vmand %vm1463, %vm1517
      %vm1521 = vmand %vm1464, %vm1518
      %vm1522 = vmand %vm1465, %vm1516
      %vm1523 = vmand %vm1466, %vm1517
      %vm1524 = vmand %vm1467, %vm1518
      %vm1525 = vmand %vm1468, %vm1516
      %vm1526 = vmand %vm1469, %vm1517
      %vm1527 = vmand %vm1470, %vm1518
      %vm1528 = vmand %vm1471, %vm1516
      %vm1529 = vmand %vm1472, %vm1517
      %vm1530 = vmand %vm1473, %vm1518
      %vm1531 = vmand %vm1474, %vm1516
      %vm1532 = vmand %vm1475, %vm1517
      %vm1533 = vmand %vm1476, %vm1518
      %vm1534 = vmand %vm1477, %vm1516
      %vm1535 = vmand %vm1478, %vm1517
      %vm1536 = vmand %vm1479, %vm1518
      %vm1537 = vmand %vm1480, %vm1516
      %vm1538 = vmand %vm1481, %vm1517
      %vm1539 = vmand %vm1482, %vm1518
      %vm1540 = vmand %vm1483, %vm1516
      %vm1541 = vmand %vm1484, %vm1517
      %vm1542 = vmand %vm1485, %vm1518
      %vm1543 = vmand %vm1486, %vm1516
      %vm1544 = vmand %vm1487, %vm1517
      %vm1545 = vmand %vm1488, %vm1518
      %vm1546 = vmand %vm1489, %vm1516
      %vm1547 = vmand %vm1490, %vm1517
      %vm1548 = vmand %vm1491, %vm1518
      %vm1549 = vmand %vm1492, %vm1516
      %vm1550 = vmand %vm1493, %vm1517
      %vm1551 = vmand %vm1494, %vm1518
      %vm1552 = vmand %vm1495, %vm1516
      %vm1553 = vmand %vm1496, %vm1517
      %vm1554 = vmand %vm1497, %vm1518
      %vm1555 = vmand %vm1498, %vm1516
      %vm1556 = vmand %vm1499, %vm1517
      %vm1557 = vmand %vm1500, %vm1518
      %vm1558 = vmand %vm1501, %vm1516
      %vm1559 = vmand %vm1502, %vm1517
      %vm1560 = vmand %vm1503, %vm1518
      %vm1561 = vmand %vm1504, %vm1516
      %vm1562 = vmand %vm1505, %vm1517
      %vm1563 = vmand %vm1506, %vm1518
      %vm1564 = vmand %vm1507, %vm1516
      %vm1565 = vmand %vm1508, %vm1517
      %vm1566 = vmand %vm1509, %vm1518
      %vm1567 = vmand %vm1510, %vm1516
      %vm1568 = vmand %vm1511, %vm1517
      %vm1569 = vmand %vm1512, %vm1518
      %vm1570 = vmand %vm1513, %vm1516
      %vm1571 = vmand %vm1514, %vm1517
      %vm1572 = vmand %vm1515, %vm1518
      %v1573 = vsel %vm1519, %v1276, 0.0
      %v1574 = vsel %vm1520, %v1278, 0.0
      %v1575 = vsel %vm1521, %v1280, 0.0
      %v1576 = vsel %vm1522, %v1282, 0.0
      %v1577 = vsel %vm1523, %v1284, 0.0
      %v1578 = vsel %vm1524, %v1286, 0.0
      %v1579 = vsel %vm1525, %v1288, 0.0
      %v1580 = vsel %vm1526, %v1290, 0.0
      %v1581 = vsel %vm1527, %v1292, 0.0
      %v1582 = vsel %vm1528, %v1294, 0.0
      %v1583 = vsel %vm1529, %v1296, 0.0
      %v1584 = vsel %vm1530, %v1298, 0.0
      %v1585 = vsel %vm1531, %v1300, 0.0
      %v1586 = vsel %vm1532, %v1302, 0.0
      %v1587 = vsel %vm1533, %v1304, 0.0
      %v1588 = vsel %vm1534, %v1306, 0.0
      %v1589 = vsel %vm1535, %v1308, 0.0
      %v1590 = vsel %vm1536, %v1310, 0.0
      %v1591 = vsel %vm1537, %v1312, 0.0
      %v1592 = vsel %vm1538, %v1314, 0.0
      %v1593 = vsel %vm1539, %v1316, 0.0
      %v1594 = vsel %vm1540, %v1318, 0.0
      %v1595 = vsel %vm1541, %v1320, 0.0
      %v1596 = vsel %vm1542, %v1322, 0.0
      %v1597 = vsel %vm1543, %v1324, 0.0
      %v1598 = vsel %vm1544, %v1326, 0.0
      %v1599 = vsel %vm1545, %v1328, 0.0
      %v1600 = vsel %vm1546, %v1330, 0.0
      %v1601 = vsel %vm1547, %v1332, 0.0
      %v1602 = vsel %vm1548, %v1334, 0.0
      %v1603 = vsel %vm1549, %v1336, 0.0
      %v1604 = vsel %vm1550, %v1338, 0.0
      %v1605 = vsel %vm1551, %v1340, 0.0
      %v1606 = vsel %vm1552, %v1342, 0.0
      %v1607 = vsel %vm1553, %v1344, 0.0
      %v1608 = vsel %vm1554, %v1346, 0.0
      %v1609 = vsel %vm1555, %v1348, 0.0
      %v1610 = vsel %vm1556, %v1350, 0.0
      %v1611 = vsel %vm1557, %v1352, 0.0
      %v1612 = vsel %vm1558, %v1354, 0.0
      %v1613 = vsel %vm1559, %v1356, 0.0
      %v1614 = vsel %vm1560, %v1358, 0.0
      %v1615 = vsel %vm1561, %v1360, 0.0
      %v1616 = vsel %vm1562, %v1362, 0.0
      %v1617 = vsel %vm1563, %v1364, 0.0
      %v1618 = vsel %vm1564, %v1366, 0.0
      %v1619 = vsel %vm1565, %v1368, 0.0
      %v1620 = vsel %vm1566, %v1370, 0.0
      %v1621 = vsel %vm1567, %v1372, 0.0
      %v1622 = vsel %vm1568, %v1374, 0.0
      %v1623 = vsel %vm1569, %v1376, 0.0
      %v1624 = vsel %vm1570, %v1378, 0.0
      %v1625 = vsel %vm1571, %v1380, 0.0
      %v1626 = vsel %vm1572, %v1382, 0.0
      %vm1681 = vcmask 1046528
      %v1682 = vrot.slane %v1573, 1
      %v1683 = vrot.slane %v1574, 1
      %v1684 = vsel %vm1681, %v1682, %v1683
      %v1685 = vrot.slane %v1575, 1
      %v1686 = vsel %vm1681, %v1683, %v1685
      %v1687 = vrot.slane %v1576, 1
      %v1688 = vrot.slane %v1577, 1
      %v1689 = vsel %vm1681, %v1687, %v1688
      %v1690 = vrot.slane %v1578, 1
      %v1691 = vsel %vm1681, %v1688, %v1690
      %v1692 = vrot.slane %v1579, 1
      %v1693 = vrot.slane %v1580, 1
      %v1694 = vsel %vm1681, %v1692, %v1693
      %v1695 = vrot.slane %v1581, 1
      %v1696 = vsel %vm1681, %v1693, %v1695
      %v1697 = vrot.slane %v1582, 1
      %v1698 = vrot.slane %v1583, 1
      %v1699 = vsel %vm1681, %v1697, %v1698
      %v1700 = vrot.slane %v1584, 1
      %v1701 = vsel %vm1681, %v1698, %v1700
      %v1702 = vrot.slane %v1585, 1
      %v1703 = vrot.slane %v1586, 1
      %v1704 = vsel %vm1681, %v1702, %v1703
      %v1705 = vrot.slane %v1587, 1
      %v1706 = vsel %vm1681, %v1703, %v1705
      %v1707 = vrot.slane %v1588, 1
      %v1708 = vrot.slane %v1589, 1
      %v1709 = vsel %vm1681, %v1707, %v1708
      %v1710 = vrot.slane %v1590, 1
      %v1711 = vsel %vm1681, %v1708, %v1710
      %v1712 = vrot.slane %v1591, 1
      %v1713 = vrot.slane %v1592, 1
      %v1714 = vsel %vm1681, %v1712, %v1713
      %v1715 = vrot.slane %v1593, 1
      %v1716 = vsel %vm1681, %v1713, %v1715
      %v1717 = vrot.slane %v1594, 1
      %v1718 = vrot.slane %v1595, 1
      %v1719 = vsel %vm1681, %v1717, %v1718
      %v1720 = vrot.slane %v1596, 1
      %v1721 = vsel %vm1681, %v1718, %v1720
      %v1722 = vrot.slane %v1597, 1
      %v1723 = vrot.slane %v1598, 1
      %v1724 = vsel %vm1681, %v1722, %v1723
      %v1725 = vrot.slane %v1599, 1
      %v1726 = vsel %vm1681, %v1723, %v1725
      %v1727 = vrot.slane %v1600, 1
      %v1728 = vrot.slane %v1601, 1
      %v1729 = vsel %vm1681, %v1727, %v1728
      %v1730 = vrot.slane %v1602, 1
      %v1731 = vsel %vm1681, %v1728, %v1730
      %v1732 = vrot.slane %v1603, 1
      %v1733 = vrot.slane %v1604, 1
      %v1734 = vsel %vm1681, %v1732, %v1733
      %v1735 = vrot.slane %v1605, 1
      %v1736 = vsel %vm1681, %v1733, %v1735
      %v1737 = vrot.slane %v1606, 1
      %v1738 = vrot.slane %v1607, 1
      %v1739 = vsel %vm1681, %v1737, %v1738
      %v1740 = vrot.slane %v1608, 1
      %v1741 = vsel %vm1681, %v1738, %v1740
      %v1742 = vrot.slane %v1609, 1
      %v1743 = vrot.slane %v1610, 1
      %v1744 = vsel %vm1681, %v1742, %v1743
      %v1745 = vrot.slane %v1611, 1
      %v1746 = vsel %vm1681, %v1743, %v1745
      %v1747 = vrot.slane %v1612, 1
      %v1748 = vrot.slane %v1613, 1
      %v1749 = vsel %vm1681, %v1747, %v1748
      %v1750 = vrot.slane %v1614, 1
      %v1751 = vsel %vm1681, %v1748, %v1750
      %v1752 = vrot.slane %v1615, 1
      %v1753 = vrot.slane %v1616, 1
      %v1754 = vsel %vm1681, %v1752, %v1753
      %v1755 = vrot.slane %v1617, 1
      %v1756 = vsel %vm1681, %v1753, %v1755
      %v1757 = vrot.slane %v1618, 1
      %v1758 = vrot.slane %v1619, 1
      %v1759 = vsel %vm1681, %v1757, %v1758
      %v1760 = vrot.slane %v1620, 1
      %v1761 = vsel %vm1681, %v1758, %v1760
      %v1762 = vrot.slane %v1621, 1
      %v1763 = vrot.slane %v1622, 1
      %v1764 = vsel %vm1681, %v1762, %v1763
      %v1765 = vrot.slane %v1623, 1
      %v1766 = vsel %vm1681, %v1763, %v1765
      %v1767 = vrot.slane %v1624, 1
      %v1768 = vrot.slane %v1625, 1
      %v1769 = vsel %vm1681, %v1767, %v1768
      %v1770 = vrot.slane %v1626, 1
      %v1771 = vsel %vm1681, %v1768, %v1770
      %vm1808 = vcmask 1045504
      %v1809 = vrot.slane %v1573, 2
      %v1810 = vrot.slane %v1574, 2
      %v1811 = vsel %vm1808, %v1809, %v1810
      %v1812 = vrot.slane %v1575, 2
      %v1813 = vsel %vm1808, %v1810, %v1812
      %v1814 = vrot.slane %v1576, 2
      %v1815 = vrot.slane %v1577, 2
      %v1816 = vsel %vm1808, %v1814, %v1815
      %v1817 = vrot.slane %v1578, 2
      %v1818 = vsel %vm1808, %v1815, %v1817
      %v1819 = vrot.slane %v1579, 2
      %v1820 = vrot.slane %v1580, 2
      %v1821 = vsel %vm1808, %v1819, %v1820
      %v1822 = vrot.slane %v1581, 2
      %v1823 = vsel %vm1808, %v1820, %v1822
      %v1824 = vrot.slane %v1582, 2
      %v1825 = vrot.slane %v1583, 2
      %v1826 = vsel %vm1808, %v1824, %v1825
      %v1827 = vrot.slane %v1584, 2
      %v1828 = vsel %vm1808, %v1825, %v1827
      %v1829 = vrot.slane %v1585, 2
      %v1830 = vrot.slane %v1586, 2
      %v1831 = vsel %vm1808, %v1829, %v1830
      %v1832 = vrot.slane %v1587, 2
      %v1833 = vsel %vm1808, %v1830, %v1832
      %v1834 = vrot.slane %v1588, 2
      %v1835 = vrot.slane %v1589, 2
      %v1836 = vsel %vm1808, %v1834, %v1835
      %v1837 = vrot.slane %v1590, 2
      %v1838 = vsel %vm1808, %v1835, %v1837
      %v1839 = vrot.slane %v1591, 2
      %v1840 = vrot.slane %v1592, 2
      %v1841 = vsel %vm1808, %v1839, %v1840
      %v1842 = vrot.slane %v1593, 2
      %v1843 = vsel %vm1808, %v1840, %v1842
      %v1844 = vrot.slane %v1594, 2
      %v1845 = vrot.slane %v1595, 2
      %v1846 = vsel %vm1808, %v1844, %v1845
      %v1847 = vrot.slane %v1596, 2
      %v1848 = vsel %vm1808, %v1845, %v1847
      %v1849 = vrot.slane %v1597, 2
      %v1850 = vrot.slane %v1598, 2
      %v1851 = vsel %vm1808, %v1849, %v1850
      %v1852 = vrot.slane %v1599, 2
      %v1853 = vsel %vm1808, %v1850, %v1852
      %v1854 = vrot.slane %v1600, 2
      %v1855 = vrot.slane %v1601, 2
      %v1856 = vsel %vm1808, %v1854, %v1855
      %v1857 = vrot.slane %v1602, 2
      %v1858 = vsel %vm1808, %v1855, %v1857
      %v1859 = vrot.slane %v1603, 2
      %v1860 = vrot.slane %v1604, 2
      %v1861 = vsel %vm1808, %v1859, %v1860
      %v1862 = vrot.slane %v1605, 2
      %v1863 = vsel %vm1808, %v1860, %v1862
      %v1864 = vrot.slane %v1606, 2
      %v1865 = vrot.slane %v1607, 2
      %v1866 = vsel %vm1808, %v1864, %v1865
      %v1867 = vrot.slane %v1608, 2
      %v1868 = vsel %vm1808, %v1865, %v1867
      %v1869 = vrot.slane %v1609, 2
      %v1870 = vrot.slane %v1610, 2
      %v1871 = vsel %vm1808, %v1869, %v1870
      %v1872 = vrot.slane %v1611, 2
      %v1873 = vsel %vm1808, %v1870, %v1872
      %v1874 = vrot.slane %v1612, 2
      %v1875 = vrot.slane %v1613, 2
      %v1876 = vsel %vm1808, %v1874, %v1875
      %v1877 = vrot.slane %v1614, 2
      %v1878 = vsel %vm1808, %v1875, %v1877
      %v1879 = vrot.slane %v1615, 2
      %v1880 = vrot.slane %v1616, 2
      %v1881 = vsel %vm1808, %v1879, %v1880
      %v1882 = vrot.slane %v1617, 2
      %v1883 = vsel %vm1808, %v1880, %v1882
      %v1884 = vrot.slane %v1618, 2
      %v1885 = vrot.slane %v1619, 2
      %v1886 = vsel %vm1808, %v1884, %v1885
      %v1887 = vrot.slane %v1620, 2
      %v1888 = vsel %vm1808, %v1885, %v1887
      %v1889 = vrot.slane %v1621, 2
      %v1890 = vrot.slane %v1622, 2
      %v1891 = vsel %vm1808, %v1889, %v1890
      %v1892 = vrot.slane %v1623, 2
      %v1893 = vsel %vm1808, %v1890, %v1892
      %v1894 = vrot.slane %v1624, 2
      %v1895 = vrot.slane %v1625, 2
      %v1896 = vsel %vm1808, %v1894, %v1895
      %v1897 = vrot.slane %v1626, 2
      %v1898 = vsel %vm1808, %v1895, %v1897
      %v1935 = vld [vmem:[%s1] sm:$0xff]
      %v1936 = vld [vmem:[%s1 + $0x8] sm:$0xff]
      %v1937 = vld [vmem:[%s1 + $0x10] sm:$0xff]
      %v1938 = vld [vmem:[%s1 + $0x18] sm:$0xff]
      %v1939 = vld [vmem:[%s1 + $0x20] sm:$0xff]
      %v1940 = vld [vmem:[%s1 + $0x28] sm:$0xff]
      %v1941 = vld [vmem:[%s1 + $0x30] sm:$0xff]
      %v1942 = vld [vmem:[%s1 + $0x38] sm:$0xff]
      %v1943 = vld [vmem:[%s1 + $0x40] sm:$0xff]
      %v1944 = vld [vmem:[%s1 + $0x48] sm:$0xff]
      %v1945 = vld [vmem:[%s1 + $0x50] sm:$0xff]
      %v1946 = vld [vmem:[%s1 + $0x58] sm:$0xff]
      %v1947 = vld [vmem:[%s1 + $0x60] sm:$0xff]
      %v1948 = vld [vmem:[%s1 + $0x68] sm:$0xff]
      %v1949 = vld [vmem:[%s1 + $0x70] sm:$0xff]
      %v1950 = vld [vmem:[%s1 + $0x78] sm:$0xff]
      %v1951 = vld [vmem:[%s1 + $0x80] sm:$0xff]
      %v1952 = vld [vmem:[%s1 + $0x88] sm:$0xff]
      %v1953 = vld [vmem:[%s1 + $0x90] sm:$0xff]
      %v1954 = vld [vmem:[%s1 + $0x98] sm:$0xff]
      %v1955 = vld [vmem:[%s1 + $0xa0] sm:$0xff]
      %v1956 = vld [vmem:[%s1 + $0xa8] sm:$0xff]
      %v1957 = vld [vmem:[%s1 + $0xb0] sm:$0xff]
      %v1958 = vld [vmem:[%s1 + $0xb8] sm:$0xff]
      %v1959 = vld [vmem:[%s1 + $0xc0] sm:$0xff]
      %v1960 = vld [vmem:[%s1 + $0xc8] sm:$0xff]
      %v1961 = vld [vmem:[%s1 + $0xd0] sm:$0xff]
      %v1962 = vld [vmem:[%s1 + $0xd8] sm:$0xff]
      %v1963 = vld [vmem:[%s1 + $0xe0] sm:$0xff]
      %v1964 = vld [vmem:[%s1 + $0xe8] sm:$0xff]
      %v1965 = vld [vmem:[%s1 + $0xf0] sm:$0xff]
      %v1966 = vld [vmem:[%s1 + $0xf8] sm:$0xff]
      %v1967 = vld [vmem:[%s1 + $0x100] sm:$0xff]
      %v1968 = vld [vmem:[%s1 + $0x108] sm:$0xff]
      %v1969 = vld [vmem:[%s1 + $0x110] sm:$0xff]
      %v1970 = vld [vmem:[%s1 + $0x118] sm:$0xff]
      %v1971 = vld [vmem:[%s1 + $0x120] sm:$0xff]
      %v1972 = vld [vmem:[%s1 + $0x128] sm:$0xff]
      %v1973 = vld [vmem:[%s1 + $0x130] sm:$0xff]
      %v1974 = vld [vmem:[%s1 + $0x138] sm:$0xff]
      %v1975 = vld [vmem:[%s1 + $0x140] sm:$0xff]
      %v1976 = vld [vmem:[%s1 + $0x148] sm:$0xff]
      %v1977 = vld [vmem:[%s1 + $0x150] sm:$0xff]
      %v1978 = vld [vmem:[%s1 + $0x158] sm:$0xff]
      %v1979 = vld [vmem:[%s1 + $0x160] sm:$0xff]
      %v1980 = vld [vmem:[%s1 + $0x168] sm:$0xff]
      %v1981 = vld [vmem:[%s1 + $0x170] sm:$0xff]
      %v1982 = vld [vmem:[%s1 + $0x178] sm:$0xff]
      %1983 = vmatprep.subr.mxu0 0.0
      %1984 = vmatpush1.msra.mxu0 %v1935
      %1985 = vmatprep.subr.mxu0 0.0
      %1986 = vmatpush1.msra.mxu0 %v1936
      %1987 = vmatprep.subr.mxu0 0.0
      %1988 = vmatpush1.msra.mxu0 %v1937
      %1989 = vmatprep.subr.mxu0 0.0
      %1990 = vmatpush1.msra.mxu0 %v1938
      %1991 = vmatprep.subr.mxu0 0.0
      %1992 = vmatpush1.msra.mxu0 %v1939
      %1993 = vmatprep.subr.mxu0 0.0
      %1994 = vmatpush1.msra.mxu0 %v1940
      %1995 = vmatprep.subr.mxu0 0.0
      %1996 = vmatpush1.msra.mxu0 %v1941
      %1997 = vmatprep.subr.mxu0 0.0
      %1998 = vmatpush1.msra.mxu0 %v1942
      %1999 = vmatprep.subr.mxu0 0.0
      %2000 = vmatpush1.msra.mxu0 %v1943
      %2001 = vmatprep.subr.mxu0 0.0
      %2002 = vmatpush1.msra.mxu0 %v1944
      %2003 = vmatprep.subr.mxu0 0.0
      %2004 = vmatpush1.msra.mxu0 %v1945
      %2005 = vmatprep.subr.mxu0 0.0
      %2006 = vmatpush1.msra.mxu0 %v1946
      %2007 = vmatprep.subr.mxu0 0.0
      %2008 = vmatpush1.msra.mxu0 %v1947
      %2009 = vmatprep.subr.mxu0 0.0
      %2010 = vmatpush1.msra.mxu0 %v1948
      %2011 = vmatprep.subr.mxu0 0.0
      %2012 = vmatpush1.msra.mxu0 %v1949
      %2013 = vmatprep.subr.mxu0 0.0
      %2014 = vmatpush1.msra.mxu0 %v1950
      %2015 = vmatprep.subr.mxu0 0.0
      %2016 = vmatpush1.msra.mxu0 %v1951
      %2017 = vmatprep.subr.mxu0 0.0
      %2018 = vmatpush1.msra.mxu0 %v1952
      %2019 = vmatprep.subr.mxu0 0.0
      %2020 = vmatpush1.msra.mxu0 %v1953
      %2021 = vmatprep.subr.mxu0 0.0
      %2022 = vmatpush1.msra.mxu0 %v1954
      %2023 = vmatprep.subr.mxu0 0.0
      %2024 = vmatpush1.msra.mxu0 %v1955
      %2025 = vmatprep.subr.mxu0 0.0
      %2026 = vmatpush1.msra.mxu0 %v1956
      %2027 = vmatprep.subr.mxu0 0.0
      %2028 = vmatpush1.msra.mxu0 %v1957
      %2029 = vmatprep.subr.mxu0 0.0
      %2030 = vmatpush1.msra.mxu0 %v1958
      %2031 = vmatprep.subr.mxu0 0.0
      %2032 = vmatpush1.msra.mxu0 %v1959
      %2033 = vmatprep.subr.mxu0 0.0
      %2034 = vmatpush1.msra.mxu0 %v1960
      %2035 = vmatprep.subr.mxu0 0.0
      %2036 = vmatpush1.msra.mxu0 %v1961
      %2037 = vmatprep.subr.mxu0 0.0
      %2038 = vmatpush1.msra.mxu0 %v1962
      %2039 = vmatprep.subr.mxu0 0.0
      %2040 = vmatpush1.msra.mxu0 %v1963
      %2041 = vmatprep.subr.mxu0 0.0
      %2042 = vmatpush1.msra.mxu0 %v1964
      %2043 = vmatprep.subr.mxu0 0.0
      %2044 = vmatpush1.msra.mxu0 %v1965
      %2045 = vmatprep.subr.mxu0 0.0
      %2046 = vmatpush1.msra.mxu0 %v1966
      %2047 = vmatprep.mubr.f32.mxu0 %v1684
      %2048 = vmatmul.mubr.f32.gmra.mrb[0].mxu0 %v1573
      %v2049 = vpop.f32.mrb[0].mxu0
      %v2050 = vadd.f32 0.0, %v2049
      %v2051 = vpop.f32.mrb[0].mxu0
      %2052 = vmatprep.mubr.f32.mxu0 %v1686
      %2053 = vmatmul.mubr.f32.gmra.mrb[0].mxu0 %v1574
      %v2054 = vpop.f32.mrb[0].mxu0
      %v2055 = vadd.f32 0.0, %v2054
      %v2056 = vpop.f32.mrb[0].mxu0
      %2057 = vmatprep.mubr.f32.mxu0 %v1689
      %2058 = vmatmul.mubr.f32.gmra.mrb[0].mxu0 %v1576
      %v2059 = vpop.f32.mrb[0].mxu0
      %v2060 = vadd.f32 0.0, %v2059
      %v2061 = vpop.f32.mrb[0].mxu0
      %2062 = vmatprep.mubr.f32.mxu0 %v1691
      %2063 = vmatmul.mubr.f32.gmra.mrb[0].mxu0 %v1577
      %v2064 = vpop.f32.mrb[0].mxu0
      %v2065 = vadd.f32 0.0, %v2064
      %v2066 = vpop.f32.mrb[0].mxu0
      %2067 = vmatprep.mubr.f32.mxu0 %v1694
      %2068 = vmatmul.mubr.f32.gmra.mrb[0].mxu0 %v1579
      %v2069 = vpop.f32.mrb[0].mxu0
      %v2070 = vadd.f32 0.0, %v2069
      %v2071 = vpop.f32.mrb[0].mxu0
      %2072 = vmatprep.mubr.f32.mxu0 %v1696
      %2073 = vmatmul.mubr.f32.gmra.mrb[0].mxu0 %v1580
      %v2074 = vpop.f32.mrb[0].mxu0
      %v2075 = vadd.f32 0.0, %v2074
      %v2076 = vpop.f32.mrb[0].mxu0
      %2077 = vmatprep.mubr.f32.mxu0 %v1699
      %2078 = vmatmul.mubr.f32.gmra.mrb[0].mxu0 %v1582
      %v2079 = vpop.f32.mrb[0].mxu0
      %v2080 = vadd.f32 0.0, %v2079
      %v2081 = vpop.f32.mrb[0].mxu0
      %2082 = vmatprep.mubr.f32.mxu0 %v1701
      %2083 = vmatmul.mubr.f32.gmra.mrb[0].mxu0 %v1583
      %v2084 = vpop.f32.mrb[0].mxu0
      %v2085 = vadd.f32 0.0, %v2084
      %v2086 = vpop.f32.mrb[0].mxu0
      %2087 = vmatprep.mubr.f32.mxu0 %v1704
      %2088 = vmatmul.mubr.f32.gmra.mrb[0].mxu0 %v1585
      %v2089 = vpop.f32.mrb[0].mxu0
      %v2090 = vadd.f32 0.0, %v2089
      %v2091 = vpop.f32.mrb[0].mxu0
      %2092 = vmatprep.mubr.f32.mxu0 %v1706
      %2093 = vmatmul.mubr.f32.gmra.mrb[0].mxu0 %v1586
      %v2094 = vpop.f32.mrb[0].mxu0
      %v2095 = vadd.f32 0.0, %v2094
      %v2096 = vpop.f32.mrb[0].mxu0
      %2097 = vmatprep.mubr.f32.mxu0 %v1709
      %2098 = vmatmul.mubr.f32.gmra.mrb[0].mxu0 %v1588
      %v2099 = vpop.f32.mrb[0].mxu0
      %v2100 = vadd.f32 0.0, %v2099
      %v2101 = vpop.f32.mrb[0].mxu0
      %2102 = vmatprep.mubr.f32.mxu0 %v1711
      %2103 = vmatmul.mubr.f32.gmra.mrb[0].mxu0 %v1589
      %v2104 = vpop.f32.mrb[0].mxu0
      %v2105 = vadd.f32 0.0, %v2104
      %v2106 = vpop.f32.mrb[0].mxu0
      %2107 = vmatprep.mubr.f32.mxu0 %v1714
      %2108 = vmatmul.mubr.f32.gmra.mrb[0].mxu0 %v1591
      %v2109 = vpop.f32.mrb[0].mxu0
      %v2110 = vadd.f32 0.0, %v2109
      %v2111 = vpop.f32.mrb[0].mxu0
      %2112 = vmatprep.mubr.f32.mxu0 %v1716
      %2113 = vmatmul.mubr.f32.gmra.mrb[0].mxu0 %v1592
      %v2114 = vpop.f32.mrb[0].mxu0
      %v2115 = vadd.f32 0.0, %v2114
      %v2116 = vpop.f32.mrb[0].mxu0
      %2117 = vmatprep.mubr.f32.mxu0 %v1719
      %2118 = vmatmul.mubr.f32.gmra.mrb[0].mxu0 %v1594
      %v2119 = vpop.f32.mrb[0].mxu0
      %v2120 = vadd.f32 0.0, %v2119
      %v2121 = vpop.f32.mrb[0].mxu0
      %2122 = vmatprep.mubr.f32.mxu0 %v1721
      %2123 = vmatmul.mubr.f32.gmra.mrb[0].mxu0 %v1595
      %v2124 = vpop.f32.mrb[0].mxu0
      %v2125 = vadd.f32 0.0, %v2124
      %v2126 = vpop.f32.mrb[0].mxu0
      %2127 = vmatprep.mubr.f32.mxu0 %v1724
      %2128 = vmatmul.mubr.f32.gmra.mrb[0].mxu0 %v1597
      %v2129 = vpop.f32.mrb[0].mxu0
      %v2130 = vadd.f32 0.0, %v2129
      %v2131 = vpop.f32.mrb[0].mxu0
      %2132 = vmatprep.mubr.f32.mxu0 %v1726
      %2133 = vmatmul.mubr.f32.gmra.mrb[0].mxu0 %v1598
      %v2134 = vpop.f32.mrb[0].mxu0
      %v2135 = vadd.f32 0.0, %v2134
      %v2136 = vpop.f32.mrb[0].mxu0
      %2137 = vmatprep.mubr.f32.mxu0 %v1729
      %2138 = vmatmul.mubr.f32.gmra.mrb[0].mxu0 %v1600
      %v2139 = vpop.f32.mrb[0].mxu0
      %v2140 = vadd.f32 0.0, %v2139
      %v2141 = vpop.f32.mrb[0].mxu0
      %2142 = vmatprep.mubr.f32.mxu0 %v1731
      %2143 = vmatmul.mubr.f32.gmra.mrb[0].mxu0 %v1601
      %v2144 = vpop.f32.mrb[0].mxu0
      %v2145 = vadd.f32 0.0, %v2144
      %v2146 = vpop.f32.mrb[0].mxu0
      %2147 = vmatprep.mubr.f32.mxu0 %v1734
      %2148 = vmatmul.mubr.f32.gmra.mrb[0].mxu0 %v1603
      %v2149 = vpop.f32.mrb[0].mxu0
      %v2150 = vadd.f32 0.0, %v2149
      %v2151 = vpop.f32.mrb[0].mxu0
      %2152 = vmatprep.mubr.f32.mxu0 %v1736
      %2153 = vmatmul.mubr.f32.gmra.mrb[0].mxu0 %v1604
      %v2154 = vpop.f32.mrb[0].mxu0
      %v2155 = vadd.f32 0.0, %v2154
      %v2156 = vpop.f32.mrb[0].mxu0
      %2157 = vmatprep.mubr.f32.mxu0 %v1739
      %2158 = vmatmul.mubr.f32.gmra.mrb[0].mxu0 %v1606
      %v2159 = vpop.f32.mrb[0].mxu0
      %v2160 = vadd.f32 0.0, %v2159
      %v2161 = vpop.f32.mrb[0].mxu0
      %2162 = vmatprep.mubr.f32.mxu0 %v1741
      %2163 = vmatmul.mubr.f32.gmra.mrb[0].mxu0 %v1607
      %v2164 = vpop.f32.mrb[0].mxu0
      %v2165 = vadd.f32 0.0, %v2164
      %v2166 = vpop.f32.mrb[0].mxu0
      %2167 = vmatprep.mubr.f32.mxu0 %v1744
      %2168 = vmatmul.mubr.f32.gmra.mrb[0].mxu0 %v1609
      %v2169 = vpop.f32.mrb[0].mxu0
      %v2170 = vadd.f32 0.0, %v2169
      %v2171 = vpop.f32.mrb[0].mxu0
      %2172 = vmatprep.mubr.f32.mxu0 %v1746
      %2173 = vmatmul.mubr.f32.gmra.mrb[0].mxu0 %v1610
      %v2174 = vpop.f32.mrb[0].mxu0
      %v2175 = vadd.f32 0.0, %v2174
      %v2176 = vpop.f32.mrb[0].mxu0
      %2177 = vmatprep.mubr.f32.mxu0 %v1749
      %2178 = vmatmul.mubr.f32.gmra.mrb[0].mxu0 %v1612
      %v2179 = vpop.f32.mrb[0].mxu0
      %v2180 = vadd.f32 0.0, %v2179
      %v2181 = vpop.f32.mrb[0].mxu0
      %2182 = vmatprep.mubr.f32.mxu0 %v1751
      %2183 = vmatmul.mubr.f32.gmra.mrb[0].mxu0 %v1613
      %v2184 = vpop.f32.mrb[0].mxu0
      %v2185 = vadd.f32 0.0, %v2184
      %v2186 = vpop.f32.mrb[0].mxu0
      %2187 = vmatprep.mubr.f32.mxu0 %v1754
      %2188 = vmatmul.mubr.f32.gmra.mrb[0].mxu0 %v1615
      %v2189 = vpop.f32.mrb[0].mxu0
      %v2190 = vadd.f32 0.0, %v2189
      %v2191 = vpop.f32.mrb[0].mxu0
      %2192 = vmatprep.mubr.f32.mxu0 %v1756
      %2193 = vmatmul.mubr.f32.gmra.mrb[0].mxu0 %v1616
      %v2194 = vpop.f32.mrb[0].mxu0
      %v2195 = vadd.f32 0.0, %v2194
      %v2196 = vpop.f32.mrb[0].mxu0
      %2197 = vmatprep.mubr.f32.mxu0 %v1759
      %2198 = vmatmul.mubr.f32.gmra.mrb[0].mxu0 %v1618
      %v2199 = vpop.f32.mrb[0].mxu0
      %v2200 = vadd.f32 0.0, %v2199
      %v2201 = vpop.f32.mrb[0].mxu0
      %2202 = vmatprep.mubr.f32.mxu0 %v1761
      %2203 = vmatmul.mubr.f32.gmra.mrb[0].mxu0 %v1619
      %v2204 = vpop.f32.mrb[0].mxu0
      %v2205 = vadd.f32 0.0, %v2204
      %v2206 = vpop.f32.mrb[0].mxu0
      %2207 = vdwg.mxu0
      %2208 = vmatprep.subr.mxu0 0.0
      %2209 = vmatpush1.msra.mxu0 %v1967
      %2210 = vmatprep.subr.mxu0 0.0
      %2211 = vmatpush1.msra.mxu0 %v1968
      %2212 = vmatprep.subr.mxu0 0.0
      %2213 = vmatpush1.msra.mxu0 %v1969
      %2214 = vmatprep.subr.mxu0 0.0
      %2215 = vmatpush1.msra.mxu0 %v1970
      %2216 = vmatprep.subr.mxu0 0.0
      %2217 = vmatpush1.msra.mxu0 %v1971
      %2218 = vmatprep.subr.mxu0 0.0
      %2219 = vmatpush1.msra.mxu0 %v1972
      %2220 = vmatprep.subr.mxu0 0.0
      %2221 = vmatpush1.msra.mxu0 %v1973
      %2222 = vmatprep.subr.mxu0 0.0
      %2223 = vmatpush1.msra.mxu0 %v1974
      %2224 = vmatprep.subr.mxu0 0.0
      %2225 = vmatpush1.msra.mxu0 %v1975
      %2226 = vmatprep.subr.mxu0 0.0
      %2227 = vmatpush1.msra.mxu0 %v1976
      %2228 = vmatprep.subr.mxu0 0.0
      %2229 = vmatpush1.msra.mxu0 %v1977
      %2230 = vmatprep.subr.mxu0 0.0
      %2231 = vmatpush1.msra.mxu0 %v1978
      %2232 = vmatprep.subr.mxu0 0.0
      %2233 = vmatpush1.msra.mxu0 %v1979
      %2234 = vmatprep.subr.mxu0 0.0
      %2235 = vmatpush1.msra.mxu0 %v1980
      %2236 = vmatprep.subr.mxu0 0.0
      %2237 = vmatpush1.msra.mxu0 %v1981
      %2238 = vmatprep.subr.mxu0 0.0
      %2239 = vmatpush1.msra.mxu0 %v1982
      %2240 = vmatprep.subr.mxu0 0.0
      %2241 = vmatpush1.msra.mxu0 0.0
      %2242 = vmatprep.subr.mxu0 0.0
      %2243 = vmatpush1.msra.mxu0 0.0
      %2244 = vmatprep.subr.mxu0 0.0
      %2245 = vmatpush1.msra.mxu0 0.0
      %2246 = vmatprep.subr.mxu0 0.0
      %2247 = vmatpush1.msra.mxu0 0.0
      %2248 = vmatprep.subr.mxu0 0.0
      %2249 = vmatpush1.msra.mxu0 0.0
      %2250 = vmatprep.subr.mxu0 0.0
      %2251 = vmatpush1.msra.mxu0 0.0
      %2252 = vmatprep.subr.mxu0 0.0
      %2253 = vmatpush1.msra.mxu0 0.0
      %2254 = vmatprep.subr.mxu0 0.0
      %2255 = vmatpush1.msra.mxu0 0.0
      %2256 = vmatprep.subr.mxu0 0.0
      %2257 = vmatpush1.msra.mxu0 0.0
      %2258 = vmatprep.subr.mxu0 0.0
      %2259 = vmatpush1.msra.mxu0 0.0
      %2260 = vmatprep.subr.mxu0 0.0
      %2261 = vmatpush1.msra.mxu0 0.0
      %2262 = vmatprep.subr.mxu0 0.0
      %2263 = vmatpush1.msra.mxu0 0.0
      %2264 = vmatprep.subr.mxu0 0.0
      %2265 = vmatpush1.msra.mxu0 0.0
      %2266 = vmatprep.subr.mxu0 0.0
      %2267 = vmatpush1.msra.mxu0 0.0
      %2268 = vmatprep.subr.mxu0 0.0
      %2269 = vmatpush1.msra.mxu0 0.0
      %2270 = vmatprep.subr.mxu0 0.0
      %2271 = vmatpush1.msra.mxu0 0.0
      %2272 = vmatprep.mubr.f32.mxu0 0.0
      %2273 = vmatmul.mubr.f32.gmra.mrb[0].mxu0 %v1811
      %v2274 = vpop.f32.mrb[0].mxu0
      %v2275 = vadd.f32 %v2050, %v2274
      %v2276 = vpop.f32.mrb[0].mxu0
      %2277 = vmatprep.mubr.f32.mxu0 0.0
      %2278 = vmatmul.mubr.f32.gmra.mrb[0].mxu0 %v1813
      %v2279 = vpop.f32.mrb[0].mxu0
      %v2280 = vadd.f32 %v2055, %v2279
      %v2281 = vpop.f32.mrb[0].mxu0
      %2282 = vmatprep.mubr.f32.mxu0 0.0
      %2283 = vmatmul.mubr.f32.gmra.mrb[0].mxu0 %v1816
      %v2284 = vpop.f32.mrb[0].mxu0
      %v2285 = vadd.f32 %v2060, %v2284
      %v2286 = vpop.f32.mrb[0].mxu0
      %2287 = vmatprep.mubr.f32.mxu0 0.0
      %2288 = vmatmul.mubr.f32.gmra.mrb[0].mxu0 %v1818
      %v2289 = vpop.f32.mrb[0].mxu0
      %v2290 = vadd.f32 %v2065, %v2289
      %v2291 = vpop.f32.mrb[0].mxu0
      %2292 = vmatprep.mubr.f32.mxu0 0.0
      %2293 = vmatmul.mubr.f32.gmra.mrb[0].mxu0 %v1821
      %v2294 = vpop.f32.mrb[0].mxu0
      %v2295 = vadd.f32 %v2070, %v2294
      %v2296 = vpop.f32.mrb[0].mxu0
      %2297 = vmatprep.mubr.f32.mxu0 0.0
      %2298 = vmatmul.mubr.f32.gmra.mrb[0].mxu0 %v1823
      %v2299 = vpop.f32.mrb[0].mxu0
      %v2300 = vadd.f32 %v2075, %v2299
      %v2301 = vpop.f32.mrb[0].mxu0
      %2302 = vmatprep.mubr.f32.mxu0 0.0
      %2303 = vmatmul.mubr.f32.gmra.mrb[0].mxu0 %v1826
      %v2304 = vpop.f32.mrb[0].mxu0
      %v2305 = vadd.f32 %v2080, %v2304
      %v2306 = vpop.f32.mrb[0].mxu0
      %2307 = vmatprep.mubr.f32.mxu0 0.0
      %2308 = vmatmul.mubr.f32.gmra.mrb[0].mxu0 %v1828
      %v2309 = vpop.f32.mrb[0].mxu0
      %v2310 = vadd.f32 %v2085, %v2309
      %v2311 = vpop.f32.mrb[0].mxu0
      %2312 = vmatprep.mubr.f32.mxu0 0.0
      %2313 = vmatmul.mubr.f32.gmra.mrb[0].mxu0 %v1831
      %v2314 = vpop.f32.mrb[0].mxu0
      %v2315 = vadd.f32 %v2090, %v2314
      %v2316 = vpop.f32.mrb[0].mxu0
      %2317 = vmatprep.mubr.f32.mxu0 0.0
      %2318 = vmatmul.mubr.f32.gmra.mrb[0].mxu0 %v1833
      %v2319 = vpop.f32.mrb[0].mxu0
      %v2320 = vadd.f32 %v2095, %v2319
      %v2321 = vpop.f32.mrb[0].mxu0
      %2322 = vmatprep.mubr.f32.mxu0 0.0
      %2323 = vmatmul.mubr.f32.gmra.mrb[0].mxu0 %v1836
      %v2324 = vpop.f32.mrb[0].mxu0
      %v2325 = vadd.f32 %v2100, %v2324
      %v2326 = vpop.f32.mrb[0].mxu0
      %2327 = vmatprep.mubr.f32.mxu0 0.0
      %2328 = vmatmul.mubr.f32.gmra.mrb[0].mxu0 %v1838
      %v2329 = vpop.f32.mrb[0].mxu0
      %v2330 = vadd.f32 %v2105, %v2329
      %v2331 = vpop.f32.mrb[0].mxu0
      %2332 = vmatprep.mubr.f32.mxu0 0.0
      %2333 = vmatmul.mubr.f32.gmra.mrb[0].mxu0 %v1841
      %v2334 = vpop.f32.mrb[0].mxu0
      %v2335 = vadd.f32 %v2110, %v2334
      %v2336 = vpop.f32.mrb[0].mxu0
      %2337 = vmatprep.mubr.f32.mxu0 0.0
      %2338 = vmatmul.mubr.f32.gmra.mrb[0].mxu0 %v1843
      %v2339 = vpop.f32.mrb[0].mxu0
      %v2340 = vadd.f32 %v2115, %v2339
      %v2341 = vpop.f32.mrb[0].mxu0
      %2342 = vmatprep.mubr.f32.mxu0 0.0
      %2343 = vmatmul.mubr.f32.gmra.mrb[0].mxu0 %v1846
      %v2344 = vpop.f32.mrb[0].mxu0
      %v2345 = vadd.f32 %v2120, %v2344
      %v2346 = vpop.f32.mrb[0].mxu0
      %2347 = vmatprep.mubr.f32.mxu0 0.0
      %2348 = vmatmul.mubr.f32.gmra.mrb[0].mxu0 %v1848
      %v2349 = vpop.f32.mrb[0].mxu0
      %v2350 = vadd.f32 %v2125, %v2349
      %v2351 = vpop.f32.mrb[0].mxu0
      %2352 = vmatprep.mubr.f32.mxu0 0.0
      %2353 = vmatmul.mubr.f32.gmra.mrb[0].mxu0 %v1851
      %v2354 = vpop.f32.mrb[0].mxu0
      %v2355 = vadd.f32 %v2130, %v2354
      %v2356 = vpop.f32.mrb[0].mxu0
      %2357 = vmatprep.mubr.f32.mxu0 0.0
      %2358 = vmatmul.mubr.f32.gmra.mrb[0].mxu0 %v1853
      %v2359 = vpop.f32.mrb[0].mxu0
      %v2360 = vadd.f32 %v2135, %v2359
      %v2361 = vpop.f32.mrb[0].mxu0
      %2362 = vmatprep.mubr.f32.mxu0 0.0
      %2363 = vmatmul.mubr.f32.gmra.mrb[0].mxu0 %v1856
      %v2364 = vpop.f32.mrb[0].mxu0
      %v2365 = vadd.f32 %v2140, %v2364
      %v2366 = vpop.f32.mrb[0].mxu0
      %2367 = vmatprep.mubr.f32.mxu0 0.0
      %2368 = vmatmul.mubr.f32.gmra.mrb[0].mxu0 %v1858
      %v2369 = vpop.f32.mrb[0].mxu0
      %v2370 = vadd.f32 %v2145, %v2369
      %v2371 = vpop.f32.mrb[0].mxu0
      %2372 = vmatprep.mubr.f32.mxu0 0.0
      %2373 = vmatmul.mubr.f32.gmra.mrb[0].mxu0 %v1861
      %v2374 = vpop.f32.mrb[0].mxu0
      %v2375 = vadd.f32 %v2150, %v2374
      %v2376 = vpop.f32.mrb[0].mxu0
      %2377 = vmatprep.mubr.f32.mxu0 0.0
      %2378 = vmatmul.mubr.f32.gmra.mrb[0].mxu0 %v1863
      %v2379 = vpop.f32.mrb[0].mxu0
      %v2380 = vadd.f32 %v2155, %v2379
      %v2381 = vpop.f32.mrb[0].mxu0
      %2382 = vmatprep.mubr.f32.mxu0 0.0
      %2383 = vmatmul.mubr.f32.gmra.mrb[0].mxu0 %v1866
      %v2384 = vpop.f32.mrb[0].mxu0
      %v2385 = vadd.f32 %v2160, %v2384
      %v2386 = vpop.f32.mrb[0].mxu0
      %2387 = vmatprep.mubr.f32.mxu0 0.0
      %2388 = vmatmul.mubr.f32.gmra.mrb[0].mxu0 %v1868
      %v2389 = vpop.f32.mrb[0].mxu0
      %v2390 = vadd.f32 %v2165, %v2389
      %v2391 = vpop.f32.mrb[0].mxu0
      %2392 = vmatprep.mubr.f32.mxu0 0.0
      %2393 = vmatmul.mubr.f32.gmra.mrb[0].mxu0 %v1871
      %v2394 = vpop.f32.mrb[0].mxu0
      %v2395 = vadd.f32 %v2170, %v2394
      %v2396 = vpop.f32.mrb[0].mxu0
      %2397 = vmatprep.mubr.f32.mxu0 0.0
      %2398 = vmatmul.mubr.f32.gmra.mrb[0].mxu0 %v1873
      %v2399 = vpop.f32.mrb[0].mxu0
      %v2400 = vadd.f32 %v2175, %v2399
      %v2401 = vpop.f32.mrb[0].mxu0
      %2402 = vmatprep.mubr.f32.mxu0 0.0
      %2403 = vmatmul.mubr.f32.gmra.mrb[0].mxu0 %v1876
      %v2404 = vpop.f32.mrb[0].mxu0
      %v2405 = vadd.f32 %v2180, %v2404
      %v2406 = vpop.f32.mrb[0].mxu0
      %2407 = vmatprep.mubr.f32.mxu0 0.0
      %2408 = vmatmul.mubr.f32.gmra.mrb[0].mxu0 %v1878
      %v2409 = vpop.f32.mrb[0].mxu0
      %v2410 = vadd.f32 %v2185, %v2409
      %v2411 = vpop.f32.mrb[0].mxu0
      %2412 = vmatprep.mubr.f32.mxu0 0.0
      %2413 = vmatmul.mubr.f32.gmra.mrb[0].mxu0 %v1881
      %v2414 = vpop.f32.mrb[0].mxu0
      %v2415 = vadd.f32 %v2190, %v2414
      %v2416 = vpop.f32.mrb[0].mxu0
      %2417 = vmatprep.mubr.f32.mxu0 0.0
      %2418 = vmatmul.mubr.f32.gmra.mrb[0].mxu0 %v1883
      %v2419 = vpop.f32.mrb[0].mxu0
      %v2420 = vadd.f32 %v2195, %v2419
      %v2421 = vpop.f32.mrb[0].mxu0
      %2422 = vmatprep.mubr.f32.mxu0 0.0
      %2423 = vmatmul.mubr.f32.gmra.mrb[0].mxu0 %v1886
      %v2424 = vpop.f32.mrb[0].mxu0
      %v2425 = vadd.f32 %v2200, %v2424
      %v2426 = vpop.f32.mrb[0].mxu0
      %2427 = vmatprep.mubr.f32.mxu0 0.0
      %2428 = vmatmul.mubr.f32.gmra.mrb[0].mxu0 %v1888
      %v2429 = vpop.f32.mrb[0].mxu0
      %v2430 = vadd.f32 %v2205, %v2429
      %v2431 = vpop.f32.mrb[0].mxu0
      %2432 = vdwg.mxu0
      %2433 = vst [vmem:[#allocation5] sm:$0xff] %v2275
      %2434 = vst [vmem:[#allocation5 + $0x8] sm:$0xff] %v2280
      %2435 = vst [vmem:[#allocation5 + $0x10] sm:$0xff] %v2285
      %2436 = vst [vmem:[#allocation5 + $0x18] sm:$0xff] %v2290
      %2437 = vst [vmem:[#allocation5 + $0x20] sm:$0xff] %v2295
      %2438 = vst [vmem:[#allocation5 + $0x28] sm:$0xff] %v2300
      %2439 = vst [vmem:[#allocation5 + $0x30] sm:$0xff] %v2305
      %2440 = vst [vmem:[#allocation5 + $0x38] sm:$0xff] %v2310
      %2441 = vst [vmem:[#allocation5 + $0x40] sm:$0xff] %v2315
      %2442 = vst [vmem:[#allocation5 + $0x48] sm:$0xff] %v2320
      %2443 = vst [vmem:[#allocation5 + $0x50] sm:$0xff] %v2325
      %2444 = vst [vmem:[#allocation5 + $0x58] sm:$0xff] %v2330
      %2445 = vst [vmem:[#allocation5 + $0x60] sm:$0xff] %v2335
      %2446 = vst [vmem:[#allocation5 + $0x68] sm:$0xff] %v2340
      %2447 = vst [vmem:[#allocation5 + $0x70] sm:$0xff] %v2345
      %2448 = vst [vmem:[#allocation5 + $0x78] sm:$0xff] %v2350
      %2449 = vst [vmem:[#allocation5 + $0x80] sm:$0xff] %v2355
      %2450 = vst [vmem:[#allocation5 + $0x88] sm:$0xff] %v2360
      %2451 = vst [vmem:[#allocation5 + $0x90] sm:$0xff] %v2365
      %2452 = vst [vmem:[#allocation5 + $0x98] sm:$0xff] %v2370
      %2453 = vst [vmem:[#allocation5 + $0xa0] sm:$0xff] %v2375
      %2454 = vst [vmem:[#allocation5 + $0xa8] sm:$0xff] %v2380
      %2455 = vst [vmem:[#allocation5 + $0xb0] sm:$0xff] %v2385
      %2456 = vst [vmem:[#allocation5 + $0xb8] sm:$0xff] %v2390
      %2457 = vst [vmem:[#allocation5 + $0xc0] sm:$0xff] %v2395
      %2458 = vst [vmem:[#allocation5 + $0xc8] sm:$0xff] %v2400
      %2459 = vst [vmem:[#allocation5 + $0xd0] sm:$0xff] %v2405
      %2460 = vst [vmem:[#allocation5 + $0xd8] sm:$0xff] %v2410
      %2461 = vst [vmem:[#allocation5 + $0xe0] sm:$0xff] %v2415
      %2462 = vst [vmem:[#allocation5 + $0xe8] sm:$0xff] %v2420
      %2463 = vst [vmem:[#allocation5 + $0xf0] sm:$0xff] %v2425
      %2464 = vst [vmem:[#allocation5 + $0xf8] sm:$0xff] %v2430
      %v2465 = vld [vmem:[#allocation5] sm:$0xff]
      %v2466 = vld [vmem:[#allocation5 + $0x8] sm:$0xff]
      %v2467 = vld [vmem:[#allocation5 + $0x10] sm:$0xff]
      %v2468 = vld [vmem:[#allocation5 + $0x18] sm:$0xff]
      %v2469 = vld [vmem:[#allocation5 + $0x20] sm:$0xff]
      %v2470 = vld [vmem:[#allocation5 + $0x28] sm:$0xff]
      %v2471 = vld [vmem:[#allocation5 + $0x30] sm:$0xff]
      %v2472 = vld [vmem:[#allocation5 + $0x38] sm:$0xff]
      %v2473 = vld [vmem:[#allocation5 + $0x40] sm:$0xff]
      %v2474 = vld [vmem:[#allocation5 + $0x48] sm:$0xff]
      %v2475 = vld [vmem:[#allocation5 + $0x50] sm:$0xff]
      %v2476 = vld [vmem:[#allocation5 + $0x58] sm:$0xff]
      %v2477 = vld [vmem:[#allocation5 + $0x60] sm:$0xff]
      %v2478 = vld [vmem:[#allocation5 + $0x68] sm:$0xff]
      %v2479 = vld [vmem:[#allocation5 + $0x70] sm:$0xff]
      %v2480 = vld [vmem:[#allocation5 + $0x78] sm:$0xff]
      %v2481 = vld [vmem:[#allocation5 + $0x80] sm:$0xff]
      %v2482 = vld [vmem:[#allocation5 + $0x88] sm:$0xff]
      %v2483 = vld [vmem:[#allocation5 + $0x90] sm:$0xff]
      %v2484 = vld [vmem:[#allocation5 + $0x98] sm:$0xff]
      %v2485 = vld [vmem:[#allocation5 + $0xa0] sm:$0xff]
      %v2486 = vld [vmem:[#allocation5 + $0xa8] sm:$0xff]
      %v2487 = vld [vmem:[#allocation5 + $0xb0] sm:$0xff]
      %v2488 = vld [vmem:[#allocation5 + $0xb8] sm:$0xff]
      %v2489 = vld [vmem:[#allocation5 + $0xc0] sm:$0xff]
      %v2490 = vld [vmem:[#allocation5 + $0xc8] sm:$0xff]
      %v2491 = vld [vmem:[#allocation5 + $0xd0] sm:$0xff]
      %v2492 = vld [vmem:[#allocation5 + $0xd8] sm:$0xff]
      %v2493 = vld [vmem:[#allocation5 + $0xe0] sm:$0xff]
      %v2494 = vld [vmem:[#allocation5 + $0xe8] sm:$0xff]
      %v2495 = vld [vmem:[#allocation5 + $0xf0] sm:$0xff]
      %v2496 = vld [vmem:[#allocation5 + $0xf8] sm:$0xff]
      %s2497 = scalar_lea.vmem %s1, 384
      %v2498 = vld [vmem:[%s2497] sm:$0xff]
      %v2499 = vld [vmem:[%s2497 + $0x8] sm:$0xff]
      %v2500 = vld [vmem:[%s2497 + $0x10] sm:$0xff]
      %v2501 = vld [vmem:[%s2497 + $0x18] sm:$0xff]
      %v2502 = vld [vmem:[%s2497 + $0x20] sm:$0xff]
      %v2503 = vld [vmem:[%s2497 + $0x28] sm:$0xff]
      %v2504 = vld [vmem:[%s2497 + $0x30] sm:$0xff]
      %v2505 = vld [vmem:[%s2497 + $0x38] sm:$0xff]
      %v2506 = vld [vmem:[%s2497 + $0x40] sm:$0xff]
      %v2507 = vld [vmem:[%s2497 + $0x48] sm:$0xff]
      %v2508 = vld [vmem:[%s2497 + $0x50] sm:$0xff]
      %v2509 = vld [vmem:[%s2497 + $0x58] sm:$0xff]
      %v2510 = vld [vmem:[%s2497 + $0x60] sm:$0xff]
      %v2511 = vld [vmem:[%s2497 + $0x68] sm:$0xff]
      %v2512 = vld [vmem:[%s2497 + $0x70] sm:$0xff]
      %v2513 = vld [vmem:[%s2497 + $0x78] sm:$0xff]
      %v2514 = vld [vmem:[%s2497 + $0x80] sm:$0xff]
      %v2515 = vld [vmem:[%s2497 + $0x88] sm:$0xff]
      %v2516 = vld [vmem:[%s2497 + $0x90] sm:$0xff]
      %v2517 = vld [vmem:[%s2497 + $0x98] sm:$0xff]
      %v2518 = vld [vmem:[%s2497 + $0xa0] sm:$0xff]
      %v2519 = vld [vmem:[%s2497 + $0xa8] sm:$0xff]
      %v2520 = vld [vmem:[%s2497 + $0xb0] sm:$0xff]
      %v2521 = vld [vmem:[%s2497 + $0xb8] sm:$0xff]
      %v2522 = vld [vmem:[%s2497 + $0xc0] sm:$0xff]
      %v2523 = vld [vmem:[%s2497 + $0xc8] sm:$0xff]
      %v2524 = vld [vmem:[%s2497 + $0xd0] sm:$0xff]
      %v2525 = vld [vmem:[%s2497 + $0xd8] sm:$0xff]
      %v2526 = vld [vmem:[%s2497 + $0xe0] sm:$0xff]
      %v2527 = vld [vmem:[%s2497 + $0xe8] sm:$0xff]
      %v2528 = vld [vmem:[%s2497 + $0xf0] sm:$0xff]
      %v2529 = vld [vmem:[%s2497 + $0xf8] sm:$0xff]
      %v2530 = vld [vmem:[%s2497 + $0x100] sm:$0xff]
      %v2531 = vld [vmem:[%s2497 + $0x108] sm:$0xff]
      %v2532 = vld [vmem:[%s2497 + $0x110] sm:$0xff]
      %v2533 = vld [vmem:[%s2497 + $0x118] sm:$0xff]
      %v2534 = vld [vmem:[%s2497 + $0x120] sm:$0xff]
      %v2535 = vld [vmem:[%s2497 + $0x128] sm:$0xff]
      %v2536 = vld [vmem:[%s2497 + $0x130] sm:$0xff]
      %v2537 = vld [vmem:[%s2497 + $0x138] sm:$0xff]
      %v2538 = vld [vmem:[%s2497 + $0x140] sm:$0xff]
      %v2539 = vld [vmem:[%s2497 + $0x148] sm:$0xff]
      %v2540 = vld [vmem:[%s2497 + $0x150] sm:$0xff]
      %v2541 = vld [vmem:[%s2497 + $0x158] sm:$0xff]
      %v2542 = vld [vmem:[%s2497 + $0x160] sm:$0xff]
      %v2543 = vld [vmem:[%s2497 + $0x168] sm:$0xff]
      %v2544 = vld [vmem:[%s2497 + $0x170] sm:$0xff]
      %v2545 = vld [vmem:[%s2497 + $0x178] sm:$0xff]
      %2546 = vmatprep.subr.mxu0 0.0
      %2547 = vmatpush1.msra.mxu0 %v2498
      %2548 = vmatprep.subr.mxu0 0.0
      %2549 = vmatpush1.msra.mxu0 %v2499
      %2550 = vmatprep.subr.mxu0 0.0
      %2551 = vmatpush1.msra.mxu0 %v2500
      %2552 = vmatprep.subr.mxu0 0.0
      %2553 = vmatpush1.msra.mxu0 %v2501
      %2554 = vmatprep.subr.mxu0 0.0
      %2555 = vmatpush1.msra.mxu0 %v2502
      %2556 = vmatprep.subr.mxu0 0.0
      %2557 = vmatpush1.msra.mxu0 %v2503
      %2558 = vmatprep.subr.mxu0 0.0
      %2559 = vmatpush1.msra.mxu0 %v2504
      %2560 = vmatprep.subr.mxu0 0.0
      %2561 = vmatpush1.msra.mxu0 %v2505
      %2562 = vmatprep.subr.mxu0 0.0
      %2563 = vmatpush1.msra.mxu0 %v2506
      %2564 = vmatprep.subr.mxu0 0.0
      %2565 = vmatpush1.msra.mxu0 %v2507
      %2566 = vmatprep.subr.mxu0 0.0
      %2567 = vmatpush1.msra.mxu0 %v2508
      %2568 = vmatprep.subr.mxu0 0.0
      %2569 = vmatpush1.msra.mxu0 %v2509
      %2570 = vmatprep.subr.mxu0 0.0
      %2571 = vmatpush1.msra.mxu0 %v2510
      %2572 = vmatprep.subr.mxu0 0.0
      %2573 = vmatpush1.msra.mxu0 %v2511
      %2574 = vmatprep.subr.mxu0 0.0
      %2575 = vmatpush1.msra.mxu0 %v2512
      %2576 = vmatprep.subr.mxu0 0.0
      %2577 = vmatpush1.msra.mxu0 %v2513
      %2578 = vmatprep.subr.mxu0 0.0
      %2579 = vmatpush1.msra.mxu0 %v2514
      %2580 = vmatprep.subr.mxu0 0.0
      %2581 = vmatpush1.msra.mxu0 %v2515
      %2582 = vmatprep.subr.mxu0 0.0
      %2583 = vmatpush1.msra.mxu0 %v2516
      %2584 = vmatprep.subr.mxu0 0.0
      %2585 = vmatpush1.msra.mxu0 %v2517
      %2586 = vmatprep.subr.mxu0 0.0
      %2587 = vmatpush1.msra.mxu0 %v2518
      %2588 = vmatprep.subr.mxu0 0.0
      %2589 = vmatpush1.msra.mxu0 %v2519
      %2590 = vmatprep.subr.mxu0 0.0
      %2591 = vmatpush1.msra.mxu0 %v2520
      %2592 = vmatprep.subr.mxu0 0.0
      %2593 = vmatpush1.msra.mxu0 %v2521
      %2594 = vmatprep.subr.mxu0 0.0
      %2595 = vmatpush1.msra.mxu0 %v2522
      %2596 = vmatprep.subr.mxu0 0.0
      %2597 = vmatpush1.msra.mxu0 %v2523
      %2598 = vmatprep.subr.mxu0 0.0
      %2599 = vmatpush1.msra.mxu0 %v2524
      %2600 = vmatprep.subr.mxu0 0.0
      %2601 = vmatpush1.msra.mxu0 %v2525
      %2602 = vmatprep.subr.mxu0 0.0
      %2603 = vmatpush1.msra.mxu0 %v2526
      %2604 = vmatprep.subr.mxu0 0.0
      %2605 = vmatpush1.msra.mxu0 %v2527
      %2606 = vmatprep.subr.mxu0 0.0
      %2607 = vmatpush1.msra.mxu0 %v2528
      %2608 = vmatprep.subr.mxu0 0.0
      %2609 = vmatpush1.msra.mxu0 %v2529
      %2610 = vmatprep.mubr.f32.mxu0 %v1689
      %2611 = vmatmul.mubr.f32.gmra.mrb[0].mxu0 %v1576
      %v2612 = vpop.f32.mrb[0].mxu0
      %v2613 = vadd.f32 0.0, %v2612
      %v2614 = vpop.f32.mrb[0].mxu0
      %2615 = vmatprep.mubr.f32.mxu0 %v1691
      %2616 = vmatmul.mubr.f32.gmra.mrb[0].mxu0 %v1577
      %v2617 = vpop.f32.mrb[0].mxu0
      %v2618 = vadd.f32 0.0, %v2617
      %v2619 = vpop.f32.mrb[0].mxu0
      %2620 = vmatprep.mubr.f32.mxu0 %v1694
      %2621 = vmatmul.mubr.f32.gmra.mrb[0].mxu0 %v1579
      %v2622 = vpop.f32.mrb[0].mxu0
      %v2623 = vadd.f32 0.0, %v2622
      %v2624 = vpop.f32.mrb[0].mxu0
      %2625 = vmatprep.mubr.f32.mxu0 %v1696
      %2626 = vmatmul.mubr.f32.gmra.mrb[0].mxu0 %v1580
      %v2627 = vpop.f32.mrb[0].mxu0
      %v2628 = vadd.f32 0.0, %v2627
      %v2629 = vpop.f32.mrb[0].mxu0
      %2630 = vmatprep.mubr.f32.mxu0 %v1699
      %2631 = vmatmul.mubr.f32.gmra.mrb[0].mxu0 %v1582
      %v2632 = vpop.f32.mrb[0].mxu0
      %v2633 = vadd.f32 0.0, %v2632
      %v2634 = vpop.f32.mrb[0].mxu0
      %2635 = vmatprep.mubr.f32.mxu0 %v1701
      %2636 = vmatmul.mubr.f32.gmra.mrb[0].mxu0 %v1583
      %v2637 = vpop.f32.mrb[0].mxu0
      %v2638 = vadd.f32 0.0, %v2637
      %v2639 = vpop.f32.mrb[0].mxu0
      %2640 = vmatprep.mubr.f32.mxu0 %v1704
      %2641 = vmatmul.mubr.f32.gmra.mrb[0].mxu0 %v1585
      %v2642 = vpop.f32.mrb[0].mxu0
      %v2643 = vadd.f32 0.0, %v2642
      %v2644 = vpop.f32.mrb[0].mxu0
      %2645 = vmatprep.mubr.f32.mxu0 %v1706
      %2646 = vmatmul.mubr.f32.gmra.mrb[0].mxu0 %v1586
      %v2647 = vpop.f32.mrb[0].mxu0
      %v2648 = vadd.f32 0.0, %v2647
      %v2649 = vpop.f32.mrb[0].mxu0
      %2650 = vmatprep.mubr.f32.mxu0 %v1709
      %2651 = vmatmul.mubr.f32.gmra.mrb[0].mxu0 %v1588
      %v2652 = vpop.f32.mrb[0].mxu0
      %v2653 = vadd.f32 0.0, %v2652
      %v2654 = vpop.f32.mrb[0].mxu0
      %2655 = vmatprep.mubr.f32.mxu0 %v1711
      %2656 = vmatmul.mubr.f32.gmra.mrb[0].mxu0 %v1589
      %v2657 = vpop.f32.mrb[0].mxu0
      %v2658 = vadd.f32 0.0, %v2657
      %v2659 = vpop.f32.mrb[0].mxu0
      %2660 = vmatprep.mubr.f32.mxu0 %v1714
      %2661 = vmatmul.mubr.f32.gmra.mrb[0].mxu0 %v1591
      %v2662 = vpop.f32.mrb[0].mxu0
      %v2663 = vadd.f32 0.0, %v2662
      %v2664 = vpop.f32.mrb[0].mxu0
      %2665 = vmatprep.mubr.f32.mxu0 %v1716
      %2666 = vmatmul.mubr.f32.gmra.mrb[0].mxu0 %v1592
      %v2667 = vpop.f32.mrb[0].mxu0
      %v2668 = vadd.f32 0.0, %v2667
      %v2669 = vpop.f32.mrb[0].mxu0
      %2670 = vmatprep.mubr.f32.mxu0 %v1719
      %2671 = vmatmul.mubr.f32.gmra.mrb[0].mxu0 %v1594
      %v2672 = vpop.f32.mrb[0].mxu0
      %v2673 = vadd.f32 0.0, %v2672
      %v2674 = vpop.f32.mrb[0].mxu0
      %2675 = vmatprep.mubr.f32.mxu0 %v1721
      %2676 = vmatmul.mubr.f32.gmra.mrb[0].mxu0 %v1595
      %v2677 = vpop.f32.mrb[0].mxu0
      %v2678 = vadd.f32 0.0, %v2677
      %v2679 = vpop.f32.mrb[0].mxu0
      %2680 = vmatprep.mubr.f32.mxu0 %v1724
      %2681 = vmatmul.mubr.f32.gmra.mrb[0].mxu0 %v1597
      %v2682 = vpop.f32.mrb[0].mxu0
      %v2683 = vadd.f32 0.0, %v2682
      %v2684 = vpop.f32.mrb[0].mxu0
      %2685 = vmatprep.mubr.f32.mxu0 %v1726
      %2686 = vmatmul.mubr.f32.gmra.mrb[0].mxu0 %v1598
      %v2687 = vpop.f32.mrb[0].mxu0
      %v2688 = vadd.f32 0.0, %v2687
      %v2689 = vpop.f32.mrb[0].mxu0
      %2690 = vmatprep.mubr.f32.mxu0 %v1729
      %2691 = vmatmul.mubr.f32.gmra.mrb[0].mxu0 %v1600
      %v2692 = vpop.f32.mrb[0].mxu0
      %v2693 = vadd.f32 0.0, %v2692
      %v2694 = vpop.f32.mrb[0].mxu0
      %2695 = vmatprep.mubr.f32.mxu0 %v1731
      %2696 = vmatmul.mubr.f32.gmra.mrb[0].mxu0 %v1601
      %v2697 = vpop.f32.mrb[0].mxu0
      %v2698 = vadd.f32 0.0, %v2697
      %v2699 = vpop.f32.mrb[0].mxu0
      %2700 = vmatprep.mubr.f32.mxu0 %v1734
      %2701 = vmatmul.mubr.f32.gmra.mrb[0].mxu0 %v1603
      %v2702 = vpop.f32.mrb[0].mxu0
      %v2703 = vadd.f32 0.0, %v2702
      %v2704 = vpop.f32.mrb[0].mxu0
      %2705 = vmatprep.mubr.f32.mxu0 %v1736
      %2706 = vmatmul.mubr.f32.gmra.mrb[0].mxu0 %v1604
      %v2707 = vpop.f32.mrb[0].mxu0
      %v2708 = vadd.f32 0.0, %v2707
      %v2709 = vpop.f32.mrb[0].mxu0
      %2710 = vmatprep.mubr.f32.mxu0 %v1739
      %2711 = vmatmul.mubr.f32.gmra.mrb[0].mxu0 %v1606
      %v2712 = vpop.f32.mrb[0].mxu0
      %v2713 = vadd.f32 0.0, %v2712
      %v2714 = vpop.f32.mrb[0].mxu0
      %2715 = vmatprep.mubr.f32.mxu0 %v1741
      %2716 = vmatmul.mubr.f32.gmra.mrb[0].mxu0 %v1607
      %v2717 = vpop.f32.mrb[0].mxu0
      %v2718 = vadd.f32 0.0, %v2717
      %v2719 = vpop.f32.mrb[0].mxu0
      %2720 = vmatprep.mubr.f32.mxu0 %v1744
      %2721 = vmatmul.mubr.f32.gmra.mrb[0].mxu0 %v1609
      %v2722 = vpop.f32.mrb[0].mxu0
      %v2723 = vadd.f32 0.0, %v2722
      %v2724 = vpop.f32.mrb[0].mxu0
      %2725 = vmatprep.mubr.f32.mxu0 %v1746
      %2726 = vmatmul.mubr.f32.gmra.mrb[0].mxu0 %v1610
      %v2727 = vpop.f32.mrb[0].mxu0
      %v2728 = vadd.f32 0.0, %v2727
      %v2729 = vpop.f32.mrb[0].mxu0
      %2730 = vmatprep.mubr.f32.mxu0 %v1749
      %2731 = vmatmul.mubr.f32.gmra.mrb[0].mxu0 %v1612
      %v2732 = vpop.f32.mrb[0].mxu0
      %v2733 = vadd.f32 0.0, %v2732
      %v2734 = vpop.f32.mrb[0].mxu0
      %2735 = vmatprep.mubr.f32.mxu0 %v1751
      %2736 = vmatmul.mubr.f32.gmra.mrb[0].mxu0 %v1613
      %v2737 = vpop.f32.mrb[0].mxu0
      %v2738 = vadd.f32 0.0, %v2737
      %v2739 = vpop.f32.mrb[0].mxu0
      %2740 = vmatprep.mubr.f32.mxu0 %v1754
      %2741 = vmatmul.mubr.f32.gmra.mrb[0].mxu0 %v1615
      %v2742 = vpop.f32.mrb[0].mxu0
      %v2743 = vadd.f32 0.0, %v2742
      %v2744 = vpop.f32.mrb[0].mxu0
      %2745 = vmatprep.mubr.f32.mxu0 %v1756
      %2746 = vmatmul.mubr.f32.gmra.mrb[0].mxu0 %v1616
      %v2747 = vpop.f32.mrb[0].mxu0
      %v2748 = vadd.f32 0.0, %v2747
      %v2749 = vpop.f32.mrb[0].mxu0
      %2750 = vmatprep.mubr.f32.mxu0 %v1759
      %2751 = vmatmul.mubr.f32.gmra.mrb[0].mxu0 %v1618
      %v2752 = vpop.f32.mrb[0].mxu0
      %v2753 = vadd.f32 0.0, %v2752
      %v2754 = vpop.f32.mrb[0].mxu0
      %2755 = vmatprep.mubr.f32.mxu0 %v1761
      %2756 = vmatmul.mubr.f32.gmra.mrb[0].mxu0 %v1619
      %v2757 = vpop.f32.mrb[0].mxu0
      %v2758 = vadd.f32 0.0, %v2757
      %v2759 = vpop.f32.mrb[0].mxu0
      %2760 = vmatprep.mubr.f32.mxu0 %v1764
      %2761 = vmatmul.mubr.f32.gmra.mrb[0].mxu0 %v1621
      %v2762 = vpop.f32.mrb[0].mxu0
      %v2763 = vadd.f32 0.0, %v2762
      %v2764 = vpop.f32.mrb[0].mxu0
      %2765 = vmatprep.mubr.f32.mxu0 %v1766
      %2766 = vmatmul.mubr.f32.gmra.mrb[0].mxu0 %v1622
      %v2767 = vpop.f32.mrb[0].mxu0
      %v2768 = vadd.f32 0.0, %v2767
      %v2769 = vpop.f32.mrb[0].mxu0
      %2770 = vdwg.mxu0
      %2771 = vmatprep.subr.mxu0 0.0
      %2772 = vmatpush1.msra.mxu0 %v2530
      %2773 = vmatprep.subr.mxu0 0.0
      %2774 = vmatpush1.msra.mxu0 %v2531
      %2775 = vmatprep.subr.mxu0 0.0
      %2776 = vmatpush1.msra.mxu0 %v2532
      %2777 = vmatprep.subr.mxu0 0.0
      %2778 = vmatpush1.msra.mxu0 %v2533
      %2779 = vmatprep.subr.mxu0 0.0
      %2780 = vmatpush1.msra.mxu0 %v2534
      %2781 = vmatprep.subr.mxu0 0.0
      %2782 = vmatpush1.msra.mxu0 %v2535
      %2783 = vmatprep.subr.mxu0 0.0
      %2784 = vmatpush1.msra.mxu0 %v2536
      %2785 = vmatprep.subr.mxu0 0.0
      %2786 = vmatpush1.msra.mxu0 %v2537
      %2787 = vmatprep.subr.mxu0 0.0
      %2788 = vmatpush1.msra.mxu0 %v2538
      %2789 = vmatprep.subr.mxu0 0.0
      %2790 = vmatpush1.msra.mxu0 %v2539
      %2791 = vmatprep.subr.mxu0 0.0
      %2792 = vmatpush1.msra.mxu0 %v2540
      %2793 = vmatprep.subr.mxu0 0.0
      %2794 = vmatpush1.msra.mxu0 %v2541
      %2795 = vmatprep.subr.mxu0 0.0
      %2796 = vmatpush1.msra.mxu0 %v2542
      %2797 = vmatprep.subr.mxu0 0.0
      %2798 = vmatpush1.msra.mxu0 %v2543
      %2799 = vmatprep.subr.mxu0 0.0
      %2800 = vmatpush1.msra.mxu0 %v2544
      %2801 = vmatprep.subr.mxu0 0.0
      %2802 = vmatpush1.msra.mxu0 %v2545
      %2803 = vmatprep.subr.mxu0 0.0
      %2804 = vmatpush1.msra.mxu0 0.0
      %2805 = vmatprep.subr.mxu0 0.0
      %2806 = vmatpush1.msra.mxu0 0.0
      %2807 = vmatprep.subr.mxu0 0.0
      %2808 = vmatpush1.msra.mxu0 0.0
      %2809 = vmatprep.subr.mxu0 0.0
      %2810 = vmatpush1.msra.mxu0 0.0
      %2811 = vmatprep.subr.mxu0 0.0
      %2812 = vmatpush1.msra.mxu0 0.0
      %2813 = vmatprep.subr.mxu0 0.0
      %2814 = vmatpush1.msra.mxu0 0.0
      %2815 = vmatprep.subr.mxu0 0.0
      %2816 = vmatpush1.msra.mxu0 0.0
      %2817 = vmatprep.subr.mxu0 0.0
      %2818 = vmatpush1.msra.mxu0 0.0
      %2819 = vmatprep.subr.mxu0 0.0
      %2820 = vmatpush1.msra.mxu0 0.0
      %2821 = vmatprep.subr.mxu0 0.0
      %2822 = vmatpush1.msra.mxu0 0.0
      %2823 = vmatprep.subr.mxu0 0.0
      %2824 = vmatpush1.msra.mxu0 0.0
      %2825 = vmatprep.subr.mxu0 0.0
      %2826 = vmatpush1.msra.mxu0 0.0
      %2827 = vmatprep.subr.mxu0 0.0
      %2828 = vmatpush1.msra.mxu0 0.0
      %2829 = vmatprep.subr.mxu0 0.0
      %2830 = vmatpush1.msra.mxu0 0.0
      %2831 = vmatprep.subr.mxu0 0.0
      %2832 = vmatpush1.msra.mxu0 0.0
      %2833 = vmatprep.subr.mxu0 0.0
      %2834 = vmatpush1.msra.mxu0 0.0
      %2835 = vmatprep.mubr.f32.mxu0 0.0
      %2836 = vmatmul.mubr.f32.gmra.mrb[0].mxu0 %v1816
      %v2837 = vpop.f32.mrb[0].mxu0
      %v2838 = vadd.f32 %v2613, %v2837
      %v2839 = vpop.f32.mrb[0].mxu0
      %2840 = vmatprep.mubr.f32.mxu0 0.0
      %2841 = vmatmul.mubr.f32.gmra.mrb[0].mxu0 %v1818
      %v2842 = vpop.f32.mrb[0].mxu0
      %v2843 = vadd.f32 %v2618, %v2842
      %v2844 = vpop.f32.mrb[0].mxu0
      %2845 = vmatprep.mubr.f32.mxu0 0.0
      %2846 = vmatmul.mubr.f32.gmra.mrb[0].mxu0 %v1821
      %v2847 = vpop.f32.mrb[0].mxu0
      %v2848 = vadd.f32 %v2623, %v2847
      %v2849 = vpop.f32.mrb[0].mxu0
      %2850 = vmatprep.mubr.f32.mxu0 0.0
      %2851 = vmatmul.mubr.f32.gmra.mrb[0].mxu0 %v1823
      %v2852 = vpop.f32.mrb[0].mxu0
      %v2853 = vadd.f32 %v2628, %v2852
      %v2854 = vpop.f32.mrb[0].mxu0
      %2855 = vmatprep.mubr.f32.mxu0 0.0
      %2856 = vmatmul.mubr.f32.gmra.mrb[0].mxu0 %v1826
      %v2857 = vpop.f32.mrb[0].mxu0
      %v2858 = vadd.f32 %v2633, %v2857
      %v2859 = vpop.f32.mrb[0].mxu0
      %2860 = vmatprep.mubr.f32.mxu0 0.0
      %2861 = vmatmul.mubr.f32.gmra.mrb[0].mxu0 %v1828
      %v2862 = vpop.f32.mrb[0].mxu0
      %v2863 = vadd.f32 %v2638, %v2862
      %v2864 = vpop.f32.mrb[0].mxu0
      %2865 = vmatprep.mubr.f32.mxu0 0.0
      %2866 = vmatmul.mubr.f32.gmra.mrb[0].mxu0 %v1831
      %v2867 = vpop.f32.mrb[0].mxu0
      %v2868 = vadd.f32 %v2643, %v2867
      %v2869 = vpop.f32.mrb[0].mxu0
      %2870 = vmatprep.mubr.f32.mxu0 0.0
      %2871 = vmatmul.mubr.f32.gmra.mrb[0].mxu0 %v1833
      %v2872 = vpop.f32.mrb[0].mxu0
      %v2873 = vadd.f32 %v2648, %v2872
      %v2874 = vpop.f32.mrb[0].mxu0
      %2875 = vmatprep.mubr.f32.mxu0 0.0
      %2876 = vmatmul.mubr.f32.gmra.mrb[0].mxu0 %v1836
      %v2877 = vpop.f32.mrb[0].mxu0
      %v2878 = vadd.f32 %v2653, %v2877
      %v2879 = vpop.f32.mrb[0].mxu0
      %2880 = vmatprep.mubr.f32.mxu0 0.0
      %2881 = vmatmul.mubr.f32.gmra.mrb[0].mxu0 %v1838
      %v2882 = vpop.f32.mrb[0].mxu0
      %v2883 = vadd.f32 %v2658, %v2882
      %v2884 = vpop.f32.mrb[0].mxu0
      %2885 = vmatprep.mubr.f32.mxu0 0.0
      %2886 = vmatmul.mubr.f32.gmra.mrb[0].mxu0 %v1841
      %v2887 = vpop.f32.mrb[0].mxu0
      %v2888 = vadd.f32 %v2663, %v2887
      %v2889 = vpop.f32.mrb[0].mxu0
      %2890 = vmatprep.mubr.f32.mxu0 0.0
      %2891 = vmatmul.mubr.f32.gmra.mrb[0].mxu0 %v1843
      %v2892 = vpop.f32.mrb[0].mxu0
      %v2893 = vadd.f32 %v2668, %v2892
      %v2894 = vpop.f32.mrb[0].mxu0
      %2895 = vmatprep.mubr.f32.mxu0 0.0
      %2896 = vmatmul.mubr.f32.gmra.mrb[0].mxu0 %v1846
      %v2897 = vpop.f32.mrb[0].mxu0
      %v2898 = vadd.f32 %v2673, %v2897
      %v2899 = vpop.f32.mrb[0].mxu0
      %2900 = vmatprep.mubr.f32.mxu0 0.0
      %2901 = vmatmul.mubr.f32.gmra.mrb[0].mxu0 %v1848
      %v2902 = vpop.f32.mrb[0].mxu0
      %v2903 = vadd.f32 %v2678, %v2902
      %v2904 = vpop.f32.mrb[0].mxu0
      %2905 = vmatprep.mubr.f32.mxu0 0.0
      %2906 = vmatmul.mubr.f32.gmra.mrb[0].mxu0 %v1851
      %v2907 = vpop.f32.mrb[0].mxu0
      %v2908 = vadd.f32 %v2683, %v2907
      %v2909 = vpop.f32.mrb[0].mxu0
      %2910 = vmatprep.mubr.f32.mxu0 0.0
      %2911 = vmatmul.mubr.f32.gmra.mrb[0].mxu0 %v1853
      %v2912 = vpop.f32.mrb[0].mxu0
      %v2913 = vadd.f32 %v2688, %v2912
      %v2914 = vpop.f32.mrb[0].mxu0
      %2915 = vmatprep.mubr.f32.mxu0 0.0
      %2916 = vmatmul.mubr.f32.gmra.mrb[0].mxu0 %v1856
      %v2917 = vpop.f32.mrb[0].mxu0
      %v2918 = vadd.f32 %v2693, %v2917
      %v2919 = vpop.f32.mrb[0].mxu0
      %2920 = vmatprep.mubr.f32.mxu0 0.0
      %2921 = vmatmul.mubr.f32.gmra.mrb[0].mxu0 %v1858
      %v2922 = vpop.f32.mrb[0].mxu0
      %v2923 = vadd.f32 %v2698, %v2922
      %v2924 = vpop.f32.mrb[0].mxu0
      %2925 = vmatprep.mubr.f32.mxu0 0.0
      %2926 = vmatmul.mubr.f32.gmra.mrb[0].mxu0 %v1861
      %v2927 = vpop.f32.mrb[0].mxu0
      %v2928 = vadd.f32 %v2703, %v2927
      %v2929 = vpop.f32.mrb[0].mxu0
      %2930 = vmatprep.mubr.f32.mxu0 0.0
      %2931 = vmatmul.mubr.f32.gmra.mrb[0].mxu0 %v1863
      %v2932 = vpop.f32.mrb[0].mxu0
      %v2933 = vadd.f32 %v2708, %v2932
      %v2934 = vpop.f32.mrb[0].mxu0
      %2935 = vmatprep.mubr.f32.mxu0 0.0
      %2936 = vmatmul.mubr.f32.gmra.mrb[0].mxu0 %v1866
      %v2937 = vpop.f32.mrb[0].mxu0
      %v2938 = vadd.f32 %v2713, %v2937
      %v2939 = vpop.f32.mrb[0].mxu0
      %2940 = vmatprep.mubr.f32.mxu0 0.0
      %2941 = vmatmul.mubr.f32.gmra.mrb[0].mxu0 %v1868
      %v2942 = vpop.f32.mrb[0].mxu0
      %v2943 = vadd.f32 %v2718, %v2942
      %v2944 = vpop.f32.mrb[0].mxu0
      %2945 = vmatprep.mubr.f32.mxu0 0.0
      %2946 = vmatmul.mubr.f32.gmra.mrb[0].mxu0 %v1871
      %v2947 = vpop.f32.mrb[0].mxu0
      %v2948 = vadd.f32 %v2723, %v2947
      %v2949 = vpop.f32.mrb[0].mxu0
      %2950 = vmatprep.mubr.f32.mxu0 0.0
      %2951 = vmatmul.mubr.f32.gmra.mrb[0].mxu0 %v1873
      %v2952 = vpop.f32.mrb[0].mxu0
      %v2953 = vadd.f32 %v2728, %v2952
      %v2954 = vpop.f32.mrb[0].mxu0
      %2955 = vmatprep.mubr.f32.mxu0 0.0
      %2956 = vmatmul.mubr.f32.gmra.mrb[0].mxu0 %v1876
      %v2957 = vpop.f32.mrb[0].mxu0
      %v2958 = vadd.f32 %v2733, %v2957
      %v2959 = vpop.f32.mrb[0].mxu0
      %2960 = vmatprep.mubr.f32.mxu0 0.0
      %2961 = vmatmul.mubr.f32.gmra.mrb[0].mxu0 %v1878
      %v2962 = vpop.f32.mrb[0].mxu0
      %v2963 = vadd.f32 %v2738, %v2962
      %v2964 = vpop.f32.mrb[0].mxu0
      %2965 = vmatprep.mubr.f32.mxu0 0.0
      %2966 = vmatmul.mubr.f32.gmra.mrb[0].mxu0 %v1881
      %v2967 = vpop.f32.mrb[0].mxu0
      %v2968 = vadd.f32 %v2743, %v2967
      %v2969 = vpop.f32.mrb[0].mxu0
      %2970 = vmatprep.mubr.f32.mxu0 0.0
      %2971 = vmatmul.mubr.f32.gmra.mrb[0].mxu0 %v1883
      %v2972 = vpop.f32.mrb[0].mxu0
      %v2973 = vadd.f32 %v2748, %v2972
      %v2974 = vpop.f32.mrb[0].mxu0
      %2975 = vmatprep.mubr.f32.mxu0 0.0
      %2976 = vmatmul.mubr.f32.gmra.mrb[0].mxu0 %v1886
      %v2977 = vpop.f32.mrb[0].mxu0
      %v2978 = vadd.f32 %v2753, %v2977
      %v2979 = vpop.f32.mrb[0].mxu0
      %2980 = vmatprep.mubr.f32.mxu0 0.0
      %2981 = vmatmul.mubr.f32.gmra.mrb[0].mxu0 %v1888
      %v2982 = vpop.f32.mrb[0].mxu0
      %v2983 = vadd.f32 %v2758, %v2982
      %v2984 = vpop.f32.mrb[0].mxu0
      %2985 = vmatprep.mubr.f32.mxu0 0.0
      %2986 = vmatmul.mubr.f32.gmra.mrb[0].mxu0 %v1891
      %v2987 = vpop.f32.mrb[0].mxu0
      %v2988 = vadd.f32 %v2763, %v2987
      %v2989 = vpop.f32.mrb[0].mxu0
      %2990 = vmatprep.mubr.f32.mxu0 0.0
      %2991 = vmatmul.mubr.f32.gmra.mrb[0].mxu0 %v1893
      %v2992 = vpop.f32.mrb[0].mxu0
      %v2993 = vadd.f32 %v2768, %v2992
      %v2994 = vpop.f32.mrb[0].mxu0
      %2995 = vdwg.mxu0
      %v2996 = vadd.f32 %v2465, %v2838
      %v2997 = vadd.f32 %v2466, %v2843
      %v2998 = vadd.f32 %v2467, %v2848
      %v2999 = vadd.f32 %v2468, %v2853
      %v3000 = vadd.f32 %v2469, %v2858
      %v3001 = vadd.f32 %v2470, %v2863
      %v3002 = vadd.f32 %v2471, %v2868
      %v3003 = vadd.f32 %v2472, %v2873
      %v3004 = vadd.f32 %v2473, %v2878
      %v3005 = vadd.f32 %v2474, %v2883
      %v3006 = vadd.f32 %v2475, %v2888
      %v3007 = vadd.f32 %v2476, %v2893
      %v3008 = vadd.f32 %v2477, %v2898
      %v3009 = vadd.f32 %v2478, %v2903
      %v3010 = vadd.f32 %v2479, %v2908
      %v3011 = vadd.f32 %v2480, %v2913
      %v3012 = vadd.f32 %v2481, %v2918
      %v3013 = vadd.f32 %v2482, %v2923
      %v3014 = vadd.f32 %v2483, %v2928
      %v3015 = vadd.f32 %v2484, %v2933
      %v3016 = vadd.f32 %v2485, %v2938
      %v3017 = vadd.f32 %v2486, %v2943
      %v3018 = vadd.f32 %v2487, %v2948
      %v3019 = vadd.f32 %v2488, %v2953
      %v3020 = vadd.f32 %v2489, %v2958
      %v3021 = vadd.f32 %v2490, %v2963
      %v3022 = vadd.f32 %v2491, %v2968
      %v3023 = vadd.f32 %v2492, %v2973
      %v3024 = vadd.f32 %v2493, %v2978
      %v3025 = vadd.f32 %v2494, %v2983
      %v3026 = vadd.f32 %v2495, %v2988
      %v3027 = vadd.f32 %v2496, %v2993
      %3028 = vst [vmem:[#allocation5] sm:$0xff] %v2996
      %3029 = vst [vmem:[#allocation5 + $0x8] sm:$0xff] %v2997
      %3030 = vst [vmem:[#allocation5 + $0x10] sm:$0xff] %v2998
      %3031 = vst [vmem:[#allocation5 + $0x18] sm:$0xff] %v2999
      %3032 = vst [vmem:[#allocation5 + $0x20] sm:$0xff] %v3000
      %3033 = vst [vmem:[#allocation5 + $0x28] sm:$0xff] %v3001
      %3034 = vst [vmem:[#allocation5 + $0x30] sm:$0xff] %v3002
      %3035 = vst [vmem:[#allocation5 + $0x38] sm:$0xff] %v3003
      %3036 = vst [vmem:[#allocation5 + $0x40] sm:$0xff] %v3004
      %3037 = vst [vmem:[#allocation5 + $0x48] sm:$0xff] %v3005
      %3038 = vst [vmem:[#allocation5 + $0x50] sm:$0xff] %v3006
      %3039 = vst [vmem:[#allocation5 + $0x58] sm:$0xff] %v3007
      %3040 = vst [vmem:[#allocation5 + $0x60] sm:$0xff] %v3008
      %3041 = vst [vmem:[#allocation5 + $0x68] sm:$0xff] %v3009
      %3042 = vst [vmem:[#allocation5 + $0x70] sm:$0xff] %v3010
      %3043 = vst [vmem:[#allocation5 + $0x78] sm:$0xff] %v3011
      %3044 = vst [vmem:[#allocation5 + $0x80] sm:$0xff] %v3012
      %3045 = vst [vmem:[#allocation5 + $0x88] sm:$0xff] %v3013
      %3046 = vst [vmem:[#allocation5 + $0x90] sm:$0xff] %v3014
      %3047 = vst [vmem:[#allocation5 + $0x98] sm:$0xff] %v3015
      %3048 = vst [vmem:[#allocation5 + $0xa0] sm:$0xff] %v3016
      %3049 = vst [vmem:[#allocation5 + $0xa8] sm:$0xff] %v3017
      %3050 = vst [vmem:[#allocation5 + $0xb0] sm:$0xff] %v3018
      %3051 = vst [vmem:[#allocation5 + $0xb8] sm:$0xff] %v3019
      %3052 = vst [vmem:[#allocation5 + $0xc0] sm:$0xff] %v3020
      %3053 = vst [vmem:[#allocation5 + $0xc8] sm:$0xff] %v3021
      %3054 = vst [vmem:[#allocation5 + $0xd0] sm:$0xff] %v3022
      %3055 = vst [vmem:[#allocation5 + $0xd8] sm:$0xff] %v3023
      %3056 = vst [vmem:[#allocation5 + $0xe0] sm:$0xff] %v3024
      %3057 = vst [vmem:[#allocation5 + $0xe8] sm:$0xff] %v3025
      %3058 = vst [vmem:[#allocation5 + $0xf0] sm:$0xff] %v3026
      %3059 = vst [vmem:[#allocation5 + $0xf8] sm:$0xff] %v3027
      %v3060 = vld [vmem:[#allocation5] sm:$0xff]
      %v3061 = vld [vmem:[#allocation5 + $0x8] sm:$0xff]
      %v3062 = vld [vmem:[#allocation5 + $0x10] sm:$0xff]
      %v3063 = vld [vmem:[#allocation5 + $0x18] sm:$0xff]
      %v3064 = vld [vmem:[#allocation5 + $0x20] sm:$0xff]
      %v3065 = vld [vmem:[#allocation5 + $0x28] sm:$0xff]
      %v3066 = vld [vmem:[#allocation5 + $0x30] sm:$0xff]
      %v3067 = vld [vmem:[#allocation5 + $0x38] sm:$0xff]
      %v3068 = vld [vmem:[#allocation5 + $0x40] sm:$0xff]
      %v3069 = vld [vmem:[#allocation5 + $0x48] sm:$0xff]
      %v3070 = vld [vmem:[#allocation5 + $0x50] sm:$0xff]
      %v3071 = vld [vmem:[#allocation5 + $0x58] sm:$0xff]
      %v3072 = vld [vmem:[#allocation5 + $0x60] sm:$0xff]
      %v3073 = vld [vmem:[#allocation5 + $0x68] sm:$0xff]
      %v3074 = vld [vmem:[#allocation5 + $0x70] sm:$0xff]
      %v3075 = vld [vmem:[#allocation5 + $0x78] sm:$0xff]
      %v3076 = vld [vmem:[#allocation5 + $0x80] sm:$0xff]
      %v3077 = vld [vmem:[#allocation5 + $0x88] sm:$0xff]
      %v3078 = vld [vmem:[#allocation5 + $0x90] sm:$0xff]
      %v3079 = vld [vmem:[#allocation5 + $0x98] sm:$0xff]
      %v3080 = vld [vmem:[#allocation5 + $0xa0] sm:$0xff]
      %v3081 = vld [vmem:[#allocation5 + $0xa8] sm:$0xff]
      %v3082 = vld [vmem:[#allocation5 + $0xb0] sm:$0xff]
      %v3083 = vld [vmem:[#allocation5 + $0xb8] sm:$0xff]
      %v3084 = vld [vmem:[#allocation5 + $0xc0] sm:$0xff]
      %v3085 = vld [vmem:[#allocation5 + $0xc8] sm:$0xff]
      %v3086 = vld [vmem:[#allocation5 + $0xd0] sm:$0xff]
      %v3087 = vld [vmem:[#allocation5 + $0xd8] sm:$0xff]
      %v3088 = vld [vmem:[#allocation5 + $0xe0] sm:$0xff]
      %v3089 = vld [vmem:[#allocation5 + $0xe8] sm:$0xff]
      %v3090 = vld [vmem:[#allocation5 + $0xf0] sm:$0xff]
      %v3091 = vld [vmem:[#allocation5 + $0xf8] sm:$0xff]
      %s3092 = scalar_lea.vmem %s1, 768
      %v3093 = vld [vmem:[%s3092] sm:$0xff]
      %v3094 = vld [vmem:[%s3092 + $0x8] sm:$0xff]
      %v3095 = vld [vmem:[%s3092 + $0x10] sm:$0xff]
      %v3096 = vld [vmem:[%s3092 + $0x18] sm:$0xff]
      %v3097 = vld [vmem:[%s3092 + $0x20] sm:$0xff]
      %v3098 = vld [vmem:[%s3092 + $0x28] sm:$0xff]
      %v3099 = vld [vmem:[%s3092 + $0x30] sm:$0xff]
      %v3100 = vld [vmem:[%s3092 + $0x38] sm:$0xff]
      %v3101 = vld [vmem:[%s3092 + $0x40] sm:$0xff]
      %v3102 = vld [vmem:[%s3092 + $0x48] sm:$0xff]
      %v3103 = vld [vmem:[%s3092 + $0x50] sm:$0xff]
      %v3104 = vld [vmem:[%s3092 + $0x58] sm:$0xff]
      %v3105 = vld [vmem:[%s3092 + $0x60] sm:$0xff]
      %v3106 = vld [vmem:[%s3092 + $0x68] sm:$0xff]
      %v3107 = vld [vmem:[%s3092 + $0x70] sm:$0xff]
      %v3108 = vld [vmem:[%s3092 + $0x78] sm:$0xff]
      %v3109 = vld [vmem:[%s3092 + $0x80] sm:$0xff]
      %v3110 = vld [vmem:[%s3092 + $0x88] sm:$0xff]
      %v3111 = vld [vmem:[%s3092 + $0x90] sm:$0xff]
      %v3112 = vld [vmem:[%s3092 + $0x98] sm:$0xff]
      %v3113 = vld [vmem:[%s3092 + $0xa0] sm:$0xff]
      %v3114 = vld [vmem:[%s3092 + $0xa8] sm:$0xff]
      %v3115 = vld [vmem:[%s3092 + $0xb0] sm:$0xff]
      %v3116 = vld [vmem:[%s3092 + $0xb8] sm:$0xff]
      %v3117 = vld [vmem:[%s3092 + $0xc0] sm:$0xff]
      %v3118 = vld [vmem:[%s3092 + $0xc8] sm:$0xff]
      %v3119 = vld [vmem:[%s3092 + $0xd0] sm:$0xff]
      %v3120 = vld [vmem:[%s3092 + $0xd8] sm:$0xff]
      %v3121 = vld [vmem:[%s3092 + $0xe0] sm:$0xff]
      %v3122 = vld [vmem:[%s3092 + $0xe8] sm:$0xff]
      %v3123 = vld [vmem:[%s3092 + $0xf0] sm:$0xff]
      %v3124 = vld [vmem:[%s3092 + $0xf8] sm:$0xff]
      %v3125 = vld [vmem:[%s3092 + $0x100] sm:$0xff]
      %v3126 = vld [vmem:[%s3092 + $0x108] sm:$0xff]
      %v3127 = vld [vmem:[%s3092 + $0x110] sm:$0xff]
      %v3128 = vld [vmem:[%s3092 + $0x118] sm:$0xff]
      %v3129 = vld [vmem:[%s3092 + $0x120] sm:$0xff]
      %v3130 = vld [vmem:[%s3092 + $0x128] sm:$0xff]
      %v3131 = vld [vmem:[%s3092 + $0x130] sm:$0xff]
      %v3132 = vld [vmem:[%s3092 + $0x138] sm:$0xff]
      %v3133 = vld [vmem:[%s3092 + $0x140] sm:$0xff]
      %v3134 = vld [vmem:[%s3092 + $0x148] sm:$0xff]
      %v3135 = vld [vmem:[%s3092 + $0x150] sm:$0xff]
      %v3136 = vld [vmem:[%s3092 + $0x158] sm:$0xff]
      %v3137 = vld [vmem:[%s3092 + $0x160] sm:$0xff]
      %v3138 = vld [vmem:[%s3092 + $0x168] sm:$0xff]
      %v3139 = vld [vmem:[%s3092 + $0x170] sm:$0xff]
      %v3140 = vld [vmem:[%s3092 + $0x178] sm:$0xff]
      %3141 = vmatprep.subr.mxu0 0.0
      %3142 = vmatpush1.msra.mxu0 %v3093
      %3143 = vmatprep.subr.mxu0 0.0
      %3144 = vmatpush1.msra.mxu0 %v3094
      %3145 = vmatprep.subr.mxu0 0.0
      %3146 = vmatpush1.msra.mxu0 %v3095
      %3147 = vmatprep.subr.mxu0 0.0
      %3148 = vmatpush1.msra.mxu0 %v3096
      %3149 = vmatprep.subr.mxu0 0.0
      %3150 = vmatpush1.msra.mxu0 %v3097
      %3151 = vmatprep.subr.mxu0 0.0
      %3152 = vmatpush1.msra.mxu0 %v3098
      %3153 = vmatprep.subr.mxu0 0.0
      %3154 = vmatpush1.msra.mxu0 %v3099
      %3155 = vmatprep.subr.mxu0 0.0
      %3156 = vmatpush1.msra.mxu0 %v3100
      %3157 = vmatprep.subr.mxu0 0.0
      %3158 = vmatpush1.msra.mxu0 %v3101
      %3159 = vmatprep.subr.mxu0 0.0
      %3160 = vmatpush1.msra.mxu0 %v3102
      %3161 = vmatprep.subr.mxu0 0.0
      %3162 = vmatpush1.msra.mxu0 %v3103
      %3163 = vmatprep.subr.mxu0 0.0
      %3164 = vmatpush1.msra.mxu0 %v3104
      %3165 = vmatprep.subr.mxu0 0.0
      %3166 = vmatpush1.msra.mxu0 %v3105
      %3167 = vmatprep.subr.mxu0 0.0
      %3168 = vmatpush1.msra.mxu0 %v3106
      %3169 = vmatprep.subr.mxu0 0.0
      %3170 = vmatpush1.msra.mxu0 %v3107
      %3171 = vmatprep.subr.mxu0 0.0
      %3172 = vmatpush1.msra.mxu0 %v3108
      %3173 = vmatprep.subr.mxu0 0.0
      %3174 = vmatpush1.msra.mxu0 %v3109
      %3175 = vmatprep.subr.mxu0 0.0
      %3176 = vmatpush1.msra.mxu0 %v3110
      %3177 = vmatprep.subr.mxu0 0.0
      %3178 = vmatpush1.msra.mxu0 %v3111
      %3179 = vmatprep.subr.mxu0 0.0
      %3180 = vmatpush1.msra.mxu0 %v3112
      %3181 = vmatprep.subr.mxu0 0.0
      %3182 = vmatpush1.msra.mxu0 %v3113
      %3183 = vmatprep.subr.mxu0 0.0
      %3184 = vmatpush1.msra.mxu0 %v3114
      %3185 = vmatprep.subr.mxu0 0.0
      %3186 = vmatpush1.msra.mxu0 %v3115
      %3187 = vmatprep.subr.mxu0 0.0
      %3188 = vmatpush1.msra.mxu0 %v3116
      %3189 = vmatprep.subr.mxu0 0.0
      %3190 = vmatpush1.msra.mxu0 %v3117
      %3191 = vmatprep.subr.mxu0 0.0
      %3192 = vmatpush1.msra.mxu0 %v3118
      %3193 = vmatprep.subr.mxu0 0.0
      %3194 = vmatpush1.msra.mxu0 %v3119
      %3195 = vmatprep.subr.mxu0 0.0
      %3196 = vmatpush1.msra.mxu0 %v3120
      %3197 = vmatprep.subr.mxu0 0.0
      %3198 = vmatpush1.msra.mxu0 %v3121
      %3199 = vmatprep.subr.mxu0 0.0
      %3200 = vmatpush1.msra.mxu0 %v3122
      %3201 = vmatprep.subr.mxu0 0.0
      %3202 = vmatpush1.msra.mxu0 %v3123
      %3203 = vmatprep.subr.mxu0 0.0
      %3204 = vmatpush1.msra.mxu0 %v3124
      %3205 = vmatprep.mubr.f32.mxu0 %v1694
      %3206 = vmatmul.mubr.f32.gmra.mrb[0].mxu0 %v1579
      %v3207 = vpop.f32.mrb[0].mxu0
      %v3208 = vadd.f32 0.0, %v3207
      %v3209 = vpop.f32.mrb[0].mxu0
      %3210 = vmatprep.mubr.f32.mxu0 %v1696
      %3211 = vmatmul.mubr.f32.gmra.mrb[0].mxu0 %v1580
      %v3212 = vpop.f32.mrb[0].mxu0
      %v3213 = vadd.f32 0.0, %v3212
      %v3214 = vpop.f32.mrb[0].mxu0
      %3215 = vmatprep.mubr.f32.mxu0 %v1699
      %3216 = vmatmul.mubr.f32.gmra.mrb[0].mxu0 %v1582
      %v3217 = vpop.f32.mrb[0].mxu0
      %v3218 = vadd.f32 0.0, %v3217
      %v3219 = vpop.f32.mrb[0].mxu0
      %3220 = vmatprep.mubr.f32.mxu0 %v1701
      %3221 = vmatmul.mubr.f32.gmra.mrb[0].mxu0 %v1583
      %v3222 = vpop.f32.mrb[0].mxu0
      %v3223 = vadd.f32 0.0, %v3222
      %v3224 = vpop.f32.mrb[0].mxu0
      %3225 = vmatprep.mubr.f32.mxu0 %v1704
      %3226 = vmatmul.mubr.f32.gmra.mrb[0].mxu0 %v1585
      %v3227 = vpop.f32.mrb[0].mxu0
      %v3228 = vadd.f32 0.0, %v3227
      %v3229 = vpop.f32.mrb[0].mxu0
      %3230 = vmatprep.mubr.f32.mxu0 %v1706
      %3231 = vmatmul.mubr.f32.gmra.mrb[0].mxu0 %v1586
      %v3232 = vpop.f32.mrb[0].mxu0
      %v3233 = vadd.f32 0.0, %v3232
      %v3234 = vpop.f32.mrb[0].mxu0
      %3235 = vmatprep.mubr.f32.mxu0 %v1709
      %3236 = vmatmul.mubr.f32.gmra.mrb[0].mxu0 %v1588
      %v3237 = vpop.f32.mrb[0].mxu0
      %v3238 = vadd.f32 0.0, %v3237
      %v3239 = vpop.f32.mrb[0].mxu0
      %3240 = vmatprep.mubr.f32.mxu0 %v1711
      %3241 = vmatmul.mubr.f32.gmra.mrb[0].mxu0 %v1589
      %v3242 = vpop.f32.mrb[0].mxu0
      %v3243 = vadd.f32 0.0, %v3242
      %v3244 = vpop.f32.mrb[0].mxu0
      %3245 = vmatprep.mubr.f32.mxu0 %v1714
      %3246 = vmatmul.mubr.f32.gmra.mrb[0].mxu0 %v1591
      %v3247 = vpop.f32.mrb[0].mxu0
      %v3248 = vadd.f32 0.0, %v3247
      %v3249 = vpop.f32.mrb[0].mxu0
      %3250 = vmatprep.mubr.f32.mxu0 %v1716
      %3251 = vmatmul.mubr.f32.gmra.mrb[0].mxu0 %v1592
      %v3252 = vpop.f32.mrb[0].mxu0
      %v3253 = vadd.f32 0.0, %v3252
      %v3254 = vpop.f32.mrb[0].mxu0
      %3255 = vmatprep.mubr.f32.mxu0 %v1719
      %3256 = vmatmul.mubr.f32.gmra.mrb[0].mxu0 %v1594
      %v3257 = vpop.f32.mrb[0].mxu0
      %v3258 = vadd.f32 0.0, %v3257
      %v3259 = vpop.f32.mrb[0].mxu0
      %3260 = vmatprep.mubr.f32.mxu0 %v1721
      %3261 = vmatmul.mubr.f32.gmra.mrb[0].mxu0 %v1595
      %v3262 = vpop.f32.mrb[0].mxu0
      %v3263 = vadd.f32 0.0, %v3262
      %v3264 = vpop.f32.mrb[0].mxu0
      %3265 = vmatprep.mubr.f32.mxu0 %v1724
      %3266 = vmatmul.mubr.f32.gmra.mrb[0].mxu0 %v1597
      %v3267 = vpop.f32.mrb[0].mxu0
      %v3268 = vadd.f32 0.0, %v3267
      %v3269 = vpop.f32.mrb[0].mxu0
      %3270 = vmatprep.mubr.f32.mxu0 %v1726
      %3271 = vmatmul.mubr.f32.gmra.mrb[0].mxu0 %v1598
      %v3272 = vpop.f32.mrb[0].mxu0
      %v3273 = vadd.f32 0.0, %v3272
      %v3274 = vpop.f32.mrb[0].mxu0
      %3275 = vmatprep.mubr.f32.mxu0 %v1729
      %3276 = vmatmul.mubr.f32.gmra.mrb[0].mxu0 %v1600
      %v3277 = vpop.f32.mrb[0].mxu0
      %v3278 = vadd.f32 0.0, %v3277
      %v3279 = vpop.f32.mrb[0].mxu0
      %3280 = vmatprep.mubr.f32.mxu0 %v1731
      %3281 = vmatmul.mubr.f32.gmra.mrb[0].mxu0 %v1601
      %v3282 = vpop.f32.mrb[0].mxu0
      %v3283 = vadd.f32 0.0, %v3282
      %v3284 = vpop.f32.mrb[0].mxu0
      %3285 = vmatprep.mubr.f32.mxu0 %v1734
      %3286 = vmatmul.mubr.f32.gmra.mrb[0].mxu0 %v1603
      %v3287 = vpop.f32.mrb[0].mxu0
      %v3288 = vadd.f32 0.0, %v3287
      %v3289 = vpop.f32.mrb[0].mxu0
      %3290 = vmatprep.mubr.f32.mxu0 %v1736
      %3291 = vmatmul.mubr.f32.gmra.mrb[0].mxu0 %v1604
      %v3292 = vpop.f32.mrb[0].mxu0
      %v3293 = vadd.f32 0.0, %v3292
      %v3294 = vpop.f32.mrb[0].mxu0
      %3295 = vmatprep.mubr.f32.mxu0 %v1739
      %3296 = vmatmul.mubr.f32.gmra.mrb[0].mxu0 %v1606
      %v3297 = vpop.f32.mrb[0].mxu0
      %v3298 = vadd.f32 0.0, %v3297
      %v3299 = vpop.f32.mrb[0].mxu0
      %3300 = vmatprep.mubr.f32.mxu0 %v1741
      %3301 = vmatmul.mubr.f32.gmra.mrb[0].mxu0 %v1607
      %v3302 = vpop.f32.mrb[0].mxu0
      %v3303 = vadd.f32 0.0, %v3302
      %v3304 = vpop.f32.mrb[0].mxu0
      %3305 = vmatprep.mubr.f32.mxu0 %v1744
      %3306 = vmatmul.mubr.f32.gmra.mrb[0].mxu0 %v1609
      %v3307 = vpop.f32.mrb[0].mxu0
      %v3308 = vadd.f32 0.0, %v3307
      %v3309 = vpop.f32.mrb[0].mxu0
      %3310 = vmatprep.mubr.f32.mxu0 %v1746
      %3311 = vmatmul.mubr.f32.gmra.mrb[0].mxu0 %v1610
      %v3312 = vpop.f32.mrb[0].mxu0
      %v3313 = vadd.f32 0.0, %v3312
      %v3314 = vpop.f32.mrb[0].mxu0
      %3315 = vmatprep.mubr.f32.mxu0 %v1749
      %3316 = vmatmul.mubr.f32.gmra.mrb[0].mxu0 %v1612
      %v3317 = vpop.f32.mrb[0].mxu0
      %v3318 = vadd.f32 0.0, %v3317
      %v3319 = vpop.f32.mrb[0].mxu0
      %3320 = vmatprep.mubr.f32.mxu0 %v1751
      %3321 = vmatmul.mubr.f32.gmra.mrb[0].mxu0 %v1613
      %v3322 = vpop.f32.mrb[0].mxu0
      %v3323 = vadd.f32 0.0, %v3322
      %v3324 = vpop.f32.mrb[0].mxu0
      %3325 = vmatprep.mubr.f32.mxu0 %v1754
      %3326 = vmatmul.mubr.f32.gmra.mrb[0].mxu0 %v1615
      %v3327 = vpop.f32.mrb[0].mxu0
      %v3328 = vadd.f32 0.0, %v3327
      %v3329 = vpop.f32.mrb[0].mxu0
      %3330 = vmatprep.mubr.f32.mxu0 %v1756
      %3331 = vmatmul.mubr.f32.gmra.mrb[0].mxu0 %v1616
      %v3332 = vpop.f32.mrb[0].mxu0
      %v3333 = vadd.f32 0.0, %v3332
      %v3334 = vpop.f32.mrb[0].mxu0
      %3335 = vmatprep.mubr.f32.mxu0 %v1759
      %3336 = vmatmul.mubr.f32.gmra.mrb[0].mxu0 %v1618
      %v3337 = vpop.f32.mrb[0].mxu0
      %v3338 = vadd.f32 0.0, %v3337
      %v3339 = vpop.f32.mrb[0].mxu0
      %3340 = vmatprep.mubr.f32.mxu0 %v1761
      %3341 = vmatmul.mubr.f32.gmra.mrb[0].mxu0 %v1619
      %v3342 = vpop.f32.mrb[0].mxu0
      %v3343 = vadd.f32 0.0, %v3342
      %v3344 = vpop.f32.mrb[0].mxu0
      %3345 = vmatprep.mubr.f32.mxu0 %v1764
      %3346 = vmatmul.mubr.f32.gmra.mrb[0].mxu0 %v1621
      %v3347 = vpop.f32.mrb[0].mxu0
      %v3348 = vadd.f32 0.0, %v3347
      %v3349 = vpop.f32.mrb[0].mxu0
      %3350 = vmatprep.mubr.f32.mxu0 %v1766
      %3351 = vmatmul.mubr.f32.gmra.mrb[0].mxu0 %v1622
      %v3352 = vpop.f32.mrb[0].mxu0
      %v3353 = vadd.f32 0.0, %v3352
      %v3354 = vpop.f32.mrb[0].mxu0
      %3355 = vmatprep.mubr.f32.mxu0 %v1769
      %3356 = vmatmul.mubr.f32.gmra.mrb[0].mxu0 %v1624
      %v3357 = vpop.f32.mrb[0].mxu0
      %v3358 = vadd.f32 0.0, %v3357
      %v3359 = vpop.f32.mrb[0].mxu0
      %3360 = vmatprep.mubr.f32.mxu0 %v1771
      %3361 = vmatmul.mubr.f32.gmra.mrb[0].mxu0 %v1625
      %v3362 = vpop.f32.mrb[0].mxu0
      %v3363 = vadd.f32 0.0, %v3362
      %v3364 = vpop.f32.mrb[0].mxu0
      %3365 = vdwg.mxu0
      %3366 = vmatprep.subr.mxu0 0.0
      %3367 = vmatpush1.msra.mxu0 %v3125
      %3368 = vmatprep.subr.mxu0 0.0
      %3369 = vmatpush1.msra.mxu0 %v3126
      %3370 = vmatprep.subr.mxu0 0.0
      %3371 = vmatpush1.msra.mxu0 %v3127
      %3372 = vmatprep.subr.mxu0 0.0
      %3373 = vmatpush1.msra.mxu0 %v3128
      %3374 = vmatprep.subr.mxu0 0.0
      %3375 = vmatpush1.msra.mxu0 %v3129
      %3376 = vmatprep.subr.mxu0 0.0
      %3377 = vmatpush1.msra.mxu0 %v3130
      %3378 = vmatprep.subr.mxu0 0.0
      %3379 = vmatpush1.msra.mxu0 %v3131
      %3380 = vmatprep.subr.mxu0 0.0
      %3381 = vmatpush1.msra.mxu0 %v3132
      %3382 = vmatprep.subr.mxu0 0.0
      %3383 = vmatpush1.msra.mxu0 %v3133
      %3384 = vmatprep.subr.mxu0 0.0
      %3385 = vmatpush1.msra.mxu0 %v3134
      %3386 = vmatprep.subr.mxu0 0.0
      %3387 = vmatpush1.msra.mxu0 %v3135
      %3388 = vmatprep.subr.mxu0 0.0
      %3389 = vmatpush1.msra.mxu0 %v3136
      %3390 = vmatprep.subr.mxu0 0.0
      %3391 = vmatpush1.msra.mxu0 %v3137
      %3392 = vmatprep.subr.mxu0 0.0
      %3393 = vmatpush1.msra.mxu0 %v3138
      %3394 = vmatprep.subr.mxu0 0.0
      %3395 = vmatpush1.msra.mxu0 %v3139
      %3396 = vmatprep.subr.mxu0 0.0
      %3397 = vmatpush1.msra.mxu0 %v3140
      %3398 = vmatprep.subr.mxu0 0.0
      %3399 = vmatpush1.msra.mxu0 0.0
      %3400 = vmatprep.subr.mxu0 0.0
      %3401 = vmatpush1.msra.mxu0 0.0
      %3402 = vmatprep.subr.mxu0 0.0
      %3403 = vmatpush1.msra.mxu0 0.0
      %3404 = vmatprep.subr.mxu0 0.0
      %3405 = vmatpush1.msra.mxu0 0.0
      %3406 = vmatprep.subr.mxu0 0.0
      %3407 = vmatpush1.msra.mxu0 0.0
      %3408 = vmatprep.subr.mxu0 0.0
      %3409 = vmatpush1.msra.mxu0 0.0
      %3410 = vmatprep.subr.mxu0 0.0
      %3411 = vmatpush1.msra.mxu0 0.0
      %3412 = vmatprep.subr.mxu0 0.0
      %3413 = vmatpush1.msra.mxu0 0.0
      %3414 = vmatprep.subr.mxu0 0.0
      %3415 = vmatpush1.msra.mxu0 0.0
      %3416 = vmatprep.subr.mxu0 0.0
      %3417 = vmatpush1.msra.mxu0 0.0
      %3418 = vmatprep.subr.mxu0 0.0
      %3419 = vmatpush1.msra.mxu0 0.0
      %3420 = vmatprep.subr.mxu0 0.0
      %3421 = vmatpush1.msra.mxu0 0.0
      %3422 = vmatprep.subr.mxu0 0.0
      %3423 = vmatpush1.msra.mxu0 0.0
      %3424 = vmatprep.subr.mxu0 0.0
      %3425 = vmatpush1.msra.mxu0 0.0
      %3426 = vmatprep.subr.mxu0 0.0
      %3427 = vmatpush1.msra.mxu0 0.0
      %3428 = vmatprep.subr.mxu0 0.0
      %3429 = vmatpush1.msra.mxu0 0.0
      %3430 = vmatprep.mubr.f32.mxu0 0.0
      %3431 = vmatmul.mubr.f32.gmra.mrb[0].mxu0 %v1821
      %v3432 = vpop.f32.mrb[0].mxu0
      %v3433 = vadd.f32 %v3208, %v3432
      %v3434 = vpop.f32.mrb[0].mxu0
      %3435 = vmatprep.mubr.f32.mxu0 0.0
      %3436 = vmatmul.mubr.f32.gmra.mrb[0].mxu0 %v1823
      %v3437 = vpop.f32.mrb[0].mxu0
      %v3438 = vadd.f32 %v3213, %v3437
      %v3439 = vpop.f32.mrb[0].mxu0
      %3440 = vmatprep.mubr.f32.mxu0 0.0
      %3441 = vmatmul.mubr.f32.gmra.mrb[0].mxu0 %v1826
      %v3442 = vpop.f32.mrb[0].mxu0
      %v3443 = vadd.f32 %v3218, %v3442
      %v3444 = vpop.f32.mrb[0].mxu0
      %3445 = vmatprep.mubr.f32.mxu0 0.0
      %3446 = vmatmul.mubr.f32.gmra.mrb[0].mxu0 %v1828
      %v3447 = vpop.f32.mrb[0].mxu0
      %v3448 = vadd.f32 %v3223, %v3447
      %v3449 = vpop.f32.mrb[0].mxu0
      %3450 = vmatprep.mubr.f32.mxu0 0.0
      %3451 = vmatmul.mubr.f32.gmra.mrb[0].mxu0 %v1831
      %v3452 = vpop.f32.mrb[0].mxu0
      %v3453 = vadd.f32 %v3228, %v3452
      %v3454 = vpop.f32.mrb[0].mxu0
      %3455 = vmatprep.mubr.f32.mxu0 0.0
      %3456 = vmatmul.mubr.f32.gmra.mrb[0].mxu0 %v1833
      %v3457 = vpop.f32.mrb[0].mxu0
      %v3458 = vadd.f32 %v3233, %v3457
      %v3459 = vpop.f32.mrb[0].mxu0
      %3460 = vmatprep.mubr.f32.mxu0 0.0
      %3461 = vmatmul.mubr.f32.gmra.mrb[0].mxu0 %v1836
      %v3462 = vpop.f32.mrb[0].mxu0
      %v3463 = vadd.f32 %v3238, %v3462
      %v3464 = vpop.f32.mrb[0].mxu0
      %3465 = vmatprep.mubr.f32.mxu0 0.0
      %3466 = vmatmul.mubr.f32.gmra.mrb[0].mxu0 %v1838
      %v3467 = vpop.f32.mrb[0].mxu0
      %v3468 = vadd.f32 %v3243, %v3467
      %v3469 = vpop.f32.mrb[0].mxu0
      %3470 = vmatprep.mubr.f32.mxu0 0.0
      %3471 = vmatmul.mubr.f32.gmra.mrb[0].mxu0 %v1841
      %v3472 = vpop.f32.mrb[0].mxu0
      %v3473 = vadd.f32 %v3248, %v3472
      %v3474 = vpop.f32.mrb[0].mxu0
      %3475 = vmatprep.mubr.f32.mxu0 0.0
      %3476 = vmatmul.mubr.f32.gmra.mrb[0].mxu0 %v1843
      %v3477 = vpop.f32.mrb[0].mxu0
      %v3478 = vadd.f32 %v3253, %v3477
      %v3479 = vpop.f32.mrb[0].mxu0
      %3480 = vmatprep.mubr.f32.mxu0 0.0
      %3481 = vmatmul.mubr.f32.gmra.mrb[0].mxu0 %v1846
      %v3482 = vpop.f32.mrb[0].mxu0
      %v3483 = vadd.f32 %v3258, %v3482
      %v3484 = vpop.f32.mrb[0].mxu0
      %3485 = vmatprep.mubr.f32.mxu0 0.0
      %3486 = vmatmul.mubr.f32.gmra.mrb[0].mxu0 %v1848
      %v3487 = vpop.f32.mrb[0].mxu0
      %v3488 = vadd.f32 %v3263, %v3487
      %v3489 = vpop.f32.mrb[0].mxu0
      %3490 = vmatprep.mubr.f32.mxu0 0.0
      %3491 = vmatmul.mubr.f32.gmra.mrb[0].mxu0 %v1851
      %v3492 = vpop.f32.mrb[0].mxu0
      %v3493 = vadd.f32 %v3268, %v3492
      %v3494 = vpop.f32.mrb[0].mxu0
      %3495 = vmatprep.mubr.f32.mxu0 0.0
      %3496 = vmatmul.mubr.f32.gmra.mrb[0].mxu0 %v1853
      %v3497 = vpop.f32.mrb[0].mxu0
      %v3498 = vadd.f32 %v3273, %v3497
      %v3499 = vpop.f32.mrb[0].mxu0
      %3500 = vmatprep.mubr.f32.mxu0 0.0
      %3501 = vmatmul.mubr.f32.gmra.mrb[0].mxu0 %v1856
      %v3502 = vpop.f32.mrb[0].mxu0
      %v3503 = vadd.f32 %v3278, %v3502
      %v3504 = vpop.f32.mrb[0].mxu0
      %3505 = vmatprep.mubr.f32.mxu0 0.0
      %3506 = vmatmul.mubr.f32.gmra.mrb[0].mxu0 %v1858
      %v3507 = vpop.f32.mrb[0].mxu0
      %v3508 = vadd.f32 %v3283, %v3507
      %v3509 = vpop.f32.mrb[0].mxu0
      %3510 = vmatprep.mubr.f32.mxu0 0.0
      %3511 = vmatmul.mubr.f32.gmra.mrb[0].mxu0 %v1861
      %v3512 = vpop.f32.mrb[0].mxu0
      %v3513 = vadd.f32 %v3288, %v3512
      %v3514 = vpop.f32.mrb[0].mxu0
      %3515 = vmatprep.mubr.f32.mxu0 0.0
      %3516 = vmatmul.mubr.f32.gmra.mrb[0].mxu0 %v1863
      %v3517 = vpop.f32.mrb[0].mxu0
      %v3518 = vadd.f32 %v3293, %v3517
      %v3519 = vpop.f32.mrb[0].mxu0
      %3520 = vmatprep.mubr.f32.mxu0 0.0
      %3521 = vmatmul.mubr.f32.gmra.mrb[0].mxu0 %v1866
      %v3522 = vpop.f32.mrb[0].mxu0
      %v3523 = vadd.f32 %v3298, %v3522
      %v3524 = vpop.f32.mrb[0].mxu0
      %3525 = vmatprep.mubr.f32.mxu0 0.0
      %3526 = vmatmul.mubr.f32.gmra.mrb[0].mxu0 %v1868
      %v3527 = vpop.f32.mrb[0].mxu0
      %v3528 = vadd.f32 %v3303, %v3527
      %v3529 = vpop.f32.mrb[0].mxu0
      %3530 = vmatprep.mubr.f32.mxu0 0.0
      %3531 = vmatmul.mubr.f32.gmra.mrb[0].mxu0 %v1871
      %v3532 = vpop.f32.mrb[0].mxu0
      %v3533 = vadd.f32 %v3308, %v3532
      %v3534 = vpop.f32.mrb[0].mxu0
      %3535 = vmatprep.mubr.f32.mxu0 0.0
      %3536 = vmatmul.mubr.f32.gmra.mrb[0].mxu0 %v1873
      %v3537 = vpop.f32.mrb[0].mxu0
      %v3538 = vadd.f32 %v3313, %v3537
      %v3539 = vpop.f32.mrb[0].mxu0
      %3540 = vmatprep.mubr.f32.mxu0 0.0
      %3541 = vmatmul.mubr.f32.gmra.mrb[0].mxu0 %v1876
      %v3542 = vpop.f32.mrb[0].mxu0
      %v3543 = vadd.f32 %v3318, %v3542
      %v3544 = vpop.f32.mrb[0].mxu0
      %3545 = vmatprep.mubr.f32.mxu0 0.0
      %3546 = vmatmul.mubr.f32.gmra.mrb[0].mxu0 %v1878
      %v3547 = vpop.f32.mrb[0].mxu0
      %v3548 = vadd.f32 %v3323, %v3547
      %v3549 = vpop.f32.mrb[0].mxu0
      %3550 = vmatprep.mubr.f32.mxu0 0.0
      %3551 = vmatmul.mubr.f32.gmra.mrb[0].mxu0 %v1881
      %v3552 = vpop.f32.mrb[0].mxu0
      %v3553 = vadd.f32 %v3328, %v3552
      %v3554 = vpop.f32.mrb[0].mxu0
      %3555 = vmatprep.mubr.f32.mxu0 0.0
      %3556 = vmatmul.mubr.f32.gmra.mrb[0].mxu0 %v1883
      %v3557 = vpop.f32.mrb[0].mxu0
      %v3558 = vadd.f32 %v3333, %v3557
      %v3559 = vpop.f32.mrb[0].mxu0
      %3560 = vmatprep.mubr.f32.mxu0 0.0
      %3561 = vmatmul.mubr.f32.gmra.mrb[0].mxu0 %v1886
      %v3562 = vpop.f32.mrb[0].mxu0
      %v3563 = vadd.f32 %v3338, %v3562
      %v3564 = vpop.f32.mrb[0].mxu0
      %3565 = vmatprep.mubr.f32.mxu0 0.0
      %3566 = vmatmul.mubr.f32.gmra.mrb[0].mxu0 %v1888
      %v3567 = vpop.f32.mrb[0].mxu0
      %v3568 = vadd.f32 %v3343, %v3567
      %v3569 = vpop.f32.mrb[0].mxu0
      %3570 = vmatprep.mubr.f32.mxu0 0.0
      %3571 = vmatmul.mubr.f32.gmra.mrb[0].mxu0 %v1891
      %v3572 = vpop.f32.mrb[0].mxu0
      %v3573 = vadd.f32 %v3348, %v3572
      %v3574 = vpop.f32.mrb[0].mxu0
      %3575 = vmatprep.mubr.f32.mxu0 0.0
      %3576 = vmatmul.mubr.f32.gmra.mrb[0].mxu0 %v1893
      %v3577 = vpop.f32.mrb[0].mxu0
      %v3578 = vadd.f32 %v3353, %v3577
      %v3579 = vpop.f32.mrb[0].mxu0
      %3580 = vmatprep.mubr.f32.mxu0 0.0
      %3581 = vmatmul.mubr.f32.gmra.mrb[0].mxu0 %v1896
      %v3582 = vpop.f32.mrb[0].mxu0
      %v3583 = vadd.f32 %v3358, %v3582
      %v3584 = vpop.f32.mrb[0].mxu0
      %3585 = vmatprep.mubr.f32.mxu0 0.0
      %3586 = vmatmul.mubr.f32.gmra.mrb[0].mxu0 %v1898
      %v3587 = vpop.f32.mrb[0].mxu0
      %v3588 = vadd.f32 %v3363, %v3587
      %v3589 = vpop.f32.mrb[0].mxu0
      %3590 = vdwg.mxu0
      %v3591 = vadd.f32 %v3060, %v3433
      %v3592 = vadd.f32 %v3061, %v3438
      %v3593 = vadd.f32 %v3062, %v3443
      %v3594 = vadd.f32 %v3063, %v3448
      %v3595 = vadd.f32 %v3064, %v3453
      %v3596 = vadd.f32 %v3065, %v3458
      %v3597 = vadd.f32 %v3066, %v3463
      %v3598 = vadd.f32 %v3067, %v3468
      %v3599 = vadd.f32 %v3068, %v3473
      %v3600 = vadd.f32 %v3069, %v3478
      %v3601 = vadd.f32 %v3070, %v3483
      %v3602 = vadd.f32 %v3071, %v3488
      %v3603 = vadd.f32 %v3072, %v3493
      %v3604 = vadd.f32 %v3073, %v3498
      %v3605 = vadd.f32 %v3074, %v3503
      %v3606 = vadd.f32 %v3075, %v3508
      %v3607 = vadd.f32 %v3076, %v3513
      %v3608 = vadd.f32 %v3077, %v3518
      %v3609 = vadd.f32 %v3078, %v3523
      %v3610 = vadd.f32 %v3079, %v3528
      %v3611 = vadd.f32 %v3080, %v3533
      %v3612 = vadd.f32 %v3081, %v3538
      %v3613 = vadd.f32 %v3082, %v3543
      %v3614 = vadd.f32 %v3083, %v3548
      %v3615 = vadd.f32 %v3084, %v3553
      %v3616 = vadd.f32 %v3085, %v3558
      %v3617 = vadd.f32 %v3086, %v3563
      %v3618 = vadd.f32 %v3087, %v3568
      %v3619 = vadd.f32 %v3088, %v3573
      %v3620 = vadd.f32 %v3089, %v3578
      %v3621 = vadd.f32 %v3090, %v3583
      %v3622 = vadd.f32 %v3091, %v3588
      %3623 = vst [vmem:[#allocation5] sm:$0xff] %v3591
      %3624 = vst [vmem:[#allocation5 + $0x8] sm:$0xff] %v3592
      %3625 = vst [vmem:[#allocation5 + $0x10] sm:$0xff] %v3593
      %3626 = vst [vmem:[#allocation5 + $0x18] sm:$0xff] %v3594
      %3627 = vst [vmem:[#allocation5 + $0x20] sm:$0xff] %v3595
      %3628 = vst [vmem:[#allocation5 + $0x28] sm:$0xff] %v3596
      %3629 = vst [vmem:[#allocation5 + $0x30] sm:$0xff] %v3597
      %3630 = vst [vmem:[#allocation5 + $0x38] sm:$0xff] %v3598
      %3631 = vst [vmem:[#allocation5 + $0x40] sm:$0xff] %v3599
      %3632 = vst [vmem:[#allocation5 + $0x48] sm:$0xff] %v3600
      %3633 = vst [vmem:[#allocation5 + $0x50] sm:$0xff] %v3601
      %3634 = vst [vmem:[#allocation5 + $0x58] sm:$0xff] %v3602
      %3635 = vst [vmem:[#allocation5 + $0x60] sm:$0xff] %v3603
      %3636 = vst [vmem:[#allocation5 + $0x68] sm:$0xff] %v3604
      %3637 = vst [vmem:[#allocation5 + $0x70] sm:$0xff] %v3605
      %3638 = vst [vmem:[#allocation5 + $0x78] sm:$0xff] %v3606
      %3639 = vst [vmem:[#allocation5 + $0x80] sm:$0xff] %v3607
      %3640 = vst [vmem:[#allocation5 + $0x88] sm:$0xff] %v3608
      %3641 = vst [vmem:[#allocation5 + $0x90] sm:$0xff] %v3609
      %3642 = vst [vmem:[#allocation5 + $0x98] sm:$0xff] %v3610
      %3643 = vst [vmem:[#allocation5 + $0xa0] sm:$0xff] %v3611
      %3644 = vst [vmem:[#allocation5 + $0xa8] sm:$0xff] %v3612
      %3645 = vst [vmem:[#allocation5 + $0xb0] sm:$0xff] %v3613
      %3646 = vst [vmem:[#allocation5 + $0xb8] sm:$0xff] %v3614
      %3647 = vst [vmem:[#allocation5 + $0xc0] sm:$0xff] %v3615
      %3648 = vst [vmem:[#allocation5 + $0xc8] sm:$0xff] %v3616
      %3649 = vst [vmem:[#allocation5 + $0xd0] sm:$0xff] %v3617
      %3650 = vst [vmem:[#allocation5 + $0xd8] sm:$0xff] %v3618
      %3651 = vst [vmem:[#allocation5 + $0xe0] sm:$0xff] %v3619
      %3652 = vst [vmem:[#allocation5 + $0xe8] sm:$0xff] %v3620
      %3653 = vst [vmem:[#allocation5 + $0xf0] sm:$0xff] %v3621
      %3654 = vst [vmem:[#allocation5 + $0xf8] sm:$0xff] %v3622
      %v3655 = vld [vmem:[#allocation5] sm:$0xff]
      %v3656 = vld [vmem:[#allocation5 + $0x8] sm:$0xff]
      %v3657 = vld [vmem:[#allocation5 + $0x10] sm:$0xff]
      %v3658 = vld [vmem:[#allocation5 + $0x18] sm:$0xff]
      %v3659 = vld [vmem:[#allocation5 + $0x20] sm:$0xff]
      %v3660 = vld [vmem:[#allocation5 + $0x28] sm:$0xff]
      %v3661 = vld [vmem:[#allocation5 + $0x30] sm:$0xff]
      %v3662 = vld [vmem:[#allocation5 + $0x38] sm:$0xff]
      %v3663 = vld [vmem:[#allocation5 + $0x40] sm:$0xff]
      %v3664 = vld [vmem:[#allocation5 + $0x48] sm:$0xff]
      %v3665 = vld [vmem:[#allocation5 + $0x50] sm:$0xff]
      %v3666 = vld [vmem:[#allocation5 + $0x58] sm:$0xff]
      %v3667 = vld [vmem:[#allocation5 + $0x60] sm:$0xff]
      %v3668 = vld [vmem:[#allocation5 + $0x68] sm:$0xff]
      %v3669 = vld [vmem:[#allocation5 + $0x70] sm:$0xff]
      %v3670 = vld [vmem:[#allocation5 + $0x78] sm:$0xff]
      %v3671 = vld [vmem:[#allocation5 + $0x80] sm:$0xff]
      %v3672 = vld [vmem:[#allocation5 + $0x88] sm:$0xff]
      %v3673 = vld [vmem:[#allocation5 + $0x90] sm:$0xff]
      %v3674 = vld [vmem:[#allocation5 + $0x98] sm:$0xff]
      %v3675 = vld [vmem:[#allocation5 + $0xa0] sm:$0xff]
      %v3676 = vld [vmem:[#allocation5 + $0xa8] sm:$0xff]
      %v3677 = vld [vmem:[#allocation5 + $0xb0] sm:$0xff]
      %v3678 = vld [vmem:[#allocation5 + $0xb8] sm:$0xff]
      %v3679 = vld [vmem:[#allocation5 + $0xc0] sm:$0xff]
      %v3680 = vld [vmem:[#allocation5 + $0xc8] sm:$0xff]
      %v3681 = vld [vmem:[#allocation5 + $0xd0] sm:$0xff]
      %v3682 = vld [vmem:[#allocation5 + $0xd8] sm:$0xff]
      %v3683 = vld [vmem:[#allocation5 + $0xe0] sm:$0xff]
      %v3684 = vld [vmem:[#allocation5 + $0xe8] sm:$0xff]
      %v3685 = vld [vmem:[#allocation5 + $0xf0] sm:$0xff]
      %v3686 = vld [vmem:[#allocation5 + $0xf8] sm:$0xff]
      %v3687 = vld [vmem:[%s2] sm:$0x1]
      %v3689 = vlaneseq
      %v3690 = vshrl.u32 %v3689, 7
      %v3691 = vsub.s32 0, %v3690
      %v3692 = vrot.slane %v3687, %v3691
      %v3694 = vadd.f32 %v3655, %v3692
      %v3695 = vadd.f32 %v3656, %v3692
      %v3696 = vadd.f32 %v3657, %v3692
      %v3697 = vadd.f32 %v3658, %v3692
      %v3698 = vadd.f32 %v3659, %v3692
      %v3699 = vadd.f32 %v3660, %v3692
      %v3700 = vadd.f32 %v3661, %v3692
      %v3701 = vadd.f32 %v3662, %v3692
      %v3702 = vadd.f32 %v3663, %v3692
      %v3703 = vadd.f32 %v3664, %v3692
      %v3704 = vadd.f32 %v3665, %v3692
      %v3705 = vadd.f32 %v3666, %v3692
      %v3706 = vadd.f32 %v3667, %v3692
      %v3707 = vadd.f32 %v3668, %v3692
      %v3708 = vadd.f32 %v3669, %v3692
      %v3709 = vadd.f32 %v3670, %v3692
      %v3710 = vadd.f32 %v3671, %v3692
      %v3711 = vadd.f32 %v3672, %v3692
      %v3712 = vadd.f32 %v3673, %v3692
      %v3713 = vadd.f32 %v3674, %v3692
      %v3714 = vadd.f32 %v3675, %v3692
      %v3715 = vadd.f32 %v3676, %v3692
      %v3716 = vadd.f32 %v3677, %v3692
      %v3717 = vadd.f32 %v3678, %v3692
      %v3718 = vadd.f32 %v3679, %v3692
      %v3719 = vadd.f32 %v3680, %v3692
      %v3720 = vadd.f32 %v3681, %v3692
      %v3721 = vadd.f32 %v3682, %v3692
      %v3722 = vadd.f32 %v3683, %v3692
      %v3723 = vadd.f32 %v3684, %v3692
      %v3724 = vadd.f32 %v3685, %v3692
      %v3725 = vadd.f32 %v3686, %v3692
      %3726 = vst [vmem:[%s241] sm:$0xff] %v3694
      %3727 = vst [vmem:[%s241 + $0x8] sm:$0xff] %v3695
      %3728 = vst [vmem:[%s241 + $0x10] sm:$0xff] %v3696
      %3729 = vst [vmem:[%s241 + $0x18] sm:$0xff] %v3697
      %3730 = vst [vmem:[%s241 + $0x20] sm:$0xff] %v3698
      %3731 = vst [vmem:[%s241 + $0x28] sm:$0xff] %v3699
      %3732 = vst [vmem:[%s241 + $0x30] sm:$0xff] %v3700
      %3733 = vst [vmem:[%s241 + $0x38] sm:$0xff] %v3701
      %3734 = vst [vmem:[%s241 + $0x40] sm:$0xff] %v3702
      %3735 = vst [vmem:[%s241 + $0x48] sm:$0xff] %v3703
      %3736 = vst [vmem:[%s241 + $0x50] sm:$0xff] %v3704
      %3737 = vst [vmem:[%s241 + $0x58] sm:$0xff] %v3705
      %3738 = vst [vmem:[%s241 + $0x60] sm:$0xff] %v3706
      %3739 = vst [vmem:[%s241 + $0x68] sm:$0xff] %v3707
      %3740 = vst [vmem:[%s241 + $0x70] sm:$0xff] %v3708
      %3741 = vst [vmem:[%s241 + $0x78] sm:$0xff] %v3709
      %3742 = vst [vmem:[%s241 + $0x80] sm:$0xff] %v3710
      %3743 = vst [vmem:[%s241 + $0x88] sm:$0xff] %v3711
      %3744 = vst [vmem:[%s241 + $0x90] sm:$0xff] %v3712
      %3745 = vst [vmem:[%s241 + $0x98] sm:$0xff] %v3713
      %3746 = vst [vmem:[%s241 + $0xa0] sm:$0xff] %v3714
      %3747 = vst [vmem:[%s241 + $0xa8] sm:$0xff] %v3715
      %3748 = vst [vmem:[%s241 + $0xb0] sm:$0xff] %v3716
      %3749 = vst [vmem:[%s241 + $0xb8] sm:$0xff] %v3717
      %3750 = vst [vmem:[%s241 + $0xc0] sm:$0xff] %v3718
      %3751 = vst [vmem:[%s241 + $0xc8] sm:$0xff] %v3719
      %3752 = vst [vmem:[%s241 + $0xd0] sm:$0xff] %v3720
      %3753 = vst [vmem:[%s241 + $0xd8] sm:$0xff] %v3721
      %3754 = vst [vmem:[%s241 + $0xe0] sm:$0xff] %v3722
      %3755 = vst [vmem:[%s241 + $0xe8] sm:$0xff] %v3723
      %3756 = vst [vmem:[%s241 + $0xf0] sm:$0xff] %v3724
      %3757 = vst [vmem:[%s241 + $0xf8] sm:$0xff] %v3725
      %v3758 = vadd.f32 %v3694, %v3695
      %v3759 = vadd.f32 %v3758, %v3696
      %v3760 = vadd.f32 %v3759, %v3697
      %v3761 = vadd.f32 %v3760, %v3698
      %v3762 = vadd.f32 %v3761, %v3699
      %v3763 = vadd.f32 %v3762, %v3700
      %v3764 = vadd.f32 %v3763, %v3701
      %v3765 = vadd.f32 %v3764, %v3702
      %v3766 = vadd.f32 %v3765, %v3703
      %v3767 = vadd.f32 %v3766, %v3704
      %v3768 = vadd.f32 %v3767, %v3705
      %v3769 = vadd.f32 %v3768, %v3706
      %v3770 = vadd.f32 %v3769, %v3707
      %v3771 = vadd.f32 %v3770, %v3708
      %v3772 = vadd.f32 %v3771, %v3709
      %v3773 = vadd.f32 %v3772, %v3710
      %v3774 = vadd.f32 %v3773, %v3711
      %v3775 = vadd.f32 %v3774, %v3712
      %v3776 = vadd.f32 %v3775, %v3713
      %v3777 = vadd.f32 %v3776, %v3714
      %v3778 = vadd.f32 %v3777, %v3715
      %v3779 = vadd.f32 %v3778, %v3716
      %v3780 = vadd.f32 %v3779, %v3717
      %v3781 = vadd.f32 %v3780, %v3718
      %v3782 = vadd.f32 %v3781, %v3719
      %v3783 = vadd.f32 %v3782, %v3720
      %v3784 = vadd.f32 %v3783, %v3721
      %v3785 = vadd.f32 %v3784, %v3722
      %v3786 = vadd.f32 %v3785, %v3723
      %v3787 = vadd.f32 %v3786, %v3724
      %v3788 = vadd.f32 %v3787, %v3725
      %v3789 = vrot.slane %v3788, 4
      %v3790 = vadd.f32 %v3788, %v3789
      %v3791 = vrot.slane %v3790, 2
      %v3792 = vadd.f32 %v3790, %v3791
      %v3793 = vrot.slane %v3792, 1
      %v3794 = vadd.f32 %v3792, %v3793
      %v3795 = vmul.f32 %v3694, %v3694
      %v3796 = vmul.f32 %v3695, %v3695
      %v3797 = vmul.f32 %v3696, %v3696
      %v3798 = vmul.f32 %v3697, %v3697
      %v3799 = vmul.f32 %v3698, %v3698
      %v3800 = vmul.f32 %v3699, %v3699
      %v3801 = vmul.f32 %v3700, %v3700
      %v3802 = vmul.f32 %v3701, %v3701
      %v3803 = vmul.f32 %v3702, %v3702
      %v3804 = vmul.f32 %v3703, %v3703
      %v3805 = vmul.f32 %v3704, %v3704
      %v3806 = vmul.f32 %v3705, %v3705
      %v3807 = vmul.f32 %v3706, %v3706
      %v3808 = vmul.f32 %v3707, %v3707
      %v3809 = vmul.f32 %v3708, %v3708
      %v3810 = vmul.f32 %v3709, %v3709
      %v3811 = vmul.f32 %v3710, %v3710
      %v3812 = vmul.f32 %v3711, %v3711
      %v3813 = vmul.f32 %v3712, %v3712
      %v3814 = vmul.f32 %v3713, %v3713
      %v3815 = vmul.f32 %v3714, %v3714
      %v3816 = vmul.f32 %v3715, %v3715
      %v3817 = vmul.f32 %v3716, %v3716
      %v3818 = vmul.f32 %v3717, %v3717
      %v3819 = vmul.f32 %v3718, %v3718
      %v3820 = vmul.f32 %v3719, %v3719
      %v3821 = vmul.f32 %v3720, %v3720
      %v3822 = vmul.f32 %v3721, %v3721
      %v3823 = vmul.f32 %v3722, %v3722
      %v3824 = vmul.f32 %v3723, %v3723
      %v3825 = vmul.f32 %v3724, %v3724
      %v3826 = vmul.f32 %v3725, %v3725
      %v3827 = vadd.f32 %v3795, %v3796
      %v3828 = vadd.f32 %v3827, %v3797
      %v3829 = vadd.f32 %v3828, %v3798
      %v3830 = vadd.f32 %v3829, %v3799
      %v3831 = vadd.f32 %v3830, %v3800
      %v3832 = vadd.f32 %v3831, %v3801
      %v3833 = vadd.f32 %v3832, %v3802
      %v3834 = vadd.f32 %v3833, %v3803
      %v3835 = vadd.f32 %v3834, %v3804
      %v3836 = vadd.f32 %v3835, %v3805
      %v3837 = vadd.f32 %v3836, %v3806
      %v3838 = vadd.f32 %v3837, %v3807
      %v3839 = vadd.f32 %v3838, %v3808
      %v3840 = vadd.f32 %v3839, %v3809
      %v3841 = vadd.f32 %v3840, %v3810
      %v3842 = vadd.f32 %v3841, %v3811
      %v3843 = vadd.f32 %v3842, %v3812
      %v3844 = vadd.f32 %v3843, %v3813
      %v3845 = vadd.f32 %v3844, %v3814
      %v3846 = vadd.f32 %v3845, %v3815
      %v3847 = vadd.f32 %v3846, %v3816
      %v3848 = vadd.f32 %v3847, %v3817
      %v3849 = vadd.f32 %v3848, %v3818
      %v3850 = vadd.f32 %v3849, %v3819
      %v3851 = vadd.f32 %v3850, %v3820
      %v3852 = vadd.f32 %v3851, %v3821
      %v3853 = vadd.f32 %v3852, %v3822
      %v3854 = vadd.f32 %v3853, %v3823
      %v3855 = vadd.f32 %v3854, %v3824
      %v3856 = vadd.f32 %v3855, %v3825
      %v3857 = vadd.f32 %v3856, %v3826
      %v3858 = vrot.slane %v3857, 4
      %v3859 = vadd.f32 %v3857, %v3858
      %v3860 = vrot.slane %v3859, 2
      %v3861 = vadd.f32 %v3859, %v3860
      %v3862 = vrot.slane %v3861, 1
      %v3863 = vadd.f32 %v3861, %v3862
      %vm3864 = vcmask 1040384
      %v3865 = vsel %vm3864, %v3794, %v3863
      %3866 = vst [vmem:[%s249] sm:$0x3] %v3865
      %s3867 = smul.u32 16, %s23
      %p3868 = scmp.lt.s32.totalorder %s22, 1
      %s3869 = scalar_select %p3868, %s22, 1
      %p3870 = scmp.lt.s32.totalorder %s3867, 15
      %s3871 = scalar_select %p3870, %s3867, 15
      %s3872 = smul.addr %s3871, 2
      %s3873 = smul.addr %s3869, 32
      %s3874 = sadd.s32 %s3872, %s3873
      %s3875 = smul.addr %s3874, 8
      %s3876 = scalar_lea.vmem %s5, %s3875
      %p3877 = scmp.lt.s32.totalorder %s22, 1
      %s3878 = scalar_select %p3877, %s22, 1
      %p3879 = scmp.lt.s32.totalorder %s23, 0
      %s3880 = scalar_select %p3879, %s23, 0
      %s3881 = sadd.s32 %s3880, %s3878
      %s3882 = smul.addr %s3881, 2
      %s3883 = scalar_lea.vmem %s6, %s3882
      // Predicated region
      $region74: #{double_conv.4} parent=35 // pred_check
        %p3884 = pneg %p134
      $region75: #{double_conv.4} parent=35 // pred_check_branch
        %3886 = sbr.rel (%p3884) target = $region77
      $region76: #{double_conv.4} parent=35 // pred_region
        %s3887 = smul.u32 16, %s23
      $region77: #{double_conv.4} parent=35 // pred_fallthru
        _
      // Predicated region
      $region78: #{double_conv.4} parent=35 // pred_check
        %p3888 = pneg %p162
      $region79: #{double_conv.4} parent=35 // pred_check_branch
        %3890 = sbr.rel (%p3888) target = $region81
      $region80: #{double_conv.4} parent=35 // pred_region
        _
      $region81: #{double_conv.4} parent=35 // pred_fallthru
        _
    $region36: #{double_conv.4} parent=5 // pred_fallthru
      _
    %p3891 = scmp.le.s32.totalorder 2, %s13
    // Predicated region
    $region82: #{double_conv.4} parent=5 // pred_check
      %p3892 = pneg %p3891
    $region83: #{double_conv.4} parent=5 // pred_check_branch
      %3894 = sbr.rel (%p3892) target = $region85
    $region84: #{double_conv.4} parent=5 // pred_region
      %s3895 = ssub.s32 %s13, 2
      // Predicated region
      $region86: #{double_conv.4} parent=84 // pred_check
        %p3896 = pneg %p140
      $region87: #{double_conv.4} parent=84 // pred_check_branch
        %3898 = sbr.rel (%p3896) target = $region89
      $region88: #{double_conv.4} parent=84 // pred_region
        %s3899 = smul.u32 16, %s25
        %p3900 = scmp.lt.s32.totalorder %s24, 1
        %s3901 = scalar_select %p3900, %s24, 1
        %p3902 = scmp.lt.s32.totalorder %s3899, 15
        %s3903 = scalar_select %p3902, %s3899, 15
        %s3904 = smul.addr %s3903, 2
        %s3905 = smul.addr %s3901, 32
        %s3906 = sadd.s32 %s3904, %s3905
        %s3907 = smul.addr %s3906, 8
        %s3908 = scalar_lea.vmem %s5, %s3907
      $region89: #{double_conv.4} parent=84 // pred_fallthru
        _
      // Predicated region
      $region90: #{double_conv.4} parent=84 // pred_check
        %p3909 = pneg %p168
      $region91: #{double_conv.4} parent=84 // pred_check_branch
        %3911 = sbr.rel (%p3909) target = $region93
      $region92: #{double_conv.4} parent=84 // pred_region
        %p3912 = scmp.lt.s32.totalorder %s24, 1
        %s3913 = scalar_select %p3912, %s24, 1
        %p3914 = scmp.lt.s32.totalorder %s25, 0
        %s3915 = scalar_select %p3914, %s25, 0
        %s3916 = sadd.s32 %s3915, %s3913
        %s3917 = smul.addr %s3916, 2
        %s3918 = scalar_lea.vmem %s6, %s3917
      $region93: #{double_conv.4} parent=84 // pred_fallthru
        _
    $region85: #{double_conv.4} parent=5 // pred_fallthru
      _
  $region6: #{double_conv.4} parent=0 // loop_footer
    %s17 = sadd.s32 1, %s13
  $region7: #{double_conv.4} parent=0 // loop_footer_branch
    %12 = sbr.rel target = $region3
  $region8: #{double_conv.4} parent=0 // loop_exit
    _
  %3919 = vsyncmov [#allocation4]
  %s3920 = vpop.sfrf %3919
  %p3921 = scmp.eq.s32.totalorder %s3920, 0
  %p3922 = pneg %p3921
  %3924 = shalt.err (%p3922)
  %s3925 = scalar_lea.sflag [#allocation4], 1
  %3926 = vsyncmov %s3925
  %s3927 = vpop.sfrf %3926
  %p3928 = scmp.eq.s32.totalorder %s3927, 0
  %p3929 = pneg %p3928
  %3931 = shalt.err (%p3929)

</llo_original>
